<compile_context>
chip_gen: v7x
topology: tpu7x:2x2x1
jax: 0.10.0
libtpu: 0.0.40
codegen_flags: <defaults>
</compile_context>

<pallas_src>
import functools

import jax
import jax.numpy as jnp
from jax.experimental import pallas as pl
from jax.experimental.pallas import tpu as pltpu

IN_DIM = 28 * 28 * 3      # 2352
HID = 176
LATENT = 30
OUT_DIM = 28 * 28 * 4     # 3136
HID_PAD = 256             # 176 padded to a lane multiple
BN_EPS = 1e-5


def _round_up(n, m):
    return ((n + m - 1) // m) * m


def _recoder_kernel(
    x_ref,
    w1_ref, g1_ref, be1_ref,
    w23_ref, g2_ref, be2_ref,
    w4_ref, b4_ref,
    out_ref,
    h1_ref, h2_ref, bn1_ref, bn2_ref,
    *, tb: int, b_real: int, b_pad: int,
):
    phase = pl.program_id(0)
    tile = pl.program_id(1)
    row0 = pl.multiple_of(tile * tb, tb)
    inv_b = 1.0 / float(b_real)   # biased variance divisor (torch training mode)

    @pl.when((phase == 0) & (tile == 0))
    def _init_stats():
        bn1_ref[...] = jnp.zeros_like(bn1_ref)
        bn2_ref[...] = jnp.zeros_like(bn2_ref)

    # ---- phase 0: h1_raw = x @ W1 ; accumulate BN1 sum / sum-of-squares -------
    @pl.when(phase == 0)
    def _phase0():
        h1 = jnp.dot(x_ref[...], w1_ref[...], preferred_element_type=jnp.float32)
        # Stats are accumulated from the f32 MXU result (before the bf16 store),
        # so the full-batch statistics stay exact in f32.
        h1_ref[pl.ds(row0, tb), :] = h1.astype(h1_ref.dtype)
        # Padded batch rows of x are all-zero and the pre-BN bias was dropped, so
        # they contribute exactly zero to both sums -> no masking needed here.
        bn1_ref[0:1, :] += jnp.sum(h1, axis=0, keepdims=True)
        bn1_ref[1:2, :] += jnp.sum(h1 * h1, axis=0, keepdims=True)

    # ---- phase 1: BN1 + ReLU -> h2_raw = a1 @ W23 ; accumulate BN2 stats ------
    @pl.when(phase == 1)
    def _phase1():
        @pl.when(tile == 0)
        def _fold_bn1():
            # NOTE: single-pass variance (E[x^2] - mean^2) in f32; fine at these
            # scales (mean << std); revisit (shifted accumulation) for huge B.
            mean = bn1_ref[0:1, :] * inv_b
            var = bn1_ref[1:2, :] * inv_b - mean * mean
            scale = jax.lax.rsqrt(var + BN_EPS) * g1_ref[...]
            bn1_ref[0:1, :] = scale
            bn1_ref[1:2, :] = be1_ref[...] - mean * scale

        scale = bn1_ref[0:1, :]
        shift = bn1_ref[1:2, :]
        h1 = h1_ref[pl.ds(row0, tb), :].astype(jnp.float32)
        a1 = jnp.maximum(h1 * scale + shift, 0.0).astype(jnp.bfloat16)
        # Encoder-out / decoder-in linears folded offline: W23 = W2 @ W3 (b2 is a
        # constant per-feature pre-BN offset, cancelled by BN2's mean subtraction).
        h2 = jnp.dot(a1, w23_ref[...], preferred_element_type=jnp.float32)
        h2_ref[pl.ds(row0, tb), :] = h2.astype(h2_ref.dtype)
        # After BN1's shift the padded batch rows are no longer zero, so mask
        # them out of the full-batch statistics for BN2.
        if b_pad != b_real:
            rows = row0 + jax.lax.broadcasted_iota(jnp.int32, (tb, 1), 0)
            h2 = jnp.where(rows < b_real, h2, 0.0)
        bn2_ref[0:1, :] += jnp.sum(h2, axis=0, keepdims=True)
        bn2_ref[1:2, :] += jnp.sum(h2 * h2, axis=0, keepdims=True)

    # ---- phase 2: BN2 + ReLU -> out = a2 @ W4 + b4 -----------------------------
    @pl.when(phase == 2)
    def _phase2():
        @pl.when(tile == 0)
        def _fold_bn2():
            mean = bn2_ref[0:1, :] * inv_b
            var = bn2_ref[1:2, :] * inv_b - mean * mean
            scale = jax.lax.rsqrt(var + BN_EPS) * g2_ref[...]
            bn2_ref[0:1, :] = scale
            bn2_ref[1:2, :] = be2_ref[...] - mean * scale

        scale = bn2_ref[0:1, :]
        shift = bn2_ref[1:2, :]
        h2 = h2_ref[pl.ds(row0, tb), :].astype(jnp.float32)
        a2 = jnp.maximum(h2 * scale + shift, 0.0).astype(jnp.bfloat16)
        out = jnp.dot(a2, w4_ref[...], preferred_element_type=jnp.float32) + b4_ref[...]
        out_ref[...] = out.astype(out_ref.dtype)


_RESIDENT_MAP = lambda p, i: (0, 0)


def _resident_spec(shape):
    """VMEM-resident parameter: constant index_map. Single-buffer it (the block
    never changes, so double buffering only wastes VMEM); gracefully fall back on
    jax versions without BlockSpec.pipeline_mode."""
    if hasattr(pl, "Buffered"):
        try:
            return pl.BlockSpec(shape, _RESIDENT_MAP, pipeline_mode=pl.Buffered(1))
        except TypeError:
            pass
    return pl.BlockSpec(shape, _RESIDENT_MAP)


def recoder_forward(x, prep, *, tile_rows=256, out_dtype=jnp.float32):
    """x: (B, 2352) float32 -> (B, 3136) `out_dtype`. `prep` = prepare_params(...).

    tile_rows: batch rows per tile. 256 is safe everywhere; 512 is worthwhile on
    v6e / v7x (fewer grid steps, larger DMAs) now that the weights are
    single-buffered and vmem_limit_bytes is set explicitly.
    out_dtype: pass jnp.bfloat16 if downstream tolerates it — the f32 output
    write is the single largest HBM stream of this memory-bound kernel."""
    B = x.shape[0]
    TB = min(tile_rows, _round_up(B, 8))
    B_pad = _round_up(B, TB)
    n_tiles = B_pad // TB
    last_tile = n_tiles - 1

    xb = x.astype(jnp.bfloat16)
    if B_pad != B:
        xb = jnp.pad(xb, ((0, B_pad - B), (0, 0)))

    kernel = functools.partial(_recoder_kernel, tb=TB, b_real=B, b_pad=B_pad)

    # x is only consumed in phase 0; for phases >= 1 keep the LAST phase-0 block
    # index so no re-DMA is triggered at the phase boundary.
    x_map = lambda p, i: (jnp.where(p == 0, i, last_tile), 0)
    # out is only written in phase 2. During phases 0-1 the block index is pinned
    # to 0 and never changes, so the (uninitialized) output buffer is never
    # flushed: the first writeback happens only after phase-2 tile 0 writes it.
    out_map = lambda p, i: (jnp.where(p == 2, i, 0), 0)

    # --- explicit VMEM budget (v5e's default scoped limit is only 16 MiB) -------
    out_isz = jnp.dtype(out_dtype).itemsize
    stream_bytes = 2 * TB * IN_DIM * 2 + 2 * TB * OUT_DIM * out_isz      # x + out (double-buffered)
    weight_bytes = ((IN_DIM * HID_PAD + HID_PAD * HID_PAD + HID_PAD * OUT_DIM) * 2
                    + (OUT_DIM + 4 * HID_PAD) * 4)                       # bf16 weights + f32 biases
    scratch_bytes = 2 * B_pad * HID_PAD * 2 + 4 * HID_PAD * 4            # bf16 h1/h2 + BN stats
    # Budget weights at 2x in case single-buffering is not honored; +25% headroom.
    need = stream_bytes + 2 * weight_bytes + scratch_bytes
    vmem_limit = min(int(need * 1.25) + (2 << 20), 56 * (1 << 20))

    grid_spec = pltpu.PrefetchScalarGridSpec(
        num_scalar_prefetch=0,
        grid=(3, n_tiles),
        in_specs=[
            pl.BlockSpec((TB, IN_DIM), x_map),
            _resident_spec((IN_DIM, HID_PAD)),     # w1  (bf16)
            _resident_spec((1, HID_PAD)),          # gamma1
            _resident_spec((1, HID_PAD)),          # beta1
            _resident_spec((HID_PAD, HID_PAD)),    # w23 = w2 @ w3 (bf16)
            _resident_spec((1, HID_PAD)),          # gamma2
            _resident_spec((1, HID_PAD)),          # beta2
            _resident_spec((HID_PAD, OUT_DIM)),    # w4  (bf16)
            _resident_spec((1, OUT_DIM)),          # b4  (f32)
        ],
        out_specs=pl.BlockSpec((TB, OUT_DIM), out_map),
        scratch_shapes=[
            pltpu.VMEM((B_pad, HID_PAD), jnp.bfloat16),  # pre-BN encoder hidden (full batch)
            pltpu.VMEM((B_pad, HID_PAD), jnp.bfloat16),  # pre-BN decoder hidden (full batch)
            pltpu.VMEM((2, HID_PAD), jnp.float32),       # BN1 [sum; sumsq] -> [scale; shift]
            pltpu.VMEM((2, HID_PAD), jnp.float32),       # BN2 [sum; sumsq] -> [scale; shift]
        ],
    )

    out = pl.pallas_call(
        kernel,
        out_shape=jax.ShapeDtypeStruct((B_pad, OUT_DIM), out_dtype),
        grid_spec=grid_spec,
        compiler_params=pltpu.CompilerParams(
            # Full-batch BatchNorm statistics are accumulated sequentially across
            # batch tiles, so both axes must stay sequential; megacore sharding of
            # the batch would yield per-shard stats != PyTorch. See core_map TODO.
            dimension_semantics=("arbitrary", "arbitrary"),
            vmem_limit_bytes=vmem_limit,
        ),
    )(
        xb,
        prep["w1"], prep["g1"], prep["be1"],
        prep["w23"], prep["g2"], prep["be2"],
        prep["w4"], prep["b4"],
    )
    return out[:B] if B_pad != B else out


def init_params(key):
    """Deterministic synthetic parameters (PyTorch-default-like init), f32, with
    Linear weights already stored transposed as (in_features, out_features)."""
    ks = jax.random.split(key, 8)

    def linear(kw, kb, fan_in, fan_out):
        bound = 1.0 / jnp.sqrt(jnp.float32(fan_in))
        w = jax.random.uniform(kw, (fan_in, fan_out), jnp.float32, -bound, bound)
        b = jax.random.uniform(kb, (1, fan_out), jnp.float32, -bound, bound)
        return w, b

    w1, b1 = linear(ks[0], ks[1], IN_DIM, HID)
    w2, b2 = linear(ks[2], ks[3], HID, LATENT)
    w3, b3 = linear(ks[4], ks[5], LATENT, HID)
    w4, b4 = linear(ks[6], ks[7], HID, OUT_DIM)
    ones = jnp.ones((1, HID), jnp.float32)
    zeros = jnp.zeros((1, HID), jnp.float32)
    return {
        "w1": w1, "b1": b1, "g1": ones, "be1": zeros,
        "w2": w2, "b2": b2,
        "w3": w3, "b3": b3, "g2": ones, "be2": zeros,
        "w4": w4, "b4": b4,
    }


def prepare_params(params):
    """Wrapper-side weight prep:
      * zero-pad hidden features to a lane multiple (176 -> 256); IN/OUT dims are
        deliberately left unpadded (full-extent blocks).
      * fold the encoder-out / decoder-in linears: W23 = W2 @ W3 (176x176); the
        rank-30 structure is preserved by the product.
      * drop b1 / b3 / b2: each contributes a constant per-feature offset to a
        pre-BatchNorm activation, which training-mode BatchNorm's batch-mean
        subtraction cancels exactly.
      * cast matmul weights to bf16 (halves weight HBM traffic, doubles MXU rate)."""
    def pad2(a, rows, cols):
        return jnp.pad(a, ((0, rows - a.shape[0]), (0, cols - a.shape[1])))

    w23 = params["w2"] @ params["w3"]                      # (176, 176) in f32
    return {
        "w1": pad2(params["w1"], IN_DIM, HID_PAD).astype(jnp.bfloat16),
        "g1": pad2(params["g1"], 1, HID_PAD),
        "be1": pad2(params["be1"], 1, HID_PAD),
        "w23": pad2(w23, HID_PAD, HID_PAD).astype(jnp.bfloat16),
        "g2": pad2(params["g2"], 1, HID_PAD),
        "be2": pad2(params["be2"], 1, HID_PAD),
        "w4": pad2(params["w4"], HID_PAD, OUT_DIM).astype(jnp.bfloat16),
        "b4": params["b4"],
    }


def reference_forward(x, p):
    """Pure-JAX reference of the PyTorch forward (training-mode BatchNorm1d).
    Matmul operands are rounded through bf16 to mirror the kernel's MXU input
    precision; BN / bias math stays f32. Includes b1 / b2 / b3 and the unfused
    W2 / W3 (the kernel drops the biases and fuses W23 — this reference checks
    that those transformations are semantics-preserving)."""
    bf = lambda v: v.astype(jnp.bfloat16).astype(jnp.float32)

    def bn_relu(h, g, be):
        m = jnp.mean(h, axis=0, keepdims=True)
        v = jnp.mean((h - m) ** 2, axis=0, keepdims=True)
        return jnp.maximum((h - m) * jax.lax.rsqrt(v + BN_EPS) * g + be, 0.0)

    h1 = bn_relu(bf(x) @ bf(p["w1"]) + p["b1"], p["g1"], p["be1"])
    z = bf(h1) @ bf(p["w2"]) + p["b2"]
    h2 = bn_relu(bf(z) @ bf(p["w3"]) + p["b3"], p["g2"], p["be2"])
    return bf(h2) @ bf(p["w4"]) + p["b4"]


if __name__ == "__main__":
    key = jax.random.PRNGKey(0)
    kx, kp = jax.random.split(key)

    # Small but multi-tile batch: tile_rows=128 -> 3 batch tiles, and 320 < 384
    # also exercises the padded-row masking of the BatchNorm statistics.
    B = 320
    x = jax.random.normal(kx, (B, IN_DIM), jnp.float32)

    params = init_params(kp)
    prep = prepare_params(params)

    out = jax.block_until_ready(recoder_forward(x, prep, tile_rows=128))
    ref = reference_forward(x, params)

    assert out.shape == (B, OUT_DIM), out.shape
    assert bool(jnp.all(jnp.isfinite(out)))
    max_err = float(jnp.max(jnp.abs(out - ref)))
    assert jnp.allclose(out, ref, atol=6e-2, rtol=6e-2), f"mismatch vs reference: {max_err}"

    print("KERNEL_OK")
</pallas_src>

<mosaic_0001>
module attributes {stable_mosaic.version = 11 : i64} {
  func.func @_recoder_kernel(%arg0: i32, %arg1: i32, %arg2: memref<128x2352xbf16, #tpu.memory_space<vmem>>, %arg3: memref<2352x256xbf16, #tpu.memory_space<vmem>>, %arg4: memref<1x256xf32, #tpu.memory_space<vmem>>, %arg5: memref<1x256xf32, #tpu.memory_space<vmem>>, %arg6: memref<256x256xbf16, #tpu.memory_space<vmem>>, %arg7: memref<1x256xf32, #tpu.memory_space<vmem>>, %arg8: memref<1x256xf32, #tpu.memory_space<vmem>>, %arg9: memref<256x3136xbf16, #tpu.memory_space<vmem>>, %arg10: memref<1x3136xf32, #tpu.memory_space<vmem>>, %arg11: memref<128x3136xf32, #tpu.memory_space<vmem>>, %arg12: memref<384x256xbf16, #tpu.memory_space<vmem>>, %arg13: memref<384x256xbf16, #tpu.memory_space<vmem>>, %arg14: memref<2x256xf32, #tpu.memory_space<vmem>>, %arg15: memref<2x256xf32, #tpu.memory_space<vmem>>) attributes {dimension_semantics = [#tpu.dimension_semantics<arbitrary>, #tpu.dimension_semantics<arbitrary>], iteration_bounds = array<i64: 3, 3>, scalar_prefetch = 0 : i64, scratch_operands = 4 : i64, tpu.core_type = #tpu.core_type<tc>, window_params = [{transform_indices = @transform_0, window_bounds = array<i64: 128, 2352>}, {pipeline_mode = #tpu.pipeline_mode<synchronous>, transform_indices = @transform_1, window_bounds = array<i64: 2352, 256>}, {pipeline_mode = #tpu.pipeline_mode<synchronous>, transform_indices = @transform_2, window_bounds = array<i64: 1, 256>}, {pipeline_mode = #tpu.pipeline_mode<synchronous>, transform_indices = @transform_3, window_bounds = array<i64: 1, 256>}, {pipeline_mode = #tpu.pipeline_mode<synchronous>, transform_indices = @transform_4, window_bounds = array<i64: 256, 256>}, {pipeline_mode = #tpu.pipeline_mode<synchronous>, transform_indices = @transform_5, window_bounds = array<i64: 1, 256>}, {pipeline_mode = #tpu.pipeline_mode<synchronous>, transform_indices = @transform_6, window_bounds = array<i64: 1, 256>}, {pipeline_mode = #tpu.pipeline_mode<synchronous>, transform_indices = @transform_7, window_bounds = array<i64: 256, 3136>}, {pipeline_mode = #tpu.pipeline_mode<synchronous>, transform_indices = @transform_8, window_bounds = array<i64: 1, 3136>}, {transform_indices = @transform_9, window_bounds = array<i64: 128, 3136>}]} {
    %c128_i32 = arith.constant 128 : i32
    %0 = arith.muli %arg1, %c128_i32 : i32
    %1 = tpu.assume_multiple %0, 128 : i32
    %c0_i32 = arith.constant 0 : i32
    %2 = arith.cmpi eq, %arg0, %c0_i32 : i32
    %c0_i32_0 = arith.constant 0 : i32
    %3 = arith.cmpi eq, %arg1, %c0_i32_0 : i32
    %4 = arith.andi %2, %3 : i1
    %5 = arith.extui %4 : i1 to i32
    %c0_i32_1 = arith.constant 0 : i32
    %6 = arith.cmpi ne, %5, %c0_i32_1 : i32
    scf.if %6 {
      %cst = arith.constant 0.000000e+00 : f32
      %16 = vector.broadcast %cst : f32 to vector<2x256xf32>
      %c0 = arith.constant 0 : index
      %c0_6 = arith.constant 0 : index
      %17 = vector.load %arg14[%c0, %c0_6] : memref<2x256xf32, #tpu.memory_space<vmem>>, vector<2x256xf32>
      tpu.vector_store %arg14[%c0, %c0_6], %16 {strides = array<i32>} : memref<2x256xf32, #tpu.memory_space<vmem>>, vector<2x256xf32>,
      %cst_7 = arith.constant 0.000000e+00 : f32
      %18 = vector.broadcast %cst_7 : f32 to vector<2x256xf32>
      %c0_8 = arith.constant 0 : index
      %c0_9 = arith.constant 0 : index
      %19 = vector.load %arg15[%c0_8, %c0_9] : memref<2x256xf32, #tpu.memory_space<vmem>>, vector<2x256xf32>
      tpu.vector_store %arg15[%c0_8, %c0_9], %18 {strides = array<i32>} : memref<2x256xf32, #tpu.memory_space<vmem>>, vector<2x256xf32>,
    } else {
    }
    %c0_i32_2 = arith.constant 0 : i32
    %7 = arith.cmpi eq, %arg0, %c0_i32_2 : i32
    %8 = arith.extui %7 : i1 to i32
    %c0_i32_3 = arith.constant 0 : i32
    %9 = arith.cmpi ne, %8, %c0_i32_3 : i32
    scf.if %9 {
      %c0 = arith.constant 0 : index
      %c0_6 = arith.constant 0 : index
      %16 = vector.load %arg2[%c0, %c0_6] : memref<128x2352xbf16, #tpu.memory_space<vmem>>, vector<128x2352xbf16>
      %c0_7 = arith.constant 0 : index
      %c0_8 = arith.constant 0 : index
      %17 = vector.load %arg3[%c0_7, %c0_8] : memref<2352x256xbf16, #tpu.memory_space<vmem>>, vector<2352x256xbf16>
      %cst = arith.constant dense<0.000000e+00> : vector<128x256xf32>
      %18 = tpu.matmul %16, %17, %cst {dimension_numbers = #tpu.dot_dimension_numbers<[1], [0], [0], [1], [0, 0, 1, 1], [], []>} : vector<128x2352xbf16>, vector<2352x256xbf16>, vector<128x256xf32> -> vector<128x256xf32>
      %19 = arith.truncf %18 : vector<128x256xf32> to vector<128x256xbf16>
      %20 = arith.index_cast %1 : i32 to index
      %c0_9 = arith.constant 0 : index
      %21 = vector.load %arg12[%20, %c0_9] : memref<384x256xbf16, #tpu.memory_space<vmem>>, vector<128x256xbf16>
      tpu.vector_store %arg12[%20, %c0_9], %19 {strides = array<i32>} : memref<384x256xbf16, #tpu.memory_space<vmem>>, vector<128x256xbf16>,
      %c0_10 = arith.constant 0 : index
      %c0_11 = arith.constant 0 : index
      %22 = vector.load %arg14[%c0_10, %c0_11] : memref<2x256xf32, #tpu.memory_space<vmem>>, vector<1x256xf32>
      %cst_12 = arith.constant dense<0.000000e+00> : vector<256xf32>
      %23 = vector.multi_reduction <add>, %18, %cst_12 [0] : vector<128x256xf32> to vector<256xf32>
      %24 = vector.shape_cast %23 : vector<256xf32> to vector<1x256xf32>
      %25 = arith.addf %22, %24 : vector<1x256xf32>
      %c0_13 = arith.constant 0 : index
      %c0_14 = arith.constant 0 : index
      %26 = vector.load %arg14[%c0_13, %c0_14] : memref<2x256xf32, #tpu.memory_space<vmem>>, vector<1x256xf32>
      tpu.vector_store %arg14[%c0_13, %c0_14], %25 {strides = array<i32>} : memref<2x256xf32, #tpu.memory_space<vmem>>, vector<1x256xf32>,
      %c1 = arith.constant 1 : index
      %c0_15 = arith.constant 0 : index
      %27 = vector.load %arg14[%c1, %c0_15] : memref<2x256xf32, #tpu.memory_space<vmem>>, vector<1x256xf32>
      %28 = arith.mulf %18, %18 : vector<128x256xf32>
      %cst_16 = arith.constant dense<0.000000e+00> : vector<256xf32>
      %29 = vector.multi_reduction <add>, %28, %cst_16 [0] : vector<128x256xf32> to vector<256xf32>
      %30 = vector.shape_cast %29 : vector<256xf32> to vector<1x256xf32>
      %31 = arith.addf %27, %30 : vector<1x256xf32>
      %c1_17 = arith.constant 1 : index
      %c0_18 = arith.constant 0 : index
      %32 = vector.load %arg14[%c1_17, %c0_18] : memref<2x256xf32, #tpu.memory_space<vmem>>, vector<1x256xf32>
      tpu.vector_store %arg14[%c1_17, %c0_18], %31 {strides = array<i32>} : memref<2x256xf32, #tpu.memory_space<vmem>>, vector<1x256xf32>,
    } else {
    }
    %c1_i32 = arith.constant 1 : i32
    %10 = arith.cmpi eq, %arg0, %c1_i32 : i32
    %11 = arith.extui %10 : i1 to i32
    %c0_i32_4 = arith.constant 0 : i32
    %12 = arith.cmpi ne, %11, %c0_i32_4 : i32
    scf.if %12 {
      %c0_i32_6 = arith.constant 0 : i32
      %16 = arith.cmpi eq, %arg1, %c0_i32_6 : i32
      %17 = arith.extui %16 : i1 to i32
      %c0_i32_7 = arith.constant 0 : i32
      %18 = arith.cmpi ne, %17, %c0_i32_7 : i32
      scf.if %18 {
        %c0_26 = arith.constant 0 : index
        %c0_27 = arith.constant 0 : index
        %56 = vector.load %arg14[%c0_26, %c0_27] : memref<2x256xf32, #tpu.memory_space<vmem>>, vector<1x256xf32>
        %cst_28 = arith.constant 3.125000e-03 : f32
        %57 = vector.broadcast %cst_28 : f32 to vector<1x256xf32>
        %58 = arith.mulf %56, %57 : vector<1x256xf32>
        %c1_29 = arith.constant 1 : index
        %c0_30 = arith.constant 0 : index
        %59 = vector.load %arg14[%c1_29, %c0_30] : memref<2x256xf32, #tpu.memory_space<vmem>>, vector<1x256xf32>
        %cst_31 = arith.constant 3.125000e-03 : f32
        %60 = vector.broadcast %cst_31 : f32 to vector<1x256xf32>
        %61 = arith.mulf %59, %60 : vector<1x256xf32>
        %62 = arith.mulf %58, %58 : vector<1x256xf32>
        %63 = arith.subf %61, %62 : vector<1x256xf32>
        %cst_32 = arith.constant 9.99999974E-6 : f32
        %64 = vector.broadcast %cst_32 : f32 to vector<1x256xf32>
        %65 = arith.addf %63, %64 : vector<1x256xf32>
        %66 = math.rsqrt %65 : vector<1x256xf32>
        %c0_33 = arith.constant 0 : index
        %c0_34 = arith.constant 0 : index
        %67 = vector.load %arg4[%c0_33, %c0_34] : memref<1x256xf32, #tpu.memory_space<vmem>>, vector<1x256xf32>
        %68 = arith.mulf %66, %67 : vector<1x256xf32>
        %c0_35 = arith.constant 0 : index
        %c0_36 = arith.constant 0 : index
        %69 = vector.load %arg14[%c0_35, %c0_36] : memref<2x256xf32, #tpu.memory_space<vmem>>, vector<1x256xf32>
        tpu.vector_store %arg14[%c0_35, %c0_36], %68 {strides = array<i32>} : memref<2x256xf32, #tpu.memory_space<vmem>>, vector<1x256xf32>,
        %c0_37 = arith.constant 0 : index
        %c0_38 = arith.constant 0 : index
        %70 = vector.load %arg5[%c0_37, %c0_38] : memref<1x256xf32, #tpu.memory_space<vmem>>, vector<1x256xf32>
        %71 = arith.mulf %58, %68 : vector<1x256xf32>
        %72 = arith.subf %70, %71 : vector<1x256xf32>
        %c1_39 = arith.constant 1 : index
        %c0_40 = arith.constant 0 : index
        %73 = vector.load %arg14[%c1_39, %c0_40] : memref<2x256xf32, #tpu.memory_space<vmem>>, vector<1x256xf32>
        tpu.vector_store %arg14[%c1_39, %c0_40], %72 {strides = array<i32>} : memref<2x256xf32, #tpu.memory_space<vmem>>, vector<1x256xf32>,
      } else {
      }
      %c0 = arith.constant 0 : index
      %c0_8 = arith.constant 0 : index
      %19 = vector.load %arg14[%c0, %c0_8] : memref<2x256xf32, #tpu.memory_space<vmem>>, vector<1x256xf32>
      %c1 = arith.constant 1 : index
      %c0_9 = arith.constant 0 : index
      %20 = vector.load %arg14[%c1, %c0_9] : memref<2x256xf32, #tpu.memory_space<vmem>>, vector<1x256xf32>
      %21 = arith.index_cast %1 : i32 to index
      %c0_10 = arith.constant 0 : index
      %22 = vector.load %arg12[%21, %c0_10] : memref<384x256xbf16, #tpu.memory_space<vmem>>, vector<128x256xbf16>
      %23 = arith.extf %22 : vector<128x256xbf16> to vector<128x256xf32>
      %24 = vector.broadcast %19 : vector<1x256xf32> to vector<128x256xf32>
      %25 = arith.mulf %23, %24 : vector<128x256xf32>
      %26 = vector.broadcast %20 : vector<1x256xf32> to vector<128x256xf32>
      %27 = arith.addf %25, %26 : vector<128x256xf32>
      %cst = arith.constant 0.000000e+00 : f32
      %28 = vector.broadcast %cst : f32 to vector<128x256xf32>
      %29 = arith.maximumf %27, %28 : vector<128x256xf32>
      %30 = arith.truncf %29 : vector<128x256xf32> to vector<128x256xbf16>
      %c0_11 = arith.constant 0 : index
      %c0_12 = arith.constant 0 : index
      %31 = vector.load %arg6[%c0_11, %c0_12] : memref<256x256xbf16, #tpu.memory_space<vmem>>, vector<256x256xbf16>
      %cst_13 = arith.constant dense<0.000000e+00> : vector<128x256xf32>
      %32 = tpu.matmul %30, %31, %cst_13 {dimension_numbers = #tpu.dot_dimension_numbers<[1], [0], [0], [1], [0, 0, 1, 1], [], []>} : vector<128x256xbf16>, vector<256x256xbf16>, vector<128x256xf32> -> vector<128x256xf32>
      %33 = arith.truncf %32 : vector<128x256xf32> to vector<128x256xbf16>
      %34 = arith.index_cast %1 : i32 to index
      %c0_14 = arith.constant 0 : index
      %35 = vector.load %arg13[%34, %c0_14] : memref<384x256xbf16, #tpu.memory_space<vmem>>, vector<128x256xbf16>
      tpu.vector_store %arg13[%34, %c0_14], %33 {strides = array<i32>} : memref<384x256xbf16, #tpu.memory_space<vmem>>, vector<128x256xbf16>,
      %36 = tpu.iota {dimensions = array<i32: 0>} : vector<128x1xi32>
      %37 = vector.broadcast %1 : i32 to vector<128x1xi32>
      %38 = arith.addi %37, %36 : vector<128x1xi32>
      %c320_i32 = arith.constant 320 : i32
      %39 = vector.broadcast %c320_i32 : i32 to vector<128x1xi32>
      %40 = arith.cmpi slt, %38, %39 : vector<128x1xi32>
      %cst_15 = arith.constant 0.000000e+00 : f32
      %41 = vector.shape_cast %40 : vector<128x1xi1> to vector<128x1xi1>
      %42 = vector.broadcast %41 : vector<128x1xi1> to vector<128x256xi1>
      %43 = vector.broadcast %cst_15 : f32 to vector<128x256xf32>
      %44 = arith.select %42, %32, %43 : vector<128x256xi1>, vector<128x256xf32>
      %c0_16 = arith.constant 0 : index
      %c0_17 = arith.constant 0 : index
      %45 = vector.load %arg15[%c0_16, %c0_17] : memref<2x256xf32, #tpu.memory_space<vmem>>, vector<1x256xf32>
      %cst_18 = arith.constant dense<0.000000e+00> : vector<256xf32>
      %46 = vector.multi_reduction <add>, %44, %cst_18 [0] : vector<128x256xf32> to vector<256xf32>
      %47 = vector.shape_cast %46 : vector<256xf32> to vector<1x256xf32>
      %48 = arith.addf %45, %47 : vector<1x256xf32>
      %c0_19 = arith.constant 0 : index
      %c0_20 = arith.constant 0 : index
      %49 = vector.load %arg15[%c0_19, %c0_20] : memref<2x256xf32, #tpu.memory_space<vmem>>, vector<1x256xf32>
      tpu.vector_store %arg15[%c0_19, %c0_20], %48 {strides = array<i32>} : memref<2x256xf32, #tpu.memory_space<vmem>>, vector<1x256xf32>,
      %c1_21 = arith.constant 1 : index
      %c0_22 = arith.constant 0 : index
      %50 = vector.load %arg15[%c1_21, %c0_22] : memref<2x256xf32, #tpu.memory_space<vmem>>, vector<1x256xf32>
      %51 = arith.mulf %44, %44 : vector<128x256xf32>
      %cst_23 = arith.constant dense<0.000000e+00> : vector<256xf32>
      %52 = vector.multi_reduction <add>, %51, %cst_23 [0] : vector<128x256xf32> to vector<256xf32>
      %53 = vector.shape_cast %52 : vector<256xf32> to vector<1x256xf32>
      %54 = arith.addf %50, %53 : vector<1x256xf32>
      %c1_24 = arith.constant 1 : index
      %c0_25 = arith.constant 0 : index
      %55 = vector.load %arg15[%c1_24, %c0_25] : memref<2x256xf32, #tpu.memory_space<vmem>>, vector<1x256xf32>
      tpu.vector_store %arg15[%c1_24, %c0_25], %54 {strides = array<i32>} : memref<2x256xf32, #tpu.memory_space<vmem>>, vector<1x256xf32>,
    } else {
    }
    %c2_i32 = arith.constant 2 : i32
    %13 = arith.cmpi eq, %arg0, %c2_i32 : i32
    %14 = arith.extui %13 : i1 to i32
    %c0_i32_5 = arith.constant 0 : i32
    %15 = arith.cmpi ne, %14, %c0_i32_5 : i32
    scf.if %15 {
      %c0_i32_6 = arith.constant 0 : i32
      %16 = arith.cmpi eq, %arg1, %c0_i32_6 : i32
      %17 = arith.extui %16 : i1 to i32
      %c0_i32_7 = arith.constant 0 : i32
      %18 = arith.cmpi ne, %17, %c0_i32_7 : i32
      scf.if %18 {
        %c0_18 = arith.constant 0 : index
        %c0_19 = arith.constant 0 : index
        %37 = vector.load %arg15[%c0_18, %c0_19] : memref<2x256xf32, #tpu.memory_space<vmem>>, vector<1x256xf32>
        %cst_20 = arith.constant 3.125000e-03 : f32
        %38 = vector.broadcast %cst_20 : f32 to vector<1x256xf32>
        %39 = arith.mulf %37, %38 : vector<1x256xf32>
        %c1_21 = arith.constant 1 : index
        %c0_22 = arith.constant 0 : index
        %40 = vector.load %arg15[%c1_21, %c0_22] : memref<2x256xf32, #tpu.memory_space<vmem>>, vector<1x256xf32>
        %cst_23 = arith.constant 3.125000e-03 : f32
        %41 = vector.broadcast %cst_23 : f32 to vector<1x256xf32>
        %42 = arith.mulf %40, %41 : vector<1x256xf32>
        %43 = arith.mulf %39, %39 : vector<1x256xf32>
        %44 = arith.subf %42, %43 : vector<1x256xf32>
        %cst_24 = arith.constant 9.99999974E-6 : f32
        %45 = vector.broadcast %cst_24 : f32 to vector<1x256xf32>
        %46 = arith.addf %44, %45 : vector<1x256xf32>
        %47 = math.rsqrt %46 : vector<1x256xf32>
        %c0_25 = arith.constant 0 : index
        %c0_26 = arith.constant 0 : index
        %48 = vector.load %arg7[%c0_25, %c0_26] : memref<1x256xf32, #tpu.memory_space<vmem>>, vector<1x256xf32>
        %49 = arith.mulf %47, %48 : vector<1x256xf32>
        %c0_27 = arith.constant 0 : index
        %c0_28 = arith.constant 0 : index
        %50 = vector.load %arg15[%c0_27, %c0_28] : memref<2x256xf32, #tpu.memory_space<vmem>>, vector<1x256xf32>
        tpu.vector_store %arg15[%c0_27, %c0_28], %49 {strides = array<i32>} : memref<2x256xf32, #tpu.memory_space<vmem>>, vector<1x256xf32>,
        %c0_29 = arith.constant 0 : index
        %c0_30 = arith.constant 0 : index
        %51 = vector.load %arg8[%c0_29, %c0_30] : memref<1x256xf32, #tpu.memory_space<vmem>>, vector<1x256xf32>
        %52 = arith.mulf %39, %49 : vector<1x256xf32>
        %53 = arith.subf %51, %52 : vector<1x256xf32>
        %c1_31 = arith.constant 1 : index
        %c0_32 = arith.constant 0 : index
        %54 = vector.load %arg15[%c1_31, %c0_32] : memref<2x256xf32, #tpu.memory_space<vmem>>, vector<1x256xf32>
        tpu.vector_store %arg15[%c1_31, %c0_32], %53 {strides = array<i32>} : memref<2x256xf32, #tpu.memory_space<vmem>>, vector<1x256xf32>,
      } else {
      }
      %c0 = arith.constant 0 : index
      %c0_8 = arith.constant 0 : index
      %19 = vector.load %arg15[%c0, %c0_8] : memref<2x256xf32, #tpu.memory_space<vmem>>, vector<1x256xf32>
      %c1 = arith.constant 1 : index
      %c0_9 = arith.constant 0 : index
      %20 = vector.load %arg15[%c1, %c0_9] : memref<2x256xf32, #tpu.memory_space<vmem>>, vector<1x256xf32>
      %21 = arith.index_cast %1 : i32 to index
      %c0_10 = arith.constant 0 : index
      %22 = vector.load %arg13[%21, %c0_10] : memref<384x256xbf16, #tpu.memory_space<vmem>>, vector<128x256xbf16>
      %23 = arith.extf %22 : vector<128x256xbf16> to vector<128x256xf32>
      %24 = vector.broadcast %19 : vector<1x256xf32> to vector<128x256xf32>
      %25 = arith.mulf %23, %24 : vector<128x256xf32>
      %26 = vector.broadcast %20 : vector<1x256xf32> to vector<128x256xf32>
      %27 = arith.addf %25, %26 : vector<128x256xf32>
      %cst = arith.constant 0.000000e+00 : f32
      %28 = vector.broadcast %cst : f32 to vector<128x256xf32>
      %29 = arith.maximumf %27, %28 : vector<128x256xf32>
      %30 = arith.truncf %29 : vector<128x256xf32> to vector<128x256xbf16>
      %c0_11 = arith.constant 0 : index
      %c0_12 = arith.constant 0 : index
      %31 = vector.load %arg9[%c0_11, %c0_12] : memref<256x3136xbf16, #tpu.memory_space<vmem>>, vector<256x3136xbf16>
      %cst_13 = arith.constant dense<0.000000e+00> : vector<128x3136xf32>
      %32 = tpu.matmul %30, %31, %cst_13 {dimension_numbers = #tpu.dot_dimension_numbers<[1], [0], [0], [1], [0, 0, 1, 1], [], []>} : vector<128x256xbf16>, vector<256x3136xbf16>, vector<128x3136xf32> -> vector<128x3136xf32>
      %c0_14 = arith.constant 0 : index
      %c0_15 = arith.constant 0 : index
      %33 = vector.load %arg10[%c0_14, %c0_15] : memref<1x3136xf32, #tpu.memory_space<vmem>>, vector<1x3136xf32>
      %34 = vector.broadcast %33 : vector<1x3136xf32> to vector<128x3136xf32>
      %35 = arith.addf %32, %34 : vector<128x3136xf32>
      %c0_16 = arith.constant 0 : index
      %c0_17 = arith.constant 0 : index
      %36 = vector.load %arg11[%c0_16, %c0_17] : memref<128x3136xf32, #tpu.memory_space<vmem>>, vector<128x3136xf32>
      tpu.vector_store %arg11[%c0_16, %c0_17], %35 {strides = array<i32>} : memref<128x3136xf32, #tpu.memory_space<vmem>>, vector<128x3136xf32>,
    } else {
    }
    return
  }
  func.func @transform_0(%arg0: i32, %arg1: i32) -> (i32, i32) {
    %c0_i32 = arith.constant 0 : i32
    %0 = arith.cmpi eq, %arg0, %c0_i32 : i32
    %c2_i32 = arith.constant 2 : i32
    %1 = arith.select %0, %arg1, %c2_i32 : i32
    %c0_i32_0 = arith.constant 0 : i32
    %c0_i32_1 = arith.constant 0 : i32
    return %1, %c0_i32_0 : i32, i32
  }
  func.func @transform_1(%arg0: i32, %arg1: i32) -> (i32, i32) {
    %c0_i32 = arith.constant 0 : i32
    %c0_i32_0 = arith.constant 0 : i32
    %c0_i32_1 = arith.constant 0 : i32
    return %c0_i32, %c0_i32_0 : i32, i32
  }
  func.func @transform_2(%arg0: i32, %arg1: i32) -> (i32, i32) {
    %c0_i32 = arith.constant 0 : i32
    %c0_i32_0 = arith.constant 0 : i32
    %c0_i32_1 = arith.constant 0 : i32
    return %c0_i32, %c0_i32_0 : i32, i32
  }
  func.func @transform_3(%arg0: i32, %arg1: i32) -> (i32, i32) {
    %c0_i32 = arith.constant 0 : i32
    %c0_i32_0 = arith.constant 0 : i32
    %c0_i32_1 = arith.constant 0 : i32
    return %c0_i32, %c0_i32_0 : i32, i32
  }
  func.func @transform_4(%arg0: i32, %arg1: i32) -> (i32, i32) {
    %c0_i32 = arith.constant 0 : i32
    %c0_i32_0 = arith.constant 0 : i32
    %c0_i32_1 = arith.constant 0 : i32
    return %c0_i32, %c0_i32_0 : i32, i32
  }
  func.func @transform_5(%arg0: i32, %arg1: i32) -> (i32, i32) {
    %c0_i32 = arith.constant 0 : i32
    %c0_i32_0 = arith.constant 0 : i32
    %c0_i32_1 = arith.constant 0 : i32
    return %c0_i32, %c0_i32_0 : i32, i32
  }
  func.func @transform_6(%arg0: i32, %arg1: i32) -> (i32, i32) {
    %c0_i32 = arith.constant 0 : i32
    %c0_i32_0 = arith.constant 0 : i32
    %c0_i32_1 = arith.constant 0 : i32
    return %c0_i32, %c0_i32_0 : i32, i32
  }
  func.func @transform_7(%arg0: i32, %arg1: i32) -> (i32, i32) {
    %c0_i32 = arith.constant 0 : i32
    %c0_i32_0 = arith.constant 0 : i32
    %c0_i32_1 = arith.constant 0 : i32
    return %c0_i32, %c0_i32_0 : i32, i32
  }
  func.func @transform_8(%arg0: i32, %arg1: i32) -> (i32, i32) {
    %c0_i32 = arith.constant 0 : i32
    %c0_i32_0 = arith.constant 0 : i32
    %c0_i32_1 = arith.constant 0 : i32
    return %c0_i32, %c0_i32_0 : i32, i32
  }
  func.func @transform_9(%arg0: i32, %arg1: i32) -> (i32, i32) {
    %c2_i32 = arith.constant 2 : i32
    %0 = arith.cmpi eq, %arg0, %c2_i32 : i32
    %c0_i32 = arith.constant 0 : i32
    %1 = arith.select %0, %arg1, %c0_i32 : i32
    %c0_i32_0 = arith.constant 0 : i32
    %c0_i32_1 = arith.constant 0 : i32
    return %1, %c0_i32_0 : i32, i32
  }
}

</mosaic_0001>

<llo_original>
// kernel: tpu_custom_call.1
$region0: #{tpu_custom_call.1}
  #allocation0 [shape = 'u32[]', space=smem, size = 0x4, offset = 0x4, fixed_abs, tag = 'smem constant byte address 0x4 - core index']
  #allocation1 [shape = 'u32[144,128]{1,0:T(1,128)}', space=vmem, size = 0x12000, scoped, tag = 'internal scratch']
  #allocation2 [shape = 'bf16[384,256]{1,0:T(16,128)(2,1)}', space=vmem, size = 0x30000, scoped, tag = 'scratch operand']
  #allocation3 [shape = 'bf16[384,256]{1,0:T(16,128)(2,1)}', space=vmem, size = 0x30000, scoped, tag = 'scratch operand']
  #allocation4 [shape = 'f32[2,256]{1,0:T(2,128)}', space=vmem, size = 0x800, scoped, tag = 'scratch operand']
  #allocation5 [shape = 'f32[2,256]{1,0:T(2,128)}', space=vmem, size = 0x800, scoped, tag = 'scratch operand']
  %s0 = inlined_call_operand.vmem [shape: bf16[384,2352], index: 0, kind: input, shape index: {}]
  %s1 = inlined_call_operand.vmem [shape: bf16[2352,256], index: 1, kind: input, shape index: {}]
  %s2 = inlined_call_operand.vmem [shape: f32[1,256], index: 2, kind: input, shape index: {}]
  %s3 = inlined_call_operand.vmem [shape: f32[1,256], index: 3, kind: input, shape index: {}]
  %s4 = inlined_call_operand.vmem [shape: bf16[256,256], index: 4, kind: input, shape index: {}]
  %s5 = inlined_call_operand.vmem [shape: f32[1,256], index: 5, kind: input, shape index: {}]
  %s6 = inlined_call_operand.vmem [shape: f32[1,256], index: 6, kind: input, shape index: {}]
  %s7 = inlined_call_operand.vmem [shape: bf16[256,3136], index: 7, kind: input, shape index: {}]
  %s8 = inlined_call_operand.vmem [shape: f32[1,3136], index: 8, kind: input, shape index: {}]
  %s9 = inlined_call_operand.vmem [shape: f32[384,3136], index: 9, kind: output, shape index: {}]
  %s10 = sld [smem:[#allocation0]]
  $region93: #{tpu_custom_call.1} parent=0
    _
  %s12 = ssub.s32 1, %s10
  %s13 = scalar_select 0, %s12, %s10
  loop: start=0, step=1, limit=11
  $region2: #{tpu_custom_call.1} parent=0 // loop_pre_header
    _
  $region3: #{tpu_custom_call.1} parent=0 // loop_header
    %s15 = sphi 0, %s19
    %p16 = scmp.ge.s32.totalorder %s15, 11
    %s22 = sphi 0, %s34
    %s23 = sphi 0, %s30
    %s24 = sphi 0, %s22
    %s25 = sphi 0, %s23
    %s26 = sphi 0, %s24
    %s27 = sphi 0, %s25
    %s41 = sphi 0, %s43
    %s44 = sphi 0, %s41
    %s45 = sphi 0, %s44
    %s61 = sphi 0, %s45
    %s65 = sphi 0, %s65
    %s67 = sphi 0, %s65
    %s68 = sphi 0, %s67
    %s82 = sphi 0, %s68
    %s86 = sphi 0, %s86
    %s88 = sphi 0, %s86
    %s89 = sphi 0, %s88
    %s103 = sphi 0, %s89
    %s107 = sphi 0, %s107
    %s109 = sphi 0, %s107
    %s110 = sphi 0, %s109
    %s124 = sphi 0, %s110
    %s128 = sphi 0, %s128
    %s130 = sphi 0, %s128
    %s131 = sphi 0, %s130
    %s145 = sphi 0, %s131
    %s149 = sphi 0, %s149
    %s151 = sphi 0, %s149
    %s152 = sphi 0, %s151
    %s166 = sphi 0, %s152
    %s170 = sphi 0, %s170
    %s172 = sphi 0, %s170
    %s173 = sphi 0, %s172
    %s187 = sphi 0, %s173
    %s191 = sphi 0, %s191
    %s193 = sphi 0, %s191
    %s194 = sphi 0, %s193
    %s208 = sphi 0, %s194
    %s212 = sphi 0, %s212
    %s214 = sphi 0, %s212
    %s215 = sphi 0, %s214
    %s229 = sphi 0, %s215
    %s239 = sphi 0, %s241
    %s242 = sphi 0, %s239
    %s243 = sphi 0, %s242
    %s259 = sphi 0, %s243
  $region4: #{tpu_custom_call.1} parent=0 // loop_header_branch
    %18 = sbr.rel (%p16) target = $region8
  $region5: #{tpu_custom_call.1} parent=0 // loop_body
    %s20 = ssub.s32 %s15, 1
    %s21 = ssub.s32 %s15, 2
    %s28 = sadd.s32 1, %s23
    %p29 = scmp.ge.s32.totalorder %s28, 3
    %s30 = scalar_select %p29, 0, %s28
    %s31 = sadd.s32 1, %s22
    %s32 = scalar_select %p29, %s31, %s22
    %p33 = scmp.ge.s32.totalorder %s32, 3
    %s34 = scalar_select %p33, 0, %s32
    %p35 = scmp.eq.s32.totalorder %s22, 0
    %s36 = scalar_select %p35, %s23, 2
    %p37 = scmp.eq.s32.totalorder %s34, 0
    %s38 = scalar_select %p37, %s30, 2
    %s39 = ssub.s32 %s36, %s38
    %p40 = scmp.eq.s32.totalorder %s39, 0
    %s42 = sadd.s32 %s41, 1
    %s43 = scalar_select %p40, %s41, %s42
    %p46 = pneg %p40
    %p47 = scmp.eq.s32.totalorder %s15, 8
    %p48 = por %p46, %p47
    %p49 = scmp.ne.s32.totalorder %s41, %s44
    %p50 = scmp.eq.s32.totalorder %s15, 0
    %p51 = por %p49, %p50
    %p52 = scmp.ne.s32.totalorder %s41, %s44
    %p53 = scmp.eq.s32.totalorder %s20, 8
    %p54 = por %p52, %p53
    %p55 = scmp.ne.s32.totalorder %s44, %s45
    %p56 = scmp.eq.s32.totalorder %s20, 0
    %p57 = por %p55, %p56
    %p58 = scmp.ne.s32.totalorder %s44, %s45
    %p59 = scmp.eq.s32.totalorder %s21, 8
    %p60 = por %p58, %p59
    %p62 = scmp.ne.s32.totalorder %s45, %s61
    %p63 = scmp.eq.s32.totalorder %s21, 0
    %p64 = por %p62, %p63
    %s66 = sadd.s32 %s65, 1
    %p69 = scmp.eq.s32.totalorder %s15, 8
    %p70 = scmp.ne.s32.totalorder %s65, %s67
    %p71 = scmp.eq.s32.totalorder %s15, 0
    %p72 = por %p70, %p71
    %p73 = scmp.ne.s32.totalorder %s65, %s67
    %p74 = scmp.eq.s32.totalorder %s20, 8
    %p75 = por %p73, %p74
    %p76 = scmp.ne.s32.totalorder %s67, %s68
    %p77 = scmp.eq.s32.totalorder %s20, 0
    %p78 = por %p76, %p77
    %p79 = scmp.ne.s32.totalorder %s67, %s68
    %p80 = scmp.eq.s32.totalorder %s21, 8
    %p81 = por %p79, %p80
    %p83 = scmp.ne.s32.totalorder %s68, %s82
    %p84 = scmp.eq.s32.totalorder %s21, 0
    %p85 = por %p83, %p84
    %s87 = sadd.s32 %s86, 1
    %p90 = scmp.eq.s32.totalorder %s15, 8
    %p91 = scmp.ne.s32.totalorder %s86, %s88
    %p92 = scmp.eq.s32.totalorder %s15, 0
    %p93 = por %p91, %p92
    %p94 = scmp.ne.s32.totalorder %s86, %s88
    %p95 = scmp.eq.s32.totalorder %s20, 8
    %p96 = por %p94, %p95
    %p97 = scmp.ne.s32.totalorder %s88, %s89
    %p98 = scmp.eq.s32.totalorder %s20, 0
    %p99 = por %p97, %p98
    %p100 = scmp.ne.s32.totalorder %s88, %s89
    %p101 = scmp.eq.s32.totalorder %s21, 8
    %p102 = por %p100, %p101
    %p104 = scmp.ne.s32.totalorder %s89, %s103
    %p105 = scmp.eq.s32.totalorder %s21, 0
    %p106 = por %p104, %p105
    %s108 = sadd.s32 %s107, 1
    %p111 = scmp.eq.s32.totalorder %s15, 8
    %p112 = scmp.ne.s32.totalorder %s107, %s109
    %p113 = scmp.eq.s32.totalorder %s15, 0
    %p114 = por %p112, %p113
    %p115 = scmp.ne.s32.totalorder %s107, %s109
    %p116 = scmp.eq.s32.totalorder %s20, 8
    %p117 = por %p115, %p116
    %p118 = scmp.ne.s32.totalorder %s109, %s110
    %p119 = scmp.eq.s32.totalorder %s20, 0
    %p120 = por %p118, %p119
    %p121 = scmp.ne.s32.totalorder %s109, %s110
    %p122 = scmp.eq.s32.totalorder %s21, 8
    %p123 = por %p121, %p122
    %p125 = scmp.ne.s32.totalorder %s110, %s124
    %p126 = scmp.eq.s32.totalorder %s21, 0
    %p127 = por %p125, %p126
    %s129 = sadd.s32 %s128, 1
    %p132 = scmp.eq.s32.totalorder %s15, 8
    %p133 = scmp.ne.s32.totalorder %s128, %s130
    %p134 = scmp.eq.s32.totalorder %s15, 0
    %p135 = por %p133, %p134
    %p136 = scmp.ne.s32.totalorder %s128, %s130
    %p137 = scmp.eq.s32.totalorder %s20, 8
    %p138 = por %p136, %p137
    %p139 = scmp.ne.s32.totalorder %s130, %s131
    %p140 = scmp.eq.s32.totalorder %s20, 0
    %p141 = por %p139, %p140
    %p142 = scmp.ne.s32.totalorder %s130, %s131
    %p143 = scmp.eq.s32.totalorder %s21, 8
    %p144 = por %p142, %p143
    %p146 = scmp.ne.s32.totalorder %s131, %s145
    %p147 = scmp.eq.s32.totalorder %s21, 0
    %p148 = por %p146, %p147
    %s150 = sadd.s32 %s149, 1
    %p153 = scmp.eq.s32.totalorder %s15, 8
    %p154 = scmp.ne.s32.totalorder %s149, %s151
    %p155 = scmp.eq.s32.totalorder %s15, 0
    %p156 = por %p154, %p155
    %p157 = scmp.ne.s32.totalorder %s149, %s151
    %p158 = scmp.eq.s32.totalorder %s20, 8
    %p159 = por %p157, %p158
    %p160 = scmp.ne.s32.totalorder %s151, %s152
    %p161 = scmp.eq.s32.totalorder %s20, 0
    %p162 = por %p160, %p161
    %p163 = scmp.ne.s32.totalorder %s151, %s152
    %p164 = scmp.eq.s32.totalorder %s21, 8
    %p165 = por %p163, %p164
    %p167 = scmp.ne.s32.totalorder %s152, %s166
    %p168 = scmp.eq.s32.totalorder %s21, 0
    %p169 = por %p167, %p168
    %s171 = sadd.s32 %s170, 1
    %p174 = scmp.eq.s32.totalorder %s15, 8
    %p175 = scmp.ne.s32.totalorder %s170, %s172
    %p176 = scmp.eq.s32.totalorder %s15, 0
    %p177 = por %p175, %p176
    %p178 = scmp.ne.s32.totalorder %s170, %s172
    %p179 = scmp.eq.s32.totalorder %s20, 8
    %p180 = por %p178, %p179
    %p181 = scmp.ne.s32.totalorder %s172, %s173
    %p182 = scmp.eq.s32.totalorder %s20, 0
    %p183 = por %p181, %p182
    %p184 = scmp.ne.s32.totalorder %s172, %s173
    %p185 = scmp.eq.s32.totalorder %s21, 8
    %p186 = por %p184, %p185
    %p188 = scmp.ne.s32.totalorder %s173, %s187
    %p189 = scmp.eq.s32.totalorder %s21, 0
    %p190 = por %p188, %p189
    %s192 = sadd.s32 %s191, 1
    %p195 = scmp.eq.s32.totalorder %s15, 8
    %p196 = scmp.ne.s32.totalorder %s191, %s193
    %p197 = scmp.eq.s32.totalorder %s15, 0
    %p198 = por %p196, %p197
    %p199 = scmp.ne.s32.totalorder %s191, %s193
    %p200 = scmp.eq.s32.totalorder %s20, 8
    %p201 = por %p199, %p200
    %p202 = scmp.ne.s32.totalorder %s193, %s194
    %p203 = scmp.eq.s32.totalorder %s20, 0
    %p204 = por %p202, %p203
    %p205 = scmp.ne.s32.totalorder %s193, %s194
    %p206 = scmp.eq.s32.totalorder %s21, 8
    %p207 = por %p205, %p206
    %p209 = scmp.ne.s32.totalorder %s194, %s208
    %p210 = scmp.eq.s32.totalorder %s21, 0
    %p211 = por %p209, %p210
    %s213 = sadd.s32 %s212, 1
    %p216 = scmp.eq.s32.totalorder %s15, 8
    %p217 = scmp.ne.s32.totalorder %s212, %s214
    %p218 = scmp.eq.s32.totalorder %s15, 0
    %p219 = por %p217, %p218
    %p220 = scmp.ne.s32.totalorder %s212, %s214
    %p221 = scmp.eq.s32.totalorder %s20, 8
    %p222 = por %p220, %p221
    %p223 = scmp.ne.s32.totalorder %s214, %s215
    %p224 = scmp.eq.s32.totalorder %s20, 0
    %p225 = por %p223, %p224
    %p226 = scmp.ne.s32.totalorder %s214, %s215
    %p227 = scmp.eq.s32.totalorder %s21, 8
    %p228 = por %p226, %p227
    %p230 = scmp.ne.s32.totalorder %s215, %s229
    %p231 = scmp.eq.s32.totalorder %s21, 0
    %p232 = por %p230, %p231
    %p233 = scmp.eq.s32.totalorder %s22, 2
    %s234 = scalar_select %p233, %s23, 0
    %p235 = scmp.eq.s32.totalorder %s34, 2
    %s236 = scalar_select %p235, %s30, 0
    %s237 = ssub.s32 %s234, %s236
    %p238 = scmp.eq.s32.totalorder %s237, 0
    %s240 = sadd.s32 %s239, 1
    %s241 = scalar_select %p238, %s239, %s240
    %p244 = pneg %p238
    %p245 = scmp.eq.s32.totalorder %s15, 8
    %p246 = por %p244, %p245
    %p247 = scmp.ne.s32.totalorder %s239, %s242
    %p248 = scmp.eq.s32.totalorder %s15, 0
    %p249 = por %p247, %p248
    %p250 = scmp.ne.s32.totalorder %s239, %s242
    %p251 = scmp.eq.s32.totalorder %s20, 8
    %p252 = por %p250, %p251
    %p253 = scmp.ne.s32.totalorder %s242, %s243
    %p254 = scmp.eq.s32.totalorder %s20, 0
    %p255 = por %p253, %p254
    %p256 = scmp.ne.s32.totalorder %s242, %s243
    %p257 = scmp.eq.s32.totalorder %s21, 8
    %p258 = por %p256, %p257
    %p260 = scmp.ne.s32.totalorder %s243, %s259
    %p261 = scmp.eq.s32.totalorder %s21, 0
    %p262 = por %p260, %p261
    %p263 = scmp.le.s32.totalorder 1, %s15
    %p264 = scmp.lt.s32.totalorder %s15, 10
    %p265 = pnand %p263, %p264
    %p266 = pneg %p265
    // Predicated region
    $region9: #{tpu_custom_call.1} parent=5 // pred_check
      _
    $region10: #{tpu_custom_call.1} parent=5 // pred_check_branch
      %268 = sbr.rel (%p265) target = $region12
    $region11: #{tpu_custom_call.1} parent=5 // pred_region
      %s269 = ssub.s32 %s15, 1
      // Predicated region
      $region13: #{tpu_custom_call.1} parent=11 // pred_check
        %p270 = pneg %p78
      $region14: #{tpu_custom_call.1} parent=11 // pred_check_branch
        %272 = sbr.rel (%p270) target = $region16
      $region15: #{tpu_custom_call.1} parent=11 // pred_region
        _
      $region16: #{tpu_custom_call.1} parent=11 // pred_fallthru
        _
      // Predicated region
      $region17: #{tpu_custom_call.1} parent=11 // pred_check
        %p273 = pneg %p99
      $region18: #{tpu_custom_call.1} parent=11 // pred_check_branch
        %275 = sbr.rel (%p273) target = $region20
      $region19: #{tpu_custom_call.1} parent=11 // pred_region
        _
      $region20: #{tpu_custom_call.1} parent=11 // pred_fallthru
        _
      // Predicated region
      $region21: #{tpu_custom_call.1} parent=11 // pred_check
        %p276 = pneg %p120
      $region22: #{tpu_custom_call.1} parent=11 // pred_check_branch
        %278 = sbr.rel (%p276) target = $region24
      $region23: #{tpu_custom_call.1} parent=11 // pred_region
        _
      $region24: #{tpu_custom_call.1} parent=11 // pred_fallthru
        _
      // Predicated region
      $region25: #{tpu_custom_call.1} parent=11 // pred_check
        %p279 = pneg %p141
      $region26: #{tpu_custom_call.1} parent=11 // pred_check_branch
        %281 = sbr.rel (%p279) target = $region28
      $region27: #{tpu_custom_call.1} parent=11 // pred_region
        _
      $region28: #{tpu_custom_call.1} parent=11 // pred_fallthru
        _
      // Predicated region
      $region29: #{tpu_custom_call.1} parent=11 // pred_check
        %p282 = pneg %p162
      $region30: #{tpu_custom_call.1} parent=11 // pred_check_branch
        %284 = sbr.rel (%p282) target = $region32
      $region31: #{tpu_custom_call.1} parent=11 // pred_region
        _
      $region32: #{tpu_custom_call.1} parent=11 // pred_fallthru
        _
      // Predicated region
      $region33: #{tpu_custom_call.1} parent=11 // pred_check
        %p285 = pneg %p183
      $region34: #{tpu_custom_call.1} parent=11 // pred_check_branch
        %287 = sbr.rel (%p285) target = $region36
      $region35: #{tpu_custom_call.1} parent=11 // pred_region
        _
      $region36: #{tpu_custom_call.1} parent=11 // pred_fallthru
        _
      // Predicated region
      $region37: #{tpu_custom_call.1} parent=11 // pred_check
        %p288 = pneg %p204
      $region38: #{tpu_custom_call.1} parent=11 // pred_check_branch
        %290 = sbr.rel (%p288) target = $region40
      $region39: #{tpu_custom_call.1} parent=11 // pred_region
        _
      $region40: #{tpu_custom_call.1} parent=11 // pred_fallthru
        _
      // Predicated region
      $region41: #{tpu_custom_call.1} parent=11 // pred_check
        %p291 = pneg %p225
      $region42: #{tpu_custom_call.1} parent=11 // pred_check_branch
        %293 = sbr.rel (%p291) target = $region44
      $region43: #{tpu_custom_call.1} parent=11 // pred_region
        _
      $region44: #{tpu_custom_call.1} parent=11 // pred_fallthru
        _
    $region12: #{tpu_custom_call.1} parent=5 // pred_fallthru
      _
    %p294 = scmp.lt.s32.totalorder %s15, 9
    // Predicated region
    $region45: #{tpu_custom_call.1} parent=5 // pred_check
      %p295 = pneg %p294
    $region46: #{tpu_custom_call.1} parent=5 // pred_check_branch
      %297 = sbr.rel (%p295) target = $region48
    $region47: #{tpu_custom_call.1} parent=5 // pred_region
      // Predicated region
      $region49: #{tpu_custom_call.1} parent=47 // pred_check
        %p298 = pneg %p51
      $region50: #{tpu_custom_call.1} parent=47 // pred_check_branch
        %300 = sbr.rel (%p298) target = $region52
      $region51: #{tpu_custom_call.1} parent=47 // pred_region
        %p301 = scmp.eq.s32.totalorder %s22, 0
        %s302 = scalar_select %p301, %s23, 2
        %s303 = smul.u32 16, %s302
        %p304 = scmp.lt.s32.totalorder %s303, 47
        %s305 = scalar_select %p304, %s303, 47
        %s306 = smul.addr %s305, 19
        %s307 = smul.addr %s306, 4
        %s308 = scalar_lea.vmem %s0, %s307
        %p309 = scmp.eq.s32.totalorder %s22, 0
        %s310 = scalar_select %p309, %s23, 2
        %s311 = smul.u32 16, %s310
      $region52: #{tpu_custom_call.1} parent=47 // pred_fallthru
        _
    $region48: #{tpu_custom_call.1} parent=5 // pred_fallthru
      _
    %p312 = scmp.le.s32.totalorder 1, %s15
    %p313 = scmp.lt.s32.totalorder %s15, 10
    %p314 = pnand %p312, %p313
    %p315 = pneg %p314
    // Predicated region
    $region53: #{tpu_custom_call.1} parent=5 // pred_check
      _
    $region54: #{tpu_custom_call.1} parent=5 // pred_check_branch
      %317 = sbr.rel (%p314) target = $region56
    $region55: #{tpu_custom_call.1} parent=5 // pred_region
      %s318 = ssub.s32 %s15, 1
      %p319 = scmp.eq.s32.totalorder %s24, 0
      %s320 = scalar_select %p319, %s25, 2
      %s321 = smul.u32 16, %s320
      %p322 = scmp.lt.s32.totalorder %s321, 47
      %s323 = scalar_select %p322, %s321, 47
      %s324 = smul.addr %s323, 19
      %s325 = smul.addr %s324, 4
      %s326 = scalar_lea.vmem %s0, %s325
      %p327 = pneg %p57
      %p328 = pneg %p54
      %p329 = pneg %p78
      %p330 = pneg %p75
      %p331 = pneg %p99
      %p332 = pneg %p96
      %p333 = pneg %p120
      %p334 = pneg %p117
      %p335 = pneg %p141
      %p336 = pneg %p138
      %p337 = pneg %p162
      %p338 = pneg %p159
      %p339 = pneg %p183
      %p340 = pneg %p180
      %p341 = pneg %p204
      %p342 = pneg %p201
      %p343 = pneg %p225
      %p344 = pneg %p222
      %p345 = pneg %p255
      %p346 = pneg %p252
      %p347 = scmp.eq.s32.totalorder %s24, 2
      %s348 = scalar_select %p347, %s25, 0
      %s349 = smul.u32 16, %s348
      %p350 = scmp.lt.s32.totalorder %s349, 47
      %s351 = scalar_select %p350, %s349, 47
      %s352 = smul.addr %s351, 25
      %s353 = smul.addr %s352, 8
      %s354 = scalar_lea.vmem %s9, %s353
      %p355 = scmp.eq.s32.totalorder %s24, 0
      %s356 = scalar_select %p355, %s25, 2
      %s357 = smul.u32 16, %s356
      %p358 = scmp.lt.s32.totalorder %s357, 47
      %s359 = scalar_select %p358, %s357, 47
      %s360 = smul.addr %s359, 19
      %s361 = smul.addr %s360, 4
      %s362 = scalar_lea.vmem %s0, %s361
      %p363 = scmp.eq.s32.totalorder %s24, 0
      %s364 = scalar_select %p363, %s25, 2
      %s365 = smul.u32 16, %s364
      %p366 = scmp.eq.s32.totalorder %s24, 2
      %s367 = scalar_select %p366, %s25, 0
      %s368 = smul.u32 16, %s367
      %p369 = scmp.lt.s32.totalorder %s368, 47
      %s370 = scalar_select %p369, %s368, 47
      %s371 = smul.addr %s370, 25
      %s372 = smul.addr %s371, 8
      %s373 = scalar_lea.vmem %s9, %s372
      %p374 = scmp.eq.s32.totalorder %s24, 2
      %s375 = scalar_select %p374, %s25, 0
      %s376 = smul.u32 16, %s375
      %s378 = smul.u32 %s25, 128
      %p379 = scmp.eq.s32.totalorder %s24, 0
      %p380 = scmp.eq.s32.totalorder %s25, 0
      %p381 = pnand %p379, %p380
      %p382 = pneg %p381
      // Predicated region
      $region57: #{tpu_custom_call.1} parent=55 // pred_check
        _
      $region58: #{tpu_custom_call.1} parent=55 // pred_check_branch
        %384 = sbr.rel (%p381) target = $region60
      $region59: #{tpu_custom_call.1} parent=55 // pred_region
        %385 = vst [vmem:[#allocation4] sm:$0xf] 0.0
        %386 = vst [vmem:[#allocation5] sm:$0xf] 0.0
      $region60: #{tpu_custom_call.1} parent=55 // pred_fallthru
        _
      // Predicated region
      $region61: #{tpu_custom_call.1} parent=55 // pred_check
        %p387 = pneg %p379
      $region62: #{tpu_custom_call.1} parent=55 // pred_check_branch
        %389 = sbr.rel (%p387) target = $region64
      $region63: #{tpu_custom_call.1} parent=55 // pred_region
        %v390 = vld [vmem:[%s362] sm:$0xff]
        %v391 = vld [vmem:[%s362 + $0x8] sm:$0xff]
        %v392 = vld [vmem:[%s362 + $0x10] sm:$0xff]
        %v393 = vld [vmem:[%s362 + $0x18] sm:$0xff]
        %v394 = vld [vmem:[%s362 + $0x20] sm:$0xff]
        %v395 = vld [vmem:[%s362 + $0x28] sm:$0xff]
        %v396 = vld [vmem:[%s362 + $0x30] sm:$0xff]
        %v397 = vld [vmem:[%s362 + $0x38] sm:$0xff]
        %v398 = vld [vmem:[%s362 + $0x40] sm:$0xff]
        %v399 = vld [vmem:[%s362 + $0x48] sm:$0xf]
        %v400 = vld [vmem:[%s362 + $0x4c] sm:$0xff]
        %v401 = vld [vmem:[%s362 + $0x54] sm:$0xff]
        %v402 = vld [vmem:[%s362 + $0x5c] sm:$0xff]
        %v403 = vld [vmem:[%s362 + $0x64] sm:$0xff]
        %v404 = vld [vmem:[%s362 + $0x6c] sm:$0xff]
        %v405 = vld [vmem:[%s362 + $0x74] sm:$0xff]
        %v406 = vld [vmem:[%s362 + $0x7c] sm:$0xff]
        %v407 = vld [vmem:[%s362 + $0x84] sm:$0xff]
        %v408 = vld [vmem:[%s362 + $0x8c] sm:$0xff]
        %v409 = vld [vmem:[%s362 + $0x94] sm:$0xf]
        %v410 = vld [vmem:[%s362 + $0x98] sm:$0xff]
        %v411 = vld [vmem:[%s362 + $0xa0] sm:$0xff]
        %v412 = vld [vmem:[%s362 + $0xa8] sm:$0xff]
        %v413 = vld [vmem:[%s362 + $0xb0] sm:$0xff]
        %v414 = vld [vmem:[%s362 + $0xb8] sm:$0xff]
        %v415 = vld [vmem:[%s362 + $0xc0] sm:$0xff]
        %v416 = vld [vmem:[%s362 + $0xc8] sm:$0xff]
        %v417 = vld [vmem:[%s362 + $0xd0] sm:$0xff]
        %v418 = vld [vmem:[%s362 + $0xd8] sm:$0xff]
        %v419 = vld [vmem:[%s362 + $0xe0] sm:$0xf]
        %v420 = vld [vmem:[%s362 + $0xe4] sm:$0xff]
        %v421 = vld [vmem:[%s362 + $0xec] sm:$0xff]
        %v422 = vld [vmem:[%s362 + $0xf4] sm:$0xff]
        %v423 = vld [vmem:[%s362 + $0xfc] sm:$0xff]
        %v424 = vld [vmem:[%s362 + $0x104] sm:$0xff]
        %v425 = vld [vmem:[%s362 + $0x10c] sm:$0xff]
        %v426 = vld [vmem:[%s362 + $0x114] sm:$0xff]
        %v427 = vld [vmem:[%s362 + $0x11c] sm:$0xff]
        %v428 = vld [vmem:[%s362 + $0x124] sm:$0xff]
        %v429 = vld [vmem:[%s362 + $0x12c] sm:$0xf]
        %v430 = vld [vmem:[%s362 + $0x130] sm:$0xff]
        %v431 = vld [vmem:[%s362 + $0x138] sm:$0xff]
        %v432 = vld [vmem:[%s362 + $0x140] sm:$0xff]
        %v433 = vld [vmem:[%s362 + $0x148] sm:$0xff]
        %v434 = vld [vmem:[%s362 + $0x150] sm:$0xff]
        %v435 = vld [vmem:[%s362 + $0x158] sm:$0xff]
        %v436 = vld [vmem:[%s362 + $0x160] sm:$0xff]
        %v437 = vld [vmem:[%s362 + $0x168] sm:$0xff]
        %v438 = vld [vmem:[%s362 + $0x170] sm:$0xff]
        %v439 = vld [vmem:[%s362 + $0x178] sm:$0xf]
        %v440 = vld [vmem:[%s362 + $0x17c] sm:$0xff]
        %v441 = vld [vmem:[%s362 + $0x184] sm:$0xff]
        %v442 = vld [vmem:[%s362 + $0x18c] sm:$0xff]
        %v443 = vld [vmem:[%s362 + $0x194] sm:$0xff]
        %v444 = vld [vmem:[%s362 + $0x19c] sm:$0xff]
        %v445 = vld [vmem:[%s362 + $0x1a4] sm:$0xff]
        %v446 = vld [vmem:[%s362 + $0x1ac] sm:$0xff]
        %v447 = vld [vmem:[%s362 + $0x1b4] sm:$0xff]
        %v448 = vld [vmem:[%s362 + $0x1bc] sm:$0xff]
        %v449 = vld [vmem:[%s362 + $0x1c4] sm:$0xf]
        %v450 = vld [vmem:[%s362 + $0x1c8] sm:$0xff]
        %v451 = vld [vmem:[%s362 + $0x1d0] sm:$0xff]
        %v452 = vld [vmem:[%s362 + $0x1d8] sm:$0xff]
        %v453 = vld [vmem:[%s362 + $0x1e0] sm:$0xff]
        %v454 = vld [vmem:[%s362 + $0x1e8] sm:$0xff]
        %v455 = vld [vmem:[%s362 + $0x1f0] sm:$0xff]
        %v456 = vld [vmem:[%s362 + $0x1f8] sm:$0xff]
        %v457 = vld [vmem:[%s362 + $0x200] sm:$0xff]
        %v458 = vld [vmem:[%s362 + $0x208] sm:$0xff]
        %v459 = vld [vmem:[%s362 + $0x210] sm:$0xf]
        %v460 = vld [vmem:[%s362 + $0x214] sm:$0xff]
        %v461 = vld [vmem:[%s362 + $0x21c] sm:$0xff]
        %v462 = vld [vmem:[%s362 + $0x224] sm:$0xff]
        %v463 = vld [vmem:[%s362 + $0x22c] sm:$0xff]
        %v464 = vld [vmem:[%s362 + $0x234] sm:$0xff]
        %v465 = vld [vmem:[%s362 + $0x23c] sm:$0xff]
        %v466 = vld [vmem:[%s362 + $0x244] sm:$0xff]
        %v467 = vld [vmem:[%s362 + $0x24c] sm:$0xff]
        %v468 = vld [vmem:[%s362 + $0x254] sm:$0xff]
        %v469 = vld [vmem:[%s362 + $0x25c] sm:$0xf]
        %v470 = vld [vmem:[%s362 + $0x260] sm:$0xff]
        %v471 = vld [vmem:[%s362 + $0x268] sm:$0xff]
        %v472 = vld [vmem:[%s362 + $0x270] sm:$0xff]
        %v473 = vld [vmem:[%s362 + $0x278] sm:$0xff]
        %v474 = vld [vmem:[%s362 + $0x280] sm:$0xff]
        %v475 = vld [vmem:[%s362 + $0x288] sm:$0xff]
        %v476 = vld [vmem:[%s362 + $0x290] sm:$0xff]
        %v477 = vld [vmem:[%s362 + $0x298] sm:$0xff]
        %v478 = vld [vmem:[%s362 + $0x2a0] sm:$0xff]
        %v479 = vld [vmem:[%s362 + $0x2a8] sm:$0xf]
        %v480 = vld [vmem:[%s362 + $0x2ac] sm:$0xff]
        %v481 = vld [vmem:[%s362 + $0x2b4] sm:$0xff]
        %v482 = vld [vmem:[%s362 + $0x2bc] sm:$0xff]
        %v483 = vld [vmem:[%s362 + $0x2c4] sm:$0xff]
        %v484 = vld [vmem:[%s362 + $0x2cc] sm:$0xff]
        %v485 = vld [vmem:[%s362 + $0x2d4] sm:$0xff]
        %v486 = vld [vmem:[%s362 + $0x2dc] sm:$0xff]
        %v487 = vld [vmem:[%s362 + $0x2e4] sm:$0xff]
        %v488 = vld [vmem:[%s362 + $0x2ec] sm:$0xff]
        %v489 = vld [vmem:[%s362 + $0x2f4] sm:$0xf]
        %v490 = vld [vmem:[%s362 + $0x2f8] sm:$0xff]
        %v491 = vld [vmem:[%s362 + $0x300] sm:$0xff]
        %v492 = vld [vmem:[%s362 + $0x308] sm:$0xff]
        %v493 = vld [vmem:[%s362 + $0x310] sm:$0xff]
        %v494 = vld [vmem:[%s362 + $0x318] sm:$0xff]
        %v495 = vld [vmem:[%s362 + $0x320] sm:$0xff]
        %v496 = vld [vmem:[%s362 + $0x328] sm:$0xff]
        %v497 = vld [vmem:[%s362 + $0x330] sm:$0xff]
        %v498 = vld [vmem:[%s362 + $0x338] sm:$0xff]
        %v499 = vld [vmem:[%s362 + $0x340] sm:$0xf]
        %v500 = vld [vmem:[%s362 + $0x344] sm:$0xff]
        %v501 = vld [vmem:[%s362 + $0x34c] sm:$0xff]
        %v502 = vld [vmem:[%s362 + $0x354] sm:$0xff]
        %v503 = vld [vmem:[%s362 + $0x35c] sm:$0xff]
        %v504 = vld [vmem:[%s362 + $0x364] sm:$0xff]
        %v505 = vld [vmem:[%s362 + $0x36c] sm:$0xff]
        %v506 = vld [vmem:[%s362 + $0x374] sm:$0xff]
        %v507 = vld [vmem:[%s362 + $0x37c] sm:$0xff]
        %v508 = vld [vmem:[%s362 + $0x384] sm:$0xff]
        %v509 = vld [vmem:[%s362 + $0x38c] sm:$0xf]
        %v510 = vld [vmem:[%s362 + $0x390] sm:$0xff]
        %v511 = vld [vmem:[%s362 + $0x398] sm:$0xff]
        %v512 = vld [vmem:[%s362 + $0x3a0] sm:$0xff]
        %v513 = vld [vmem:[%s362 + $0x3a8] sm:$0xff]
        %v514 = vld [vmem:[%s362 + $0x3b0] sm:$0xff]
        %v515 = vld [vmem:[%s362 + $0x3b8] sm:$0xff]
        %v516 = vld [vmem:[%s362 + $0x3c0] sm:$0xff]
        %v517 = vld [vmem:[%s362 + $0x3c8] sm:$0xff]
        %v518 = vld [vmem:[%s362 + $0x3d0] sm:$0xff]
        %v519 = vld [vmem:[%s362 + $0x3d8] sm:$0xf]
        %v520 = vld [vmem:[%s362 + $0x3dc] sm:$0xff]
        %v521 = vld [vmem:[%s362 + $0x3e4] sm:$0xff]
        %v522 = vld [vmem:[%s362 + $0x3ec] sm:$0xff]
        %v523 = vld [vmem:[%s362 + $0x3f4] sm:$0xff]
        %v524 = vld [vmem:[%s362 + $0x3fc] sm:$0xff]
        %v525 = vld [vmem:[%s362 + $0x404] sm:$0xff]
        %v526 = vld [vmem:[%s362 + $0x40c] sm:$0xff]
        %v527 = vld [vmem:[%s362 + $0x414] sm:$0xff]
        %v528 = vld [vmem:[%s362 + $0x41c] sm:$0xff]
        %v529 = vld [vmem:[%s362 + $0x424] sm:$0xf]
        %v530 = vld [vmem:[%s362 + $0x428] sm:$0xff]
        %v531 = vld [vmem:[%s362 + $0x430] sm:$0xff]
        %v532 = vld [vmem:[%s362 + $0x438] sm:$0xff]
        %v533 = vld [vmem:[%s362 + $0x440] sm:$0xff]
        %v534 = vld [vmem:[%s362 + $0x448] sm:$0xff]
        %v535 = vld [vmem:[%s362 + $0x450] sm:$0xff]
        %v536 = vld [vmem:[%s362 + $0x458] sm:$0xff]
        %v537 = vld [vmem:[%s362 + $0x460] sm:$0xff]
        %v538 = vld [vmem:[%s362 + $0x468] sm:$0xff]
        %v539 = vld [vmem:[%s362 + $0x470] sm:$0xf]
        %v540 = vld [vmem:[%s362 + $0x474] sm:$0xff]
        %v541 = vld [vmem:[%s362 + $0x47c] sm:$0xff]
        %v542 = vld [vmem:[%s362 + $0x484] sm:$0xff]
        %v543 = vld [vmem:[%s362 + $0x48c] sm:$0xff]
        %v544 = vld [vmem:[%s362 + $0x494] sm:$0xff]
        %v545 = vld [vmem:[%s362 + $0x49c] sm:$0xff]
        %v546 = vld [vmem:[%s362 + $0x4a4] sm:$0xff]
        %v547 = vld [vmem:[%s362 + $0x4ac] sm:$0xff]
        %v548 = vld [vmem:[%s362 + $0x4b4] sm:$0xff]
        %v549 = vld [vmem:[%s362 + $0x4bc] sm:$0xf]
        %v550 = vld [vmem:[%s1] sm:$0xff]
        %v551 = vld [vmem:[%s1 + $0x8] sm:$0xff]
        %v552 = vld [vmem:[%s1 + $0x10] sm:$0xff]
        %v553 = vld [vmem:[%s1 + $0x18] sm:$0xff]
        %v554 = vld [vmem:[%s1 + $0x20] sm:$0xff]
        %v555 = vld [vmem:[%s1 + $0x28] sm:$0xff]
        %v556 = vld [vmem:[%s1 + $0x30] sm:$0xff]
        %v557 = vld [vmem:[%s1 + $0x38] sm:$0xff]
        %v558 = vld [vmem:[%s1 + $0x40] sm:$0xff]
        %v559 = vld [vmem:[%s1 + $0x48] sm:$0xff]
        %v560 = vld [vmem:[%s1 + $0x50] sm:$0xff]
        %v561 = vld [vmem:[%s1 + $0x58] sm:$0xff]
        %v562 = vld [vmem:[%s1 + $0x60] sm:$0xff]
        %v563 = vld [vmem:[%s1 + $0x68] sm:$0xff]
        %v564 = vld [vmem:[%s1 + $0x70] sm:$0xff]
        %v565 = vld [vmem:[%s1 + $0x78] sm:$0xff]
        %v566 = vld [vmem:[%s1 + $0x80] sm:$0xff]
        %v567 = vld [vmem:[%s1 + $0x88] sm:$0xff]
        %v568 = vld [vmem:[%s1 + $0x90] sm:$0xff]
        %v569 = vld [vmem:[%s1 + $0x98] sm:$0xff]
        %v570 = vld [vmem:[%s1 + $0xa0] sm:$0xff]
        %v571 = vld [vmem:[%s1 + $0xa8] sm:$0xff]
        %v572 = vld [vmem:[%s1 + $0xb0] sm:$0xff]
        %v573 = vld [vmem:[%s1 + $0xb8] sm:$0xff]
        %v574 = vld [vmem:[%s1 + $0xc0] sm:$0xff]
        %v575 = vld [vmem:[%s1 + $0xc8] sm:$0xff]
        %v576 = vld [vmem:[%s1 + $0xd0] sm:$0xff]
        %v577 = vld [vmem:[%s1 + $0xd8] sm:$0xff]
        %v578 = vld [vmem:[%s1 + $0xe0] sm:$0xff]
        %v579 = vld [vmem:[%s1 + $0xe8] sm:$0xff]
        %v580 = vld [vmem:[%s1 + $0xf0] sm:$0xff]
        %v581 = vld [vmem:[%s1 + $0xf8] sm:$0xff]
        %v582 = vld [vmem:[%s1 + $0x100] sm:$0xff]
        %v583 = vld [vmem:[%s1 + $0x108] sm:$0xff]
        %v584 = vld [vmem:[%s1 + $0x110] sm:$0xff]
        %v585 = vld [vmem:[%s1 + $0x118] sm:$0xff]
        %v586 = vld [vmem:[%s1 + $0x120] sm:$0xff]
        %v587 = vld [vmem:[%s1 + $0x128] sm:$0xff]
        %v588 = vld [vmem:[%s1 + $0x130] sm:$0xff]
        %v589 = vld [vmem:[%s1 + $0x138] sm:$0xff]
        %v590 = vld [vmem:[%s1 + $0x140] sm:$0xff]
        %v591 = vld [vmem:[%s1 + $0x148] sm:$0xff]
        %v592 = vld [vmem:[%s1 + $0x150] sm:$0xff]
        %v593 = vld [vmem:[%s1 + $0x158] sm:$0xff]
        %v594 = vld [vmem:[%s1 + $0x160] sm:$0xff]
        %v595 = vld [vmem:[%s1 + $0x168] sm:$0xff]
        %v596 = vld [vmem:[%s1 + $0x170] sm:$0xff]
        %v597 = vld [vmem:[%s1 + $0x178] sm:$0xff]
        %v598 = vld [vmem:[%s1 + $0x180] sm:$0xff]
        %v599 = vld [vmem:[%s1 + $0x188] sm:$0xff]
        %v600 = vld [vmem:[%s1 + $0x190] sm:$0xff]
        %v601 = vld [vmem:[%s1 + $0x198] sm:$0xff]
        %v602 = vld [vmem:[%s1 + $0x1a0] sm:$0xff]
        %v603 = vld [vmem:[%s1 + $0x1a8] sm:$0xff]
        %v604 = vld [vmem:[%s1 + $0x1b0] sm:$0xff]
        %v605 = vld [vmem:[%s1 + $0x1b8] sm:$0xff]
        %v606 = vld [vmem:[%s1 + $0x1c0] sm:$0xff]
        %v607 = vld [vmem:[%s1 + $0x1c8] sm:$0xff]
        %v608 = vld [vmem:[%s1 + $0x1d0] sm:$0xff]
        %v609 = vld [vmem:[%s1 + $0x1d8] sm:$0xff]
        %v610 = vld [vmem:[%s1 + $0x1e0] sm:$0xff]
        %v611 = vld [vmem:[%s1 + $0x1e8] sm:$0xff]
        %v612 = vld [vmem:[%s1 + $0x1f0] sm:$0xff]
        %v613 = vld [vmem:[%s1 + $0x1f8] sm:$0xff]
        %v614 = vld [vmem:[%s1 + $0x200] sm:$0xff]
        %v615 = vld [vmem:[%s1 + $0x208] sm:$0xff]
        %v616 = vld [vmem:[%s1 + $0x210] sm:$0xff]
        %v617 = vld [vmem:[%s1 + $0x218] sm:$0xff]
        %v618 = vld [vmem:[%s1 + $0x220] sm:$0xff]
        %v619 = vld [vmem:[%s1 + $0x228] sm:$0xff]
        %v620 = vld [vmem:[%s1 + $0x230] sm:$0xff]
        %v621 = vld [vmem:[%s1 + $0x238] sm:$0xff]
        %v622 = vld [vmem:[%s1 + $0x240] sm:$0xff]
        %v623 = vld [vmem:[%s1 + $0x248] sm:$0xff]
        %v624 = vld [vmem:[%s1 + $0x250] sm:$0xff]
        %v625 = vld [vmem:[%s1 + $0x258] sm:$0xff]
        %v626 = vld [vmem:[%s1 + $0x260] sm:$0xff]
        %v627 = vld [vmem:[%s1 + $0x268] sm:$0xff]
        %v628 = vld [vmem:[%s1 + $0x270] sm:$0xff]
        %v629 = vld [vmem:[%s1 + $0x278] sm:$0xff]
        %v630 = vld [vmem:[%s1 + $0x280] sm:$0xff]
        %v631 = vld [vmem:[%s1 + $0x288] sm:$0xff]
        %v632 = vld [vmem:[%s1 + $0x290] sm:$0xff]
        %v633 = vld [vmem:[%s1 + $0x298] sm:$0xff]
        %v634 = vld [vmem:[%s1 + $0x2a0] sm:$0xff]
        %v635 = vld [vmem:[%s1 + $0x2a8] sm:$0xff]
        %v636 = vld [vmem:[%s1 + $0x2b0] sm:$0xff]
        %v637 = vld [vmem:[%s1 + $0x2b8] sm:$0xff]
        %v638 = vld [vmem:[%s1 + $0x2c0] sm:$0xff]
        %v639 = vld [vmem:[%s1 + $0x2c8] sm:$0xff]
        %v640 = vld [vmem:[%s1 + $0x2d0] sm:$0xff]
        %v641 = vld [vmem:[%s1 + $0x2d8] sm:$0xff]
        %v642 = vld [vmem:[%s1 + $0x2e0] sm:$0xff]
        %v643 = vld [vmem:[%s1 + $0x2e8] sm:$0xff]
        %v644 = vld [vmem:[%s1 + $0x2f0] sm:$0xff]
        %v645 = vld [vmem:[%s1 + $0x2f8] sm:$0xff]
        %v646 = vld [vmem:[%s1 + $0x300] sm:$0xff]
        %v647 = vld [vmem:[%s1 + $0x308] sm:$0xff]
        %v648 = vld [vmem:[%s1 + $0x310] sm:$0xff]
        %v649 = vld [vmem:[%s1 + $0x318] sm:$0xff]
        %v650 = vld [vmem:[%s1 + $0x320] sm:$0xff]
        %v651 = vld [vmem:[%s1 + $0x328] sm:$0xff]
        %v652 = vld [vmem:[%s1 + $0x330] sm:$0xff]
        %v653 = vld [vmem:[%s1 + $0x338] sm:$0xff]
        %v654 = vld [vmem:[%s1 + $0x340] sm:$0xff]
        %v655 = vld [vmem:[%s1 + $0x348] sm:$0xff]
        %v656 = vld [vmem:[%s1 + $0x350] sm:$0xff]
        %v657 = vld [vmem:[%s1 + $0x358] sm:$0xff]
        %v658 = vld [vmem:[%s1 + $0x360] sm:$0xff]
        %v659 = vld [vmem:[%s1 + $0x368] sm:$0xff]
        %v660 = vld [vmem:[%s1 + $0x370] sm:$0xff]
        %v661 = vld [vmem:[%s1 + $0x378] sm:$0xff]
        %v662 = vld [vmem:[%s1 + $0x380] sm:$0xff]
        %v663 = vld [vmem:[%s1 + $0x388] sm:$0xff]
        %v664 = vld [vmem:[%s1 + $0x390] sm:$0xff]
        %v665 = vld [vmem:[%s1 + $0x398] sm:$0xff]
        %v666 = vld [vmem:[%s1 + $0x3a0] sm:$0xff]
        %v667 = vld [vmem:[%s1 + $0x3a8] sm:$0xff]
        %v668 = vld [vmem:[%s1 + $0x3b0] sm:$0xff]
        %v669 = vld [vmem:[%s1 + $0x3b8] sm:$0xff]
        %v670 = vld [vmem:[%s1 + $0x3c0] sm:$0xff]
        %v671 = vld [vmem:[%s1 + $0x3c8] sm:$0xff]
        %v672 = vld [vmem:[%s1 + $0x3d0] sm:$0xff]
        %v673 = vld [vmem:[%s1 + $0x3d8] sm:$0xff]
        %v674 = vld [vmem:[%s1 + $0x3e0] sm:$0xff]
        %v675 = vld [vmem:[%s1 + $0x3e8] sm:$0xff]
        %v676 = vld [vmem:[%s1 + $0x3f0] sm:$0xff]
        %v677 = vld [vmem:[%s1 + $0x3f8] sm:$0xff]
        %v678 = vld [vmem:[%s1 + $0x400] sm:$0xff]
        %v679 = vld [vmem:[%s1 + $0x408] sm:$0xff]
        %v680 = vld [vmem:[%s1 + $0x410] sm:$0xff]
        %v681 = vld [vmem:[%s1 + $0x418] sm:$0xff]
        %v682 = vld [vmem:[%s1 + $0x420] sm:$0xff]
        %v683 = vld [vmem:[%s1 + $0x428] sm:$0xff]
        %v684 = vld [vmem:[%s1 + $0x430] sm:$0xff]
        %v685 = vld [vmem:[%s1 + $0x438] sm:$0xff]
        %v686 = vld [vmem:[%s1 + $0x440] sm:$0xff]
        %v687 = vld [vmem:[%s1 + $0x448] sm:$0xff]
        %v688 = vld [vmem:[%s1 + $0x450] sm:$0xff]
        %v689 = vld [vmem:[%s1 + $0x458] sm:$0xff]
        %v690 = vld [vmem:[%s1 + $0x460] sm:$0xff]
        %v691 = vld [vmem:[%s1 + $0x468] sm:$0xff]
        %v692 = vld [vmem:[%s1 + $0x470] sm:$0xff]
        %v693 = vld [vmem:[%s1 + $0x478] sm:$0xff]
        %v694 = vld [vmem:[%s1 + $0x480] sm:$0xff]
        %v695 = vld [vmem:[%s1 + $0x488] sm:$0xff]
        %v696 = vld [vmem:[%s1 + $0x490] sm:$0xff]
        %v697 = vld [vmem:[%s1 + $0x498] sm:$0xff]
        %v698 = vld [vmem:[%s1 + $0x4a0] sm:$0xff]
        %v699 = vld [vmem:[%s1 + $0x4a8] sm:$0xff]
        %v700 = vld [vmem:[%s1 + $0x4b0] sm:$0xff]
        %v701 = vld [vmem:[%s1 + $0x4b8] sm:$0xff]
        %v702 = vld [vmem:[%s1 + $0x4c0] sm:$0xff]
        %v703 = vld [vmem:[%s1 + $0x4c8] sm:$0xff]
        %v704 = vld [vmem:[%s1 + $0x4d0] sm:$0xff]
        %v705 = vld [vmem:[%s1 + $0x4d8] sm:$0xff]
        %v706 = vld [vmem:[%s1 + $0x4e0] sm:$0xff]
        %v707 = vld [vmem:[%s1 + $0x4e8] sm:$0xff]
        %v708 = vld [vmem:[%s1 + $0x4f0] sm:$0xff]
        %v709 = vld [vmem:[%s1 + $0x4f8] sm:$0xff]
        %v710 = vld [vmem:[%s1 + $0x500] sm:$0xff]
        %v711 = vld [vmem:[%s1 + $0x508] sm:$0xff]
        %v712 = vld [vmem:[%s1 + $0x510] sm:$0xff]
        %v713 = vld [vmem:[%s1 + $0x518] sm:$0xff]
        %v714 = vld [vmem:[%s1 + $0x520] sm:$0xff]
        %v715 = vld [vmem:[%s1 + $0x528] sm:$0xff]
        %v716 = vld [vmem:[%s1 + $0x530] sm:$0xff]
        %v717 = vld [vmem:[%s1 + $0x538] sm:$0xff]
        %v718 = vld [vmem:[%s1 + $0x540] sm:$0xff]
        %v719 = vld [vmem:[%s1 + $0x548] sm:$0xff]
        %v720 = vld [vmem:[%s1 + $0x550] sm:$0xff]
        %v721 = vld [vmem:[%s1 + $0x558] sm:$0xff]
        %v722 = vld [vmem:[%s1 + $0x560] sm:$0xff]
        %v723 = vld [vmem:[%s1 + $0x568] sm:$0xff]
        %v724 = vld [vmem:[%s1 + $0x570] sm:$0xff]
        %v725 = vld [vmem:[%s1 + $0x578] sm:$0xff]
        %v726 = vld [vmem:[%s1 + $0x580] sm:$0xff]
        %v727 = vld [vmem:[%s1 + $0x588] sm:$0xff]
        %v728 = vld [vmem:[%s1 + $0x590] sm:$0xff]
        %v729 = vld [vmem:[%s1 + $0x598] sm:$0xff]
        %v730 = vld [vmem:[%s1 + $0x5a0] sm:$0xff]
        %v731 = vld [vmem:[%s1 + $0x5a8] sm:$0xff]
        %v732 = vld [vmem:[%s1 + $0x5b0] sm:$0xff]
        %v733 = vld [vmem:[%s1 + $0x5b8] sm:$0xff]
        %v734 = vld [vmem:[%s1 + $0x5c0] sm:$0xff]
        %v735 = vld [vmem:[%s1 + $0x5c8] sm:$0xff]
        %v736 = vld [vmem:[%s1 + $0x5d0] sm:$0xff]
        %v737 = vld [vmem:[%s1 + $0x5d8] sm:$0xff]
        %v738 = vld [vmem:[%s1 + $0x5e0] sm:$0xff]
        %v739 = vld [vmem:[%s1 + $0x5e8] sm:$0xff]
        %v740 = vld [vmem:[%s1 + $0x5f0] sm:$0xff]
        %v741 = vld [vmem:[%s1 + $0x5f8] sm:$0xff]
        %v742 = vld [vmem:[%s1 + $0x600] sm:$0xff]
        %v743 = vld [vmem:[%s1 + $0x608] sm:$0xff]
        %v744 = vld [vmem:[%s1 + $0x610] sm:$0xff]
        %v745 = vld [vmem:[%s1 + $0x618] sm:$0xff]
        %v746 = vld [vmem:[%s1 + $0x620] sm:$0xff]
        %v747 = vld [vmem:[%s1 + $0x628] sm:$0xff]
        %v748 = vld [vmem:[%s1 + $0x630] sm:$0xff]
        %v749 = vld [vmem:[%s1 + $0x638] sm:$0xff]
        %v750 = vld [vmem:[%s1 + $0x640] sm:$0xff]
        %v751 = vld [vmem:[%s1 + $0x648] sm:$0xff]
        %v752 = vld [vmem:[%s1 + $0x650] sm:$0xff]
        %v753 = vld [vmem:[%s1 + $0x658] sm:$0xff]
        %v754 = vld [vmem:[%s1 + $0x660] sm:$0xff]
        %v755 = vld [vmem:[%s1 + $0x668] sm:$0xff]
        %v756 = vld [vmem:[%s1 + $0x670] sm:$0xff]
        %v757 = vld [vmem:[%s1 + $0x678] sm:$0xff]
        %v758 = vld [vmem:[%s1 + $0x680] sm:$0xff]
        %v759 = vld [vmem:[%s1 + $0x688] sm:$0xff]
        %v760 = vld [vmem:[%s1 + $0x690] sm:$0xff]
        %v761 = vld [vmem:[%s1 + $0x698] sm:$0xff]
        %v762 = vld [vmem:[%s1 + $0x6a0] sm:$0xff]
        %v763 = vld [vmem:[%s1 + $0x6a8] sm:$0xff]
        %v764 = vld [vmem:[%s1 + $0x6b0] sm:$0xff]
        %v765 = vld [vmem:[%s1 + $0x6b8] sm:$0xff]
        %v766 = vld [vmem:[%s1 + $0x6c0] sm:$0xff]
        %v767 = vld [vmem:[%s1 + $0x6c8] sm:$0xff]
        %v768 = vld [vmem:[%s1 + $0x6d0] sm:$0xff]
        %v769 = vld [vmem:[%s1 + $0x6d8] sm:$0xff]
        %v770 = vld [vmem:[%s1 + $0x6e0] sm:$0xff]
        %v771 = vld [vmem:[%s1 + $0x6e8] sm:$0xff]
        %v772 = vld [vmem:[%s1 + $0x6f0] sm:$0xff]
        %v773 = vld [vmem:[%s1 + $0x6f8] sm:$0xff]
        %v774 = vld [vmem:[%s1 + $0x700] sm:$0xff]
        %v775 = vld [vmem:[%s1 + $0x708] sm:$0xff]
        %v776 = vld [vmem:[%s1 + $0x710] sm:$0xff]
        %v777 = vld [vmem:[%s1 + $0x718] sm:$0xff]
        %v778 = vld [vmem:[%s1 + $0x720] sm:$0xff]
        %v779 = vld [vmem:[%s1 + $0x728] sm:$0xff]
        %v780 = vld [vmem:[%s1 + $0x730] sm:$0xff]
        %v781 = vld [vmem:[%s1 + $0x738] sm:$0xff]
        %v782 = vld [vmem:[%s1 + $0x740] sm:$0xff]
        %v783 = vld [vmem:[%s1 + $0x748] sm:$0xff]
        %v784 = vld [vmem:[%s1 + $0x750] sm:$0xff]
        %v785 = vld [vmem:[%s1 + $0x758] sm:$0xff]
        %v786 = vld [vmem:[%s1 + $0x760] sm:$0xff]
        %v787 = vld [vmem:[%s1 + $0x768] sm:$0xff]
        %v788 = vld [vmem:[%s1 + $0x770] sm:$0xff]
        %v789 = vld [vmem:[%s1 + $0x778] sm:$0xff]
        %v790 = vld [vmem:[%s1 + $0x780] sm:$0xff]
        %v791 = vld [vmem:[%s1 + $0x788] sm:$0xff]
        %v792 = vld [vmem:[%s1 + $0x790] sm:$0xff]
        %v793 = vld [vmem:[%s1 + $0x798] sm:$0xff]
        %v794 = vld [vmem:[%s1 + $0x7a0] sm:$0xff]
        %v795 = vld [vmem:[%s1 + $0x7a8] sm:$0xff]
        %v796 = vld [vmem:[%s1 + $0x7b0] sm:$0xff]
        %v797 = vld [vmem:[%s1 + $0x7b8] sm:$0xff]
        %v798 = vld [vmem:[%s1 + $0x7c0] sm:$0xff]
        %v799 = vld [vmem:[%s1 + $0x7c8] sm:$0xff]
        %v800 = vld [vmem:[%s1 + $0x7d0] sm:$0xff]
        %v801 = vld [vmem:[%s1 + $0x7d8] sm:$0xff]
        %v802 = vld [vmem:[%s1 + $0x7e0] sm:$0xff]
        %v803 = vld [vmem:[%s1 + $0x7e8] sm:$0xff]
        %v804 = vld [vmem:[%s1 + $0x7f0] sm:$0xff]
        %v805 = vld [vmem:[%s1 + $0x7f8] sm:$0xff]
        %v806 = vld [vmem:[%s1 + $0x800] sm:$0xff]
        %v807 = vld [vmem:[%s1 + $0x808] sm:$0xff]
        %v808 = vld [vmem:[%s1 + $0x810] sm:$0xff]
        %v809 = vld [vmem:[%s1 + $0x818] sm:$0xff]
        %v810 = vld [vmem:[%s1 + $0x820] sm:$0xff]
        %v811 = vld [vmem:[%s1 + $0x828] sm:$0xff]
        %v812 = vld [vmem:[%s1 + $0x830] sm:$0xff]
        %v813 = vld [vmem:[%s1 + $0x838] sm:$0xff]
        %v814 = vld [vmem:[%s1 + $0x840] sm:$0xff]
        %v815 = vld [vmem:[%s1 + $0x848] sm:$0xff]
        %v816 = vld [vmem:[%s1 + $0x850] sm:$0xff]
        %v817 = vld [vmem:[%s1 + $0x858] sm:$0xff]
        %v818 = vld [vmem:[%s1 + $0x860] sm:$0xff]
        %v819 = vld [vmem:[%s1 + $0x868] sm:$0xff]
        %v820 = vld [vmem:[%s1 + $0x870] sm:$0xff]
        %v821 = vld [vmem:[%s1 + $0x878] sm:$0xff]
        %v822 = vld [vmem:[%s1 + $0x880] sm:$0xff]
        %v823 = vld [vmem:[%s1 + $0x888] sm:$0xff]
        %v824 = vld [vmem:[%s1 + $0x890] sm:$0xff]
        %v825 = vld [vmem:[%s1 + $0x898] sm:$0xff]
        %v826 = vld [vmem:[%s1 + $0x8a0] sm:$0xff]
        %v827 = vld [vmem:[%s1 + $0x8a8] sm:$0xff]
        %v828 = vld [vmem:[%s1 + $0x8b0] sm:$0xff]
        %v829 = vld [vmem:[%s1 + $0x8b8] sm:$0xff]
        %v830 = vld [vmem:[%s1 + $0x8c0] sm:$0xff]
        %v831 = vld [vmem:[%s1 + $0x8c8] sm:$0xff]
        %v832 = vld [vmem:[%s1 + $0x8d0] sm:$0xff]
        %v833 = vld [vmem:[%s1 + $0x8d8] sm:$0xff]
        %v834 = vld [vmem:[%s1 + $0x8e0] sm:$0xff]
        %v835 = vld [vmem:[%s1 + $0x8e8] sm:$0xff]
        %v836 = vld [vmem:[%s1 + $0x8f0] sm:$0xff]
        %v837 = vld [vmem:[%s1 + $0x8f8] sm:$0xff]
        %v838 = vld [vmem:[%s1 + $0x900] sm:$0xff]
        %v839 = vld [vmem:[%s1 + $0x908] sm:$0xff]
        %v840 = vld [vmem:[%s1 + $0x910] sm:$0xff]
        %v841 = vld [vmem:[%s1 + $0x918] sm:$0xff]
        %v842 = vld [vmem:[%s1 + $0x920] sm:$0xff]
        %v843 = vld [vmem:[%s1 + $0x928] sm:$0xff]
        %v1004 = vunpack.c.l.b16 %v390
        %v1005 = vunpack.c.h.b16 %v390
        %v1006 = vunpack.c.l.b16 %v391
        %v1007 = vunpack.c.h.b16 %v391
        %v1008 = vunpack.c.l.b16 %v392
        %v1009 = vunpack.c.h.b16 %v392
        %v1010 = vunpack.c.l.b16 %v393
        %v1011 = vunpack.c.h.b16 %v393
        %v1012 = vunpack.c.l.b16 %v394
        %v1013 = vunpack.c.h.b16 %v394
        %v1014 = vunpack.c.l.b16 %v395
        %v1015 = vunpack.c.h.b16 %v395
        %v1016 = vunpack.c.l.b16 %v396
        %v1017 = vunpack.c.h.b16 %v396
        %v1018 = vunpack.c.l.b16 %v397
        %v1019 = vunpack.c.h.b16 %v397
        %v1020 = vunpack.c.l.b16 %v398
        %v1021 = vunpack.c.h.b16 %v398
        %v1022 = vunpack.c.l.b16 %v399
        %v1023 = vunpack.c.l.b16 %v400
        %v1024 = vunpack.c.h.b16 %v400
        %v1025 = vunpack.c.l.b16 %v401
        %v1026 = vunpack.c.h.b16 %v401
        %v1027 = vunpack.c.l.b16 %v402
        %v1028 = vunpack.c.h.b16 %v402
        %v1029 = vunpack.c.l.b16 %v403
        %v1030 = vunpack.c.h.b16 %v403
        %v1031 = vunpack.c.l.b16 %v404
        %v1032 = vunpack.c.h.b16 %v404
        %v1033 = vunpack.c.l.b16 %v405
        %v1034 = vunpack.c.h.b16 %v405
        %v1035 = vunpack.c.l.b16 %v406
        %v1036 = vunpack.c.h.b16 %v406
        %v1037 = vunpack.c.l.b16 %v407
        %v1038 = vunpack.c.h.b16 %v407
        %v1039 = vunpack.c.l.b16 %v408
        %v1040 = vunpack.c.h.b16 %v408
        %v1041 = vunpack.c.l.b16 %v409
        %v1042 = vunpack.c.l.b16 %v410
        %v1043 = vunpack.c.h.b16 %v410
        %v1044 = vunpack.c.l.b16 %v411
        %v1045 = vunpack.c.h.b16 %v411
        %v1046 = vunpack.c.l.b16 %v412
        %v1047 = vunpack.c.h.b16 %v412
        %v1048 = vunpack.c.l.b16 %v413
        %v1049 = vunpack.c.h.b16 %v413
        %v1050 = vunpack.c.l.b16 %v414
        %v1051 = vunpack.c.h.b16 %v414
        %v1052 = vunpack.c.l.b16 %v415
        %v1053 = vunpack.c.h.b16 %v415
        %v1054 = vunpack.c.l.b16 %v416
        %v1055 = vunpack.c.h.b16 %v416
        %v1056 = vunpack.c.l.b16 %v417
        %v1057 = vunpack.c.h.b16 %v417
        %v1058 = vunpack.c.l.b16 %v418
        %v1059 = vunpack.c.h.b16 %v418
        %v1060 = vunpack.c.l.b16 %v419
        %v1061 = vunpack.c.l.b16 %v420
        %v1062 = vunpack.c.h.b16 %v420
        %v1063 = vunpack.c.l.b16 %v421
        %v1064 = vunpack.c.h.b16 %v421
        %v1065 = vunpack.c.l.b16 %v422
        %v1066 = vunpack.c.h.b16 %v422
        %v1067 = vunpack.c.l.b16 %v423
        %v1068 = vunpack.c.h.b16 %v423
        %v1069 = vunpack.c.l.b16 %v424
        %v1070 = vunpack.c.h.b16 %v424
        %v1071 = vunpack.c.l.b16 %v425
        %v1072 = vunpack.c.h.b16 %v425
        %v1073 = vunpack.c.l.b16 %v426
        %v1074 = vunpack.c.h.b16 %v426
        %v1075 = vunpack.c.l.b16 %v427
        %v1076 = vunpack.c.h.b16 %v427
        %v1077 = vunpack.c.l.b16 %v428
        %v1078 = vunpack.c.h.b16 %v428
        %v1079 = vunpack.c.l.b16 %v429
        %v1080 = vunpack.c.l.b16 %v430
        %v1081 = vunpack.c.h.b16 %v430
        %v1082 = vunpack.c.l.b16 %v431
        %v1083 = vunpack.c.h.b16 %v431
        %v1084 = vunpack.c.l.b16 %v432
        %v1085 = vunpack.c.h.b16 %v432
        %v1086 = vunpack.c.l.b16 %v433
        %v1087 = vunpack.c.h.b16 %v433
        %v1088 = vunpack.c.l.b16 %v434
        %v1089 = vunpack.c.h.b16 %v434
        %v1090 = vunpack.c.l.b16 %v435
        %v1091 = vunpack.c.h.b16 %v435
        %v1092 = vunpack.c.l.b16 %v436
        %v1093 = vunpack.c.h.b16 %v436
        %v1094 = vunpack.c.l.b16 %v437
        %v1095 = vunpack.c.h.b16 %v437
        %v1096 = vunpack.c.l.b16 %v438
        %v1097 = vunpack.c.h.b16 %v438
        %v1098 = vunpack.c.l.b16 %v439
        %v1099 = vunpack.c.l.b16 %v440
        %v1100 = vunpack.c.h.b16 %v440
        %v1101 = vunpack.c.l.b16 %v441
        %v1102 = vunpack.c.h.b16 %v441
        %v1103 = vunpack.c.l.b16 %v442
        %v1104 = vunpack.c.h.b16 %v442
        %v1105 = vunpack.c.l.b16 %v443
        %v1106 = vunpack.c.h.b16 %v443
        %v1107 = vunpack.c.l.b16 %v444
        %v1108 = vunpack.c.h.b16 %v444
        %v1109 = vunpack.c.l.b16 %v445
        %v1110 = vunpack.c.h.b16 %v445
        %v1111 = vunpack.c.l.b16 %v446
        %v1112 = vunpack.c.h.b16 %v446
        %v1113 = vunpack.c.l.b16 %v447
        %v1114 = vunpack.c.h.b16 %v447
        %v1115 = vunpack.c.l.b16 %v448
        %v1116 = vunpack.c.h.b16 %v448
        %v1117 = vunpack.c.l.b16 %v449
        %v1118 = vunpack.c.l.b16 %v450
        %v1119 = vunpack.c.h.b16 %v450
        %v1120 = vunpack.c.l.b16 %v451
        %v1121 = vunpack.c.h.b16 %v451
        %v1122 = vunpack.c.l.b16 %v452
        %v1123 = vunpack.c.h.b16 %v452
        %v1124 = vunpack.c.l.b16 %v453
        %v1125 = vunpack.c.h.b16 %v453
        %v1126 = vunpack.c.l.b16 %v454
        %v1127 = vunpack.c.h.b16 %v454
        %v1128 = vunpack.c.l.b16 %v455
        %v1129 = vunpack.c.h.b16 %v455
        %v1130 = vunpack.c.l.b16 %v456
        %v1131 = vunpack.c.h.b16 %v456
        %v1132 = vunpack.c.l.b16 %v457
        %v1133 = vunpack.c.h.b16 %v457
        %v1134 = vunpack.c.l.b16 %v458
        %v1135 = vunpack.c.h.b16 %v458
        %v1136 = vunpack.c.l.b16 %v459
        %v1137 = vunpack.c.l.b16 %v460
        %v1138 = vunpack.c.h.b16 %v460
        %v1139 = vunpack.c.l.b16 %v461
        %v1140 = vunpack.c.h.b16 %v461
        %v1141 = vunpack.c.l.b16 %v462
        %v1142 = vunpack.c.h.b16 %v462
        %v1143 = vunpack.c.l.b16 %v463
        %v1144 = vunpack.c.h.b16 %v463
        %v1145 = vunpack.c.l.b16 %v464
        %v1146 = vunpack.c.h.b16 %v464
        %v1147 = vunpack.c.l.b16 %v465
        %v1148 = vunpack.c.h.b16 %v465
        %v1149 = vunpack.c.l.b16 %v466
        %v1150 = vunpack.c.h.b16 %v466
        %v1151 = vunpack.c.l.b16 %v467
        %v1152 = vunpack.c.h.b16 %v467
        %v1153 = vunpack.c.l.b16 %v468
        %v1154 = vunpack.c.h.b16 %v468
        %v1155 = vunpack.c.l.b16 %v469
        %v1156 = vunpack.c.l.b16 %v470
        %v1157 = vunpack.c.h.b16 %v470
        %v1158 = vunpack.c.l.b16 %v471
        %v1159 = vunpack.c.h.b16 %v471
        %v1160 = vunpack.c.l.b16 %v472
        %v1161 = vunpack.c.h.b16 %v472
        %v1162 = vunpack.c.l.b16 %v473
        %v1163 = vunpack.c.h.b16 %v473
        %v1164 = vunpack.c.l.b16 %v474
        %v1165 = vunpack.c.h.b16 %v474
        %v1166 = vunpack.c.l.b16 %v475
        %v1167 = vunpack.c.h.b16 %v475
        %v1168 = vunpack.c.l.b16 %v476
        %v1169 = vunpack.c.h.b16 %v476
        %v1170 = vunpack.c.l.b16 %v477
        %v1171 = vunpack.c.h.b16 %v477
        %v1172 = vunpack.c.l.b16 %v478
        %v1173 = vunpack.c.h.b16 %v478
        %v1174 = vunpack.c.l.b16 %v479
        %v1175 = vunpack.c.l.b16 %v480
        %v1176 = vunpack.c.h.b16 %v480
        %v1177 = vunpack.c.l.b16 %v481
        %v1178 = vunpack.c.h.b16 %v481
        %v1179 = vunpack.c.l.b16 %v482
        %v1180 = vunpack.c.h.b16 %v482
        %v1181 = vunpack.c.l.b16 %v483
        %v1182 = vunpack.c.h.b16 %v483
        %v1183 = vunpack.c.l.b16 %v484
        %v1184 = vunpack.c.h.b16 %v484
        %v1185 = vunpack.c.l.b16 %v485
        %v1186 = vunpack.c.h.b16 %v485
        %v1187 = vunpack.c.l.b16 %v486
        %v1188 = vunpack.c.h.b16 %v486
        %v1189 = vunpack.c.l.b16 %v487
        %v1190 = vunpack.c.h.b16 %v487
        %v1191 = vunpack.c.l.b16 %v488
        %v1192 = vunpack.c.h.b16 %v488
        %v1193 = vunpack.c.l.b16 %v489
        %v1194 = vunpack.c.l.b16 %v490
        %v1195 = vunpack.c.h.b16 %v490
        %v1196 = vunpack.c.l.b16 %v491
        %v1197 = vunpack.c.h.b16 %v491
        %v1198 = vunpack.c.l.b16 %v492
        %v1199 = vunpack.c.h.b16 %v492
        %v1200 = vunpack.c.l.b16 %v493
        %v1201 = vunpack.c.h.b16 %v493
        %v1202 = vunpack.c.l.b16 %v494
        %v1203 = vunpack.c.h.b16 %v494
        %v1204 = vunpack.c.l.b16 %v495
        %v1205 = vunpack.c.h.b16 %v495
        %v1206 = vunpack.c.l.b16 %v496
        %v1207 = vunpack.c.h.b16 %v496
        %v1208 = vunpack.c.l.b16 %v497
        %v1209 = vunpack.c.h.b16 %v497
        %v1210 = vunpack.c.l.b16 %v498
        %v1211 = vunpack.c.h.b16 %v498
        %v1212 = vunpack.c.l.b16 %v499
        %v1213 = vunpack.c.l.b16 %v500
        %v1214 = vunpack.c.h.b16 %v500
        %v1215 = vunpack.c.l.b16 %v501
        %v1216 = vunpack.c.h.b16 %v501
        %v1217 = vunpack.c.l.b16 %v502
        %v1218 = vunpack.c.h.b16 %v502
        %v1219 = vunpack.c.l.b16 %v503
        %v1220 = vunpack.c.h.b16 %v503
        %v1221 = vunpack.c.l.b16 %v504
        %v1222 = vunpack.c.h.b16 %v504
        %v1223 = vunpack.c.l.b16 %v505
        %v1224 = vunpack.c.h.b16 %v505
        %v1225 = vunpack.c.l.b16 %v506
        %v1226 = vunpack.c.h.b16 %v506
        %v1227 = vunpack.c.l.b16 %v507
        %v1228 = vunpack.c.h.b16 %v507
        %v1229 = vunpack.c.l.b16 %v508
        %v1230 = vunpack.c.h.b16 %v508
        %v1231 = vunpack.c.l.b16 %v509
        %v1232 = vunpack.c.l.b16 %v510
        %v1233 = vunpack.c.h.b16 %v510
        %v1234 = vunpack.c.l.b16 %v511
        %v1235 = vunpack.c.h.b16 %v511
        %v1236 = vunpack.c.l.b16 %v512
        %v1237 = vunpack.c.h.b16 %v512
        %v1238 = vunpack.c.l.b16 %v513
        %v1239 = vunpack.c.h.b16 %v513
        %v1240 = vunpack.c.l.b16 %v514
        %v1241 = vunpack.c.h.b16 %v514
        %v1242 = vunpack.c.l.b16 %v515
        %v1243 = vunpack.c.h.b16 %v515
        %v1244 = vunpack.c.l.b16 %v516
        %v1245 = vunpack.c.h.b16 %v516
        %v1246 = vunpack.c.l.b16 %v517
        %v1247 = vunpack.c.h.b16 %v517
        %v1248 = vunpack.c.l.b16 %v518
        %v1249 = vunpack.c.h.b16 %v518
        %v1250 = vunpack.c.l.b16 %v519
        %v1251 = vunpack.c.l.b16 %v520
        %v1252 = vunpack.c.h.b16 %v520
        %v1253 = vunpack.c.l.b16 %v521
        %v1254 = vunpack.c.h.b16 %v521
        %v1255 = vunpack.c.l.b16 %v522
        %v1256 = vunpack.c.h.b16 %v522
        %v1257 = vunpack.c.l.b16 %v523
        %v1258 = vunpack.c.h.b16 %v523
        %v1259 = vunpack.c.l.b16 %v524
        %v1260 = vunpack.c.h.b16 %v524
        %v1261 = vunpack.c.l.b16 %v525
        %v1262 = vunpack.c.h.b16 %v525
        %v1263 = vunpack.c.l.b16 %v526
        %v1264 = vunpack.c.h.b16 %v526
        %v1265 = vunpack.c.l.b16 %v527
        %v1266 = vunpack.c.h.b16 %v527
        %v1267 = vunpack.c.l.b16 %v528
        %v1268 = vunpack.c.h.b16 %v528
        %v1269 = vunpack.c.l.b16 %v529
        %v1270 = vunpack.c.l.b16 %v530
        %v1271 = vunpack.c.h.b16 %v530
        %v1272 = vunpack.c.l.b16 %v531
        %v1273 = vunpack.c.h.b16 %v531
        %v1274 = vunpack.c.l.b16 %v532
        %v1275 = vunpack.c.h.b16 %v532
        %v1276 = vunpack.c.l.b16 %v533
        %v1277 = vunpack.c.h.b16 %v533
        %v1278 = vunpack.c.l.b16 %v534
        %v1279 = vunpack.c.h.b16 %v534
        %v1280 = vunpack.c.l.b16 %v535
        %v1281 = vunpack.c.h.b16 %v535
        %v1282 = vunpack.c.l.b16 %v536
        %v1283 = vunpack.c.h.b16 %v536
        %v1284 = vunpack.c.l.b16 %v537
        %v1285 = vunpack.c.h.b16 %v537
        %v1286 = vunpack.c.l.b16 %v538
        %v1287 = vunpack.c.h.b16 %v538
        %v1288 = vunpack.c.l.b16 %v539
        %v1289 = vunpack.c.l.b16 %v540
        %v1290 = vunpack.c.h.b16 %v540
        %v1291 = vunpack.c.l.b16 %v541
        %v1292 = vunpack.c.h.b16 %v541
        %v1293 = vunpack.c.l.b16 %v542
        %v1294 = vunpack.c.h.b16 %v542
        %v1295 = vunpack.c.l.b16 %v543
        %v1296 = vunpack.c.h.b16 %v543
        %v1297 = vunpack.c.l.b16 %v544
        %v1298 = vunpack.c.h.b16 %v544
        %v1299 = vunpack.c.l.b16 %v545
        %v1300 = vunpack.c.h.b16 %v545
        %v1301 = vunpack.c.l.b16 %v546
        %v1302 = vunpack.c.h.b16 %v546
        %v1303 = vunpack.c.l.b16 %v547
        %v1304 = vunpack.c.h.b16 %v547
        %v1305 = vunpack.c.l.b16 %v548
        %v1306 = vunpack.c.h.b16 %v548
        %v1307 = vunpack.c.l.b16 %v549
        %v1308 = vpack.c.b16 %v1023, %v1004
        %v1309 = vpack.c.b16 %v1024, %v1005
        %v1310 = vpack.c.b16 %v1025, %v1006
        %v1311 = vpack.c.b16 %v1026, %v1007
        %v1312 = vpack.c.b16 %v1027, %v1008
        %v1313 = vpack.c.b16 %v1028, %v1009
        %v1314 = vpack.c.b16 %v1029, %v1010
        %v1315 = vpack.c.b16 %v1030, %v1011
        %v1316 = vpack.c.b16 %v1031, %v1012
        %v1317 = vpack.c.b16 %v1032, %v1013
        %v1318 = vpack.c.b16 %v1033, %v1014
        %v1319 = vpack.c.b16 %v1034, %v1015
        %v1320 = vpack.c.b16 %v1035, %v1016
        %v1321 = vpack.c.b16 %v1036, %v1017
        %v1322 = vpack.c.b16 %v1037, %v1018
        %v1323 = vpack.c.b16 %v1038, %v1019
        %v1324 = vpack.c.b16 %v1039, %v1020
        %v1325 = vpack.c.b16 %v1040, %v1021
        %v1326 = vpack.c.b16 %v1041, %v1022
        %v1327 = vpack.c.b16 %v1061, %v1042
        %v1328 = vpack.c.b16 %v1062, %v1043
        %v1329 = vpack.c.b16 %v1063, %v1044
        %v1330 = vpack.c.b16 %v1064, %v1045
        %v1331 = vpack.c.b16 %v1065, %v1046
        %v1332 = vpack.c.b16 %v1066, %v1047
        %v1333 = vpack.c.b16 %v1067, %v1048
        %v1334 = vpack.c.b16 %v1068, %v1049
        %v1335 = vpack.c.b16 %v1069, %v1050
        %v1336 = vpack.c.b16 %v1070, %v1051
        %v1337 = vpack.c.b16 %v1071, %v1052
        %v1338 = vpack.c.b16 %v1072, %v1053
        %v1339 = vpack.c.b16 %v1073, %v1054
        %v1340 = vpack.c.b16 %v1074, %v1055
        %v1341 = vpack.c.b16 %v1075, %v1056
        %v1342 = vpack.c.b16 %v1076, %v1057
        %v1343 = vpack.c.b16 %v1077, %v1058
        %v1344 = vpack.c.b16 %v1078, %v1059
        %v1345 = vpack.c.b16 %v1079, %v1060
        %v1346 = vpack.c.b16 %v1099, %v1080
        %v1347 = vpack.c.b16 %v1100, %v1081
        %v1348 = vpack.c.b16 %v1101, %v1082
        %v1349 = vpack.c.b16 %v1102, %v1083
        %v1350 = vpack.c.b16 %v1103, %v1084
        %v1351 = vpack.c.b16 %v1104, %v1085
        %v1352 = vpack.c.b16 %v1105, %v1086
        %v1353 = vpack.c.b16 %v1106, %v1087
        %v1354 = vpack.c.b16 %v1107, %v1088
        %v1355 = vpack.c.b16 %v1108, %v1089
        %v1356 = vpack.c.b16 %v1109, %v1090
        %v1357 = vpack.c.b16 %v1110, %v1091
        %v1358 = vpack.c.b16 %v1111, %v1092
        %v1359 = vpack.c.b16 %v1112, %v1093
        %v1360 = vpack.c.b16 %v1113, %v1094
        %v1361 = vpack.c.b16 %v1114, %v1095
        %v1362 = vpack.c.b16 %v1115, %v1096
        %v1363 = vpack.c.b16 %v1116, %v1097
        %v1364 = vpack.c.b16 %v1117, %v1098
        %v1365 = vpack.c.b16 %v1137, %v1118
        %v1366 = vpack.c.b16 %v1138, %v1119
        %v1367 = vpack.c.b16 %v1139, %v1120
        %v1368 = vpack.c.b16 %v1140, %v1121
        %v1369 = vpack.c.b16 %v1141, %v1122
        %v1370 = vpack.c.b16 %v1142, %v1123
        %v1371 = vpack.c.b16 %v1143, %v1124
        %v1372 = vpack.c.b16 %v1144, %v1125
        %v1373 = vpack.c.b16 %v1145, %v1126
        %v1374 = vpack.c.b16 %v1146, %v1127
        %v1375 = vpack.c.b16 %v1147, %v1128
        %v1376 = vpack.c.b16 %v1148, %v1129
        %v1377 = vpack.c.b16 %v1149, %v1130
        %v1378 = vpack.c.b16 %v1150, %v1131
        %v1379 = vpack.c.b16 %v1151, %v1132
        %v1380 = vpack.c.b16 %v1152, %v1133
        %v1381 = vpack.c.b16 %v1153, %v1134
        %v1382 = vpack.c.b16 %v1154, %v1135
        %v1383 = vpack.c.b16 %v1155, %v1136
        %v1384 = vpack.c.b16 %v1175, %v1156
        %v1385 = vpack.c.b16 %v1176, %v1157
        %v1386 = vpack.c.b16 %v1177, %v1158
        %v1387 = vpack.c.b16 %v1178, %v1159
        %v1388 = vpack.c.b16 %v1179, %v1160
        %v1389 = vpack.c.b16 %v1180, %v1161
        %v1390 = vpack.c.b16 %v1181, %v1162
        %v1391 = vpack.c.b16 %v1182, %v1163
        %v1392 = vpack.c.b16 %v1183, %v1164
        %v1393 = vpack.c.b16 %v1184, %v1165
        %v1394 = vpack.c.b16 %v1185, %v1166
        %v1395 = vpack.c.b16 %v1186, %v1167
        %v1396 = vpack.c.b16 %v1187, %v1168
        %v1397 = vpack.c.b16 %v1188, %v1169
        %v1398 = vpack.c.b16 %v1189, %v1170
        %v1399 = vpack.c.b16 %v1190, %v1171
        %v1400 = vpack.c.b16 %v1191, %v1172
        %v1401 = vpack.c.b16 %v1192, %v1173
        %v1402 = vpack.c.b16 %v1193, %v1174
        %v1403 = vpack.c.b16 %v1213, %v1194
        %v1404 = vpack.c.b16 %v1214, %v1195
        %v1405 = vpack.c.b16 %v1215, %v1196
        %v1406 = vpack.c.b16 %v1216, %v1197
        %v1407 = vpack.c.b16 %v1217, %v1198
        %v1408 = vpack.c.b16 %v1218, %v1199
        %v1409 = vpack.c.b16 %v1219, %v1200
        %v1410 = vpack.c.b16 %v1220, %v1201
        %v1411 = vpack.c.b16 %v1221, %v1202
        %v1412 = vpack.c.b16 %v1222, %v1203
        %v1413 = vpack.c.b16 %v1223, %v1204
        %v1414 = vpack.c.b16 %v1224, %v1205
        %v1415 = vpack.c.b16 %v1225, %v1206
        %v1416 = vpack.c.b16 %v1226, %v1207
        %v1417 = vpack.c.b16 %v1227, %v1208
        %v1418 = vpack.c.b16 %v1228, %v1209
        %v1419 = vpack.c.b16 %v1229, %v1210
        %v1420 = vpack.c.b16 %v1230, %v1211
        %v1421 = vpack.c.b16 %v1231, %v1212
        %v1422 = vpack.c.b16 %v1251, %v1232
        %v1423 = vpack.c.b16 %v1252, %v1233
        %v1424 = vpack.c.b16 %v1253, %v1234
        %v1425 = vpack.c.b16 %v1254, %v1235
        %v1426 = vpack.c.b16 %v1255, %v1236
        %v1427 = vpack.c.b16 %v1256, %v1237
        %v1428 = vpack.c.b16 %v1257, %v1238
        %v1429 = vpack.c.b16 %v1258, %v1239
        %v1430 = vpack.c.b16 %v1259, %v1240
        %v1431 = vpack.c.b16 %v1260, %v1241
        %v1432 = vpack.c.b16 %v1261, %v1242
        %v1433 = vpack.c.b16 %v1262, %v1243
        %v1434 = vpack.c.b16 %v1263, %v1244
        %v1435 = vpack.c.b16 %v1264, %v1245
        %v1436 = vpack.c.b16 %v1265, %v1246
        %v1437 = vpack.c.b16 %v1266, %v1247
        %v1438 = vpack.c.b16 %v1267, %v1248
        %v1439 = vpack.c.b16 %v1268, %v1249
        %v1440 = vpack.c.b16 %v1269, %v1250
        %v1441 = vpack.c.b16 %v1289, %v1270
        %v1442 = vpack.c.b16 %v1290, %v1271
        %v1443 = vpack.c.b16 %v1291, %v1272
        %v1444 = vpack.c.b16 %v1292, %v1273
        %v1445 = vpack.c.b16 %v1293, %v1274
        %v1446 = vpack.c.b16 %v1294, %v1275
        %v1447 = vpack.c.b16 %v1295, %v1276
        %v1448 = vpack.c.b16 %v1296, %v1277
        %v1449 = vpack.c.b16 %v1297, %v1278
        %v1450 = vpack.c.b16 %v1298, %v1279
        %v1451 = vpack.c.b16 %v1299, %v1280
        %v1452 = vpack.c.b16 %v1300, %v1281
        %v1453 = vpack.c.b16 %v1301, %v1282
        %v1454 = vpack.c.b16 %v1302, %v1283
        %v1455 = vpack.c.b16 %v1303, %v1284
        %v1456 = vpack.c.b16 %v1304, %v1285
        %v1457 = vpack.c.b16 %v1305, %v1286
        %v1458 = vpack.c.b16 %v1306, %v1287
        %v1459 = vpack.c.b16 %v1307, %v1288
        %v1898 = vunpack.c.l.b16 %v550
        %v1899 = vunpack.c.h.b16 %v550
        %v1900 = vunpack.c.l.b16 %v551
        %v1901 = vunpack.c.h.b16 %v551
        %v1902 = vunpack.c.l.b16 %v552
        %v1903 = vunpack.c.h.b16 %v552
        %v1904 = vunpack.c.l.b16 %v553
        %v1905 = vunpack.c.h.b16 %v553
        %v1906 = vunpack.c.l.b16 %v554
        %v1907 = vunpack.c.h.b16 %v554
        %v1908 = vunpack.c.l.b16 %v555
        %v1909 = vunpack.c.h.b16 %v555
        %v1910 = vunpack.c.l.b16 %v556
        %v1911 = vunpack.c.h.b16 %v556
        %v1912 = vunpack.c.l.b16 %v557
        %v1913 = vunpack.c.h.b16 %v557
        %v1914 = vunpack.c.l.b16 %v558
        %v1915 = vunpack.c.h.b16 %v558
        %v1916 = vunpack.c.l.b16 %v559
        %v1917 = vunpack.c.h.b16 %v559
        %v1918 = vunpack.c.l.b16 %v560
        %v1919 = vunpack.c.h.b16 %v560
        %v1920 = vunpack.c.l.b16 %v561
        %v1921 = vunpack.c.h.b16 %v561
        %v1922 = vunpack.c.l.b16 %v562
        %v1923 = vunpack.c.h.b16 %v562
        %v1924 = vunpack.c.l.b16 %v563
        %v1925 = vunpack.c.h.b16 %v563
        %v1926 = vunpack.c.l.b16 %v564
        %v1927 = vunpack.c.h.b16 %v564
        %v1928 = vunpack.c.l.b16 %v565
        %v1929 = vunpack.c.h.b16 %v565
        %v1930 = vunpack.c.l.b16 %v566
        %v1931 = vunpack.c.h.b16 %v566
        %v1932 = vunpack.c.l.b16 %v567
        %v1933 = vunpack.c.h.b16 %v567
        %v1934 = vunpack.c.l.b16 %v568
        %v1935 = vunpack.c.h.b16 %v568
        %v1936 = vunpack.c.l.b16 %v569
        %v1937 = vunpack.c.h.b16 %v569
        %v1938 = vunpack.c.l.b16 %v570
        %v1939 = vunpack.c.h.b16 %v570
        %v1940 = vunpack.c.l.b16 %v571
        %v1941 = vunpack.c.h.b16 %v571
        %v1942 = vunpack.c.l.b16 %v572
        %v1943 = vunpack.c.h.b16 %v572
        %v1944 = vunpack.c.l.b16 %v573
        %v1945 = vunpack.c.h.b16 %v573
        %v1946 = vunpack.c.l.b16 %v574
        %v1947 = vunpack.c.h.b16 %v574
        %v1948 = vunpack.c.l.b16 %v575
        %v1949 = vunpack.c.h.b16 %v575
        %v1950 = vunpack.c.l.b16 %v576
        %v1951 = vunpack.c.h.b16 %v576
        %v1952 = vunpack.c.l.b16 %v577
        %v1953 = vunpack.c.h.b16 %v577
        %v1954 = vunpack.c.l.b16 %v578
        %v1955 = vunpack.c.h.b16 %v578
        %v1956 = vunpack.c.l.b16 %v579
        %v1957 = vunpack.c.h.b16 %v579
        %v1958 = vunpack.c.l.b16 %v580
        %v1959 = vunpack.c.h.b16 %v580
        %v1960 = vunpack.c.l.b16 %v581
        %v1961 = vunpack.c.h.b16 %v581
        %v1962 = vunpack.c.l.b16 %v582
        %v1963 = vunpack.c.h.b16 %v582
        %v1964 = vunpack.c.l.b16 %v583
        %v1965 = vunpack.c.h.b16 %v583
        %v1966 = vunpack.c.l.b16 %v584
        %v1967 = vunpack.c.h.b16 %v584
        %v1968 = vunpack.c.l.b16 %v585
        %v1969 = vunpack.c.h.b16 %v585
        %v1970 = vunpack.c.l.b16 %v586
        %v1971 = vunpack.c.h.b16 %v586
        %v1972 = vunpack.c.l.b16 %v587
        %v1973 = vunpack.c.h.b16 %v587
        %v1974 = vunpack.c.l.b16 %v588
        %v1975 = vunpack.c.h.b16 %v588
        %v1976 = vunpack.c.l.b16 %v589
        %v1977 = vunpack.c.h.b16 %v589
        %v1978 = vunpack.c.l.b16 %v590
        %v1979 = vunpack.c.h.b16 %v590
        %v1980 = vunpack.c.l.b16 %v591
        %v1981 = vunpack.c.h.b16 %v591
        %v1982 = vunpack.c.l.b16 %v592
        %v1983 = vunpack.c.h.b16 %v592
        %v1984 = vunpack.c.l.b16 %v593
        %v1985 = vunpack.c.h.b16 %v593
        %v1986 = vunpack.c.l.b16 %v594
        %v1987 = vunpack.c.h.b16 %v594
        %v1988 = vunpack.c.l.b16 %v595
        %v1989 = vunpack.c.h.b16 %v595
        %v1990 = vunpack.c.l.b16 %v596
        %v1991 = vunpack.c.h.b16 %v596
        %v1992 = vunpack.c.l.b16 %v597
        %v1993 = vunpack.c.h.b16 %v597
        %v1994 = vunpack.c.l.b16 %v598
        %v1995 = vunpack.c.h.b16 %v598
        %v1996 = vunpack.c.l.b16 %v599
        %v1997 = vunpack.c.h.b16 %v599
        %v1998 = vunpack.c.l.b16 %v600
        %v1999 = vunpack.c.h.b16 %v600
        %v2000 = vunpack.c.l.b16 %v601
        %v2001 = vunpack.c.h.b16 %v601
        %v2002 = vunpack.c.l.b16 %v602
        %v2003 = vunpack.c.h.b16 %v602
        %v2004 = vunpack.c.l.b16 %v603
        %v2005 = vunpack.c.h.b16 %v603
        %v2006 = vunpack.c.l.b16 %v604
        %v2007 = vunpack.c.h.b16 %v604
        %v2008 = vunpack.c.l.b16 %v605
        %v2009 = vunpack.c.h.b16 %v605
        %v2010 = vunpack.c.l.b16 %v606
        %v2011 = vunpack.c.h.b16 %v606
        %v2012 = vunpack.c.l.b16 %v607
        %v2013 = vunpack.c.h.b16 %v607
        %v2014 = vunpack.c.l.b16 %v608
        %v2015 = vunpack.c.h.b16 %v608
        %v2016 = vunpack.c.l.b16 %v609
        %v2017 = vunpack.c.h.b16 %v609
        %v2018 = vunpack.c.l.b16 %v610
        %v2019 = vunpack.c.h.b16 %v610
        %v2020 = vunpack.c.l.b16 %v611
        %v2021 = vunpack.c.h.b16 %v611
        %v2022 = vunpack.c.l.b16 %v612
        %v2023 = vunpack.c.h.b16 %v612
        %v2024 = vunpack.c.l.b16 %v613
        %v2025 = vunpack.c.h.b16 %v613
        %v2026 = vunpack.c.l.b16 %v614
        %v2027 = vunpack.c.h.b16 %v614
        %v2028 = vunpack.c.l.b16 %v615
        %v2029 = vunpack.c.h.b16 %v615
        %v2030 = vunpack.c.l.b16 %v616
        %v2031 = vunpack.c.h.b16 %v616
        %v2032 = vunpack.c.l.b16 %v617
        %v2033 = vunpack.c.h.b16 %v617
        %v2034 = vunpack.c.l.b16 %v618
        %v2035 = vunpack.c.h.b16 %v618
        %v2036 = vunpack.c.l.b16 %v619
        %v2037 = vunpack.c.h.b16 %v619
        %v2038 = vunpack.c.l.b16 %v620
        %v2039 = vunpack.c.h.b16 %v620
        %v2040 = vunpack.c.l.b16 %v621
        %v2041 = vunpack.c.h.b16 %v621
        %v2042 = vunpack.c.l.b16 %v622
        %v2043 = vunpack.c.h.b16 %v622
        %v2044 = vunpack.c.l.b16 %v623
        %v2045 = vunpack.c.h.b16 %v623
        %v2046 = vunpack.c.l.b16 %v624
        %v2047 = vunpack.c.h.b16 %v624
        %v2048 = vunpack.c.l.b16 %v625
        %v2049 = vunpack.c.h.b16 %v625
        %v2050 = vunpack.c.l.b16 %v626
        %v2051 = vunpack.c.h.b16 %v626
        %v2052 = vunpack.c.l.b16 %v627
        %v2053 = vunpack.c.h.b16 %v627
        %v2054 = vunpack.c.l.b16 %v628
        %v2055 = vunpack.c.h.b16 %v628
        %v2056 = vunpack.c.l.b16 %v629
        %v2057 = vunpack.c.h.b16 %v629
        %v2058 = vunpack.c.l.b16 %v630
        %v2059 = vunpack.c.h.b16 %v630
        %v2060 = vunpack.c.l.b16 %v631
        %v2061 = vunpack.c.h.b16 %v631
        %v2062 = vunpack.c.l.b16 %v632
        %v2063 = vunpack.c.h.b16 %v632
        %v2064 = vunpack.c.l.b16 %v633
        %v2065 = vunpack.c.h.b16 %v633
        %v2066 = vunpack.c.l.b16 %v634
        %v2067 = vunpack.c.h.b16 %v634
        %v2068 = vunpack.c.l.b16 %v635
        %v2069 = vunpack.c.h.b16 %v635
        %v2070 = vunpack.c.l.b16 %v636
        %v2071 = vunpack.c.h.b16 %v636
        %v2072 = vunpack.c.l.b16 %v637
        %v2073 = vunpack.c.h.b16 %v637
        %v2074 = vunpack.c.l.b16 %v638
        %v2075 = vunpack.c.h.b16 %v638
        %v2076 = vunpack.c.l.b16 %v639
        %v2077 = vunpack.c.h.b16 %v639
        %v2078 = vunpack.c.l.b16 %v640
        %v2079 = vunpack.c.h.b16 %v640
        %v2080 = vunpack.c.l.b16 %v641
        %v2081 = vunpack.c.h.b16 %v641
        %v2082 = vunpack.c.l.b16 %v642
        %v2083 = vunpack.c.h.b16 %v642
        %v2084 = vunpack.c.l.b16 %v643
        %v2085 = vunpack.c.h.b16 %v643
        %v2086 = vunpack.c.l.b16 %v644
        %v2087 = vunpack.c.h.b16 %v644
        %v2088 = vunpack.c.l.b16 %v645
        %v2089 = vunpack.c.h.b16 %v645
        %v2090 = vunpack.c.l.b16 %v646
        %v2091 = vunpack.c.h.b16 %v646
        %v2092 = vunpack.c.l.b16 %v647
        %v2093 = vunpack.c.h.b16 %v647
        %v2094 = vunpack.c.l.b16 %v648
        %v2095 = vunpack.c.h.b16 %v648
        %v2096 = vunpack.c.l.b16 %v649
        %v2097 = vunpack.c.h.b16 %v649
        %v2098 = vunpack.c.l.b16 %v650
        %v2099 = vunpack.c.h.b16 %v650
        %v2100 = vunpack.c.l.b16 %v651
        %v2101 = vunpack.c.h.b16 %v651
        %v2102 = vunpack.c.l.b16 %v652
        %v2103 = vunpack.c.h.b16 %v652
        %v2104 = vunpack.c.l.b16 %v653
        %v2105 = vunpack.c.h.b16 %v653
        %v2106 = vunpack.c.l.b16 %v654
        %v2107 = vunpack.c.h.b16 %v654
        %v2108 = vunpack.c.l.b16 %v655
        %v2109 = vunpack.c.h.b16 %v655
        %v2110 = vunpack.c.l.b16 %v656
        %v2111 = vunpack.c.h.b16 %v656
        %v2112 = vunpack.c.l.b16 %v657
        %v2113 = vunpack.c.h.b16 %v657
        %v2114 = vunpack.c.l.b16 %v658
        %v2115 = vunpack.c.h.b16 %v658
        %v2116 = vunpack.c.l.b16 %v659
        %v2117 = vunpack.c.h.b16 %v659
        %v2118 = vunpack.c.l.b16 %v660
        %v2119 = vunpack.c.h.b16 %v660
        %v2120 = vunpack.c.l.b16 %v661
        %v2121 = vunpack.c.h.b16 %v661
        %v2122 = vunpack.c.l.b16 %v662
        %v2123 = vunpack.c.h.b16 %v662
        %v2124 = vunpack.c.l.b16 %v663
        %v2125 = vunpack.c.h.b16 %v663
        %v2126 = vunpack.c.l.b16 %v664
        %v2127 = vunpack.c.h.b16 %v664
        %v2128 = vunpack.c.l.b16 %v665
        %v2129 = vunpack.c.h.b16 %v665
        %v2130 = vunpack.c.l.b16 %v666
        %v2131 = vunpack.c.h.b16 %v666
        %v2132 = vunpack.c.l.b16 %v667
        %v2133 = vunpack.c.h.b16 %v667
        %v2134 = vunpack.c.l.b16 %v668
        %v2135 = vunpack.c.h.b16 %v668
        %v2136 = vunpack.c.l.b16 %v669
        %v2137 = vunpack.c.h.b16 %v669
        %v2138 = vunpack.c.l.b16 %v670
        %v2139 = vunpack.c.h.b16 %v670
        %v2140 = vunpack.c.l.b16 %v671
        %v2141 = vunpack.c.h.b16 %v671
        %v2142 = vunpack.c.l.b16 %v672
        %v2143 = vunpack.c.h.b16 %v672
        %v2144 = vunpack.c.l.b16 %v673
        %v2145 = vunpack.c.h.b16 %v673
        %v2146 = vunpack.c.l.b16 %v674
        %v2147 = vunpack.c.h.b16 %v674
        %v2148 = vunpack.c.l.b16 %v675
        %v2149 = vunpack.c.h.b16 %v675
        %v2150 = vunpack.c.l.b16 %v676
        %v2151 = vunpack.c.h.b16 %v676
        %v2152 = vunpack.c.l.b16 %v677
        %v2153 = vunpack.c.h.b16 %v677
        %v2154 = vunpack.c.l.b16 %v678
        %v2155 = vunpack.c.h.b16 %v678
        %v2156 = vunpack.c.l.b16 %v679
        %v2157 = vunpack.c.h.b16 %v679
        %v2158 = vunpack.c.l.b16 %v680
        %v2159 = vunpack.c.h.b16 %v680
        %v2160 = vunpack.c.l.b16 %v681
        %v2161 = vunpack.c.h.b16 %v681
        %v2162 = vunpack.c.l.b16 %v682
        %v2163 = vunpack.c.h.b16 %v682
        %v2164 = vunpack.c.l.b16 %v683
        %v2165 = vunpack.c.h.b16 %v683
        %v2166 = vunpack.c.l.b16 %v684
        %v2167 = vunpack.c.h.b16 %v684
        %v2168 = vunpack.c.l.b16 %v685
        %v2169 = vunpack.c.h.b16 %v685
        %v2170 = vunpack.c.l.b16 %v686
        %v2171 = vunpack.c.h.b16 %v686
        %v2172 = vunpack.c.l.b16 %v687
        %v2173 = vunpack.c.h.b16 %v687
        %v2174 = vunpack.c.l.b16 %v688
        %v2175 = vunpack.c.h.b16 %v688
        %v2176 = vunpack.c.l.b16 %v689
        %v2177 = vunpack.c.h.b16 %v689
        %v2178 = vunpack.c.l.b16 %v690
        %v2179 = vunpack.c.h.b16 %v690
        %v2180 = vunpack.c.l.b16 %v691
        %v2181 = vunpack.c.h.b16 %v691
        %v2182 = vunpack.c.l.b16 %v692
        %v2183 = vunpack.c.h.b16 %v692
        %v2184 = vunpack.c.l.b16 %v693
        %v2185 = vunpack.c.h.b16 %v693
        %v2186 = vunpack.c.l.b16 %v694
        %v2187 = vunpack.c.h.b16 %v694
        %v2188 = vunpack.c.l.b16 %v695
        %v2189 = vunpack.c.h.b16 %v695
        %v2190 = vunpack.c.l.b16 %v696
        %v2191 = vunpack.c.h.b16 %v696
        %v2192 = vunpack.c.l.b16 %v697
        %v2193 = vunpack.c.h.b16 %v697
        %v2194 = vunpack.c.l.b16 %v698
        %v2195 = vunpack.c.h.b16 %v698
        %v2196 = vunpack.c.l.b16 %v699
        %v2197 = vunpack.c.h.b16 %v699
        %v2198 = vunpack.c.l.b16 %v700
        %v2199 = vunpack.c.h.b16 %v700
        %v2200 = vunpack.c.l.b16 %v701
        %v2201 = vunpack.c.h.b16 %v701
        %v2202 = vunpack.c.l.b16 %v702
        %v2203 = vunpack.c.h.b16 %v702
        %v2204 = vunpack.c.l.b16 %v703
        %v2205 = vunpack.c.h.b16 %v703
        %v2206 = vunpack.c.l.b16 %v704
        %v2207 = vunpack.c.h.b16 %v704
        %v2208 = vunpack.c.l.b16 %v705
        %v2209 = vunpack.c.h.b16 %v705
        %v2210 = vunpack.c.l.b16 %v706
        %v2211 = vunpack.c.h.b16 %v706
        %v2212 = vunpack.c.l.b16 %v707
        %v2213 = vunpack.c.h.b16 %v707
        %v2214 = vunpack.c.l.b16 %v708
        %v2215 = vunpack.c.h.b16 %v708
        %v2216 = vunpack.c.l.b16 %v709
        %v2217 = vunpack.c.h.b16 %v709
        %v2218 = vunpack.c.l.b16 %v710
        %v2219 = vunpack.c.h.b16 %v710
        %v2220 = vunpack.c.l.b16 %v711
        %v2221 = vunpack.c.h.b16 %v711
        %v2222 = vunpack.c.l.b16 %v712
        %v2223 = vunpack.c.h.b16 %v712
        %v2224 = vunpack.c.l.b16 %v713
        %v2225 = vunpack.c.h.b16 %v713
        %v2226 = vunpack.c.l.b16 %v714
        %v2227 = vunpack.c.h.b16 %v714
        %v2228 = vunpack.c.l.b16 %v715
        %v2229 = vunpack.c.h.b16 %v715
        %v2230 = vunpack.c.l.b16 %v716
        %v2231 = vunpack.c.h.b16 %v716
        %v2232 = vunpack.c.l.b16 %v717
        %v2233 = vunpack.c.h.b16 %v717
        %v2234 = vunpack.c.l.b16 %v718
        %v2235 = vunpack.c.h.b16 %v718
        %v2236 = vunpack.c.l.b16 %v719
        %v2237 = vunpack.c.h.b16 %v719
        %v2238 = vunpack.c.l.b16 %v720
        %v2239 = vunpack.c.h.b16 %v720
        %v2240 = vunpack.c.l.b16 %v721
        %v2241 = vunpack.c.h.b16 %v721
        %v2242 = vunpack.c.l.b16 %v722
        %v2243 = vunpack.c.h.b16 %v722
        %v2244 = vunpack.c.l.b16 %v723
        %v2245 = vunpack.c.h.b16 %v723
        %v2246 = vunpack.c.l.b16 %v724
        %v2247 = vunpack.c.h.b16 %v724
        %v2248 = vunpack.c.l.b16 %v725
        %v2249 = vunpack.c.h.b16 %v725
        %v2250 = vunpack.c.l.b16 %v726
        %v2251 = vunpack.c.h.b16 %v726
        %v2252 = vunpack.c.l.b16 %v727
        %v2253 = vunpack.c.h.b16 %v727
        %v2254 = vunpack.c.l.b16 %v728
        %v2255 = vunpack.c.h.b16 %v728
        %v2256 = vunpack.c.l.b16 %v729
        %v2257 = vunpack.c.h.b16 %v729
        %v2258 = vunpack.c.l.b16 %v730
        %v2259 = vunpack.c.h.b16 %v730
        %v2260 = vunpack.c.l.b16 %v731
        %v2261 = vunpack.c.h.b16 %v731
        %v2262 = vunpack.c.l.b16 %v732
        %v2263 = vunpack.c.h.b16 %v732
        %v2264 = vunpack.c.l.b16 %v733
        %v2265 = vunpack.c.h.b16 %v733
        %v2266 = vunpack.c.l.b16 %v734
        %v2267 = vunpack.c.h.b16 %v734
        %v2268 = vunpack.c.l.b16 %v735
        %v2269 = vunpack.c.h.b16 %v735
        %v2270 = vunpack.c.l.b16 %v736
        %v2271 = vunpack.c.h.b16 %v736
        %v2272 = vunpack.c.l.b16 %v737
        %v2273 = vunpack.c.h.b16 %v737
        %v2274 = vunpack.c.l.b16 %v738
        %v2275 = vunpack.c.h.b16 %v738
        %v2276 = vunpack.c.l.b16 %v739
        %v2277 = vunpack.c.h.b16 %v739
        %v2278 = vunpack.c.l.b16 %v740
        %v2279 = vunpack.c.h.b16 %v740
        %v2280 = vunpack.c.l.b16 %v741
        %v2281 = vunpack.c.h.b16 %v741
        %v2282 = vunpack.c.l.b16 %v742
        %v2283 = vunpack.c.h.b16 %v742
        %v2284 = vunpack.c.l.b16 %v743
        %v2285 = vunpack.c.h.b16 %v743
        %v2286 = vunpack.c.l.b16 %v744
        %v2287 = vunpack.c.h.b16 %v744
        %v2288 = vunpack.c.l.b16 %v745
        %v2289 = vunpack.c.h.b16 %v745
        %v2290 = vunpack.c.l.b16 %v746
        %v2291 = vunpack.c.h.b16 %v746
        %v2292 = vunpack.c.l.b16 %v747
        %v2293 = vunpack.c.h.b16 %v747
        %v2294 = vunpack.c.l.b16 %v748
        %v2295 = vunpack.c.h.b16 %v748
        %v2296 = vunpack.c.l.b16 %v749
        %v2297 = vunpack.c.h.b16 %v749
        %v2298 = vunpack.c.l.b16 %v750
        %v2299 = vunpack.c.h.b16 %v750
        %v2300 = vunpack.c.l.b16 %v751
        %v2301 = vunpack.c.h.b16 %v751
        %v2302 = vunpack.c.l.b16 %v752
        %v2303 = vunpack.c.h.b16 %v752
        %v2304 = vunpack.c.l.b16 %v753
        %v2305 = vunpack.c.h.b16 %v753
        %v2306 = vunpack.c.l.b16 %v754
        %v2307 = vunpack.c.h.b16 %v754
        %v2308 = vunpack.c.l.b16 %v755
        %v2309 = vunpack.c.h.b16 %v755
        %v2310 = vunpack.c.l.b16 %v756
        %v2311 = vunpack.c.h.b16 %v756
        %v2312 = vunpack.c.l.b16 %v757
        %v2313 = vunpack.c.h.b16 %v757
        %v2314 = vunpack.c.l.b16 %v758
        %v2315 = vunpack.c.h.b16 %v758
        %v2316 = vunpack.c.l.b16 %v759
        %v2317 = vunpack.c.h.b16 %v759
        %v2318 = vunpack.c.l.b16 %v760
        %v2319 = vunpack.c.h.b16 %v760
        %v2320 = vunpack.c.l.b16 %v761
        %v2321 = vunpack.c.h.b16 %v761
        %v2322 = vunpack.c.l.b16 %v762
        %v2323 = vunpack.c.h.b16 %v762
        %v2324 = vunpack.c.l.b16 %v763
        %v2325 = vunpack.c.h.b16 %v763
        %v2326 = vunpack.c.l.b16 %v764
        %v2327 = vunpack.c.h.b16 %v764
        %v2328 = vunpack.c.l.b16 %v765
        %v2329 = vunpack.c.h.b16 %v765
        %v2330 = vunpack.c.l.b16 %v766
        %v2331 = vunpack.c.h.b16 %v766
        %v2332 = vunpack.c.l.b16 %v767
        %v2333 = vunpack.c.h.b16 %v767
        %v2334 = vunpack.c.l.b16 %v768
        %v2335 = vunpack.c.h.b16 %v768
        %v2336 = vunpack.c.l.b16 %v769
        %v2337 = vunpack.c.h.b16 %v769
        %v2338 = vunpack.c.l.b16 %v770
        %v2339 = vunpack.c.h.b16 %v770
        %v2340 = vunpack.c.l.b16 %v771
        %v2341 = vunpack.c.h.b16 %v771
        %v2342 = vunpack.c.l.b16 %v772
        %v2343 = vunpack.c.h.b16 %v772
        %v2344 = vunpack.c.l.b16 %v773
        %v2345 = vunpack.c.h.b16 %v773
        %v2346 = vunpack.c.l.b16 %v774
        %v2347 = vunpack.c.h.b16 %v774
        %v2348 = vunpack.c.l.b16 %v775
        %v2349 = vunpack.c.h.b16 %v775
        %v2350 = vunpack.c.l.b16 %v776
        %v2351 = vunpack.c.h.b16 %v776
        %v2352 = vunpack.c.l.b16 %v777
        %v2353 = vunpack.c.h.b16 %v777
        %v2354 = vunpack.c.l.b16 %v778
        %v2355 = vunpack.c.h.b16 %v778
        %v2356 = vunpack.c.l.b16 %v779
        %v2357 = vunpack.c.h.b16 %v779
        %v2358 = vunpack.c.l.b16 %v780
        %v2359 = vunpack.c.h.b16 %v780
        %v2360 = vunpack.c.l.b16 %v781
        %v2361 = vunpack.c.h.b16 %v781
        %v2362 = vunpack.c.l.b16 %v782
        %v2363 = vunpack.c.h.b16 %v782
        %v2364 = vunpack.c.l.b16 %v783
        %v2365 = vunpack.c.h.b16 %v783
        %v2366 = vunpack.c.l.b16 %v784
        %v2367 = vunpack.c.h.b16 %v784
        %v2368 = vunpack.c.l.b16 %v785
        %v2369 = vunpack.c.h.b16 %v785
        %v2370 = vunpack.c.l.b16 %v786
        %v2371 = vunpack.c.h.b16 %v786
        %v2372 = vunpack.c.l.b16 %v787
        %v2373 = vunpack.c.h.b16 %v787
        %v2374 = vunpack.c.l.b16 %v788
        %v2375 = vunpack.c.h.b16 %v788
        %v2376 = vunpack.c.l.b16 %v789
        %v2377 = vunpack.c.h.b16 %v789
        %v2378 = vunpack.c.l.b16 %v790
        %v2379 = vunpack.c.h.b16 %v790
        %v2380 = vunpack.c.l.b16 %v791
        %v2381 = vunpack.c.h.b16 %v791
        %v2382 = vunpack.c.l.b16 %v792
        %v2383 = vunpack.c.h.b16 %v792
        %v2384 = vunpack.c.l.b16 %v793
        %v2385 = vunpack.c.h.b16 %v793
        %v2386 = vunpack.c.l.b16 %v794
        %v2387 = vunpack.c.h.b16 %v794
        %v2388 = vunpack.c.l.b16 %v795
        %v2389 = vunpack.c.h.b16 %v795
        %v2390 = vunpack.c.l.b16 %v796
        %v2391 = vunpack.c.h.b16 %v796
        %v2392 = vunpack.c.l.b16 %v797
        %v2393 = vunpack.c.h.b16 %v797
        %v2394 = vunpack.c.l.b16 %v798
        %v2395 = vunpack.c.h.b16 %v798
        %v2396 = vunpack.c.l.b16 %v799
        %v2397 = vunpack.c.h.b16 %v799
        %v2398 = vunpack.c.l.b16 %v800
        %v2399 = vunpack.c.h.b16 %v800
        %v2400 = vunpack.c.l.b16 %v801
        %v2401 = vunpack.c.h.b16 %v801
        %v2402 = vunpack.c.l.b16 %v802
        %v2403 = vunpack.c.h.b16 %v802
        %v2404 = vunpack.c.l.b16 %v803
        %v2405 = vunpack.c.h.b16 %v803
        %v2406 = vunpack.c.l.b16 %v804
        %v2407 = vunpack.c.h.b16 %v804
        %v2408 = vunpack.c.l.b16 %v805
        %v2409 = vunpack.c.h.b16 %v805
        %v2410 = vunpack.c.l.b16 %v806
        %v2411 = vunpack.c.h.b16 %v806
        %v2412 = vunpack.c.l.b16 %v807
        %v2413 = vunpack.c.h.b16 %v807
        %v2414 = vunpack.c.l.b16 %v808
        %v2415 = vunpack.c.h.b16 %v808
        %v2416 = vunpack.c.l.b16 %v809
        %v2417 = vunpack.c.h.b16 %v809
        %v2418 = vunpack.c.l.b16 %v810
        %v2419 = vunpack.c.h.b16 %v810
        %v2420 = vunpack.c.l.b16 %v811
        %v2421 = vunpack.c.h.b16 %v811
        %v2422 = vunpack.c.l.b16 %v812
        %v2423 = vunpack.c.h.b16 %v812
        %v2424 = vunpack.c.l.b16 %v813
        %v2425 = vunpack.c.h.b16 %v813
        %v2426 = vunpack.c.l.b16 %v814
        %v2427 = vunpack.c.h.b16 %v814
        %v2428 = vunpack.c.l.b16 %v815
        %v2429 = vunpack.c.h.b16 %v815
        %v2430 = vunpack.c.l.b16 %v816
        %v2431 = vunpack.c.h.b16 %v816
        %v2432 = vunpack.c.l.b16 %v817
        %v2433 = vunpack.c.h.b16 %v817
        %v2434 = vunpack.c.l.b16 %v818
        %v2435 = vunpack.c.h.b16 %v818
        %v2436 = vunpack.c.l.b16 %v819
        %v2437 = vunpack.c.h.b16 %v819
        %v2438 = vunpack.c.l.b16 %v820
        %v2439 = vunpack.c.h.b16 %v820
        %v2440 = vunpack.c.l.b16 %v821
        %v2441 = vunpack.c.h.b16 %v821
        %v2442 = vunpack.c.l.b16 %v822
        %v2443 = vunpack.c.h.b16 %v822
        %v2444 = vunpack.c.l.b16 %v823
        %v2445 = vunpack.c.h.b16 %v823
        %v2446 = vunpack.c.l.b16 %v824
        %v2447 = vunpack.c.h.b16 %v824
        %v2448 = vunpack.c.l.b16 %v825
        %v2449 = vunpack.c.h.b16 %v825
        %v2450 = vunpack.c.l.b16 %v826
        %v2451 = vunpack.c.h.b16 %v826
        %v2452 = vunpack.c.l.b16 %v827
        %v2453 = vunpack.c.h.b16 %v827
        %v2454 = vunpack.c.l.b16 %v828
        %v2455 = vunpack.c.h.b16 %v828
        %v2456 = vunpack.c.l.b16 %v829
        %v2457 = vunpack.c.h.b16 %v829
        %v2458 = vunpack.c.l.b16 %v830
        %v2459 = vunpack.c.h.b16 %v830
        %v2460 = vunpack.c.l.b16 %v831
        %v2461 = vunpack.c.h.b16 %v831
        %v2462 = vunpack.c.l.b16 %v832
        %v2463 = vunpack.c.h.b16 %v832
        %v2464 = vunpack.c.l.b16 %v833
        %v2465 = vunpack.c.h.b16 %v833
        %v2466 = vunpack.c.l.b16 %v834
        %v2467 = vunpack.c.h.b16 %v834
        %v2468 = vunpack.c.l.b16 %v835
        %v2469 = vunpack.c.h.b16 %v835
        %v2470 = vunpack.c.l.b16 %v836
        %v2471 = vunpack.c.h.b16 %v836
        %v2472 = vunpack.c.l.b16 %v837
        %v2473 = vunpack.c.h.b16 %v837
        %v2474 = vunpack.c.l.b16 %v838
        %v2475 = vunpack.c.h.b16 %v838
        %v2476 = vunpack.c.l.b16 %v839
        %v2477 = vunpack.c.h.b16 %v839
        %v2478 = vunpack.c.l.b16 %v840
        %v2479 = vunpack.c.h.b16 %v840
        %v2480 = vunpack.c.l.b16 %v841
        %v2481 = vunpack.c.h.b16 %v841
        %v2482 = vunpack.c.l.b16 %v842
        %v2483 = vunpack.c.h.b16 %v842
        %v2484 = vunpack.c.l.b16 %v843
        %v2485 = vunpack.c.h.b16 %v843
        %v2486 = vpack.c.b16 %v1900, %v1898
        %v2487 = vpack.c.b16 %v1901, %v1899
        %v2488 = vpack.c.b16 %v1904, %v1902
        %v2489 = vpack.c.b16 %v1905, %v1903
        %v2490 = vpack.c.b16 %v1908, %v1906
        %v2491 = vpack.c.b16 %v1909, %v1907
        %v2492 = vpack.c.b16 %v1912, %v1910
        %v2493 = vpack.c.b16 %v1913, %v1911
        %v2494 = vpack.c.b16 %v1916, %v1914
        %v2495 = vpack.c.b16 %v1917, %v1915
        %v2496 = vpack.c.b16 %v1920, %v1918
        %v2497 = vpack.c.b16 %v1921, %v1919
        %v2498 = vpack.c.b16 %v1924, %v1922
        %v2499 = vpack.c.b16 %v1925, %v1923
        %v2500 = vpack.c.b16 %v1928, %v1926
        %v2501 = vpack.c.b16 %v1929, %v1927
        %v2502 = vpack.c.b16 %v1932, %v1930
        %v2503 = vpack.c.b16 %v1933, %v1931
        %v2504 = vpack.c.b16 %v1936, %v1934
        %v2505 = vpack.c.b16 %v1937, %v1935
        %v2506 = vpack.c.b16 %v1940, %v1938
        %v2507 = vpack.c.b16 %v1941, %v1939
        %v2508 = vpack.c.b16 %v1944, %v1942
        %v2509 = vpack.c.b16 %v1945, %v1943
        %v2510 = vpack.c.b16 %v1948, %v1946
        %v2511 = vpack.c.b16 %v1949, %v1947
        %v2512 = vpack.c.b16 %v1952, %v1950
        %v2513 = vpack.c.b16 %v1953, %v1951
        %v2514 = vpack.c.b16 %v1956, %v1954
        %v2515 = vpack.c.b16 %v1957, %v1955
        %v2516 = vpack.c.b16 %v1960, %v1958
        %v2517 = vpack.c.b16 %v1961, %v1959
        %v2518 = vpack.c.b16 %v1964, %v1962
        %v2519 = vpack.c.b16 %v1965, %v1963
        %v2520 = vpack.c.b16 %v1968, %v1966
        %v2521 = vpack.c.b16 %v1969, %v1967
        %v2522 = vpack.c.b16 %v1972, %v1970
        %v2523 = vpack.c.b16 %v1973, %v1971
        %v2524 = vpack.c.b16 %v1976, %v1974
        %v2525 = vpack.c.b16 %v1977, %v1975
        %v2526 = vpack.c.b16 %v1980, %v1978
        %v2527 = vpack.c.b16 %v1981, %v1979
        %v2528 = vpack.c.b16 %v1984, %v1982
        %v2529 = vpack.c.b16 %v1985, %v1983
        %v2530 = vpack.c.b16 %v1988, %v1986
        %v2531 = vpack.c.b16 %v1989, %v1987
        %v2532 = vpack.c.b16 %v1992, %v1990
        %v2533 = vpack.c.b16 %v1993, %v1991
        %v2534 = vpack.c.b16 %v1996, %v1994
        %v2535 = vpack.c.b16 %v1997, %v1995
        %v2536 = vpack.c.b16 %v2000, %v1998
        %v2537 = vpack.c.b16 %v2001, %v1999
        %v2538 = vpack.c.b16 %v2004, %v2002
        %v2539 = vpack.c.b16 %v2005, %v2003
        %v2540 = vpack.c.b16 %v2008, %v2006
        %v2541 = vpack.c.b16 %v2009, %v2007
        %v2542 = vpack.c.b16 %v2012, %v2010
        %v2543 = vpack.c.b16 %v2013, %v2011
        %v2544 = vpack.c.b16 %v2016, %v2014
        %v2545 = vpack.c.b16 %v2017, %v2015
        %v2546 = vpack.c.b16 %v2020, %v2018
        %v2547 = vpack.c.b16 %v2021, %v2019
        %v2548 = vpack.c.b16 %v2024, %v2022
        %v2549 = vpack.c.b16 %v2025, %v2023
        %v2550 = vpack.c.b16 %v2028, %v2026
        %v2551 = vpack.c.b16 %v2029, %v2027
        %v2552 = vpack.c.b16 %v2032, %v2030
        %v2553 = vpack.c.b16 %v2033, %v2031
        %v2554 = vpack.c.b16 %v2036, %v2034
        %v2555 = vpack.c.b16 %v2037, %v2035
        %v2556 = vpack.c.b16 %v2040, %v2038
        %v2557 = vpack.c.b16 %v2041, %v2039
        %v2558 = vpack.c.b16 %v2044, %v2042
        %v2559 = vpack.c.b16 %v2045, %v2043
        %v2560 = vpack.c.b16 %v2048, %v2046
        %v2561 = vpack.c.b16 %v2049, %v2047
        %v2562 = vpack.c.b16 %v2052, %v2050
        %v2563 = vpack.c.b16 %v2053, %v2051
        %v2564 = vpack.c.b16 %v2056, %v2054
        %v2565 = vpack.c.b16 %v2057, %v2055
        %v2566 = vpack.c.b16 %v2060, %v2058
        %v2567 = vpack.c.b16 %v2061, %v2059
        %v2568 = vpack.c.b16 %v2064, %v2062
        %v2569 = vpack.c.b16 %v2065, %v2063
        %v2570 = vpack.c.b16 %v2068, %v2066
        %v2571 = vpack.c.b16 %v2069, %v2067
        %v2572 = vpack.c.b16 %v2072, %v2070
        %v2573 = vpack.c.b16 %v2073, %v2071
        %v2574 = vpack.c.b16 %v2076, %v2074
        %v2575 = vpack.c.b16 %v2077, %v2075
        %v2576 = vpack.c.b16 %v2080, %v2078
        %v2577 = vpack.c.b16 %v2081, %v2079
        %v2578 = vpack.c.b16 %v2084, %v2082
        %v2579 = vpack.c.b16 %v2085, %v2083
        %v2580 = vpack.c.b16 %v2088, %v2086
        %v2581 = vpack.c.b16 %v2089, %v2087
        %v2582 = vpack.c.b16 %v2092, %v2090
        %v2583 = vpack.c.b16 %v2093, %v2091
        %v2584 = vpack.c.b16 %v2096, %v2094
        %v2585 = vpack.c.b16 %v2097, %v2095
        %v2586 = vpack.c.b16 %v2100, %v2098
        %v2587 = vpack.c.b16 %v2101, %v2099
        %v2588 = vpack.c.b16 %v2104, %v2102
        %v2589 = vpack.c.b16 %v2105, %v2103
        %v2590 = vpack.c.b16 %v2108, %v2106
        %v2591 = vpack.c.b16 %v2109, %v2107
        %v2592 = vpack.c.b16 %v2112, %v2110
        %v2593 = vpack.c.b16 %v2113, %v2111
        %v2594 = vpack.c.b16 %v2116, %v2114
        %v2595 = vpack.c.b16 %v2117, %v2115
        %v2596 = vpack.c.b16 %v2120, %v2118
        %v2597 = vpack.c.b16 %v2121, %v2119
        %v2598 = vpack.c.b16 %v2124, %v2122
        %v2599 = vpack.c.b16 %v2125, %v2123
        %v2600 = vpack.c.b16 %v2128, %v2126
        %v2601 = vpack.c.b16 %v2129, %v2127
        %v2602 = vpack.c.b16 %v2132, %v2130
        %v2603 = vpack.c.b16 %v2133, %v2131
        %v2604 = vpack.c.b16 %v2136, %v2134
        %v2605 = vpack.c.b16 %v2137, %v2135
        %v2606 = vpack.c.b16 %v2140, %v2138
        %v2607 = vpack.c.b16 %v2141, %v2139
        %v2608 = vpack.c.b16 %v2144, %v2142
        %v2609 = vpack.c.b16 %v2145, %v2143
        %v2610 = vpack.c.b16 %v2148, %v2146
        %v2611 = vpack.c.b16 %v2149, %v2147
        %v2612 = vpack.c.b16 %v2152, %v2150
        %v2613 = vpack.c.b16 %v2153, %v2151
        %v2614 = vpack.c.b16 %v2156, %v2154
        %v2615 = vpack.c.b16 %v2157, %v2155
        %v2616 = vpack.c.b16 %v2160, %v2158
        %v2617 = vpack.c.b16 %v2161, %v2159
        %v2618 = vpack.c.b16 %v2164, %v2162
        %v2619 = vpack.c.b16 %v2165, %v2163
        %v2620 = vpack.c.b16 %v2168, %v2166
        %v2621 = vpack.c.b16 %v2169, %v2167
        %v2622 = vpack.c.b16 %v2172, %v2170
        %v2623 = vpack.c.b16 %v2173, %v2171
        %v2624 = vpack.c.b16 %v2176, %v2174
        %v2625 = vpack.c.b16 %v2177, %v2175
        %v2626 = vpack.c.b16 %v2180, %v2178
        %v2627 = vpack.c.b16 %v2181, %v2179
        %v2628 = vpack.c.b16 %v2184, %v2182
        %v2629 = vpack.c.b16 %v2185, %v2183
        %v2630 = vpack.c.b16 %v2188, %v2186
        %v2631 = vpack.c.b16 %v2189, %v2187
        %v2632 = vpack.c.b16 %v2192, %v2190
        %v2633 = vpack.c.b16 %v2193, %v2191
        %v2634 = vpack.c.b16 %v2196, %v2194
        %v2635 = vpack.c.b16 %v2197, %v2195
        %v2636 = vpack.c.b16 %v2200, %v2198
        %v2637 = vpack.c.b16 %v2201, %v2199
        %v2638 = vpack.c.b16 %v2204, %v2202
        %v2639 = vpack.c.b16 %v2205, %v2203
        %v2640 = vpack.c.b16 %v2208, %v2206
        %v2641 = vpack.c.b16 %v2209, %v2207
        %v2642 = vpack.c.b16 %v2212, %v2210
        %v2643 = vpack.c.b16 %v2213, %v2211
        %v2644 = vpack.c.b16 %v2216, %v2214
        %v2645 = vpack.c.b16 %v2217, %v2215
        %v2646 = vpack.c.b16 %v2220, %v2218
        %v2647 = vpack.c.b16 %v2221, %v2219
        %v2648 = vpack.c.b16 %v2224, %v2222
        %v2649 = vpack.c.b16 %v2225, %v2223
        %v2650 = vpack.c.b16 %v2228, %v2226
        %v2651 = vpack.c.b16 %v2229, %v2227
        %v2652 = vpack.c.b16 %v2232, %v2230
        %v2653 = vpack.c.b16 %v2233, %v2231
        %v2654 = vpack.c.b16 %v2236, %v2234
        %v2655 = vpack.c.b16 %v2237, %v2235
        %v2656 = vpack.c.b16 %v2240, %v2238
        %v2657 = vpack.c.b16 %v2241, %v2239
        %v2658 = vpack.c.b16 %v2244, %v2242
        %v2659 = vpack.c.b16 %v2245, %v2243
        %v2660 = vpack.c.b16 %v2248, %v2246
        %v2661 = vpack.c.b16 %v2249, %v2247
        %v2662 = vpack.c.b16 %v2252, %v2250
        %v2663 = vpack.c.b16 %v2253, %v2251
        %v2664 = vpack.c.b16 %v2256, %v2254
        %v2665 = vpack.c.b16 %v2257, %v2255
        %v2666 = vpack.c.b16 %v2260, %v2258
        %v2667 = vpack.c.b16 %v2261, %v2259
        %v2668 = vpack.c.b16 %v2264, %v2262
        %v2669 = vpack.c.b16 %v2265, %v2263
        %v2670 = vpack.c.b16 %v2268, %v2266
        %v2671 = vpack.c.b16 %v2269, %v2267
        %v2672 = vpack.c.b16 %v2272, %v2270
        %v2673 = vpack.c.b16 %v2273, %v2271
        %v2674 = vpack.c.b16 %v2276, %v2274
        %v2675 = vpack.c.b16 %v2277, %v2275
        %v2676 = vpack.c.b16 %v2280, %v2278
        %v2677 = vpack.c.b16 %v2281, %v2279
        %v2678 = vpack.c.b16 %v2284, %v2282
        %v2679 = vpack.c.b16 %v2285, %v2283
        %v2680 = vpack.c.b16 %v2288, %v2286
        %v2681 = vpack.c.b16 %v2289, %v2287
        %v2682 = vpack.c.b16 %v2292, %v2290
        %v2683 = vpack.c.b16 %v2293, %v2291
        %v2684 = vpack.c.b16 %v2296, %v2294
        %v2685 = vpack.c.b16 %v2297, %v2295
        %v2686 = vpack.c.b16 %v2300, %v2298
        %v2687 = vpack.c.b16 %v2301, %v2299
        %v2688 = vpack.c.b16 %v2304, %v2302
        %v2689 = vpack.c.b16 %v2305, %v2303
        %v2690 = vpack.c.b16 %v2308, %v2306
        %v2691 = vpack.c.b16 %v2309, %v2307
        %v2692 = vpack.c.b16 %v2312, %v2310
        %v2693 = vpack.c.b16 %v2313, %v2311
        %v2694 = vpack.c.b16 %v2316, %v2314
        %v2695 = vpack.c.b16 %v2317, %v2315
        %v2696 = vpack.c.b16 %v2320, %v2318
        %v2697 = vpack.c.b16 %v2321, %v2319
        %v2698 = vpack.c.b16 %v2324, %v2322
        %v2699 = vpack.c.b16 %v2325, %v2323
        %v2700 = vpack.c.b16 %v2328, %v2326
        %v2701 = vpack.c.b16 %v2329, %v2327
        %v2702 = vpack.c.b16 %v2332, %v2330
        %v2703 = vpack.c.b16 %v2333, %v2331
        %v2704 = vpack.c.b16 %v2336, %v2334
        %v2705 = vpack.c.b16 %v2337, %v2335
        %v2706 = vpack.c.b16 %v2340, %v2338
        %v2707 = vpack.c.b16 %v2341, %v2339
        %v2708 = vpack.c.b16 %v2344, %v2342
        %v2709 = vpack.c.b16 %v2345, %v2343
        %v2710 = vpack.c.b16 %v2348, %v2346
        %v2711 = vpack.c.b16 %v2349, %v2347
        %v2712 = vpack.c.b16 %v2352, %v2350
        %v2713 = vpack.c.b16 %v2353, %v2351
        %v2714 = vpack.c.b16 %v2356, %v2354
        %v2715 = vpack.c.b16 %v2357, %v2355
        %v2716 = vpack.c.b16 %v2360, %v2358
        %v2717 = vpack.c.b16 %v2361, %v2359
        %v2718 = vpack.c.b16 %v2364, %v2362
        %v2719 = vpack.c.b16 %v2365, %v2363
        %v2720 = vpack.c.b16 %v2368, %v2366
        %v2721 = vpack.c.b16 %v2369, %v2367
        %v2722 = vpack.c.b16 %v2372, %v2370
        %v2723 = vpack.c.b16 %v2373, %v2371
        %v2724 = vpack.c.b16 %v2376, %v2374
        %v2725 = vpack.c.b16 %v2377, %v2375
        %v2726 = vpack.c.b16 %v2380, %v2378
        %v2727 = vpack.c.b16 %v2381, %v2379
        %v2728 = vpack.c.b16 %v2384, %v2382
        %v2729 = vpack.c.b16 %v2385, %v2383
        %v2730 = vpack.c.b16 %v2388, %v2386
        %v2731 = vpack.c.b16 %v2389, %v2387
        %v2732 = vpack.c.b16 %v2392, %v2390
        %v2733 = vpack.c.b16 %v2393, %v2391
        %v2734 = vpack.c.b16 %v2396, %v2394
        %v2735 = vpack.c.b16 %v2397, %v2395
        %v2736 = vpack.c.b16 %v2400, %v2398
        %v2737 = vpack.c.b16 %v2401, %v2399
        %v2738 = vpack.c.b16 %v2404, %v2402
        %v2739 = vpack.c.b16 %v2405, %v2403
        %v2740 = vpack.c.b16 %v2408, %v2406
        %v2741 = vpack.c.b16 %v2409, %v2407
        %v2742 = vpack.c.b16 %v2412, %v2410
        %v2743 = vpack.c.b16 %v2413, %v2411
        %v2744 = vpack.c.b16 %v2416, %v2414
        %v2745 = vpack.c.b16 %v2417, %v2415
        %v2746 = vpack.c.b16 %v2420, %v2418
        %v2747 = vpack.c.b16 %v2421, %v2419
        %v2748 = vpack.c.b16 %v2424, %v2422
        %v2749 = vpack.c.b16 %v2425, %v2423
        %v2750 = vpack.c.b16 %v2428, %v2426
        %v2751 = vpack.c.b16 %v2429, %v2427
        %v2752 = vpack.c.b16 %v2432, %v2430
        %v2753 = vpack.c.b16 %v2433, %v2431
        %v2754 = vpack.c.b16 %v2436, %v2434
        %v2755 = vpack.c.b16 %v2437, %v2435
        %v2756 = vpack.c.b16 %v2440, %v2438
        %v2757 = vpack.c.b16 %v2441, %v2439
        %v2758 = vpack.c.b16 %v2444, %v2442
        %v2759 = vpack.c.b16 %v2445, %v2443
        %v2760 = vpack.c.b16 %v2448, %v2446
        %v2761 = vpack.c.b16 %v2449, %v2447
        %v2762 = vpack.c.b16 %v2452, %v2450
        %v2763 = vpack.c.b16 %v2453, %v2451
        %v2764 = vpack.c.b16 %v2456, %v2454
        %v2765 = vpack.c.b16 %v2457, %v2455
        %v2766 = vpack.c.b16 %v2460, %v2458
        %v2767 = vpack.c.b16 %v2461, %v2459
        %v2768 = vpack.c.b16 %v2464, %v2462
        %v2769 = vpack.c.b16 %v2465, %v2463
        %v2770 = vpack.c.b16 %v2468, %v2466
        %v2771 = vpack.c.b16 %v2469, %v2467
        %v2772 = vpack.c.b16 %v2472, %v2470
        %v2773 = vpack.c.b16 %v2473, %v2471
        %v2774 = vpack.c.b16 %v2476, %v2474
        %v2775 = vpack.c.b16 %v2477, %v2475
        %v2776 = vpack.c.b16 %v2480, %v2478
        %v2777 = vpack.c.b16 %v2481, %v2479
        %v2778 = vpack.c.b16 %v2484, %v2482
        %v2779 = vpack.c.b16 %v2485, %v2483
        %vm3074 = vcmask 392192
        %v3076 = vsel %vm3074, %v1326, 0
        %v3079 = vsel %vm3074, %v1345, 0
        %v3082 = vsel %vm3074, %v1364, 0
        %v3085 = vsel %vm3074, %v1383, 0
        %v3088 = vsel %vm3074, %v1402, 0
        %v3091 = vsel %vm3074, %v1421, 0
        %v3094 = vsel %vm3074, %v1440, 0
        %v3097 = vsel %vm3074, %v1459, 0
        %3099 = vmatprep.subr.bf16.mxu0 %v2487
        %3100 = vmatpush1.bf16.msra.mxu0 %v2486
        %3101 = vmatprep.subr.bf16.mxu0 %v2489
        %3102 = vmatpush1.bf16.msra.mxu0 %v2488
        %3103 = vmatprep.subr.bf16.mxu0 %v2491
        %3104 = vmatpush1.bf16.msra.mxu0 %v2490
        %3105 = vmatprep.subr.bf16.mxu0 %v2493
        %3106 = vmatpush1.bf16.msra.mxu0 %v2492
        %3107 = vmatprep.subr.bf16.mxu0 %v2495
        %3108 = vmatpush1.bf16.msra.mxu0 %v2494
        %3109 = vmatprep.subr.bf16.mxu0 %v2497
        %3110 = vmatpush1.bf16.msra.mxu0 %v2496
        %3111 = vmatprep.subr.bf16.mxu0 %v2499
        %3112 = vmatpush1.bf16.msra.mxu0 %v2498
        %3113 = vmatprep.subr.bf16.mxu0 %v2501
        %3114 = vmatpush1.bf16.msra.mxu0 %v2500
        %3115 = vmatprep.subr.bf16.mxu0 %v2503
        %3116 = vmatpush1.bf16.msra.mxu0 %v2502
        %3117 = vmatprep.subr.bf16.mxu0 %v2505
        %3118 = vmatpush1.bf16.msra.mxu0 %v2504
        %3119 = vmatprep.subr.bf16.mxu0 %v2507
        %3120 = vmatpush1.bf16.msra.mxu0 %v2506
        %3121 = vmatprep.subr.bf16.mxu0 %v2509
        %3122 = vmatpush1.bf16.msra.mxu0 %v2508
        %3123 = vmatprep.subr.bf16.mxu0 %v2511
        %3124 = vmatpush1.bf16.msra.mxu0 %v2510
        %3125 = vmatprep.subr.bf16.mxu0 %v2513
        %3126 = vmatpush1.bf16.msra.mxu0 %v2512
        %3127 = vmatprep.subr.bf16.mxu0 %v2515
        %3128 = vmatpush1.bf16.msra.mxu0 %v2514
        %3129 = vmatprep.subr.bf16.mxu0 %v2517
        %3130 = vmatpush1.bf16.msra.mxu0 %v2516
        %3131 = vmatprep.mubr.bf16.mxu0 %v1309
        %3132 = vmatmul.mubr.bf16.gmra.mrb[0].mxu0 %v1308
        %v3133 = vpop.f32.mrb[0].mxu0
        %v3134 = vadd.f32 0.0, %v3133
        %v3135 = vpop.f32.mrb[0].mxu0
        %v3136 = vadd.f32 0.0, %v3135
        %v3137 = vpop.f32.mrb[0].mxu0
        %v3138 = vadd.f32 0.0, %v3137
        %v3139 = vpop.f32.mrb[0].mxu0
        %v3140 = vadd.f32 0.0, %v3139
        %3141 = vmatprep.mubr.bf16.mxu0 %v1328
        %3142 = vmatmul.mubr.bf16.gmra.mrb[0].mxu0 %v1327
        %v3143 = vpop.f32.mrb[0].mxu0
        %v3144 = vadd.f32 0.0, %v3143
        %v3145 = vpop.f32.mrb[0].mxu0
        %v3146 = vadd.f32 0.0, %v3145
        %v3147 = vpop.f32.mrb[0].mxu0
        %v3148 = vadd.f32 0.0, %v3147
        %v3149 = vpop.f32.mrb[0].mxu0
        %v3150 = vadd.f32 0.0, %v3149
        %3151 = vmatprep.mubr.bf16.mxu0 %v1347
        %3152 = vmatmul.mubr.bf16.gmra.mrb[0].mxu0 %v1346
        %v3153 = vpop.f32.mrb[0].mxu0
        %v3154 = vadd.f32 0.0, %v3153
        %v3155 = vpop.f32.mrb[0].mxu0
        %v3156 = vadd.f32 0.0, %v3155
        %v3157 = vpop.f32.mrb[0].mxu0
        %v3158 = vadd.f32 0.0, %v3157
        %v3159 = vpop.f32.mrb[0].mxu0
        %v3160 = vadd.f32 0.0, %v3159
        %3161 = vmatprep.mubr.bf16.mxu0 %v1366
        %3162 = vmatmul.mubr.bf16.gmra.mrb[0].mxu0 %v1365
        %v3163 = vpop.f32.mrb[0].mxu0
        %v3164 = vadd.f32 0.0, %v3163
        %v3165 = vpop.f32.mrb[0].mxu0
        %v3166 = vadd.f32 0.0, %v3165
        %v3167 = vpop.f32.mrb[0].mxu0
        %v3168 = vadd.f32 0.0, %v3167
        %v3169 = vpop.f32.mrb[0].mxu0
        %v3170 = vadd.f32 0.0, %v3169
        %3171 = vmatprep.mubr.bf16.mxu0 %v1385
        %3172 = vmatmul.mubr.bf16.gmra.mrb[0].mxu0 %v1384
        %v3173 = vpop.f32.mrb[0].mxu0
        %v3174 = vadd.f32 0.0, %v3173
        %v3175 = vpop.f32.mrb[0].mxu0
        %v3176 = vadd.f32 0.0, %v3175
        %v3177 = vpop.f32.mrb[0].mxu0
        %v3178 = vadd.f32 0.0, %v3177
        %v3179 = vpop.f32.mrb[0].mxu0
        %v3180 = vadd.f32 0.0, %v3179
        %3181 = vmatprep.mubr.bf16.mxu0 %v1404
        %3182 = vmatmul.mubr.bf16.gmra.mrb[0].mxu0 %v1403
        %v3183 = vpop.f32.mrb[0].mxu0
        %v3184 = vadd.f32 0.0, %v3183
        %v3185 = vpop.f32.mrb[0].mxu0
        %v3186 = vadd.f32 0.0, %v3185
        %v3187 = vpop.f32.mrb[0].mxu0
        %v3188 = vadd.f32 0.0, %v3187
        %v3189 = vpop.f32.mrb[0].mxu0
        %v3190 = vadd.f32 0.0, %v3189
        %3191 = vmatprep.mubr.bf16.mxu0 %v1423
        %3192 = vmatmul.mubr.bf16.gmra.mrb[0].mxu0 %v1422
        %v3193 = vpop.f32.mrb[0].mxu0
        %v3194 = vadd.f32 0.0, %v3193
        %v3195 = vpop.f32.mrb[0].mxu0
        %v3196 = vadd.f32 0.0, %v3195
        %v3197 = vpop.f32.mrb[0].mxu0
        %v3198 = vadd.f32 0.0, %v3197
        %v3199 = vpop.f32.mrb[0].mxu0
        %v3200 = vadd.f32 0.0, %v3199
        %3201 = vmatprep.mubr.bf16.mxu0 %v1442
        %3202 = vmatmul.mubr.bf16.gmra.mrb[0].mxu0 %v1441
        %v3203 = vpop.f32.mrb[0].mxu0
        %v3204 = vadd.f32 0.0, %v3203
        %v3205 = vpop.f32.mrb[0].mxu0
        %v3206 = vadd.f32 0.0, %v3205
        %v3207 = vpop.f32.mrb[0].mxu0
        %v3208 = vadd.f32 0.0, %v3207
        %v3209 = vpop.f32.mrb[0].mxu0
        %v3210 = vadd.f32 0.0, %v3209
        %3211 = vdwg.mxu0
        %3212 = vmatprep.subr.bf16.mxu0 %v2519
        %3213 = vmatpush1.bf16.msra.mxu0 %v2518
        %3214 = vmatprep.subr.bf16.mxu0 %v2521
        %3215 = vmatpush1.bf16.msra.mxu0 %v2520
        %3216 = vmatprep.subr.bf16.mxu0 %v2523
        %3217 = vmatpush1.bf16.msra.mxu0 %v2522
        %3218 = vmatprep.subr.bf16.mxu0 %v2525
        %3219 = vmatpush1.bf16.msra.mxu0 %v2524
        %3220 = vmatprep.subr.bf16.mxu0 %v2527
        %3221 = vmatpush1.bf16.msra.mxu0 %v2526
        %3222 = vmatprep.subr.bf16.mxu0 %v2529
        %3223 = vmatpush1.bf16.msra.mxu0 %v2528
        %3224 = vmatprep.subr.bf16.mxu0 %v2531
        %3225 = vmatpush1.bf16.msra.mxu0 %v2530
        %3226 = vmatprep.subr.bf16.mxu0 %v2533
        %3227 = vmatpush1.bf16.msra.mxu0 %v2532
        %3228 = vmatprep.subr.bf16.mxu0 %v2535
        %3229 = vmatpush1.bf16.msra.mxu0 %v2534
        %3230 = vmatprep.subr.bf16.mxu0 %v2537
        %3231 = vmatpush1.bf16.msra.mxu0 %v2536
        %3232 = vmatprep.subr.bf16.mxu0 %v2539
        %3233 = vmatpush1.bf16.msra.mxu0 %v2538
        %3234 = vmatprep.subr.bf16.mxu0 %v2541
        %3235 = vmatpush1.bf16.msra.mxu0 %v2540
        %3236 = vmatprep.subr.bf16.mxu0 %v2543
        %3237 = vmatpush1.bf16.msra.mxu0 %v2542
        %3238 = vmatprep.subr.bf16.mxu0 %v2545
        %3239 = vmatpush1.bf16.msra.mxu0 %v2544
        %3240 = vmatprep.subr.bf16.mxu0 %v2547
        %3241 = vmatpush1.bf16.msra.mxu0 %v2546
        %3242 = vmatprep.subr.bf16.mxu0 %v2549
        %3243 = vmatpush1.bf16.msra.mxu0 %v2548
        %3244 = vmatprep.mubr.bf16.mxu0 %v1311
        %3245 = vmatmul.mubr.bf16.gmra.mrb[0].mxu0 %v1310
        %v3246 = vpop.f32.mrb[0].mxu0
        %v3247 = vadd.f32 %v3134, %v3246
        %v3248 = vpop.f32.mrb[0].mxu0
        %v3249 = vadd.f32 %v3136, %v3248
        %v3250 = vpop.f32.mrb[0].mxu0
        %v3251 = vadd.f32 %v3138, %v3250
        %v3252 = vpop.f32.mrb[0].mxu0
        %v3253 = vadd.f32 %v3140, %v3252
        %3254 = vmatprep.mubr.bf16.mxu0 %v1330
        %3255 = vmatmul.mubr.bf16.gmra.mrb[0].mxu0 %v1329
        %v3256 = vpop.f32.mrb[0].mxu0
        %v3257 = vadd.f32 %v3144, %v3256
        %v3258 = vpop.f32.mrb[0].mxu0
        %v3259 = vadd.f32 %v3146, %v3258
        %v3260 = vpop.f32.mrb[0].mxu0
        %v3261 = vadd.f32 %v3148, %v3260
        %v3262 = vpop.f32.mrb[0].mxu0
        %v3263 = vadd.f32 %v3150, %v3262
        %3264 = vmatprep.mubr.bf16.mxu0 %v1349
        %3265 = vmatmul.mubr.bf16.gmra.mrb[0].mxu0 %v1348
        %v3266 = vpop.f32.mrb[0].mxu0
        %v3267 = vadd.f32 %v3154, %v3266
        %v3268 = vpop.f32.mrb[0].mxu0
        %v3269 = vadd.f32 %v3156, %v3268
        %v3270 = vpop.f32.mrb[0].mxu0
        %v3271 = vadd.f32 %v3158, %v3270
        %v3272 = vpop.f32.mrb[0].mxu0
        %v3273 = vadd.f32 %v3160, %v3272
        %3274 = vmatprep.mubr.bf16.mxu0 %v1368
        %3275 = vmatmul.mubr.bf16.gmra.mrb[0].mxu0 %v1367
        %v3276 = vpop.f32.mrb[0].mxu0
        %v3277 = vadd.f32 %v3164, %v3276
        %v3278 = vpop.f32.mrb[0].mxu0
        %v3279 = vadd.f32 %v3166, %v3278
        %v3280 = vpop.f32.mrb[0].mxu0
        %v3281 = vadd.f32 %v3168, %v3280
        %v3282 = vpop.f32.mrb[0].mxu0
        %v3283 = vadd.f32 %v3170, %v3282
        %3284 = vmatprep.mubr.bf16.mxu0 %v1387
        %3285 = vmatmul.mubr.bf16.gmra.mrb[0].mxu0 %v1386
        %v3286 = vpop.f32.mrb[0].mxu0
        %v3287 = vadd.f32 %v3174, %v3286
        %v3288 = vpop.f32.mrb[0].mxu0
        %v3289 = vadd.f32 %v3176, %v3288
        %v3290 = vpop.f32.mrb[0].mxu0
        %v3291 = vadd.f32 %v3178, %v3290
        %v3292 = vpop.f32.mrb[0].mxu0
        %v3293 = vadd.f32 %v3180, %v3292
        %3294 = vmatprep.mubr.bf16.mxu0 %v1406
        %3295 = vmatmul.mubr.bf16.gmra.mrb[0].mxu0 %v1405
        %v3296 = vpop.f32.mrb[0].mxu0
        %v3297 = vadd.f32 %v3184, %v3296
        %v3298 = vpop.f32.mrb[0].mxu0
        %v3299 = vadd.f32 %v3186, %v3298
        %v3300 = vpop.f32.mrb[0].mxu0
        %v3301 = vadd.f32 %v3188, %v3300
        %v3302 = vpop.f32.mrb[0].mxu0
        %v3303 = vadd.f32 %v3190, %v3302
        %3304 = vmatprep.mubr.bf16.mxu0 %v1425
        %3305 = vmatmul.mubr.bf16.gmra.mrb[0].mxu0 %v1424
        %v3306 = vpop.f32.mrb[0].mxu0
        %v3307 = vadd.f32 %v3194, %v3306
        %v3308 = vpop.f32.mrb[0].mxu0
        %v3309 = vadd.f32 %v3196, %v3308
        %v3310 = vpop.f32.mrb[0].mxu0
        %v3311 = vadd.f32 %v3198, %v3310
        %v3312 = vpop.f32.mrb[0].mxu0
        %v3313 = vadd.f32 %v3200, %v3312
        %3314 = vmatprep.mubr.bf16.mxu0 %v1444
        %3315 = vmatmul.mubr.bf16.gmra.mrb[0].mxu0 %v1443
        %v3316 = vpop.f32.mrb[0].mxu0
        %v3317 = vadd.f32 %v3204, %v3316
        %v3318 = vpop.f32.mrb[0].mxu0
        %v3319 = vadd.f32 %v3206, %v3318
        %v3320 = vpop.f32.mrb[0].mxu0
        %v3321 = vadd.f32 %v3208, %v3320
        %v3322 = vpop.f32.mrb[0].mxu0
        %v3323 = vadd.f32 %v3210, %v3322
        %3324 = vdwg.mxu0
        %3325 = vmatprep.subr.bf16.mxu0 %v2551
        %3326 = vmatpush1.bf16.msra.mxu0 %v2550
        %3327 = vmatprep.subr.bf16.mxu0 %v2553
        %3328 = vmatpush1.bf16.msra.mxu0 %v2552
        %3329 = vmatprep.subr.bf16.mxu0 %v2555
        %3330 = vmatpush1.bf16.msra.mxu0 %v2554
        %3331 = vmatprep.subr.bf16.mxu0 %v2557
        %3332 = vmatpush1.bf16.msra.mxu0 %v2556
        %3333 = vmatprep.subr.bf16.mxu0 %v2559
        %3334 = vmatpush1.bf16.msra.mxu0 %v2558
        %3335 = vmatprep.subr.bf16.mxu0 %v2561
        %3336 = vmatpush1.bf16.msra.mxu0 %v2560
        %3337 = vmatprep.subr.bf16.mxu0 %v2563
        %3338 = vmatpush1.bf16.msra.mxu0 %v2562
        %3339 = vmatprep.subr.bf16.mxu0 %v2565
        %3340 = vmatpush1.bf16.msra.mxu0 %v2564
        %3341 = vmatprep.subr.bf16.mxu0 %v2567
        %3342 = vmatpush1.bf16.msra.mxu0 %v2566
        %3343 = vmatprep.subr.bf16.mxu0 %v2569
        %3344 = vmatpush1.bf16.msra.mxu0 %v2568
        %3345 = vmatprep.subr.bf16.mxu0 %v2571
        %3346 = vmatpush1.bf16.msra.mxu0 %v2570
        %3347 = vmatprep.subr.bf16.mxu0 %v2573
        %3348 = vmatpush1.bf16.msra.mxu0 %v2572
        %3349 = vmatprep.subr.bf16.mxu0 %v2575
        %3350 = vmatpush1.bf16.msra.mxu0 %v2574
        %3351 = vmatprep.subr.bf16.mxu0 %v2577
        %3352 = vmatpush1.bf16.msra.mxu0 %v2576
        %3353 = vmatprep.subr.bf16.mxu0 %v2579
        %3354 = vmatpush1.bf16.msra.mxu0 %v2578
        %3355 = vmatprep.subr.bf16.mxu0 %v2581
        %3356 = vmatpush1.bf16.msra.mxu0 %v2580
        %3357 = vmatprep.mubr.bf16.mxu0 %v1313
        %3358 = vmatmul.mubr.bf16.gmra.mrb[0].mxu0 %v1312
        %v3359 = vpop.f32.mrb[0].mxu0
        %v3360 = vadd.f32 %v3247, %v3359
        %v3361 = vpop.f32.mrb[0].mxu0
        %v3362 = vadd.f32 %v3249, %v3361
        %v3363 = vpop.f32.mrb[0].mxu0
        %v3364 = vadd.f32 %v3251, %v3363
        %v3365 = vpop.f32.mrb[0].mxu0
        %v3366 = vadd.f32 %v3253, %v3365
        %3367 = vmatprep.mubr.bf16.mxu0 %v1332
        %3368 = vmatmul.mubr.bf16.gmra.mrb[0].mxu0 %v1331
        %v3369 = vpop.f32.mrb[0].mxu0
        %v3370 = vadd.f32 %v3257, %v3369
        %v3371 = vpop.f32.mrb[0].mxu0
        %v3372 = vadd.f32 %v3259, %v3371
        %v3373 = vpop.f32.mrb[0].mxu0
        %v3374 = vadd.f32 %v3261, %v3373
        %v3375 = vpop.f32.mrb[0].mxu0
        %v3376 = vadd.f32 %v3263, %v3375
        %3377 = vmatprep.mubr.bf16.mxu0 %v1351
        %3378 = vmatmul.mubr.bf16.gmra.mrb[0].mxu0 %v1350
        %v3379 = vpop.f32.mrb[0].mxu0
        %v3380 = vadd.f32 %v3267, %v3379
        %v3381 = vpop.f32.mrb[0].mxu0
        %v3382 = vadd.f32 %v3269, %v3381
        %v3383 = vpop.f32.mrb[0].mxu0
        %v3384 = vadd.f32 %v3271, %v3383
        %v3385 = vpop.f32.mrb[0].mxu0
        %v3386 = vadd.f32 %v3273, %v3385
        %3387 = vmatprep.mubr.bf16.mxu0 %v1370
        %3388 = vmatmul.mubr.bf16.gmra.mrb[0].mxu0 %v1369
        %v3389 = vpop.f32.mrb[0].mxu0
        %v3390 = vadd.f32 %v3277, %v3389
        %v3391 = vpop.f32.mrb[0].mxu0
        %v3392 = vadd.f32 %v3279, %v3391
        %v3393 = vpop.f32.mrb[0].mxu0
        %v3394 = vadd.f32 %v3281, %v3393
        %v3395 = vpop.f32.mrb[0].mxu0
        %v3396 = vadd.f32 %v3283, %v3395
        %3397 = vmatprep.mubr.bf16.mxu0 %v1389
        %3398 = vmatmul.mubr.bf16.gmra.mrb[0].mxu0 %v1388
        %v3399 = vpop.f32.mrb[0].mxu0
        %v3400 = vadd.f32 %v3287, %v3399
        %v3401 = vpop.f32.mrb[0].mxu0
        %v3402 = vadd.f32 %v3289, %v3401
        %v3403 = vpop.f32.mrb[0].mxu0
        %v3404 = vadd.f32 %v3291, %v3403
        %v3405 = vpop.f32.mrb[0].mxu0
        %v3406 = vadd.f32 %v3293, %v3405
        %3407 = vmatprep.mubr.bf16.mxu0 %v1408
        %3408 = vmatmul.mubr.bf16.gmra.mrb[0].mxu0 %v1407
        %v3409 = vpop.f32.mrb[0].mxu0
        %v3410 = vadd.f32 %v3297, %v3409
        %v3411 = vpop.f32.mrb[0].mxu0
        %v3412 = vadd.f32 %v3299, %v3411
        %v3413 = vpop.f32.mrb[0].mxu0
        %v3414 = vadd.f32 %v3301, %v3413
        %v3415 = vpop.f32.mrb[0].mxu0
        %v3416 = vadd.f32 %v3303, %v3415
        %3417 = vmatprep.mubr.bf16.mxu0 %v1427
        %3418 = vmatmul.mubr.bf16.gmra.mrb[0].mxu0 %v1426
        %v3419 = vpop.f32.mrb[0].mxu0
        %v3420 = vadd.f32 %v3307, %v3419
        %v3421 = vpop.f32.mrb[0].mxu0
        %v3422 = vadd.f32 %v3309, %v3421
        %v3423 = vpop.f32.mrb[0].mxu0
        %v3424 = vadd.f32 %v3311, %v3423
        %v3425 = vpop.f32.mrb[0].mxu0
        %v3426 = vadd.f32 %v3313, %v3425
        %3427 = vmatprep.mubr.bf16.mxu0 %v1446
        %3428 = vmatmul.mubr.bf16.gmra.mrb[0].mxu0 %v1445
        %v3429 = vpop.f32.mrb[0].mxu0
        %v3430 = vadd.f32 %v3317, %v3429
        %v3431 = vpop.f32.mrb[0].mxu0
        %v3432 = vadd.f32 %v3319, %v3431
        %v3433 = vpop.f32.mrb[0].mxu0
        %v3434 = vadd.f32 %v3321, %v3433
        %v3435 = vpop.f32.mrb[0].mxu0
        %v3436 = vadd.f32 %v3323, %v3435
        %3437 = vdwg.mxu0
        %3438 = vmatprep.subr.bf16.mxu0 %v2583
        %3439 = vmatpush1.bf16.msra.mxu0 %v2582
        %3440 = vmatprep.subr.bf16.mxu0 %v2585
        %3441 = vmatpush1.bf16.msra.mxu0 %v2584
        %3442 = vmatprep.subr.bf16.mxu0 %v2587
        %3443 = vmatpush1.bf16.msra.mxu0 %v2586
        %3444 = vmatprep.subr.bf16.mxu0 %v2589
        %3445 = vmatpush1.bf16.msra.mxu0 %v2588
        %3446 = vmatprep.subr.bf16.mxu0 %v2591
        %3447 = vmatpush1.bf16.msra.mxu0 %v2590
        %3448 = vmatprep.subr.bf16.mxu0 %v2593
        %3449 = vmatpush1.bf16.msra.mxu0 %v2592
        %3450 = vmatprep.subr.bf16.mxu0 %v2595
        %3451 = vmatpush1.bf16.msra.mxu0 %v2594
        %3452 = vmatprep.subr.bf16.mxu0 %v2597
        %3453 = vmatpush1.bf16.msra.mxu0 %v2596
        %3454 = vmatprep.subr.bf16.mxu0 %v2599
        %3455 = vmatpush1.bf16.msra.mxu0 %v2598
        %3456 = vmatprep.subr.bf16.mxu0 %v2601
        %3457 = vmatpush1.bf16.msra.mxu0 %v2600
        %3458 = vmatprep.subr.bf16.mxu0 %v2603
        %3459 = vmatpush1.bf16.msra.mxu0 %v2602
        %3460 = vmatprep.subr.bf16.mxu0 %v2605
        %3461 = vmatpush1.bf16.msra.mxu0 %v2604
        %3462 = vmatprep.subr.bf16.mxu0 %v2607
        %3463 = vmatpush1.bf16.msra.mxu0 %v2606
        %3464 = vmatprep.subr.bf16.mxu0 %v2609
        %3465 = vmatpush1.bf16.msra.mxu0 %v2608
        %3466 = vmatprep.subr.bf16.mxu0 %v2611
        %3467 = vmatpush1.bf16.msra.mxu0 %v2610
        %3468 = vmatprep.subr.bf16.mxu0 %v2613
        %3469 = vmatpush1.bf16.msra.mxu0 %v2612
        %3470 = vmatprep.mubr.bf16.mxu0 %v1315
        %3471 = vmatmul.mubr.bf16.gmra.mrb[0].mxu0 %v1314
        %v3472 = vpop.f32.mrb[0].mxu0
        %v3473 = vadd.f32 %v3360, %v3472
        %v3474 = vpop.f32.mrb[0].mxu0
        %v3475 = vadd.f32 %v3362, %v3474
        %v3476 = vpop.f32.mrb[0].mxu0
        %v3477 = vadd.f32 %v3364, %v3476
        %v3478 = vpop.f32.mrb[0].mxu0
        %v3479 = vadd.f32 %v3366, %v3478
        %3480 = vmatprep.mubr.bf16.mxu0 %v1334
        %3481 = vmatmul.mubr.bf16.gmra.mrb[0].mxu0 %v1333
        %v3482 = vpop.f32.mrb[0].mxu0
        %v3483 = vadd.f32 %v3370, %v3482
        %v3484 = vpop.f32.mrb[0].mxu0
        %v3485 = vadd.f32 %v3372, %v3484
        %v3486 = vpop.f32.mrb[0].mxu0
        %v3487 = vadd.f32 %v3374, %v3486
        %v3488 = vpop.f32.mrb[0].mxu0
        %v3489 = vadd.f32 %v3376, %v3488
        %3490 = vmatprep.mubr.bf16.mxu0 %v1353
        %3491 = vmatmul.mubr.bf16.gmra.mrb[0].mxu0 %v1352
        %v3492 = vpop.f32.mrb[0].mxu0
        %v3493 = vadd.f32 %v3380, %v3492
        %v3494 = vpop.f32.mrb[0].mxu0
        %v3495 = vadd.f32 %v3382, %v3494
        %v3496 = vpop.f32.mrb[0].mxu0
        %v3497 = vadd.f32 %v3384, %v3496
        %v3498 = vpop.f32.mrb[0].mxu0
        %v3499 = vadd.f32 %v3386, %v3498
        %3500 = vmatprep.mubr.bf16.mxu0 %v1372
        %3501 = vmatmul.mubr.bf16.gmra.mrb[0].mxu0 %v1371
        %v3502 = vpop.f32.mrb[0].mxu0
        %v3503 = vadd.f32 %v3390, %v3502
        %v3504 = vpop.f32.mrb[0].mxu0
        %v3505 = vadd.f32 %v3392, %v3504
        %v3506 = vpop.f32.mrb[0].mxu0
        %v3507 = vadd.f32 %v3394, %v3506
        %v3508 = vpop.f32.mrb[0].mxu0
        %v3509 = vadd.f32 %v3396, %v3508
        %3510 = vmatprep.mubr.bf16.mxu0 %v1391
        %3511 = vmatmul.mubr.bf16.gmra.mrb[0].mxu0 %v1390
        %v3512 = vpop.f32.mrb[0].mxu0
        %v3513 = vadd.f32 %v3400, %v3512
        %v3514 = vpop.f32.mrb[0].mxu0
        %v3515 = vadd.f32 %v3402, %v3514
        %v3516 = vpop.f32.mrb[0].mxu0
        %v3517 = vadd.f32 %v3404, %v3516
        %v3518 = vpop.f32.mrb[0].mxu0
        %v3519 = vadd.f32 %v3406, %v3518
        %3520 = vmatprep.mubr.bf16.mxu0 %v1410
        %3521 = vmatmul.mubr.bf16.gmra.mrb[0].mxu0 %v1409
        %v3522 = vpop.f32.mrb[0].mxu0
        %v3523 = vadd.f32 %v3410, %v3522
        %v3524 = vpop.f32.mrb[0].mxu0
        %v3525 = vadd.f32 %v3412, %v3524
        %v3526 = vpop.f32.mrb[0].mxu0
        %v3527 = vadd.f32 %v3414, %v3526
        %v3528 = vpop.f32.mrb[0].mxu0
        %v3529 = vadd.f32 %v3416, %v3528
        %3530 = vmatprep.mubr.bf16.mxu0 %v1429
        %3531 = vmatmul.mubr.bf16.gmra.mrb[0].mxu0 %v1428
        %v3532 = vpop.f32.mrb[0].mxu0
        %v3533 = vadd.f32 %v3420, %v3532
        %v3534 = vpop.f32.mrb[0].mxu0
        %v3535 = vadd.f32 %v3422, %v3534
        %v3536 = vpop.f32.mrb[0].mxu0
        %v3537 = vadd.f32 %v3424, %v3536
        %v3538 = vpop.f32.mrb[0].mxu0
        %v3539 = vadd.f32 %v3426, %v3538
        %3540 = vmatprep.mubr.bf16.mxu0 %v1448
        %3541 = vmatmul.mubr.bf16.gmra.mrb[0].mxu0 %v1447
        %v3542 = vpop.f32.mrb[0].mxu0
        %v3543 = vadd.f32 %v3430, %v3542
        %v3544 = vpop.f32.mrb[0].mxu0
        %v3545 = vadd.f32 %v3432, %v3544
        %v3546 = vpop.f32.mrb[0].mxu0
        %v3547 = vadd.f32 %v3434, %v3546
        %v3548 = vpop.f32.mrb[0].mxu0
        %v3549 = vadd.f32 %v3436, %v3548
        %3550 = vdwg.mxu0
        %3551 = vmatprep.subr.bf16.mxu0 %v2615
        %3552 = vmatpush1.bf16.msra.mxu0 %v2614
        %3553 = vmatprep.subr.bf16.mxu0 %v2617
        %3554 = vmatpush1.bf16.msra.mxu0 %v2616
        %3555 = vmatprep.subr.bf16.mxu0 %v2619
        %3556 = vmatpush1.bf16.msra.mxu0 %v2618
        %3557 = vmatprep.subr.bf16.mxu0 %v2621
        %3558 = vmatpush1.bf16.msra.mxu0 %v2620
        %3559 = vmatprep.subr.bf16.mxu0 %v2623
        %3560 = vmatpush1.bf16.msra.mxu0 %v2622
        %3561 = vmatprep.subr.bf16.mxu0 %v2625
        %3562 = vmatpush1.bf16.msra.mxu0 %v2624
        %3563 = vmatprep.subr.bf16.mxu0 %v2627
        %3564 = vmatpush1.bf16.msra.mxu0 %v2626
        %3565 = vmatprep.subr.bf16.mxu0 %v2629
        %3566 = vmatpush1.bf16.msra.mxu0 %v2628
        %3567 = vmatprep.subr.bf16.mxu0 %v2631
        %3568 = vmatpush1.bf16.msra.mxu0 %v2630
        %3569 = vmatprep.subr.bf16.mxu0 %v2633
        %3570 = vmatpush1.bf16.msra.mxu0 %v2632
        %3571 = vmatprep.subr.bf16.mxu0 %v2635
        %3572 = vmatpush1.bf16.msra.mxu0 %v2634
        %3573 = vmatprep.subr.bf16.mxu0 %v2637
        %3574 = vmatpush1.bf16.msra.mxu0 %v2636
        %3575 = vmatprep.subr.bf16.mxu0 %v2639
        %3576 = vmatpush1.bf16.msra.mxu0 %v2638
        %3577 = vmatprep.subr.bf16.mxu0 %v2641
        %3578 = vmatpush1.bf16.msra.mxu0 %v2640
        %3579 = vmatprep.subr.bf16.mxu0 %v2643
        %3580 = vmatpush1.bf16.msra.mxu0 %v2642
        %3581 = vmatprep.subr.bf16.mxu0 %v2645
        %3582 = vmatpush1.bf16.msra.mxu0 %v2644
        %3583 = vmatprep.mubr.bf16.mxu0 %v1317
        %3584 = vmatmul.mubr.bf16.gmra.mrb[0].mxu0 %v1316
        %v3585 = vpop.f32.mrb[0].mxu0
        %v3586 = vadd.f32 %v3473, %v3585
        %v3587 = vpop.f32.mrb[0].mxu0
        %v3588 = vadd.f32 %v3475, %v3587
        %v3589 = vpop.f32.mrb[0].mxu0
        %v3590 = vadd.f32 %v3477, %v3589
        %v3591 = vpop.f32.mrb[0].mxu0
        %v3592 = vadd.f32 %v3479, %v3591
        %3593 = vmatprep.mubr.bf16.mxu0 %v1336
        %3594 = vmatmul.mubr.bf16.gmra.mrb[0].mxu0 %v1335
        %v3595 = vpop.f32.mrb[0].mxu0
        %v3596 = vadd.f32 %v3483, %v3595
        %v3597 = vpop.f32.mrb[0].mxu0
        %v3598 = vadd.f32 %v3485, %v3597
        %v3599 = vpop.f32.mrb[0].mxu0
        %v3600 = vadd.f32 %v3487, %v3599
        %v3601 = vpop.f32.mrb[0].mxu0
        %v3602 = vadd.f32 %v3489, %v3601
        %3603 = vmatprep.mubr.bf16.mxu0 %v1355
        %3604 = vmatmul.mubr.bf16.gmra.mrb[0].mxu0 %v1354
        %v3605 = vpop.f32.mrb[0].mxu0
        %v3606 = vadd.f32 %v3493, %v3605
        %v3607 = vpop.f32.mrb[0].mxu0
        %v3608 = vadd.f32 %v3495, %v3607
        %v3609 = vpop.f32.mrb[0].mxu0
        %v3610 = vadd.f32 %v3497, %v3609
        %v3611 = vpop.f32.mrb[0].mxu0
        %v3612 = vadd.f32 %v3499, %v3611
        %3613 = vmatprep.mubr.bf16.mxu0 %v1374
        %3614 = vmatmul.mubr.bf16.gmra.mrb[0].mxu0 %v1373
        %v3615 = vpop.f32.mrb[0].mxu0
        %v3616 = vadd.f32 %v3503, %v3615
        %v3617 = vpop.f32.mrb[0].mxu0
        %v3618 = vadd.f32 %v3505, %v3617
        %v3619 = vpop.f32.mrb[0].mxu0
        %v3620 = vadd.f32 %v3507, %v3619
        %v3621 = vpop.f32.mrb[0].mxu0
        %v3622 = vadd.f32 %v3509, %v3621
        %3623 = vmatprep.mubr.bf16.mxu0 %v1393
        %3624 = vmatmul.mubr.bf16.gmra.mrb[0].mxu0 %v1392
        %v3625 = vpop.f32.mrb[0].mxu0
        %v3626 = vadd.f32 %v3513, %v3625
        %v3627 = vpop.f32.mrb[0].mxu0
        %v3628 = vadd.f32 %v3515, %v3627
        %v3629 = vpop.f32.mrb[0].mxu0
        %v3630 = vadd.f32 %v3517, %v3629
        %v3631 = vpop.f32.mrb[0].mxu0
        %v3632 = vadd.f32 %v3519, %v3631
        %3633 = vmatprep.mubr.bf16.mxu0 %v1412
        %3634 = vmatmul.mubr.bf16.gmra.mrb[0].mxu0 %v1411
        %v3635 = vpop.f32.mrb[0].mxu0
        %v3636 = vadd.f32 %v3523, %v3635
        %v3637 = vpop.f32.mrb[0].mxu0
        %v3638 = vadd.f32 %v3525, %v3637
        %v3639 = vpop.f32.mrb[0].mxu0
        %v3640 = vadd.f32 %v3527, %v3639
        %v3641 = vpop.f32.mrb[0].mxu0
        %v3642 = vadd.f32 %v3529, %v3641
        %3643 = vmatprep.mubr.bf16.mxu0 %v1431
        %3644 = vmatmul.mubr.bf16.gmra.mrb[0].mxu0 %v1430
        %v3645 = vpop.f32.mrb[0].mxu0
        %v3646 = vadd.f32 %v3533, %v3645
        %v3647 = vpop.f32.mrb[0].mxu0
        %v3648 = vadd.f32 %v3535, %v3647
        %v3649 = vpop.f32.mrb[0].mxu0
        %v3650 = vadd.f32 %v3537, %v3649
        %v3651 = vpop.f32.mrb[0].mxu0
        %v3652 = vadd.f32 %v3539, %v3651
        %3653 = vmatprep.mubr.bf16.mxu0 %v1450
        %3654 = vmatmul.mubr.bf16.gmra.mrb[0].mxu0 %v1449
        %v3655 = vpop.f32.mrb[0].mxu0
        %v3656 = vadd.f32 %v3543, %v3655
        %v3657 = vpop.f32.mrb[0].mxu0
        %v3658 = vadd.f32 %v3545, %v3657
        %v3659 = vpop.f32.mrb[0].mxu0
        %v3660 = vadd.f32 %v3547, %v3659
        %v3661 = vpop.f32.mrb[0].mxu0
        %v3662 = vadd.f32 %v3549, %v3661
        %3663 = vdwg.mxu0
        %3664 = vmatprep.subr.bf16.mxu0 %v2647
        %3665 = vmatpush1.bf16.msra.mxu0 %v2646
        %3666 = vmatprep.subr.bf16.mxu0 %v2649
        %3667 = vmatpush1.bf16.msra.mxu0 %v2648
        %3668 = vmatprep.subr.bf16.mxu0 %v2651
        %3669 = vmatpush1.bf16.msra.mxu0 %v2650
        %3670 = vmatprep.subr.bf16.mxu0 %v2653
        %3671 = vmatpush1.bf16.msra.mxu0 %v2652
        %3672 = vmatprep.subr.bf16.mxu0 %v2655
        %3673 = vmatpush1.bf16.msra.mxu0 %v2654
        %3674 = vmatprep.subr.bf16.mxu0 %v2657
        %3675 = vmatpush1.bf16.msra.mxu0 %v2656
        %3676 = vmatprep.subr.bf16.mxu0 %v2659
        %3677 = vmatpush1.bf16.msra.mxu0 %v2658
        %3678 = vmatprep.subr.bf16.mxu0 %v2661
        %3679 = vmatpush1.bf16.msra.mxu0 %v2660
        %3680 = vmatprep.subr.bf16.mxu0 %v2663
        %3681 = vmatpush1.bf16.msra.mxu0 %v2662
        %3682 = vmatprep.subr.bf16.mxu0 %v2665
        %3683 = vmatpush1.bf16.msra.mxu0 %v2664
        %3684 = vmatprep.subr.bf16.mxu0 %v2667
        %3685 = vmatpush1.bf16.msra.mxu0 %v2666
        %3686 = vmatprep.subr.bf16.mxu0 %v2669
        %3687 = vmatpush1.bf16.msra.mxu0 %v2668
        %3688 = vmatprep.subr.bf16.mxu0 %v2671
        %3689 = vmatpush1.bf16.msra.mxu0 %v2670
        %3690 = vmatprep.subr.bf16.mxu0 %v2673
        %3691 = vmatpush1.bf16.msra.mxu0 %v2672
        %3692 = vmatprep.subr.bf16.mxu0 %v2675
        %3693 = vmatpush1.bf16.msra.mxu0 %v2674
        %3694 = vmatprep.subr.bf16.mxu0 %v2677
        %3695 = vmatpush1.bf16.msra.mxu0 %v2676
        %3696 = vmatprep.mubr.bf16.mxu0 %v1319
        %3697 = vmatmul.mubr.bf16.gmra.mrb[0].mxu0 %v1318
        %v3698 = vpop.f32.mrb[0].mxu0
        %v3699 = vadd.f32 %v3586, %v3698
        %v3700 = vpop.f32.mrb[0].mxu0
        %v3701 = vadd.f32 %v3588, %v3700
        %v3702 = vpop.f32.mrb[0].mxu0
        %v3703 = vadd.f32 %v3590, %v3702
        %v3704 = vpop.f32.mrb[0].mxu0
        %v3705 = vadd.f32 %v3592, %v3704
        %3706 = vmatprep.mubr.bf16.mxu0 %v1338
        %3707 = vmatmul.mubr.bf16.gmra.mrb[0].mxu0 %v1337
        %v3708 = vpop.f32.mrb[0].mxu0
        %v3709 = vadd.f32 %v3596, %v3708
        %v3710 = vpop.f32.mrb[0].mxu0
        %v3711 = vadd.f32 %v3598, %v3710
        %v3712 = vpop.f32.mrb[0].mxu0
        %v3713 = vadd.f32 %v3600, %v3712
        %v3714 = vpop.f32.mrb[0].mxu0
        %v3715 = vadd.f32 %v3602, %v3714
        %3716 = vmatprep.mubr.bf16.mxu0 %v1357
        %3717 = vmatmul.mubr.bf16.gmra.mrb[0].mxu0 %v1356
        %v3718 = vpop.f32.mrb[0].mxu0
        %v3719 = vadd.f32 %v3606, %v3718
        %v3720 = vpop.f32.mrb[0].mxu0
        %v3721 = vadd.f32 %v3608, %v3720
        %v3722 = vpop.f32.mrb[0].mxu0
        %v3723 = vadd.f32 %v3610, %v3722
        %v3724 = vpop.f32.mrb[0].mxu0
        %v3725 = vadd.f32 %v3612, %v3724
        %3726 = vmatprep.mubr.bf16.mxu0 %v1376
        %3727 = vmatmul.mubr.bf16.gmra.mrb[0].mxu0 %v1375
        %v3728 = vpop.f32.mrb[0].mxu0
        %v3729 = vadd.f32 %v3616, %v3728
        %v3730 = vpop.f32.mrb[0].mxu0
        %v3731 = vadd.f32 %v3618, %v3730
        %v3732 = vpop.f32.mrb[0].mxu0
        %v3733 = vadd.f32 %v3620, %v3732
        %v3734 = vpop.f32.mrb[0].mxu0
        %v3735 = vadd.f32 %v3622, %v3734
        %3736 = vmatprep.mubr.bf16.mxu0 %v1395
        %3737 = vmatmul.mubr.bf16.gmra.mrb[0].mxu0 %v1394
        %v3738 = vpop.f32.mrb[0].mxu0
        %v3739 = vadd.f32 %v3626, %v3738
        %v3740 = vpop.f32.mrb[0].mxu0
        %v3741 = vadd.f32 %v3628, %v3740
        %v3742 = vpop.f32.mrb[0].mxu0
        %v3743 = vadd.f32 %v3630, %v3742
        %v3744 = vpop.f32.mrb[0].mxu0
        %v3745 = vadd.f32 %v3632, %v3744
        %3746 = vmatprep.mubr.bf16.mxu0 %v1414
        %3747 = vmatmul.mubr.bf16.gmra.mrb[0].mxu0 %v1413
        %v3748 = vpop.f32.mrb[0].mxu0
        %v3749 = vadd.f32 %v3636, %v3748
        %v3750 = vpop.f32.mrb[0].mxu0
        %v3751 = vadd.f32 %v3638, %v3750
        %v3752 = vpop.f32.mrb[0].mxu0
        %v3753 = vadd.f32 %v3640, %v3752
        %v3754 = vpop.f32.mrb[0].mxu0
        %v3755 = vadd.f32 %v3642, %v3754
        %3756 = vmatprep.mubr.bf16.mxu0 %v1433
        %3757 = vmatmul.mubr.bf16.gmra.mrb[0].mxu0 %v1432
        %v3758 = vpop.f32.mrb[0].mxu0
        %v3759 = vadd.f32 %v3646, %v3758
        %v3760 = vpop.f32.mrb[0].mxu0
        %v3761 = vadd.f32 %v3648, %v3760
        %v3762 = vpop.f32.mrb[0].mxu0
        %v3763 = vadd.f32 %v3650, %v3762
        %v3764 = vpop.f32.mrb[0].mxu0
        %v3765 = vadd.f32 %v3652, %v3764
        %3766 = vmatprep.mubr.bf16.mxu0 %v1452
        %3767 = vmatmul.mubr.bf16.gmra.mrb[0].mxu0 %v1451
        %v3768 = vpop.f32.mrb[0].mxu0
        %v3769 = vadd.f32 %v3656, %v3768
        %v3770 = vpop.f32.mrb[0].mxu0
        %v3771 = vadd.f32 %v3658, %v3770
        %v3772 = vpop.f32.mrb[0].mxu0
        %v3773 = vadd.f32 %v3660, %v3772
        %v3774 = vpop.f32.mrb[0].mxu0
        %v3775 = vadd.f32 %v3662, %v3774
        %3776 = vdwg.mxu0
        %3777 = vmatprep.subr.bf16.mxu0 %v2679
        %3778 = vmatpush1.bf16.msra.mxu0 %v2678
        %3779 = vmatprep.subr.bf16.mxu0 %v2681
        %3780 = vmatpush1.bf16.msra.mxu0 %v2680
        %3781 = vmatprep.subr.bf16.mxu0 %v2683
        %3782 = vmatpush1.bf16.msra.mxu0 %v2682
        %3783 = vmatprep.subr.bf16.mxu0 %v2685
        %3784 = vmatpush1.bf16.msra.mxu0 %v2684
        %3785 = vmatprep.subr.bf16.mxu0 %v2687
        %3786 = vmatpush1.bf16.msra.mxu0 %v2686
        %3787 = vmatprep.subr.bf16.mxu0 %v2689
        %3788 = vmatpush1.bf16.msra.mxu0 %v2688
        %3789 = vmatprep.subr.bf16.mxu0 %v2691
        %3790 = vmatpush1.bf16.msra.mxu0 %v2690
        %3791 = vmatprep.subr.bf16.mxu0 %v2693
        %3792 = vmatpush1.bf16.msra.mxu0 %v2692
        %3793 = vmatprep.subr.bf16.mxu0 %v2695
        %3794 = vmatpush1.bf16.msra.mxu0 %v2694
        %3795 = vmatprep.subr.bf16.mxu0 %v2697
        %3796 = vmatpush1.bf16.msra.mxu0 %v2696
        %3797 = vmatprep.subr.bf16.mxu0 %v2699
        %3798 = vmatpush1.bf16.msra.mxu0 %v2698
        %3799 = vmatprep.subr.bf16.mxu0 %v2701
        %3800 = vmatpush1.bf16.msra.mxu0 %v2700
        %3801 = vmatprep.subr.bf16.mxu0 %v2703
        %3802 = vmatpush1.bf16.msra.mxu0 %v2702
        %3803 = vmatprep.subr.bf16.mxu0 %v2705
        %3804 = vmatpush1.bf16.msra.mxu0 %v2704
        %3805 = vmatprep.subr.bf16.mxu0 %v2707
        %3806 = vmatpush1.bf16.msra.mxu0 %v2706
        %3807 = vmatprep.subr.bf16.mxu0 %v2709
        %3808 = vmatpush1.bf16.msra.mxu0 %v2708
        %3809 = vmatprep.mubr.bf16.mxu0 %v1321
        %3810 = vmatmul.mubr.bf16.gmra.mrb[0].mxu0 %v1320
        %v3811 = vpop.f32.mrb[0].mxu0
        %v3812 = vadd.f32 %v3699, %v3811
        %v3813 = vpop.f32.mrb[0].mxu0
        %v3814 = vadd.f32 %v3701, %v3813
        %v3815 = vpop.f32.mrb[0].mxu0
        %v3816 = vadd.f32 %v3703, %v3815
        %v3817 = vpop.f32.mrb[0].mxu0
        %v3818 = vadd.f32 %v3705, %v3817
        %3819 = vmatprep.mubr.bf16.mxu0 %v1340
        %3820 = vmatmul.mubr.bf16.gmra.mrb[0].mxu0 %v1339
        %v3821 = vpop.f32.mrb[0].mxu0
        %v3822 = vadd.f32 %v3709, %v3821
        %v3823 = vpop.f32.mrb[0].mxu0
        %v3824 = vadd.f32 %v3711, %v3823
        %v3825 = vpop.f32.mrb[0].mxu0
        %v3826 = vadd.f32 %v3713, %v3825
        %v3827 = vpop.f32.mrb[0].mxu0
        %v3828 = vadd.f32 %v3715, %v3827
        %3829 = vmatprep.mubr.bf16.mxu0 %v1359
        %3830 = vmatmul.mubr.bf16.gmra.mrb[0].mxu0 %v1358
        %v3831 = vpop.f32.mrb[0].mxu0
        %v3832 = vadd.f32 %v3719, %v3831
        %v3833 = vpop.f32.mrb[0].mxu0
        %v3834 = vadd.f32 %v3721, %v3833
        %v3835 = vpop.f32.mrb[0].mxu0
        %v3836 = vadd.f32 %v3723, %v3835
        %v3837 = vpop.f32.mrb[0].mxu0
        %v3838 = vadd.f32 %v3725, %v3837
        %3839 = vmatprep.mubr.bf16.mxu0 %v1378
        %3840 = vmatmul.mubr.bf16.gmra.mrb[0].mxu0 %v1377
        %v3841 = vpop.f32.mrb[0].mxu0
        %v3842 = vadd.f32 %v3729, %v3841
        %v3843 = vpop.f32.mrb[0].mxu0
        %v3844 = vadd.f32 %v3731, %v3843
        %v3845 = vpop.f32.mrb[0].mxu0
        %v3846 = vadd.f32 %v3733, %v3845
        %v3847 = vpop.f32.mrb[0].mxu0
        %v3848 = vadd.f32 %v3735, %v3847
        %3849 = vmatprep.mubr.bf16.mxu0 %v1397
        %3850 = vmatmul.mubr.bf16.gmra.mrb[0].mxu0 %v1396
        %v3851 = vpop.f32.mrb[0].mxu0
        %v3852 = vadd.f32 %v3739, %v3851
        %v3853 = vpop.f32.mrb[0].mxu0
        %v3854 = vadd.f32 %v3741, %v3853
        %v3855 = vpop.f32.mrb[0].mxu0
        %v3856 = vadd.f32 %v3743, %v3855
        %v3857 = vpop.f32.mrb[0].mxu0
        %v3858 = vadd.f32 %v3745, %v3857
        %3859 = vmatprep.mubr.bf16.mxu0 %v1416
        %3860 = vmatmul.mubr.bf16.gmra.mrb[0].mxu0 %v1415
        %v3861 = vpop.f32.mrb[0].mxu0
        %v3862 = vadd.f32 %v3749, %v3861
        %v3863 = vpop.f32.mrb[0].mxu0
        %v3864 = vadd.f32 %v3751, %v3863
        %v3865 = vpop.f32.mrb[0].mxu0
        %v3866 = vadd.f32 %v3753, %v3865
        %v3867 = vpop.f32.mrb[0].mxu0
        %v3868 = vadd.f32 %v3755, %v3867
        %3869 = vmatprep.mubr.bf16.mxu0 %v1435
        %3870 = vmatmul.mubr.bf16.gmra.mrb[0].mxu0 %v1434
        %v3871 = vpop.f32.mrb[0].mxu0
        %v3872 = vadd.f32 %v3759, %v3871
        %v3873 = vpop.f32.mrb[0].mxu0
        %v3874 = vadd.f32 %v3761, %v3873
        %v3875 = vpop.f32.mrb[0].mxu0
        %v3876 = vadd.f32 %v3763, %v3875
        %v3877 = vpop.f32.mrb[0].mxu0
        %v3878 = vadd.f32 %v3765, %v3877
        %3879 = vmatprep.mubr.bf16.mxu0 %v1454
        %3880 = vmatmul.mubr.bf16.gmra.mrb[0].mxu0 %v1453
        %v3881 = vpop.f32.mrb[0].mxu0
        %v3882 = vadd.f32 %v3769, %v3881
        %v3883 = vpop.f32.mrb[0].mxu0
        %v3884 = vadd.f32 %v3771, %v3883
        %v3885 = vpop.f32.mrb[0].mxu0
        %v3886 = vadd.f32 %v3773, %v3885
        %v3887 = vpop.f32.mrb[0].mxu0
        %v3888 = vadd.f32 %v3775, %v3887
        %3889 = vdwg.mxu0
        %3890 = vmatprep.subr.bf16.mxu0 %v2711
        %3891 = vmatpush1.bf16.msra.mxu0 %v2710
        %3892 = vmatprep.subr.bf16.mxu0 %v2713
        %3893 = vmatpush1.bf16.msra.mxu0 %v2712
        %3894 = vmatprep.subr.bf16.mxu0 %v2715
        %3895 = vmatpush1.bf16.msra.mxu0 %v2714
        %3896 = vmatprep.subr.bf16.mxu0 %v2717
        %3897 = vmatpush1.bf16.msra.mxu0 %v2716
        %3898 = vmatprep.subr.bf16.mxu0 %v2719
        %3899 = vmatpush1.bf16.msra.mxu0 %v2718
        %3900 = vmatprep.subr.bf16.mxu0 %v2721
        %3901 = vmatpush1.bf16.msra.mxu0 %v2720
        %3902 = vmatprep.subr.bf16.mxu0 %v2723
        %3903 = vmatpush1.bf16.msra.mxu0 %v2722
        %3904 = vmatprep.subr.bf16.mxu0 %v2725
        %3905 = vmatpush1.bf16.msra.mxu0 %v2724
        %3906 = vmatprep.subr.bf16.mxu0 %v2727
        %3907 = vmatpush1.bf16.msra.mxu0 %v2726
        %3908 = vmatprep.subr.bf16.mxu0 %v2729
        %3909 = vmatpush1.bf16.msra.mxu0 %v2728
        %3910 = vmatprep.subr.bf16.mxu0 %v2731
        %3911 = vmatpush1.bf16.msra.mxu0 %v2730
        %3912 = vmatprep.subr.bf16.mxu0 %v2733
        %3913 = vmatpush1.bf16.msra.mxu0 %v2732
        %3914 = vmatprep.subr.bf16.mxu0 %v2735
        %3915 = vmatpush1.bf16.msra.mxu0 %v2734
        %3916 = vmatprep.subr.bf16.mxu0 %v2737
        %3917 = vmatpush1.bf16.msra.mxu0 %v2736
        %3918 = vmatprep.subr.bf16.mxu0 %v2739
        %3919 = vmatpush1.bf16.msra.mxu0 %v2738
        %3920 = vmatprep.subr.bf16.mxu0 %v2741
        %3921 = vmatpush1.bf16.msra.mxu0 %v2740
        %3922 = vmatprep.mubr.bf16.mxu0 %v1323
        %3923 = vmatmul.mubr.bf16.gmra.mrb[0].mxu0 %v1322
        %v3924 = vpop.f32.mrb[0].mxu0
        %v3925 = vadd.f32 %v3812, %v3924
        %v3926 = vpop.f32.mrb[0].mxu0
        %v3927 = vadd.f32 %v3814, %v3926
        %v3928 = vpop.f32.mrb[0].mxu0
        %v3929 = vadd.f32 %v3816, %v3928
        %v3930 = vpop.f32.mrb[0].mxu0
        %v3931 = vadd.f32 %v3818, %v3930
        %3932 = vmatprep.mubr.bf16.mxu0 %v1342
        %3933 = vmatmul.mubr.bf16.gmra.mrb[0].mxu0 %v1341
        %v3934 = vpop.f32.mrb[0].mxu0
        %v3935 = vadd.f32 %v3822, %v3934
        %v3936 = vpop.f32.mrb[0].mxu0
        %v3937 = vadd.f32 %v3824, %v3936
        %v3938 = vpop.f32.mrb[0].mxu0
        %v3939 = vadd.f32 %v3826, %v3938
        %v3940 = vpop.f32.mrb[0].mxu0
        %v3941 = vadd.f32 %v3828, %v3940
        %3942 = vmatprep.mubr.bf16.mxu0 %v1361
        %3943 = vmatmul.mubr.bf16.gmra.mrb[0].mxu0 %v1360
        %v3944 = vpop.f32.mrb[0].mxu0
        %v3945 = vadd.f32 %v3832, %v3944
        %v3946 = vpop.f32.mrb[0].mxu0
        %v3947 = vadd.f32 %v3834, %v3946
        %v3948 = vpop.f32.mrb[0].mxu0
        %v3949 = vadd.f32 %v3836, %v3948
        %v3950 = vpop.f32.mrb[0].mxu0
        %v3951 = vadd.f32 %v3838, %v3950
        %3952 = vmatprep.mubr.bf16.mxu0 %v1380
        %3953 = vmatmul.mubr.bf16.gmra.mrb[0].mxu0 %v1379
        %v3954 = vpop.f32.mrb[0].mxu0
        %v3955 = vadd.f32 %v3842, %v3954
        %v3956 = vpop.f32.mrb[0].mxu0
        %v3957 = vadd.f32 %v3844, %v3956
        %v3958 = vpop.f32.mrb[0].mxu0
        %v3959 = vadd.f32 %v3846, %v3958
        %v3960 = vpop.f32.mrb[0].mxu0
        %v3961 = vadd.f32 %v3848, %v3960
        %3962 = vmatprep.mubr.bf16.mxu0 %v1399
        %3963 = vmatmul.mubr.bf16.gmra.mrb[0].mxu0 %v1398
        %v3964 = vpop.f32.mrb[0].mxu0
        %v3965 = vadd.f32 %v3852, %v3964
        %v3966 = vpop.f32.mrb[0].mxu0
        %v3967 = vadd.f32 %v3854, %v3966
        %v3968 = vpop.f32.mrb[0].mxu0
        %v3969 = vadd.f32 %v3856, %v3968
        %v3970 = vpop.f32.mrb[0].mxu0
        %v3971 = vadd.f32 %v3858, %v3970
        %3972 = vmatprep.mubr.bf16.mxu0 %v1418
        %3973 = vmatmul.mubr.bf16.gmra.mrb[0].mxu0 %v1417
        %v3974 = vpop.f32.mrb[0].mxu0
        %v3975 = vadd.f32 %v3862, %v3974
        %v3976 = vpop.f32.mrb[0].mxu0
        %v3977 = vadd.f32 %v3864, %v3976
        %v3978 = vpop.f32.mrb[0].mxu0
        %v3979 = vadd.f32 %v3866, %v3978
        %v3980 = vpop.f32.mrb[0].mxu0
        %v3981 = vadd.f32 %v3868, %v3980
        %3982 = vmatprep.mubr.bf16.mxu0 %v1437
        %3983 = vmatmul.mubr.bf16.gmra.mrb[0].mxu0 %v1436
        %v3984 = vpop.f32.mrb[0].mxu0
        %v3985 = vadd.f32 %v3872, %v3984
        %v3986 = vpop.f32.mrb[0].mxu0
        %v3987 = vadd.f32 %v3874, %v3986
        %v3988 = vpop.f32.mrb[0].mxu0
        %v3989 = vadd.f32 %v3876, %v3988
        %v3990 = vpop.f32.mrb[0].mxu0
        %v3991 = vadd.f32 %v3878, %v3990
        %3992 = vmatprep.mubr.bf16.mxu0 %v1456
        %3993 = vmatmul.mubr.bf16.gmra.mrb[0].mxu0 %v1455
        %v3994 = vpop.f32.mrb[0].mxu0
        %v3995 = vadd.f32 %v3882, %v3994
        %v3996 = vpop.f32.mrb[0].mxu0
        %v3997 = vadd.f32 %v3884, %v3996
        %v3998 = vpop.f32.mrb[0].mxu0
        %v3999 = vadd.f32 %v3886, %v3998
        %v4000 = vpop.f32.mrb[0].mxu0
        %v4001 = vadd.f32 %v3888, %v4000
        %4002 = vdwg.mxu0
        %4003 = vmatprep.subr.bf16.mxu0 %v2743
        %4004 = vmatpush1.bf16.msra.mxu0 %v2742
        %4005 = vmatprep.subr.bf16.mxu0 %v2745
        %4006 = vmatpush1.bf16.msra.mxu0 %v2744
        %4007 = vmatprep.subr.bf16.mxu0 %v2747
        %4008 = vmatpush1.bf16.msra.mxu0 %v2746
        %4009 = vmatprep.subr.bf16.mxu0 %v2749
        %4010 = vmatpush1.bf16.msra.mxu0 %v2748
        %4011 = vmatprep.subr.bf16.mxu0 %v2751
        %4012 = vmatpush1.bf16.msra.mxu0 %v2750
        %4013 = vmatprep.subr.bf16.mxu0 %v2753
        %4014 = vmatpush1.bf16.msra.mxu0 %v2752
        %4015 = vmatprep.subr.bf16.mxu0 %v2755
        %4016 = vmatpush1.bf16.msra.mxu0 %v2754
        %4017 = vmatprep.subr.bf16.mxu0 %v2757
        %4018 = vmatpush1.bf16.msra.mxu0 %v2756
        %4019 = vmatprep.subr.bf16.mxu0 %v2759
        %4020 = vmatpush1.bf16.msra.mxu0 %v2758
        %4021 = vmatprep.subr.bf16.mxu0 %v2761
        %4022 = vmatpush1.bf16.msra.mxu0 %v2760
        %4023 = vmatprep.subr.bf16.mxu0 %v2763
        %4024 = vmatpush1.bf16.msra.mxu0 %v2762
        %4025 = vmatprep.subr.bf16.mxu0 %v2765
        %4026 = vmatpush1.bf16.msra.mxu0 %v2764
        %4027 = vmatprep.subr.bf16.mxu0 %v2767
        %4028 = vmatpush1.bf16.msra.mxu0 %v2766
        %4029 = vmatprep.subr.bf16.mxu0 %v2769
        %4030 = vmatpush1.bf16.msra.mxu0 %v2768
        %4031 = vmatprep.subr.bf16.mxu0 %v2771
        %4032 = vmatpush1.bf16.msra.mxu0 %v2770
        %4033 = vmatprep.subr.bf16.mxu0 %v2773
        %4034 = vmatpush1.bf16.msra.mxu0 %v2772
        %4035 = vmatprep.mubr.bf16.mxu0 %v1325
        %4036 = vmatmul.mubr.bf16.gmra.mrb[0].mxu0 %v1324
        %v4037 = vpop.f32.mrb[0].mxu0
        %v4038 = vadd.f32 %v3925, %v4037
        %v4039 = vpop.f32.mrb[0].mxu0
        %v4040 = vadd.f32 %v3927, %v4039
        %v4041 = vpop.f32.mrb[0].mxu0
        %v4042 = vadd.f32 %v3929, %v4041
        %v4043 = vpop.f32.mrb[0].mxu0
        %v4044 = vadd.f32 %v3931, %v4043
        %4045 = vmatprep.mubr.bf16.mxu0 %v1344
        %4046 = vmatmul.mubr.bf16.gmra.mrb[0].mxu0 %v1343
        %v4047 = vpop.f32.mrb[0].mxu0
        %v4048 = vadd.f32 %v3935, %v4047
        %v4049 = vpop.f32.mrb[0].mxu0
        %v4050 = vadd.f32 %v3937, %v4049
        %v4051 = vpop.f32.mrb[0].mxu0
        %v4052 = vadd.f32 %v3939, %v4051
        %v4053 = vpop.f32.mrb[0].mxu0
        %v4054 = vadd.f32 %v3941, %v4053
        %4055 = vmatprep.mubr.bf16.mxu0 %v1363
        %4056 = vmatmul.mubr.bf16.gmra.mrb[0].mxu0 %v1362
        %v4057 = vpop.f32.mrb[0].mxu0
        %v4058 = vadd.f32 %v3945, %v4057
        %v4059 = vpop.f32.mrb[0].mxu0
        %v4060 = vadd.f32 %v3947, %v4059
        %v4061 = vpop.f32.mrb[0].mxu0
        %v4062 = vadd.f32 %v3949, %v4061
        %v4063 = vpop.f32.mrb[0].mxu0
        %v4064 = vadd.f32 %v3951, %v4063
        %4065 = vmatprep.mubr.bf16.mxu0 %v1382
        %4066 = vmatmul.mubr.bf16.gmra.mrb[0].mxu0 %v1381
        %v4067 = vpop.f32.mrb[0].mxu0
        %v4068 = vadd.f32 %v3955, %v4067
        %v4069 = vpop.f32.mrb[0].mxu0
        %v4070 = vadd.f32 %v3957, %v4069
        %v4071 = vpop.f32.mrb[0].mxu0
        %v4072 = vadd.f32 %v3959, %v4071
        %v4073 = vpop.f32.mrb[0].mxu0
        %v4074 = vadd.f32 %v3961, %v4073
        %4075 = vmatprep.mubr.bf16.mxu0 %v1401
        %4076 = vmatmul.mubr.bf16.gmra.mrb[0].mxu0 %v1400
        %v4077 = vpop.f32.mrb[0].mxu0
        %v4078 = vadd.f32 %v3965, %v4077
        %v4079 = vpop.f32.mrb[0].mxu0
        %v4080 = vadd.f32 %v3967, %v4079
        %v4081 = vpop.f32.mrb[0].mxu0
        %v4082 = vadd.f32 %v3969, %v4081
        %v4083 = vpop.f32.mrb[0].mxu0
        %v4084 = vadd.f32 %v3971, %v4083
        %4085 = vmatprep.mubr.bf16.mxu0 %v1420
        %4086 = vmatmul.mubr.bf16.gmra.mrb[0].mxu0 %v1419
        %v4087 = vpop.f32.mrb[0].mxu0
        %v4088 = vadd.f32 %v3975, %v4087
        %v4089 = vpop.f32.mrb[0].mxu0
        %v4090 = vadd.f32 %v3977, %v4089
        %v4091 = vpop.f32.mrb[0].mxu0
        %v4092 = vadd.f32 %v3979, %v4091
        %v4093 = vpop.f32.mrb[0].mxu0
        %v4094 = vadd.f32 %v3981, %v4093
        %4095 = vmatprep.mubr.bf16.mxu0 %v1439
        %4096 = vmatmul.mubr.bf16.gmra.mrb[0].mxu0 %v1438
        %v4097 = vpop.f32.mrb[0].mxu0
        %v4098 = vadd.f32 %v3985, %v4097
        %v4099 = vpop.f32.mrb[0].mxu0
        %v4100 = vadd.f32 %v3987, %v4099
        %v4101 = vpop.f32.mrb[0].mxu0
        %v4102 = vadd.f32 %v3989, %v4101
        %v4103 = vpop.f32.mrb[0].mxu0
        %v4104 = vadd.f32 %v3991, %v4103
        %4105 = vmatprep.mubr.bf16.mxu0 %v1458
        %4106 = vmatmul.mubr.bf16.gmra.mrb[0].mxu0 %v1457
        %v4107 = vpop.f32.mrb[0].mxu0
        %v4108 = vadd.f32 %v3995, %v4107
        %v4109 = vpop.f32.mrb[0].mxu0
        %v4110 = vadd.f32 %v3997, %v4109
        %v4111 = vpop.f32.mrb[0].mxu0
        %v4112 = vadd.f32 %v3999, %v4111
        %v4113 = vpop.f32.mrb[0].mxu0
        %v4114 = vadd.f32 %v4001, %v4113
        %4115 = vdwg.mxu0
        %4116 = vmatprep.subr.bf16.mxu0 %v2775
        %4117 = vmatpush1.bf16.msra.mxu0 %v2774
        %4118 = vmatprep.subr.bf16.mxu0 %v2777
        %4119 = vmatpush1.bf16.msra.mxu0 %v2776
        %4120 = vmatprep.subr.bf16.mxu0 %v2779
        %4121 = vmatpush1.bf16.msra.mxu0 %v2778
        %4122 = vmatprep.subr.bf16.mxu0 0
        %4123 = vmatpush1.bf16.msra.mxu0 0
        %4124 = vmatprep.subr.bf16.mxu0 0
        %4125 = vmatpush1.bf16.msra.mxu0 0
        %4126 = vmatprep.subr.bf16.mxu0 0
        %4127 = vmatpush1.bf16.msra.mxu0 0
        %4128 = vmatprep.subr.bf16.mxu0 0
        %4129 = vmatpush1.bf16.msra.mxu0 0
        %4130 = vmatprep.subr.bf16.mxu0 0
        %4131 = vmatpush1.bf16.msra.mxu0 0
        %4132 = vmatprep.subr.bf16.mxu0 0
        %4133 = vmatpush1.bf16.msra.mxu0 0
        %4134 = vmatprep.subr.bf16.mxu0 0
        %4135 = vmatpush1.bf16.msra.mxu0 0
        %4136 = vmatprep.subr.bf16.mxu0 0
        %4137 = vmatpush1.bf16.msra.mxu0 0
        %4138 = vmatprep.subr.bf16.mxu0 0
        %4139 = vmatpush1.bf16.msra.mxu0 0
        %4140 = vmatprep.subr.bf16.mxu0 0
        %4141 = vmatpush1.bf16.msra.mxu0 0
        %4142 = vmatprep.subr.bf16.mxu0 0
        %4143 = vmatpush1.bf16.msra.mxu0 0
        %4144 = vmatprep.subr.bf16.mxu0 0
        %4145 = vmatpush1.bf16.msra.mxu0 0
        %4146 = vmatprep.subr.bf16.mxu0 0
        %4147 = vmatpush1.bf16.msra.mxu0 0
        %4148 = vmatprep.mubr.bf16.mxu0 0
        %4149 = vmatmul.mubr.bf16.gmra.mrb[0].mxu0 %v3076
        %v4150 = vpop.f32.mrb[0].mxu0
        %v4151 = vadd.f32 %v4038, %v4150
        %v4152 = vpop.f32.mrb[0].mxu0
        %v4153 = vadd.f32 %v4040, %v4152
        %v4154 = vpop.f32.mrb[0].mxu0
        %v4155 = vadd.f32 %v4042, %v4154
        %v4156 = vpop.f32.mrb[0].mxu0
        %v4157 = vadd.f32 %v4044, %v4156
        %4158 = vmatprep.mubr.bf16.mxu0 0
        %4159 = vmatmul.mubr.bf16.gmra.mrb[0].mxu0 %v3079
        %v4160 = vpop.f32.mrb[0].mxu0
        %v4161 = vadd.f32 %v4048, %v4160
        %v4162 = vpop.f32.mrb[0].mxu0
        %v4163 = vadd.f32 %v4050, %v4162
        %v4164 = vpop.f32.mrb[0].mxu0
        %v4165 = vadd.f32 %v4052, %v4164
        %v4166 = vpop.f32.mrb[0].mxu0
        %v4167 = vadd.f32 %v4054, %v4166
        %4168 = vmatprep.mubr.bf16.mxu0 0
        %4169 = vmatmul.mubr.bf16.gmra.mrb[0].mxu0 %v3082
        %v4170 = vpop.f32.mrb[0].mxu0
        %v4171 = vadd.f32 %v4058, %v4170
        %v4172 = vpop.f32.mrb[0].mxu0
        %v4173 = vadd.f32 %v4060, %v4172
        %v4174 = vpop.f32.mrb[0].mxu0
        %v4175 = vadd.f32 %v4062, %v4174
        %v4176 = vpop.f32.mrb[0].mxu0
        %v4177 = vadd.f32 %v4064, %v4176
        %4178 = vmatprep.mubr.bf16.mxu0 0
        %4179 = vmatmul.mubr.bf16.gmra.mrb[0].mxu0 %v3085
        %v4180 = vpop.f32.mrb[0].mxu0
        %v4181 = vadd.f32 %v4068, %v4180
        %v4182 = vpop.f32.mrb[0].mxu0
        %v4183 = vadd.f32 %v4070, %v4182
        %v4184 = vpop.f32.mrb[0].mxu0
        %v4185 = vadd.f32 %v4072, %v4184
        %v4186 = vpop.f32.mrb[0].mxu0
        %v4187 = vadd.f32 %v4074, %v4186
        %4188 = vmatprep.mubr.bf16.mxu0 0
        %4189 = vmatmul.mubr.bf16.gmra.mrb[0].mxu0 %v3088
        %v4190 = vpop.f32.mrb[0].mxu0
        %v4191 = vadd.f32 %v4078, %v4190
        %v4192 = vpop.f32.mrb[0].mxu0
        %v4193 = vadd.f32 %v4080, %v4192
        %v4194 = vpop.f32.mrb[0].mxu0
        %v4195 = vadd.f32 %v4082, %v4194
        %v4196 = vpop.f32.mrb[0].mxu0
        %v4197 = vadd.f32 %v4084, %v4196
        %4198 = vmatprep.mubr.bf16.mxu0 0
        %4199 = vmatmul.mubr.bf16.gmra.mrb[0].mxu0 %v3091
        %v4200 = vpop.f32.mrb[0].mxu0
        %v4201 = vadd.f32 %v4088, %v4200
        %v4202 = vpop.f32.mrb[0].mxu0
        %v4203 = vadd.f32 %v4090, %v4202
        %v4204 = vpop.f32.mrb[0].mxu0
        %v4205 = vadd.f32 %v4092, %v4204
        %v4206 = vpop.f32.mrb[0].mxu0
        %v4207 = vadd.f32 %v4094, %v4206
        %4208 = vmatprep.mubr.bf16.mxu0 0
        %4209 = vmatmul.mubr.bf16.gmra.mrb[0].mxu0 %v3094
        %v4210 = vpop.f32.mrb[0].mxu0
        %v4211 = vadd.f32 %v4098, %v4210
        %v4212 = vpop.f32.mrb[0].mxu0
        %v4213 = vadd.f32 %v4100, %v4212
        %v4214 = vpop.f32.mrb[0].mxu0
        %v4215 = vadd.f32 %v4102, %v4214
        %v4216 = vpop.f32.mrb[0].mxu0
        %v4217 = vadd.f32 %v4104, %v4216
        %4218 = vmatprep.mubr.bf16.mxu0 0
        %4219 = vmatmul.mubr.bf16.gmra.mrb[0].mxu0 %v3097
        %v4220 = vpop.f32.mrb[0].mxu0
        %v4221 = vadd.f32 %v4108, %v4220
        %v4222 = vpop.f32.mrb[0].mxu0
        %v4223 = vadd.f32 %v4110, %v4222
        %v4224 = vpop.f32.mrb[0].mxu0
        %v4225 = vadd.f32 %v4112, %v4224
        %v4226 = vpop.f32.mrb[0].mxu0
        %v4227 = vadd.f32 %v4114, %v4226
        %4228 = vdwg.mxu0
        %v4229 = vpack.c.bf16 %v4155, %v4151
        %v4230 = vpack.c.bf16 %v4157, %v4153
        %v4231 = vpack.c.bf16 %v4165, %v4161
        %v4232 = vpack.c.bf16 %v4167, %v4163
        %v4233 = vpack.c.bf16 %v4175, %v4171
        %v4234 = vpack.c.bf16 %v4177, %v4173
        %v4235 = vpack.c.bf16 %v4185, %v4181
        %v4236 = vpack.c.bf16 %v4187, %v4183
        %v4237 = vpack.c.bf16 %v4195, %v4191
        %v4238 = vpack.c.bf16 %v4197, %v4193
        %v4239 = vpack.c.bf16 %v4205, %v4201
        %v4240 = vpack.c.bf16 %v4207, %v4203
        %v4241 = vpack.c.bf16 %v4215, %v4211
        %v4242 = vpack.c.bf16 %v4217, %v4213
        %v4243 = vpack.c.bf16 %v4225, %v4221
        %v4244 = vpack.c.bf16 %v4227, %v4223
        %s4245 = sshra.s32 %s378, 4
        %s4246 = sand.u32 %s378, 15
        %s4247 = smul.u32 %s4245, 2
        %s4248 = smul.addr %s4247, 8
        %s4249 = scalar_lea.vmem [#allocation2], %s4248
        %4250 = vst [vmem:[%s4249] sm:$0xff] %v4229
        %4251 = vst [vmem:[%s4249 + $0x8] sm:$0xff] %v4230
        %4252 = vst [vmem:[%s4249 + $0x10] sm:$0xff] %v4231
        %4253 = vst [vmem:[%s4249 + $0x18] sm:$0xff] %v4232
        %4254 = vst [vmem:[%s4249 + $0x20] sm:$0xff] %v4233
        %4255 = vst [vmem:[%s4249 + $0x28] sm:$0xff] %v4234
        %4256 = vst [vmem:[%s4249 + $0x30] sm:$0xff] %v4235
        %4257 = vst [vmem:[%s4249 + $0x38] sm:$0xff] %v4236
        %4258 = vst [vmem:[%s4249 + $0x40] sm:$0xff] %v4237
        %4259 = vst [vmem:[%s4249 + $0x48] sm:$0xff] %v4238
        %4260 = vst [vmem:[%s4249 + $0x50] sm:$0xff] %v4239
        %4261 = vst [vmem:[%s4249 + $0x58] sm:$0xff] %v4240
        %4262 = vst [vmem:[%s4249 + $0x60] sm:$0xff] %v4241
        %4263 = vst [vmem:[%s4249 + $0x68] sm:$0xff] %v4242
        %4264 = vst [vmem:[%s4249 + $0x70] sm:$0xff] %v4243
        %4265 = vst [vmem:[%s4249 + $0x78] sm:$0xff] %v4244
        %v4266 = vld [vmem:[#allocation4] ss:$2 sm:$0x3]
        %v4267 = vadd.f32 %v4151, %v4155
        %v4268 = vadd.f32 %v4267, %v4161
        %v4269 = vadd.f32 %v4268, %v4165
        %v4270 = vadd.f32 %v4269, %v4171
        %v4271 = vadd.f32 %v4270, %v4175
        %v4272 = vadd.f32 %v4271, %v4181
        %v4273 = vadd.f32 %v4272, %v4185
        %v4274 = vadd.f32 %v4273, %v4191
        %v4275 = vadd.f32 %v4274, %v4195
        %v4276 = vadd.f32 %v4275, %v4201
        %v4277 = vadd.f32 %v4276, %v4205
        %v4278 = vadd.f32 %v4277, %v4211
        %v4279 = vadd.f32 %v4278, %v4215
        %v4280 = vadd.f32 %v4279, %v4221
        %v4281 = vadd.f32 %v4280, %v4225
        %v4282 = vrot.slane %v4281, 4
        %v4283 = vadd.f32 %v4281, %v4282
        %v4284 = vrot.slane %v4283, 2
        %v4285 = vadd.f32 %v4283, %v4284
        %v4286 = vrot.slane %v4285, 1
        %v4287 = vadd.f32 %v4285, %v4286
        %v4288 = vadd.f32 %v4153, %v4157
        %v4289 = vadd.f32 %v4288, %v4163
        %v4290 = vadd.f32 %v4289, %v4167
        %v4291 = vadd.f32 %v4290, %v4173
        %v4292 = vadd.f32 %v4291, %v4177
        %v4293 = vadd.f32 %v4292, %v4183
        %v4294 = vadd.f32 %v4293, %v4187
        %v4295 = vadd.f32 %v4294, %v4193
        %v4296 = vadd.f32 %v4295, %v4197
        %v4297 = vadd.f32 %v4296, %v4203
        %v4298 = vadd.f32 %v4297, %v4207
        %v4299 = vadd.f32 %v4298, %v4213
        %v4300 = vadd.f32 %v4299, %v4217
        %v4301 = vadd.f32 %v4300, %v4223
        %v4302 = vadd.f32 %v4301, %v4227
        %v4303 = vrot.slane %v4302, 4
        %v4304 = vadd.f32 %v4302, %v4303
        %v4305 = vrot.slane %v4304, 2
        %v4306 = vadd.f32 %v4304, %v4305
        %v4307 = vrot.slane %v4306, 1
        %v4308 = vadd.f32 %v4306, %v4307
        %v4311 = vcombine.low %v4287, %v4308
        %v4313 = vunpack.c.l.s4 1966171168
        %v4314 = vunpack.c.0.s8 %v4313
        %v4315 = vlaneseq
        %v4316 = vshrl.u32 %v4315, 7
        %v4317 = vsub.s32 %v4314, %v4316
        %v4318 = vrot.slane %v4311, %v4317
        %v4320 = vunpack.c.l.s4 1966171168
        %v4321 = vunpack.c.0.s8 %v4320
        %v4322 = vlaneseq
        %v4323 = vshrl.u32 %v4322, 7
        %v4324 = vsub.s32 %v4321, %v4323
        %v4325 = vrot.slane %v4318, %v4324
        %v4327 = vadd.f32 %v4266, %v4325
        %v4328 = vlaneseq
        %vm4329 = vcmp.ge.s32.totalorder %v4328, 0
        %vm4330 = vcmp.lt.s32.totalorder %v4328, 256
        %vm4331 = vmand %vm4329, %vm4330
        %4332 = vst.msk [vmem:[#allocation4] ss:$2 sm:$0x3] %vm4331, %v4327
        %s4333 = scalar_lea.vmem [#allocation4], 1
        %v4334 = vld [vmem:[%s4333] ss:$2 sm:$0x3]
        %v4335 = vmul.f32 %v4151, %v4151
        %v4336 = vmul.f32 %v4153, %v4153
        %v4337 = vmul.f32 %v4155, %v4155
        %v4338 = vmul.f32 %v4157, %v4157
        %v4339 = vmul.f32 %v4161, %v4161
        %v4340 = vmul.f32 %v4163, %v4163
        %v4341 = vmul.f32 %v4165, %v4165
        %v4342 = vmul.f32 %v4167, %v4167
        %v4343 = vmul.f32 %v4171, %v4171
        %v4344 = vmul.f32 %v4173, %v4173
        %v4345 = vmul.f32 %v4175, %v4175
        %v4346 = vmul.f32 %v4177, %v4177
        %v4347 = vmul.f32 %v4181, %v4181
        %v4348 = vmul.f32 %v4183, %v4183
        %v4349 = vmul.f32 %v4185, %v4185
        %v4350 = vmul.f32 %v4187, %v4187
        %v4351 = vmul.f32 %v4191, %v4191
        %v4352 = vmul.f32 %v4193, %v4193
        %v4353 = vmul.f32 %v4195, %v4195
        %v4354 = vmul.f32 %v4197, %v4197
        %v4355 = vmul.f32 %v4201, %v4201
        %v4356 = vmul.f32 %v4203, %v4203
        %v4357 = vmul.f32 %v4205, %v4205
        %v4358 = vmul.f32 %v4207, %v4207
        %v4359 = vmul.f32 %v4211, %v4211
        %v4360 = vmul.f32 %v4213, %v4213
        %v4361 = vmul.f32 %v4215, %v4215
        %v4362 = vmul.f32 %v4217, %v4217
        %v4363 = vmul.f32 %v4221, %v4221
        %v4364 = vmul.f32 %v4223, %v4223
        %v4365 = vmul.f32 %v4225, %v4225
        %v4366 = vmul.f32 %v4227, %v4227
        %v4367 = vadd.f32 %v4335, %v4337
        %v4368 = vadd.f32 %v4367, %v4339
        %v4369 = vadd.f32 %v4368, %v4341
        %v4370 = vadd.f32 %v4369, %v4343
        %v4371 = vadd.f32 %v4370, %v4345
        %v4372 = vadd.f32 %v4371, %v4347
        %v4373 = vadd.f32 %v4372, %v4349
        %v4374 = vadd.f32 %v4373, %v4351
        %v4375 = vadd.f32 %v4374, %v4353
        %v4376 = vadd.f32 %v4375, %v4355
        %v4377 = vadd.f32 %v4376, %v4357
        %v4378 = vadd.f32 %v4377, %v4359
        %v4379 = vadd.f32 %v4378, %v4361
        %v4380 = vadd.f32 %v4379, %v4363
        %v4381 = vadd.f32 %v4380, %v4365
        %v4382 = vrot.slane %v4381, 4
        %v4383 = vadd.f32 %v4381, %v4382
        %v4384 = vrot.slane %v4383, 2
        %v4385 = vadd.f32 %v4383, %v4384
        %v4386 = vrot.slane %v4385, 1
        %v4387 = vadd.f32 %v4385, %v4386
        %v4388 = vadd.f32 %v4336, %v4338
        %v4389 = vadd.f32 %v4388, %v4340
        %v4390 = vadd.f32 %v4389, %v4342
        %v4391 = vadd.f32 %v4390, %v4344
        %v4392 = vadd.f32 %v4391, %v4346
        %v4393 = vadd.f32 %v4392, %v4348
        %v4394 = vadd.f32 %v4393, %v4350
        %v4395 = vadd.f32 %v4394, %v4352
        %v4396 = vadd.f32 %v4395, %v4354
        %v4397 = vadd.f32 %v4396, %v4356
        %v4398 = vadd.f32 %v4397, %v4358
        %v4399 = vadd.f32 %v4398, %v4360
        %v4400 = vadd.f32 %v4399, %v4362
        %v4401 = vadd.f32 %v4400, %v4364
        %v4402 = vadd.f32 %v4401, %v4366
        %v4403 = vrot.slane %v4402, 4
        %v4404 = vadd.f32 %v4402, %v4403
        %v4405 = vrot.slane %v4404, 2
        %v4406 = vadd.f32 %v4404, %v4405
        %v4407 = vrot.slane %v4406, 1
        %v4408 = vadd.f32 %v4406, %v4407
        %v4411 = vcombine.low %v4387, %v4408
        %v4413 = vunpack.c.l.s4 1966171168
        %v4414 = vunpack.c.0.s8 %v4413
        %v4415 = vlaneseq
        %v4416 = vshrl.u32 %v4415, 7
        %v4417 = vsub.s32 %v4414, %v4416
        %v4418 = vrot.slane %v4411, %v4417
        %v4420 = vunpack.c.l.s4 1966171168
        %v4421 = vunpack.c.0.s8 %v4420
        %v4422 = vlaneseq
        %v4423 = vshrl.u32 %v4422, 7
        %v4424 = vsub.s32 %v4421, %v4423
        %v4425 = vrot.slane %v4418, %v4424
        %v4427 = vadd.f32 %v4334, %v4425
        %4428 = vst.msk [vmem:[%s4333] ss:$2 sm:$0x3] %vm4331, %v4427
      $region64: #{tpu_custom_call.1} parent=55 // pred_fallthru
        _
      %p4429 = scmp.eq.s32.totalorder %s24, 1
      // Predicated region
      $region65: #{tpu_custom_call.1} parent=55 // pred_check
        %p4430 = pneg %p4429
      $region66: #{tpu_custom_call.1} parent=55 // pred_check_branch
        %4432 = sbr.rel (%p4430) target = $region68
      $region67: #{tpu_custom_call.1} parent=55 // pred_region
        // Predicated region
        $region69: #{tpu_custom_call.1} parent=67 // pred_check
          %p4433 = pneg %p380
        $region70: #{tpu_custom_call.1} parent=67 // pred_check_branch
          %4435 = sbr.rel (%p4433) target = $region72
        $region71: #{tpu_custom_call.1} parent=67 // pred_region
          %v4436 = vld [vmem:[#allocation4] ss:$2 sm:$0x3]
          %v4437 = vmul.f32 %v4436, 0.003125
          %s4438 = scalar_lea.vmem [#allocation4], 1
          %v4439 = vld [vmem:[%s4438] ss:$2 sm:$0x3]
          %v4440 = vmul.f32 %v4439, 0.003125
          %v4441 = vmul.f32 %v4437, %v4437
          %v4442 = vsub.f32 %v4440, %v4441
          %v4443 = vadd.f32 %v4442, 1e-05
          %v4444 = vrsqrt.pop %v4443
          %v4445 = vld [vmem:[%s2] sm:$0x3]
          %v4446 = vmul.f32 %v4444, %v4445
          %v4447 = vlaneseq
          %vm4448 = vcmp.ge.s32.totalorder %v4447, 0
          %vm4449 = vcmp.lt.s32.totalorder %v4447, 256
          %vm4450 = vmand %vm4448, %vm4449
          %4451 = vst.msk [vmem:[#allocation4] ss:$2 sm:$0x3] %vm4450, %v4446
          %v4452 = vld [vmem:[%s3] sm:$0x3]
          %v4453 = vmul.f32 %v4437, %v4446
          %v4454 = vsub.f32 %v4452, %v4453
          %4455 = vst.msk [vmem:[%s4438] ss:$2 sm:$0x3] %vm4450, %v4454
        $region72: #{tpu_custom_call.1} parent=67 // pred_fallthru
          _
        %v4456 = vld [vmem:[#allocation4] ss:$2 sm:$0x3]
        %s4457 = scalar_lea.vmem [#allocation4], 1
        %v4458 = vld [vmem:[%s4457] ss:$2 sm:$0x3]
        %s4459 = sshra.s32 %s378, 4
        %s4460 = sand.u32 %s378, 15
        %s4461 = smul.u32 %s4459, 2
        %s4462 = smul.addr %s4461, 8
        %s4463 = scalar_lea.vmem [#allocation2], %s4462
        %v4464 = vld [vmem:[%s4463] sm:$0xff]
        %v4465 = vld [vmem:[%s4463 + $0x8] sm:$0xff]
        %v4466 = vld [vmem:[%s4463 + $0x10] sm:$0xff]
        %v4467 = vld [vmem:[%s4463 + $0x18] sm:$0xff]
        %v4468 = vld [vmem:[%s4463 + $0x20] sm:$0xff]
        %v4469 = vld [vmem:[%s4463 + $0x28] sm:$0xff]
        %v4470 = vld [vmem:[%s4463 + $0x30] sm:$0xff]
        %v4471 = vld [vmem:[%s4463 + $0x38] sm:$0xff]
        %v4472 = vld [vmem:[%s4463 + $0x40] sm:$0xff]
        %v4473 = vld [vmem:[%s4463 + $0x48] sm:$0xff]
        %v4474 = vld [vmem:[%s4463 + $0x50] sm:$0xff]
        %v4475 = vld [vmem:[%s4463 + $0x58] sm:$0xff]
        %v4476 = vld [vmem:[%s4463 + $0x60] sm:$0xff]
        %v4477 = vld [vmem:[%s4463 + $0x68] sm:$0xff]
        %v4478 = vld [vmem:[%s4463 + $0x70] sm:$0xff]
        %v4479 = vld [vmem:[%s4463 + $0x78] sm:$0xff]
        %v4480 = vunpack.c.l.bf16 %v4464
        %v4481 = vunpack.c.l.bf16 %v4465
        %v4482 = vunpack.c.h.bf16 %v4464
        %v4483 = vunpack.c.h.bf16 %v4465
        %v4484 = vunpack.c.l.bf16 %v4466
        %v4485 = vunpack.c.l.bf16 %v4467
        %v4486 = vunpack.c.h.bf16 %v4466
        %v4487 = vunpack.c.h.bf16 %v4467
        %v4488 = vunpack.c.l.bf16 %v4468
        %v4489 = vunpack.c.l.bf16 %v4469
        %v4490 = vunpack.c.h.bf16 %v4468
        %v4491 = vunpack.c.h.bf16 %v4469
        %v4492 = vunpack.c.l.bf16 %v4470
        %v4493 = vunpack.c.l.bf16 %v4471
        %v4494 = vunpack.c.h.bf16 %v4470
        %v4495 = vunpack.c.h.bf16 %v4471
        %v4496 = vunpack.c.l.bf16 %v4472
        %v4497 = vunpack.c.l.bf16 %v4473
        %v4498 = vunpack.c.h.bf16 %v4472
        %v4499 = vunpack.c.h.bf16 %v4473
        %v4500 = vunpack.c.l.bf16 %v4474
        %v4501 = vunpack.c.l.bf16 %v4475
        %v4502 = vunpack.c.h.bf16 %v4474
        %v4503 = vunpack.c.h.bf16 %v4475
        %v4504 = vunpack.c.l.bf16 %v4476
        %v4505 = vunpack.c.l.bf16 %v4477
        %v4506 = vunpack.c.h.bf16 %v4476
        %v4507 = vunpack.c.h.bf16 %v4477
        %v4508 = vunpack.c.l.bf16 %v4478
        %v4509 = vunpack.c.l.bf16 %v4479
        %v4510 = vunpack.c.h.bf16 %v4478
        %v4511 = vunpack.c.h.bf16 %v4479
        %v4513 = vlaneseq
        %v4514 = vshrl.u32 %v4513, 7
        %v4515 = vsub.s32 0, %v4514
        %v4516 = vrot.slane %v4456, %v4515
        %v4517 = vlaneseq
        %v4518 = vshrl.u32 %v4517, 7
        %v4519 = vsub.s32 1, %v4518
        %v4520 = vrot.slane %v4456, %v4519
        %v4523 = vmul.f32 %v4480, %v4516
        %v4524 = vmul.f32 %v4481, %v4520
        %v4525 = vmul.f32 %v4482, %v4516
        %v4526 = vmul.f32 %v4483, %v4520
        %v4527 = vmul.f32 %v4484, %v4516
        %v4528 = vmul.f32 %v4485, %v4520
        %v4529 = vmul.f32 %v4486, %v4516
        %v4530 = vmul.f32 %v4487, %v4520
        %v4531 = vmul.f32 %v4488, %v4516
        %v4532 = vmul.f32 %v4489, %v4520
        %v4533 = vmul.f32 %v4490, %v4516
        %v4534 = vmul.f32 %v4491, %v4520
        %v4535 = vmul.f32 %v4492, %v4516
        %v4536 = vmul.f32 %v4493, %v4520
        %v4537 = vmul.f32 %v4494, %v4516
        %v4538 = vmul.f32 %v4495, %v4520
        %v4539 = vmul.f32 %v4496, %v4516
        %v4540 = vmul.f32 %v4497, %v4520
        %v4541 = vmul.f32 %v4498, %v4516
        %v4542 = vmul.f32 %v4499, %v4520
        %v4543 = vmul.f32 %v4500, %v4516
        %v4544 = vmul.f32 %v4501, %v4520
        %v4545 = vmul.f32 %v4502, %v4516
        %v4546 = vmul.f32 %v4503, %v4520
        %v4547 = vmul.f32 %v4504, %v4516
        %v4548 = vmul.f32 %v4505, %v4520
        %v4549 = vmul.f32 %v4506, %v4516
        %v4550 = vmul.f32 %v4507, %v4520
        %v4551 = vmul.f32 %v4508, %v4516
        %v4552 = vmul.f32 %v4509, %v4520
        %v4553 = vmul.f32 %v4510, %v4516
        %v4554 = vmul.f32 %v4511, %v4520
        %v4556 = vlaneseq
        %v4557 = vshrl.u32 %v4556, 7
        %v4558 = vsub.s32 0, %v4557
        %v4559 = vrot.slane %v4458, %v4558
        %v4560 = vlaneseq
        %v4561 = vshrl.u32 %v4560, 7
        %v4562 = vsub.s32 1, %v4561
        %v4563 = vrot.slane %v4458, %v4562
        %v4566 = vadd.f32 %v4523, %v4559
        %v4567 = vadd.f32 %v4524, %v4563
        %v4568 = vadd.f32 %v4525, %v4559
        %v4569 = vadd.f32 %v4526, %v4563
        %v4570 = vadd.f32 %v4527, %v4559
        %v4571 = vadd.f32 %v4528, %v4563
        %v4572 = vadd.f32 %v4529, %v4559
        %v4573 = vadd.f32 %v4530, %v4563
        %v4574 = vadd.f32 %v4531, %v4559
        %v4575 = vadd.f32 %v4532, %v4563
        %v4576 = vadd.f32 %v4533, %v4559
        %v4577 = vadd.f32 %v4534, %v4563
        %v4578 = vadd.f32 %v4535, %v4559
        %v4579 = vadd.f32 %v4536, %v4563
        %v4580 = vadd.f32 %v4537, %v4559
        %v4581 = vadd.f32 %v4538, %v4563
        %v4582 = vadd.f32 %v4539, %v4559
        %v4583 = vadd.f32 %v4540, %v4563
        %v4584 = vadd.f32 %v4541, %v4559
        %v4585 = vadd.f32 %v4542, %v4563
        %v4586 = vadd.f32 %v4543, %v4559
        %v4587 = vadd.f32 %v4544, %v4563
        %v4588 = vadd.f32 %v4545, %v4559
        %v4589 = vadd.f32 %v4546, %v4563
        %v4590 = vadd.f32 %v4547, %v4559
        %v4591 = vadd.f32 %v4548, %v4563
        %v4592 = vadd.f32 %v4549, %v4559
        %v4593 = vadd.f32 %v4550, %v4563
        %v4594 = vadd.f32 %v4551, %v4559
        %v4595 = vadd.f32 %v4552, %v4563
        %v4596 = vadd.f32 %v4553, %v4559
        %v4597 = vadd.f32 %v4554, %v4563
        %v4598 = vmax.f32 %v4566, 0.0
        %v4599 = vmax.f32 %v4567, 0.0
        %v4600 = vmax.f32 %v4568, 0.0
        %v4601 = vmax.f32 %v4569, 0.0
        %v4602 = vmax.f32 %v4570, 0.0
        %v4603 = vmax.f32 %v4571, 0.0
        %v4604 = vmax.f32 %v4572, 0.0
        %v4605 = vmax.f32 %v4573, 0.0
        %v4606 = vmax.f32 %v4574, 0.0
        %v4607 = vmax.f32 %v4575, 0.0
        %v4608 = vmax.f32 %v4576, 0.0
        %v4609 = vmax.f32 %v4577, 0.0
        %v4610 = vmax.f32 %v4578, 0.0
        %v4611 = vmax.f32 %v4579, 0.0
        %v4612 = vmax.f32 %v4580, 0.0
        %v4613 = vmax.f32 %v4581, 0.0
        %v4614 = vmax.f32 %v4582, 0.0
        %v4615 = vmax.f32 %v4583, 0.0
        %v4616 = vmax.f32 %v4584, 0.0
        %v4617 = vmax.f32 %v4585, 0.0
        %v4618 = vmax.f32 %v4586, 0.0
        %v4619 = vmax.f32 %v4587, 0.0
        %v4620 = vmax.f32 %v4588, 0.0
        %v4621 = vmax.f32 %v4589, 0.0
        %v4622 = vmax.f32 %v4590, 0.0
        %v4623 = vmax.f32 %v4591, 0.0
        %v4624 = vmax.f32 %v4592, 0.0
        %v4625 = vmax.f32 %v4593, 0.0
        %v4626 = vmax.f32 %v4594, 0.0
        %v4627 = vmax.f32 %v4595, 0.0
        %v4628 = vmax.f32 %v4596, 0.0
        %v4629 = vmax.f32 %v4597, 0.0
        %v4630 = vpack.c.bf16 %v4600, %v4598
        %v4631 = vpack.c.bf16 %v4601, %v4599
        %v4632 = vpack.c.bf16 %v4604, %v4602
        %v4633 = vpack.c.bf16 %v4605, %v4603
        %v4634 = vpack.c.bf16 %v4608, %v4606
        %v4635 = vpack.c.bf16 %v4609, %v4607
        %v4636 = vpack.c.bf16 %v4612, %v4610
        %v4637 = vpack.c.bf16 %v4613, %v4611
        %v4638 = vpack.c.bf16 %v4616, %v4614
        %v4639 = vpack.c.bf16 %v4617, %v4615
        %v4640 = vpack.c.bf16 %v4620, %v4618
        %v4641 = vpack.c.bf16 %v4621, %v4619
        %v4642 = vpack.c.bf16 %v4624, %v4622
        %v4643 = vpack.c.bf16 %v4625, %v4623
        %v4644 = vpack.c.bf16 %v4628, %v4626
        %v4645 = vpack.c.bf16 %v4629, %v4627
        %v4646 = vld [vmem:[%s4] sm:$0xff]
        %v4647 = vld [vmem:[%s4 + $0x8] sm:$0xff]
        %v4648 = vld [vmem:[%s4 + $0x10] sm:$0xff]
        %v4649 = vld [vmem:[%s4 + $0x18] sm:$0xff]
        %v4650 = vld [vmem:[%s4 + $0x20] sm:$0xff]
        %v4651 = vld [vmem:[%s4 + $0x28] sm:$0xff]
        %v4652 = vld [vmem:[%s4 + $0x30] sm:$0xff]
        %v4653 = vld [vmem:[%s4 + $0x38] sm:$0xff]
        %v4654 = vld [vmem:[%s4 + $0x40] sm:$0xff]
        %v4655 = vld [vmem:[%s4 + $0x48] sm:$0xff]
        %v4656 = vld [vmem:[%s4 + $0x50] sm:$0xff]
        %v4657 = vld [vmem:[%s4 + $0x58] sm:$0xff]
        %v4658 = vld [vmem:[%s4 + $0x60] sm:$0xff]
        %v4659 = vld [vmem:[%s4 + $0x68] sm:$0xff]
        %v4660 = vld [vmem:[%s4 + $0x70] sm:$0xff]
        %v4661 = vld [vmem:[%s4 + $0x78] sm:$0xff]
        %v4662 = vld [vmem:[%s4 + $0x80] sm:$0xff]
        %v4663 = vld [vmem:[%s4 + $0x88] sm:$0xff]
        %v4664 = vld [vmem:[%s4 + $0x90] sm:$0xff]
        %v4665 = vld [vmem:[%s4 + $0x98] sm:$0xff]
        %v4666 = vld [vmem:[%s4 + $0xa0] sm:$0xff]
        %v4667 = vld [vmem:[%s4 + $0xa8] sm:$0xff]
        %v4668 = vld [vmem:[%s4 + $0xb0] sm:$0xff]
        %v4669 = vld [vmem:[%s4 + $0xb8] sm:$0xff]
        %v4670 = vld [vmem:[%s4 + $0xc0] sm:$0xff]
        %v4671 = vld [vmem:[%s4 + $0xc8] sm:$0xff]
        %v4672 = vld [vmem:[%s4 + $0xd0] sm:$0xff]
        %v4673 = vld [vmem:[%s4 + $0xd8] sm:$0xff]
        %v4674 = vld [vmem:[%s4 + $0xe0] sm:$0xff]
        %v4675 = vld [vmem:[%s4 + $0xe8] sm:$0xff]
        %v4676 = vld [vmem:[%s4 + $0xf0] sm:$0xff]
        %v4677 = vld [vmem:[%s4 + $0xf8] sm:$0xff]
        %v4710 = vunpack.c.l.b16 %v4646
        %v4711 = vunpack.c.h.b16 %v4646
        %v4712 = vunpack.c.l.b16 %v4647
        %v4713 = vunpack.c.h.b16 %v4647
        %v4714 = vunpack.c.l.b16 %v4648
        %v4715 = vunpack.c.h.b16 %v4648
        %v4716 = vunpack.c.l.b16 %v4649
        %v4717 = vunpack.c.h.b16 %v4649
        %v4718 = vunpack.c.l.b16 %v4650
        %v4719 = vunpack.c.h.b16 %v4650
        %v4720 = vunpack.c.l.b16 %v4651
        %v4721 = vunpack.c.h.b16 %v4651
        %v4722 = vunpack.c.l.b16 %v4652
        %v4723 = vunpack.c.h.b16 %v4652
        %v4724 = vunpack.c.l.b16 %v4653
        %v4725 = vunpack.c.h.b16 %v4653
        %v4726 = vunpack.c.l.b16 %v4654
        %v4727 = vunpack.c.h.b16 %v4654
        %v4728 = vunpack.c.l.b16 %v4655
        %v4729 = vunpack.c.h.b16 %v4655
        %v4730 = vunpack.c.l.b16 %v4656
        %v4731 = vunpack.c.h.b16 %v4656
        %v4732 = vunpack.c.l.b16 %v4657
        %v4733 = vunpack.c.h.b16 %v4657
        %v4734 = vunpack.c.l.b16 %v4658
        %v4735 = vunpack.c.h.b16 %v4658
        %v4736 = vunpack.c.l.b16 %v4659
        %v4737 = vunpack.c.h.b16 %v4659
        %v4738 = vunpack.c.l.b16 %v4660
        %v4739 = vunpack.c.h.b16 %v4660
        %v4740 = vunpack.c.l.b16 %v4661
        %v4741 = vunpack.c.h.b16 %v4661
        %v4742 = vunpack.c.l.b16 %v4662
        %v4743 = vunpack.c.h.b16 %v4662
        %v4744 = vunpack.c.l.b16 %v4663
        %v4745 = vunpack.c.h.b16 %v4663
        %v4746 = vunpack.c.l.b16 %v4664
        %v4747 = vunpack.c.h.b16 %v4664
        %v4748 = vunpack.c.l.b16 %v4665
        %v4749 = vunpack.c.h.b16 %v4665
        %v4750 = vunpack.c.l.b16 %v4666
        %v4751 = vunpack.c.h.b16 %v4666
        %v4752 = vunpack.c.l.b16 %v4667
        %v4753 = vunpack.c.h.b16 %v4667
        %v4754 = vunpack.c.l.b16 %v4668
        %v4755 = vunpack.c.h.b16 %v4668
        %v4756 = vunpack.c.l.b16 %v4669
        %v4757 = vunpack.c.h.b16 %v4669
        %v4758 = vunpack.c.l.b16 %v4670
        %v4759 = vunpack.c.h.b16 %v4670
        %v4760 = vunpack.c.l.b16 %v4671
        %v4761 = vunpack.c.h.b16 %v4671
        %v4762 = vunpack.c.l.b16 %v4672
        %v4763 = vunpack.c.h.b16 %v4672
        %v4764 = vunpack.c.l.b16 %v4673
        %v4765 = vunpack.c.h.b16 %v4673
        %v4766 = vunpack.c.l.b16 %v4674
        %v4767 = vunpack.c.h.b16 %v4674
        %v4768 = vunpack.c.l.b16 %v4675
        %v4769 = vunpack.c.h.b16 %v4675
        %v4770 = vunpack.c.l.b16 %v4676
        %v4771 = vunpack.c.h.b16 %v4676
        %v4772 = vunpack.c.l.b16 %v4677
        %v4773 = vunpack.c.h.b16 %v4677
        %v4774 = vpack.c.b16 %v4712, %v4710
        %v4775 = vpack.c.b16 %v4713, %v4711
        %v4776 = vpack.c.b16 %v4716, %v4714
        %v4777 = vpack.c.b16 %v4717, %v4715
        %v4778 = vpack.c.b16 %v4720, %v4718
        %v4779 = vpack.c.b16 %v4721, %v4719
        %v4780 = vpack.c.b16 %v4724, %v4722
        %v4781 = vpack.c.b16 %v4725, %v4723
        %v4782 = vpack.c.b16 %v4728, %v4726
        %v4783 = vpack.c.b16 %v4729, %v4727
        %v4784 = vpack.c.b16 %v4732, %v4730
        %v4785 = vpack.c.b16 %v4733, %v4731
        %v4786 = vpack.c.b16 %v4736, %v4734
        %v4787 = vpack.c.b16 %v4737, %v4735
        %v4788 = vpack.c.b16 %v4740, %v4738
        %v4789 = vpack.c.b16 %v4741, %v4739
        %v4790 = vpack.c.b16 %v4744, %v4742
        %v4791 = vpack.c.b16 %v4745, %v4743
        %v4792 = vpack.c.b16 %v4748, %v4746
        %v4793 = vpack.c.b16 %v4749, %v4747
        %v4794 = vpack.c.b16 %v4752, %v4750
        %v4795 = vpack.c.b16 %v4753, %v4751
        %v4796 = vpack.c.b16 %v4756, %v4754
        %v4797 = vpack.c.b16 %v4757, %v4755
        %v4798 = vpack.c.b16 %v4760, %v4758
        %v4799 = vpack.c.b16 %v4761, %v4759
        %v4800 = vpack.c.b16 %v4764, %v4762
        %v4801 = vpack.c.b16 %v4765, %v4763
        %v4802 = vpack.c.b16 %v4768, %v4766
        %v4803 = vpack.c.b16 %v4769, %v4767
        %v4804 = vpack.c.b16 %v4772, %v4770
        %v4805 = vpack.c.b16 %v4773, %v4771
        %4838 = vmatprep.subr.bf16.mxu0 %v4775
        %4839 = vmatpush1.bf16.msra.mxu0 %v4774
        %4840 = vmatprep.subr.bf16.mxu0 %v4777
        %4841 = vmatpush1.bf16.msra.mxu0 %v4776
        %4842 = vmatprep.subr.bf16.mxu0 %v4779
        %4843 = vmatpush1.bf16.msra.mxu0 %v4778
        %4844 = vmatprep.subr.bf16.mxu0 %v4781
        %4845 = vmatpush1.bf16.msra.mxu0 %v4780
        %4846 = vmatprep.subr.bf16.mxu0 %v4783
        %4847 = vmatpush1.bf16.msra.mxu0 %v4782
        %4848 = vmatprep.subr.bf16.mxu0 %v4785
        %4849 = vmatpush1.bf16.msra.mxu0 %v4784
        %4850 = vmatprep.subr.bf16.mxu0 %v4787
        %4851 = vmatpush1.bf16.msra.mxu0 %v4786
        %4852 = vmatprep.subr.bf16.mxu0 %v4789
        %4853 = vmatpush1.bf16.msra.mxu0 %v4788
        %4854 = vmatprep.subr.bf16.mxu0 %v4791
        %4855 = vmatpush1.bf16.msra.mxu0 %v4790
        %4856 = vmatprep.subr.bf16.mxu0 %v4793
        %4857 = vmatpush1.bf16.msra.mxu0 %v4792
        %4858 = vmatprep.subr.bf16.mxu0 %v4795
        %4859 = vmatpush1.bf16.msra.mxu0 %v4794
        %4860 = vmatprep.subr.bf16.mxu0 %v4797
        %4861 = vmatpush1.bf16.msra.mxu0 %v4796
        %4862 = vmatprep.subr.bf16.mxu0 %v4799
        %4863 = vmatpush1.bf16.msra.mxu0 %v4798
        %4864 = vmatprep.subr.bf16.mxu0 %v4801
        %4865 = vmatpush1.bf16.msra.mxu0 %v4800
        %4866 = vmatprep.subr.bf16.mxu0 %v4803
        %4867 = vmatpush1.bf16.msra.mxu0 %v4802
        %4868 = vmatprep.subr.bf16.mxu0 %v4805
        %4869 = vmatpush1.bf16.msra.mxu0 %v4804
        %4870 = vmatprep.mubr.bf16.mxu0 %v4631
        %4871 = vmatmul.mubr.bf16.gmra.mrb[0].mxu0 %v4630
        %v4872 = vpop.f32.mrb[0].mxu0
        %v4873 = vadd.f32 0.0, %v4872
        %v4874 = vpop.f32.mrb[0].mxu0
        %v4875 = vadd.f32 0.0, %v4874
        %v4876 = vpop.f32.mrb[0].mxu0
        %v4877 = vadd.f32 0.0, %v4876
        %v4878 = vpop.f32.mrb[0].mxu0
        %v4879 = vadd.f32 0.0, %v4878
        %4880 = vmatprep.mubr.bf16.mxu0 %v4633
        %4881 = vmatmul.mubr.bf16.gmra.mrb[0].mxu0 %v4632
        %v4882 = vpop.f32.mrb[0].mxu0
        %v4883 = vadd.f32 0.0, %v4882
        %v4884 = vpop.f32.mrb[0].mxu0
        %v4885 = vadd.f32 0.0, %v4884
        %v4886 = vpop.f32.mrb[0].mxu0
        %v4887 = vadd.f32 0.0, %v4886
        %v4888 = vpop.f32.mrb[0].mxu0
        %v4889 = vadd.f32 0.0, %v4888
        %4890 = vmatprep.mubr.bf16.mxu0 %v4635
        %4891 = vmatmul.mubr.bf16.gmra.mrb[0].mxu0 %v4634
        %v4892 = vpop.f32.mrb[0].mxu0
        %v4893 = vadd.f32 0.0, %v4892
        %v4894 = vpop.f32.mrb[0].mxu0
        %v4895 = vadd.f32 0.0, %v4894
        %v4896 = vpop.f32.mrb[0].mxu0
        %v4897 = vadd.f32 0.0, %v4896
        %v4898 = vpop.f32.mrb[0].mxu0
        %v4899 = vadd.f32 0.0, %v4898
        %4900 = vmatprep.mubr.bf16.mxu0 %v4637
        %4901 = vmatmul.mubr.bf16.gmra.mrb[0].mxu0 %v4636
        %v4902 = vpop.f32.mrb[0].mxu0
        %v4903 = vadd.f32 0.0, %v4902
        %v4904 = vpop.f32.mrb[0].mxu0
        %v4905 = vadd.f32 0.0, %v4904
        %v4906 = vpop.f32.mrb[0].mxu0
        %v4907 = vadd.f32 0.0, %v4906
        %v4908 = vpop.f32.mrb[0].mxu0
        %v4909 = vadd.f32 0.0, %v4908
        %4910 = vmatprep.mubr.bf16.mxu0 %v4639
        %4911 = vmatmul.mubr.bf16.gmra.mrb[0].mxu0 %v4638
        %v4912 = vpop.f32.mrb[0].mxu0
        %v4913 = vadd.f32 0.0, %v4912
        %v4914 = vpop.f32.mrb[0].mxu0
        %v4915 = vadd.f32 0.0, %v4914
        %v4916 = vpop.f32.mrb[0].mxu0
        %v4917 = vadd.f32 0.0, %v4916
        %v4918 = vpop.f32.mrb[0].mxu0
        %v4919 = vadd.f32 0.0, %v4918
        %4920 = vmatprep.mubr.bf16.mxu0 %v4641
        %4921 = vmatmul.mubr.bf16.gmra.mrb[0].mxu0 %v4640
        %v4922 = vpop.f32.mrb[0].mxu0
        %v4923 = vadd.f32 0.0, %v4922
        %v4924 = vpop.f32.mrb[0].mxu0
        %v4925 = vadd.f32 0.0, %v4924
        %v4926 = vpop.f32.mrb[0].mxu0
        %v4927 = vadd.f32 0.0, %v4926
        %v4928 = vpop.f32.mrb[0].mxu0
        %v4929 = vadd.f32 0.0, %v4928
        %4930 = vmatprep.mubr.bf16.mxu0 %v4643
        %4931 = vmatmul.mubr.bf16.gmra.mrb[0].mxu0 %v4642
        %v4932 = vpop.f32.mrb[0].mxu0
        %v4933 = vadd.f32 0.0, %v4932
        %v4934 = vpop.f32.mrb[0].mxu0
        %v4935 = vadd.f32 0.0, %v4934
        %v4936 = vpop.f32.mrb[0].mxu0
        %v4937 = vadd.f32 0.0, %v4936
        %v4938 = vpop.f32.mrb[0].mxu0
        %v4939 = vadd.f32 0.0, %v4938
        %4940 = vmatprep.mubr.bf16.mxu0 %v4645
        %4941 = vmatmul.mubr.bf16.gmra.mrb[0].mxu0 %v4644
        %v4942 = vpop.f32.mrb[0].mxu0
        %v4943 = vadd.f32 0.0, %v4942
        %v4944 = vpop.f32.mrb[0].mxu0
        %v4945 = vadd.f32 0.0, %v4944
        %v4946 = vpop.f32.mrb[0].mxu0
        %v4947 = vadd.f32 0.0, %v4946
        %v4948 = vpop.f32.mrb[0].mxu0
        %v4949 = vadd.f32 0.0, %v4948
        %4950 = vdwg.mxu0
        %v4951 = vpack.c.bf16 %v4877, %v4873
        %v4952 = vpack.c.bf16 %v4879, %v4875
        %v4953 = vpack.c.bf16 %v4887, %v4883
        %v4954 = vpack.c.bf16 %v4889, %v4885
        %v4955 = vpack.c.bf16 %v4897, %v4893
        %v4956 = vpack.c.bf16 %v4899, %v4895
        %v4957 = vpack.c.bf16 %v4907, %v4903
        %v4958 = vpack.c.bf16 %v4909, %v4905
        %v4959 = vpack.c.bf16 %v4917, %v4913
        %v4960 = vpack.c.bf16 %v4919, %v4915
        %v4961 = vpack.c.bf16 %v4927, %v4923
        %v4962 = vpack.c.bf16 %v4929, %v4925
        %v4963 = vpack.c.bf16 %v4937, %v4933
        %v4964 = vpack.c.bf16 %v4939, %v4935
        %v4965 = vpack.c.bf16 %v4947, %v4943
        %v4966 = vpack.c.bf16 %v4949, %v4945
        %s4967 = smul.addr %s4461, 8
        %s4968 = scalar_lea.vmem [#allocation3], %s4967
        %4969 = vst [vmem:[%s4968] sm:$0xff] %v4951
        %4970 = vst [vmem:[%s4968 + $0x8] sm:$0xff] %v4952
        %4971 = vst [vmem:[%s4968 + $0x10] sm:$0xff] %v4953
        %4972 = vst [vmem:[%s4968 + $0x18] sm:$0xff] %v4954
        %4973 = vst [vmem:[%s4968 + $0x20] sm:$0xff] %v4955
        %4974 = vst [vmem:[%s4968 + $0x28] sm:$0xff] %v4956
        %4975 = vst [vmem:[%s4968 + $0x30] sm:$0xff] %v4957
        %4976 = vst [vmem:[%s4968 + $0x38] sm:$0xff] %v4958
        %4977 = vst [vmem:[%s4968 + $0x40] sm:$0xff] %v4959
        %4978 = vst [vmem:[%s4968 + $0x48] sm:$0xff] %v4960
        %4979 = vst [vmem:[%s4968 + $0x50] sm:$0xff] %v4961
        %4980 = vst [vmem:[%s4968 + $0x58] sm:$0xff] %v4962
        %4981 = vst [vmem:[%s4968 + $0x60] sm:$0xff] %v4963
        %4982 = vst [vmem:[%s4968 + $0x68] sm:$0xff] %v4964
        %4983 = vst [vmem:[%s4968 + $0x70] sm:$0xff] %v4965
        %4984 = vst [vmem:[%s4968 + $0x78] sm:$0xff] %v4966
        %v4985 = vlaneseq
        %v4986 = vshrl.u32 %v4985, 7
        %v4987 = vadd.s32 %v4986, 8
        %v4988 = vadd.s32 %v4986, 16
        %v4989 = vadd.s32 %v4986, 24
        %v4990 = vadd.s32 %v4986, 32
        %v4991 = vadd.s32 %v4986, 40
        %v4992 = vadd.s32 %v4986, 48
        %v4993 = vadd.s32 %v4986, 56
        %v4994 = vadd.s32 %v4986, 64
        %v4995 = vadd.s32 %v4986, 72
        %v4996 = vadd.s32 %v4986, 80
        %v4997 = vadd.s32 %v4986, 88
        %v4998 = vadd.s32 %v4986, 96
        %v4999 = vadd.s32 %v4986, 104
        %v5000 = vadd.s32 %v4986, 112
        %v5001 = vadd.s32 %v4986, 120
        %v5002 = vstv %s378
        %v5003 = vadd.s32 %v5002, %v4986
        %v5004 = vadd.s32 %v5002, %v4987
        %v5005 = vadd.s32 %v5002, %v4988
        %v5006 = vadd.s32 %v5002, %v4989
        %v5007 = vadd.s32 %v5002, %v4990
        %v5008 = vadd.s32 %v5002, %v4991
        %v5009 = vadd.s32 %v5002, %v4992
        %v5010 = vadd.s32 %v5002, %v4993
        %v5011 = vadd.s32 %v5002, %v4994
        %v5012 = vadd.s32 %v5002, %v4995
        %v5013 = vadd.s32 %v5002, %v4996
        %v5014 = vadd.s32 %v5002, %v4997
        %v5015 = vadd.s32 %v5002, %v4998
        %v5016 = vadd.s32 %v5002, %v4999
        %v5017 = vadd.s32 %v5002, %v5000
        %v5018 = vadd.s32 %v5002, %v5001
        %vm5019 = vcmp.lt.s32.totalorder %v5003, 320
        %vm5020 = vcmp.lt.s32.totalorder %v5004, 320
        %vm5021 = vcmp.lt.s32.totalorder %v5005, 320
        %vm5022 = vcmp.lt.s32.totalorder %v5006, 320
        %vm5023 = vcmp.lt.s32.totalorder %v5007, 320
        %vm5024 = vcmp.lt.s32.totalorder %v5008, 320
        %vm5025 = vcmp.lt.s32.totalorder %v5009, 320
        %vm5026 = vcmp.lt.s32.totalorder %v5010, 320
        %vm5027 = vcmp.lt.s32.totalorder %v5011, 320
        %vm5028 = vcmp.lt.s32.totalorder %v5012, 320
        %vm5029 = vcmp.lt.s32.totalorder %v5013, 320
        %vm5030 = vcmp.lt.s32.totalorder %v5014, 320
        %vm5031 = vcmp.lt.s32.totalorder %v5015, 320
        %vm5032 = vcmp.lt.s32.totalorder %v5016, 320
        %vm5033 = vcmp.lt.s32.totalorder %v5017, 320
        %vm5034 = vcmp.lt.s32.totalorder %v5018, 320
        %v5035 = vsel %vm5019, 1, 0
        %v5036 = vsel %vm5020, 1, 0
        %v5037 = vsel %vm5021, 1, 0
        %v5038 = vsel %vm5022, 1, 0
        %v5039 = vsel %vm5023, 1, 0
        %v5040 = vsel %vm5024, 1, 0
        %v5041 = vsel %vm5025, 1, 0
        %v5042 = vsel %vm5026, 1, 0
        %v5043 = vsel %vm5027, 1, 0
        %v5044 = vsel %vm5028, 1, 0
        %v5045 = vsel %vm5029, 1, 0
        %v5046 = vsel %vm5030, 1, 0
        %v5047 = vsel %vm5031, 1, 0
        %v5048 = vsel %vm5032, 1, 0
        %v5049 = vsel %vm5033, 1, 0
        %v5050 = vsel %vm5034, 1, 0
        %vm5051 = vcmp.eq.s32.totalorder %v5035, 1
        %vm5052 = vcmp.eq.s32.totalorder %v5036, 1
        %vm5053 = vcmp.eq.s32.totalorder %v5037, 1
        %vm5054 = vcmp.eq.s32.totalorder %v5038, 1
        %vm5055 = vcmp.eq.s32.totalorder %v5039, 1
        %vm5056 = vcmp.eq.s32.totalorder %v5040, 1
        %vm5057 = vcmp.eq.s32.totalorder %v5041, 1
        %vm5058 = vcmp.eq.s32.totalorder %v5042, 1
        %vm5059 = vcmp.eq.s32.totalorder %v5043, 1
        %vm5060 = vcmp.eq.s32.totalorder %v5044, 1
        %vm5061 = vcmp.eq.s32.totalorder %v5045, 1
        %vm5062 = vcmp.eq.s32.totalorder %v5046, 1
        %vm5063 = vcmp.eq.s32.totalorder %v5047, 1
        %vm5064 = vcmp.eq.s32.totalorder %v5048, 1
        %vm5065 = vcmp.eq.s32.totalorder %v5049, 1
        %vm5066 = vcmp.eq.s32.totalorder %v5050, 1
        %v5067 = vsel %vm5051, %v4873, 0.0
        %v5068 = vsel %vm5051, %v4875, 0.0
        %v5069 = vsel %vm5052, %v4877, 0.0
        %v5070 = vsel %vm5052, %v4879, 0.0
        %v5071 = vsel %vm5053, %v4883, 0.0
        %v5072 = vsel %vm5053, %v4885, 0.0
        %v5073 = vsel %vm5054, %v4887, 0.0
        %v5074 = vsel %vm5054, %v4889, 0.0
        %v5075 = vsel %vm5055, %v4893, 0.0
        %v5076 = vsel %vm5055, %v4895, 0.0
        %v5077 = vsel %vm5056, %v4897, 0.0
        %v5078 = vsel %vm5056, %v4899, 0.0
        %v5079 = vsel %vm5057, %v4903, 0.0
        %v5080 = vsel %vm5057, %v4905, 0.0
        %v5081 = vsel %vm5058, %v4907, 0.0
        %v5082 = vsel %vm5058, %v4909, 0.0
        %v5083 = vsel %vm5059, %v4913, 0.0
        %v5084 = vsel %vm5059, %v4915, 0.0
        %v5085 = vsel %vm5060, %v4917, 0.0
        %v5086 = vsel %vm5060, %v4919, 0.0
        %v5087 = vsel %vm5061, %v4923, 0.0
        %v5088 = vsel %vm5061, %v4925, 0.0
        %v5089 = vsel %vm5062, %v4927, 0.0
        %v5090 = vsel %vm5062, %v4929, 0.0
        %v5091 = vsel %vm5063, %v4933, 0.0
        %v5092 = vsel %vm5063, %v4935, 0.0
        %v5093 = vsel %vm5064, %v4937, 0.0
        %v5094 = vsel %vm5064, %v4939, 0.0
        %v5095 = vsel %vm5065, %v4943, 0.0
        %v5096 = vsel %vm5065, %v4945, 0.0
        %v5097 = vsel %vm5066, %v4947, 0.0
        %v5098 = vsel %vm5066, %v4949, 0.0
        %v5099 = vld [vmem:[#allocation5] ss:$2 sm:$0x3]
        %v5100 = vadd.f32 %v5067, %v5069
        %v5101 = vadd.f32 %v5100, %v5071
        %v5102 = vadd.f32 %v5101, %v5073
        %v5103 = vadd.f32 %v5102, %v5075
        %v5104 = vadd.f32 %v5103, %v5077
        %v5105 = vadd.f32 %v5104, %v5079
        %v5106 = vadd.f32 %v5105, %v5081
        %v5107 = vadd.f32 %v5106, %v5083
        %v5108 = vadd.f32 %v5107, %v5085
        %v5109 = vadd.f32 %v5108, %v5087
        %v5110 = vadd.f32 %v5109, %v5089
        %v5111 = vadd.f32 %v5110, %v5091
        %v5112 = vadd.f32 %v5111, %v5093
        %v5113 = vadd.f32 %v5112, %v5095
        %v5114 = vadd.f32 %v5113, %v5097
        %v5115 = vrot.slane %v5114, 4
        %v5116 = vadd.f32 %v5114, %v5115
        %v5117 = vrot.slane %v5116, 2
        %v5118 = vadd.f32 %v5116, %v5117
        %v5119 = vrot.slane %v5118, 1
        %v5120 = vadd.f32 %v5118, %v5119
        %v5121 = vadd.f32 %v5068, %v5070
        %v5122 = vadd.f32 %v5121, %v5072
        %v5123 = vadd.f32 %v5122, %v5074
        %v5124 = vadd.f32 %v5123, %v5076
        %v5125 = vadd.f32 %v5124, %v5078
        %v5126 = vadd.f32 %v5125, %v5080
        %v5127 = vadd.f32 %v5126, %v5082
        %v5128 = vadd.f32 %v5127, %v5084
        %v5129 = vadd.f32 %v5128, %v5086
        %v5130 = vadd.f32 %v5129, %v5088
        %v5131 = vadd.f32 %v5130, %v5090
        %v5132 = vadd.f32 %v5131, %v5092
        %v5133 = vadd.f32 %v5132, %v5094
        %v5134 = vadd.f32 %v5133, %v5096
        %v5135 = vadd.f32 %v5134, %v5098
        %v5136 = vrot.slane %v5135, 4
        %v5137 = vadd.f32 %v5135, %v5136
        %v5138 = vrot.slane %v5137, 2
        %v5139 = vadd.f32 %v5137, %v5138
        %v5140 = vrot.slane %v5139, 1
        %v5141 = vadd.f32 %v5139, %v5140
        %v5144 = vcombine.low %v5120, %v5141
        %v5146 = vunpack.c.l.s4 1966171168
        %v5147 = vunpack.c.0.s8 %v5146
        %v5148 = vlaneseq
        %v5149 = vshrl.u32 %v5148, 7
        %v5150 = vsub.s32 %v5147, %v5149
        %v5151 = vrot.slane %v5144, %v5150
        %v5153 = vunpack.c.l.s4 1966171168
        %v5154 = vunpack.c.0.s8 %v5153
        %v5155 = vlaneseq
        %v5156 = vshrl.u32 %v5155, 7
        %v5157 = vsub.s32 %v5154, %v5156
        %v5158 = vrot.slane %v5151, %v5157
        %v5160 = vadd.f32 %v5099, %v5158
        %v5161 = vlaneseq
        %vm5162 = vcmp.ge.s32.totalorder %v5161, 0
        %vm5163 = vcmp.lt.s32.totalorder %v5161, 256
        %vm5164 = vmand %vm5162, %vm5163
        %5165 = vst.msk [vmem:[#allocation5] ss:$2 sm:$0x3] %vm5164, %v5160
        %s5166 = scalar_lea.vmem [#allocation5], 1
        %v5167 = vld [vmem:[%s5166] ss:$2 sm:$0x3]
        %v5168 = vmul.f32 %v5067, %v5067
        %v5169 = vmul.f32 %v5068, %v5068
        %v5170 = vmul.f32 %v5069, %v5069
        %v5171 = vmul.f32 %v5070, %v5070
        %v5172 = vmul.f32 %v5071, %v5071
        %v5173 = vmul.f32 %v5072, %v5072
        %v5174 = vmul.f32 %v5073, %v5073
        %v5175 = vmul.f32 %v5074, %v5074
        %v5176 = vmul.f32 %v5075, %v5075
        %v5177 = vmul.f32 %v5076, %v5076
        %v5178 = vmul.f32 %v5077, %v5077
        %v5179 = vmul.f32 %v5078, %v5078
        %v5180 = vmul.f32 %v5079, %v5079
        %v5181 = vmul.f32 %v5080, %v5080
        %v5182 = vmul.f32 %v5081, %v5081
        %v5183 = vmul.f32 %v5082, %v5082
        %v5184 = vmul.f32 %v5083, %v5083
        %v5185 = vmul.f32 %v5084, %v5084
        %v5186 = vmul.f32 %v5085, %v5085
        %v5187 = vmul.f32 %v5086, %v5086
        %v5188 = vmul.f32 %v5087, %v5087
        %v5189 = vmul.f32 %v5088, %v5088
        %v5190 = vmul.f32 %v5089, %v5089
        %v5191 = vmul.f32 %v5090, %v5090
        %v5192 = vmul.f32 %v5091, %v5091
        %v5193 = vmul.f32 %v5092, %v5092
        %v5194 = vmul.f32 %v5093, %v5093
        %v5195 = vmul.f32 %v5094, %v5094
        %v5196 = vmul.f32 %v5095, %v5095
        %v5197 = vmul.f32 %v5096, %v5096
        %v5198 = vmul.f32 %v5097, %v5097
        %v5199 = vmul.f32 %v5098, %v5098
        %v5200 = vadd.f32 %v5168, %v5170
        %v5201 = vadd.f32 %v5200, %v5172
        %v5202 = vadd.f32 %v5201, %v5174
        %v5203 = vadd.f32 %v5202, %v5176
        %v5204 = vadd.f32 %v5203, %v5178
        %v5205 = vadd.f32 %v5204, %v5180
        %v5206 = vadd.f32 %v5205, %v5182
        %v5207 = vadd.f32 %v5206, %v5184
        %v5208 = vadd.f32 %v5207, %v5186
        %v5209 = vadd.f32 %v5208, %v5188
        %v5210 = vadd.f32 %v5209, %v5190
        %v5211 = vadd.f32 %v5210, %v5192
        %v5212 = vadd.f32 %v5211, %v5194
        %v5213 = vadd.f32 %v5212, %v5196
        %v5214 = vadd.f32 %v5213, %v5198
        %v5215 = vrot.slane %v5214, 4
        %v5216 = vadd.f32 %v5214, %v5215
        %v5217 = vrot.slane %v5216, 2
        %v5218 = vadd.f32 %v5216, %v5217
        %v5219 = vrot.slane %v5218, 1
        %v5220 = vadd.f32 %v5218, %v5219
        %v5221 = vadd.f32 %v5169, %v5171
        %v5222 = vadd.f32 %v5221, %v5173
        %v5223 = vadd.f32 %v5222, %v5175
        %v5224 = vadd.f32 %v5223, %v5177
        %v5225 = vadd.f32 %v5224, %v5179
        %v5226 = vadd.f32 %v5225, %v5181
        %v5227 = vadd.f32 %v5226, %v5183
        %v5228 = vadd.f32 %v5227, %v5185
        %v5229 = vadd.f32 %v5228, %v5187
        %v5230 = vadd.f32 %v5229, %v5189
        %v5231 = vadd.f32 %v5230, %v5191
        %v5232 = vadd.f32 %v5231, %v5193
        %v5233 = vadd.f32 %v5232, %v5195
        %v5234 = vadd.f32 %v5233, %v5197
        %v5235 = vadd.f32 %v5234, %v5199
        %v5236 = vrot.slane %v5235, 4
        %v5237 = vadd.f32 %v5235, %v5236
        %v5238 = vrot.slane %v5237, 2
        %v5239 = vadd.f32 %v5237, %v5238
        %v5240 = vrot.slane %v5239, 1
        %v5241 = vadd.f32 %v5239, %v5240
        %v5244 = vcombine.low %v5220, %v5241
        %v5246 = vunpack.c.l.s4 1966171168
        %v5247 = vunpack.c.0.s8 %v5246
        %v5248 = vlaneseq
        %v5249 = vshrl.u32 %v5248, 7
        %v5250 = vsub.s32 %v5247, %v5249
        %v5251 = vrot.slane %v5244, %v5250
        %v5253 = vunpack.c.l.s4 1966171168
        %v5254 = vunpack.c.0.s8 %v5253
        %v5255 = vlaneseq
        %v5256 = vshrl.u32 %v5255, 7
        %v5257 = vsub.s32 %v5254, %v5256
        %v5258 = vrot.slane %v5251, %v5257
        %v5260 = vadd.f32 %v5167, %v5258
        %5261 = vst.msk [vmem:[%s5166] ss:$2 sm:$0x3] %vm5164, %v5260
      $region68: #{tpu_custom_call.1} parent=55 // pred_fallthru
        _
      %p5262 = scmp.eq.s32.totalorder %s24, 2
      // Predicated region
      $region73: #{tpu_custom_call.1} parent=55 // pred_check
        %p5263 = pneg %p5262
      $region74: #{tpu_custom_call.1} parent=55 // pred_check_branch
        %5265 = sbr.rel (%p5263) target = $region76
      $region75: #{tpu_custom_call.1} parent=55 // pred_region
        // Predicated region
        $region77: #{tpu_custom_call.1} parent=75 // pred_check
          %p5266 = pneg %p380
        $region78: #{tpu_custom_call.1} parent=75 // pred_check_branch
          %5268 = sbr.rel (%p5266) target = $region80
        $region79: #{tpu_custom_call.1} parent=75 // pred_region
          %v5269 = vld [vmem:[#allocation5] ss:$2 sm:$0x3]
          %v5270 = vmul.f32 %v5269, 0.003125
          %s5271 = scalar_lea.vmem [#allocation5], 1
          %v5272 = vld [vmem:[%s5271] ss:$2 sm:$0x3]
          %v5273 = vmul.f32 %v5272, 0.003125
          %v5274 = vmul.f32 %v5270, %v5270
          %v5275 = vsub.f32 %v5273, %v5274
          %v5276 = vadd.f32 %v5275, 1e-05
          %v5277 = vrsqrt.pop %v5276
          %v5278 = vld [vmem:[%s5] sm:$0x3]
          %v5279 = vmul.f32 %v5277, %v5278
          %v5280 = vlaneseq
          %vm5281 = vcmp.ge.s32.totalorder %v5280, 0
          %vm5282 = vcmp.lt.s32.totalorder %v5280, 256
          %vm5283 = vmand %vm5281, %vm5282
          %5284 = vst.msk [vmem:[#allocation5] ss:$2 sm:$0x3] %vm5283, %v5279
          %v5285 = vld [vmem:[%s6] sm:$0x3]
          %v5286 = vmul.f32 %v5270, %v5279
          %v5287 = vsub.f32 %v5285, %v5286
          %5288 = vst.msk [vmem:[%s5271] ss:$2 sm:$0x3] %vm5283, %v5287
        $region80: #{tpu_custom_call.1} parent=75 // pred_fallthru
          _
        %v5289 = vld [vmem:[#allocation5] ss:$2 sm:$0x3]
        %s5290 = scalar_lea.vmem [#allocation5], 1
        %v5291 = vld [vmem:[%s5290] ss:$2 sm:$0x3]
        %s5292 = sshra.s32 %s378, 4
        %s5293 = sand.u32 %s378, 15
        %s5294 = smul.u32 %s5292, 2
        %s5295 = smul.addr %s5294, 8
        %s5296 = scalar_lea.vmem [#allocation3], %s5295
        %v5297 = vld [vmem:[%s5296] sm:$0xff]
        %v5298 = vld [vmem:[%s5296 + $0x8] sm:$0xff]
        %v5299 = vld [vmem:[%s5296 + $0x10] sm:$0xff]
        %v5300 = vld [vmem:[%s5296 + $0x18] sm:$0xff]
        %v5301 = vld [vmem:[%s5296 + $0x20] sm:$0xff]
        %v5302 = vld [vmem:[%s5296 + $0x28] sm:$0xff]
        %v5303 = vld [vmem:[%s5296 + $0x30] sm:$0xff]
        %v5304 = vld [vmem:[%s5296 + $0x38] sm:$0xff]
        %v5305 = vld [vmem:[%s5296 + $0x40] sm:$0xff]
        %v5306 = vld [vmem:[%s5296 + $0x48] sm:$0xff]
        %v5307 = vld [vmem:[%s5296 + $0x50] sm:$0xff]
        %v5308 = vld [vmem:[%s5296 + $0x58] sm:$0xff]
        %v5309 = vld [vmem:[%s5296 + $0x60] sm:$0xff]
        %v5310 = vld [vmem:[%s5296 + $0x68] sm:$0xff]
        %v5311 = vld [vmem:[%s5296 + $0x70] sm:$0xff]
        %v5312 = vld [vmem:[%s5296 + $0x78] sm:$0xff]
        %v5313 = vunpack.c.l.bf16 %v5297
        %v5314 = vunpack.c.l.bf16 %v5298
        %v5315 = vunpack.c.h.bf16 %v5297
        %v5316 = vunpack.c.h.bf16 %v5298
        %v5317 = vunpack.c.l.bf16 %v5299
        %v5318 = vunpack.c.l.bf16 %v5300
        %v5319 = vunpack.c.h.bf16 %v5299
        %v5320 = vunpack.c.h.bf16 %v5300
        %v5321 = vunpack.c.l.bf16 %v5301
        %v5322 = vunpack.c.l.bf16 %v5302
        %v5323 = vunpack.c.h.bf16 %v5301
        %v5324 = vunpack.c.h.bf16 %v5302
        %v5325 = vunpack.c.l.bf16 %v5303
        %v5326 = vunpack.c.l.bf16 %v5304
        %v5327 = vunpack.c.h.bf16 %v5303
        %v5328 = vunpack.c.h.bf16 %v5304
        %v5329 = vunpack.c.l.bf16 %v5305
        %v5330 = vunpack.c.l.bf16 %v5306
        %v5331 = vunpack.c.h.bf16 %v5305
        %v5332 = vunpack.c.h.bf16 %v5306
        %v5333 = vunpack.c.l.bf16 %v5307
        %v5334 = vunpack.c.l.bf16 %v5308
        %v5335 = vunpack.c.h.bf16 %v5307
        %v5336 = vunpack.c.h.bf16 %v5308
        %v5337 = vunpack.c.l.bf16 %v5309
        %v5338 = vunpack.c.l.bf16 %v5310
        %v5339 = vunpack.c.h.bf16 %v5309
        %v5340 = vunpack.c.h.bf16 %v5310
        %v5341 = vunpack.c.l.bf16 %v5311
        %v5342 = vunpack.c.l.bf16 %v5312
        %v5343 = vunpack.c.h.bf16 %v5311
        %v5344 = vunpack.c.h.bf16 %v5312
        %v5346 = vlaneseq
        %v5347 = vshrl.u32 %v5346, 7
        %v5348 = vsub.s32 0, %v5347
        %v5349 = vrot.slane %v5289, %v5348
        %v5350 = vlaneseq
        %v5351 = vshrl.u32 %v5350, 7
        %v5352 = vsub.s32 1, %v5351
        %v5353 = vrot.slane %v5289, %v5352
        %v5356 = vmul.f32 %v5313, %v5349
        %v5357 = vmul.f32 %v5314, %v5353
        %v5358 = vmul.f32 %v5315, %v5349
        %v5359 = vmul.f32 %v5316, %v5353
        %v5360 = vmul.f32 %v5317, %v5349
        %v5361 = vmul.f32 %v5318, %v5353
        %v5362 = vmul.f32 %v5319, %v5349
        %v5363 = vmul.f32 %v5320, %v5353
        %v5364 = vmul.f32 %v5321, %v5349
        %v5365 = vmul.f32 %v5322, %v5353
        %v5366 = vmul.f32 %v5323, %v5349
        %v5367 = vmul.f32 %v5324, %v5353
        %v5368 = vmul.f32 %v5325, %v5349
        %v5369 = vmul.f32 %v5326, %v5353
        %v5370 = vmul.f32 %v5327, %v5349
        %v5371 = vmul.f32 %v5328, %v5353
        %v5372 = vmul.f32 %v5329, %v5349
        %v5373 = vmul.f32 %v5330, %v5353
        %v5374 = vmul.f32 %v5331, %v5349
        %v5375 = vmul.f32 %v5332, %v5353
        %v5376 = vmul.f32 %v5333, %v5349
        %v5377 = vmul.f32 %v5334, %v5353
        %v5378 = vmul.f32 %v5335, %v5349
        %v5379 = vmul.f32 %v5336, %v5353
        %v5380 = vmul.f32 %v5337, %v5349
        %v5381 = vmul.f32 %v5338, %v5353
        %v5382 = vmul.f32 %v5339, %v5349
        %v5383 = vmul.f32 %v5340, %v5353
        %v5384 = vmul.f32 %v5341, %v5349
        %v5385 = vmul.f32 %v5342, %v5353
        %v5386 = vmul.f32 %v5343, %v5349
        %v5387 = vmul.f32 %v5344, %v5353
        %v5389 = vlaneseq
        %v5390 = vshrl.u32 %v5389, 7
        %v5391 = vsub.s32 0, %v5390
        %v5392 = vrot.slane %v5291, %v5391
        %v5393 = vlaneseq
        %v5394 = vshrl.u32 %v5393, 7
        %v5395 = vsub.s32 1, %v5394
        %v5396 = vrot.slane %v5291, %v5395
        %v5399 = vadd.f32 %v5356, %v5392
        %v5400 = vadd.f32 %v5357, %v5396
        %v5401 = vadd.f32 %v5358, %v5392
        %v5402 = vadd.f32 %v5359, %v5396
        %v5403 = vadd.f32 %v5360, %v5392
        %v5404 = vadd.f32 %v5361, %v5396
        %v5405 = vadd.f32 %v5362, %v5392
        %v5406 = vadd.f32 %v5363, %v5396
        %v5407 = vadd.f32 %v5364, %v5392
        %v5408 = vadd.f32 %v5365, %v5396
        %v5409 = vadd.f32 %v5366, %v5392
        %v5410 = vadd.f32 %v5367, %v5396
        %v5411 = vadd.f32 %v5368, %v5392
        %v5412 = vadd.f32 %v5369, %v5396
        %v5413 = vadd.f32 %v5370, %v5392
        %v5414 = vadd.f32 %v5371, %v5396
        %v5415 = vadd.f32 %v5372, %v5392
        %v5416 = vadd.f32 %v5373, %v5396
        %v5417 = vadd.f32 %v5374, %v5392
        %v5418 = vadd.f32 %v5375, %v5396
        %v5419 = vadd.f32 %v5376, %v5392
        %v5420 = vadd.f32 %v5377, %v5396
        %v5421 = vadd.f32 %v5378, %v5392
        %v5422 = vadd.f32 %v5379, %v5396
        %v5423 = vadd.f32 %v5380, %v5392
        %v5424 = vadd.f32 %v5381, %v5396
        %v5425 = vadd.f32 %v5382, %v5392
        %v5426 = vadd.f32 %v5383, %v5396
        %v5427 = vadd.f32 %v5384, %v5392
        %v5428 = vadd.f32 %v5385, %v5396
        %v5429 = vadd.f32 %v5386, %v5392
        %v5430 = vadd.f32 %v5387, %v5396
        %v5431 = vmax.f32 %v5399, 0.0
        %v5432 = vmax.f32 %v5400, 0.0
        %v5433 = vmax.f32 %v5401, 0.0
        %v5434 = vmax.f32 %v5402, 0.0
        %v5435 = vmax.f32 %v5403, 0.0
        %v5436 = vmax.f32 %v5404, 0.0
        %v5437 = vmax.f32 %v5405, 0.0
        %v5438 = vmax.f32 %v5406, 0.0
        %v5439 = vmax.f32 %v5407, 0.0
        %v5440 = vmax.f32 %v5408, 0.0
        %v5441 = vmax.f32 %v5409, 0.0
        %v5442 = vmax.f32 %v5410, 0.0
        %v5443 = vmax.f32 %v5411, 0.0
        %v5444 = vmax.f32 %v5412, 0.0
        %v5445 = vmax.f32 %v5413, 0.0
        %v5446 = vmax.f32 %v5414, 0.0
        %v5447 = vmax.f32 %v5415, 0.0
        %v5448 = vmax.f32 %v5416, 0.0
        %v5449 = vmax.f32 %v5417, 0.0
        %v5450 = vmax.f32 %v5418, 0.0
        %v5451 = vmax.f32 %v5419, 0.0
        %v5452 = vmax.f32 %v5420, 0.0
        %v5453 = vmax.f32 %v5421, 0.0
        %v5454 = vmax.f32 %v5422, 0.0
        %v5455 = vmax.f32 %v5423, 0.0
        %v5456 = vmax.f32 %v5424, 0.0
        %v5457 = vmax.f32 %v5425, 0.0
        %v5458 = vmax.f32 %v5426, 0.0
        %v5459 = vmax.f32 %v5427, 0.0
        %v5460 = vmax.f32 %v5428, 0.0
        %v5461 = vmax.f32 %v5429, 0.0
        %v5462 = vmax.f32 %v5430, 0.0
        %v5463 = vpack.c.bf16 %v5433, %v5431
        %v5464 = vpack.c.bf16 %v5434, %v5432
        %v5465 = vpack.c.bf16 %v5437, %v5435
        %v5466 = vpack.c.bf16 %v5438, %v5436
        %v5467 = vpack.c.bf16 %v5441, %v5439
        %v5468 = vpack.c.bf16 %v5442, %v5440
        %v5469 = vpack.c.bf16 %v5445, %v5443
        %v5470 = vpack.c.bf16 %v5446, %v5444
        %v5471 = vpack.c.bf16 %v5449, %v5447
        %v5472 = vpack.c.bf16 %v5450, %v5448
        %v5473 = vpack.c.bf16 %v5453, %v5451
        %v5474 = vpack.c.bf16 %v5454, %v5452
        %v5475 = vpack.c.bf16 %v5457, %v5455
        %v5476 = vpack.c.bf16 %v5458, %v5456
        %v5477 = vpack.c.bf16 %v5461, %v5459
        %v5478 = vpack.c.bf16 %v5462, %v5460
        %v5479 = vld [vmem:[%s7] sm:$0xff]
        %v5480 = vld [vmem:[%s7 + $0x8] sm:$0xff]
        %v5481 = vld [vmem:[%s7 + $0x10] sm:$0xff]
        %v5482 = vld [vmem:[%s7 + $0x18] sm:$0xff]
        %v5483 = vld [vmem:[%s7 + $0x20] sm:$0xff]
        %v5484 = vld [vmem:[%s7 + $0x28] sm:$0xff]
        %v5485 = vld [vmem:[%s7 + $0x30] sm:$0xff]
        %v5486 = vld [vmem:[%s7 + $0x38] sm:$0xff]
        %v5487 = vld [vmem:[%s7 + $0x40] sm:$0xff]
        %v5488 = vld [vmem:[%s7 + $0x48] sm:$0xff]
        %v5489 = vld [vmem:[%s7 + $0x50] sm:$0xff]
        %v5490 = vld [vmem:[%s7 + $0x58] sm:$0xff]
        %v5491 = vld [vmem:[%s7 + $0x60] sm:$0xf]
        %v5492 = vld [vmem:[%s7 + $0x64] sm:$0xff]
        %v5493 = vld [vmem:[%s7 + $0x6c] sm:$0xff]
        %v5494 = vld [vmem:[%s7 + $0x74] sm:$0xff]
        %v5495 = vld [vmem:[%s7 + $0x7c] sm:$0xff]
        %v5496 = vld [vmem:[%s7 + $0x84] sm:$0xff]
        %v5497 = vld [vmem:[%s7 + $0x8c] sm:$0xff]
        %v5498 = vld [vmem:[%s7 + $0x94] sm:$0xff]
        %v5499 = vld [vmem:[%s7 + $0x9c] sm:$0xff]
        %v5500 = vld [vmem:[%s7 + $0xa4] sm:$0xff]
        %v5501 = vld [vmem:[%s7 + $0xac] sm:$0xff]
        %v5502 = vld [vmem:[%s7 + $0xb4] sm:$0xff]
        %v5503 = vld [vmem:[%s7 + $0xbc] sm:$0xff]
        %v5504 = vld [vmem:[%s7 + $0xc4] sm:$0xf]
        %v5505 = vld [vmem:[%s7 + $0xc8] sm:$0xff]
        %v5506 = vld [vmem:[%s7 + $0xd0] sm:$0xff]
        %v5507 = vld [vmem:[%s7 + $0xd8] sm:$0xff]
        %v5508 = vld [vmem:[%s7 + $0xe0] sm:$0xff]
        %v5509 = vld [vmem:[%s7 + $0xe8] sm:$0xff]
        %v5510 = vld [vmem:[%s7 + $0xf0] sm:$0xff]
        %v5511 = vld [vmem:[%s7 + $0xf8] sm:$0xff]
        %v5512 = vld [vmem:[%s7 + $0x100] sm:$0xff]
        %v5513 = vld [vmem:[%s7 + $0x108] sm:$0xff]
        %v5514 = vld [vmem:[%s7 + $0x110] sm:$0xff]
        %v5515 = vld [vmem:[%s7 + $0x118] sm:$0xff]
        %v5516 = vld [vmem:[%s7 + $0x120] sm:$0xff]
        %v5517 = vld [vmem:[%s7 + $0x128] sm:$0xf]
        %v5518 = vld [vmem:[%s7 + $0x12c] sm:$0xff]
        %v5519 = vld [vmem:[%s7 + $0x134] sm:$0xff]
        %v5520 = vld [vmem:[%s7 + $0x13c] sm:$0xff]
        %v5521 = vld [vmem:[%s7 + $0x144] sm:$0xff]
        %v5522 = vld [vmem:[%s7 + $0x14c] sm:$0xff]
        %v5523 = vld [vmem:[%s7 + $0x154] sm:$0xff]
        %v5524 = vld [vmem:[%s7 + $0x15c] sm:$0xff]
        %v5525 = vld [vmem:[%s7 + $0x164] sm:$0xff]
        %v5526 = vld [vmem:[%s7 + $0x16c] sm:$0xff]
        %v5527 = vld [vmem:[%s7 + $0x174] sm:$0xff]
        %v5528 = vld [vmem:[%s7 + $0x17c] sm:$0xff]
        %v5529 = vld [vmem:[%s7 + $0x184] sm:$0xff]
        %v5530 = vld [vmem:[%s7 + $0x18c] sm:$0xf]
        %v5531 = vld [vmem:[%s7 + $0x190] sm:$0xff]
        %v5532 = vld [vmem:[%s7 + $0x198] sm:$0xff]
        %v5533 = vld [vmem:[%s7 + $0x1a0] sm:$0xff]
        %v5534 = vld [vmem:[%s7 + $0x1a8] sm:$0xff]
        %v5535 = vld [vmem:[%s7 + $0x1b0] sm:$0xff]
        %v5536 = vld [vmem:[%s7 + $0x1b8] sm:$0xff]
        %v5537 = vld [vmem:[%s7 + $0x1c0] sm:$0xff]
        %v5538 = vld [vmem:[%s7 + $0x1c8] sm:$0xff]
        %v5539 = vld [vmem:[%s7 + $0x1d0] sm:$0xff]
        %v5540 = vld [vmem:[%s7 + $0x1d8] sm:$0xff]
        %v5541 = vld [vmem:[%s7 + $0x1e0] sm:$0xff]
        %v5542 = vld [vmem:[%s7 + $0x1e8] sm:$0xff]
        %v5543 = vld [vmem:[%s7 + $0x1f0] sm:$0xf]
        %v5544 = vld [vmem:[%s7 + $0x1f4] sm:$0xff]
        %v5545 = vld [vmem:[%s7 + $0x1fc] sm:$0xff]
        %v5546 = vld [vmem:[%s7 + $0x204] sm:$0xff]
        %v5547 = vld [vmem:[%s7 + $0x20c] sm:$0xff]
        %v5548 = vld [vmem:[%s7 + $0x214] sm:$0xff]
        %v5549 = vld [vmem:[%s7 + $0x21c] sm:$0xff]
        %v5550 = vld [vmem:[%s7 + $0x224] sm:$0xff]
        %v5551 = vld [vmem:[%s7 + $0x22c] sm:$0xff]
        %v5552 = vld [vmem:[%s7 + $0x234] sm:$0xff]
        %v5553 = vld [vmem:[%s7 + $0x23c] sm:$0xff]
        %v5554 = vld [vmem:[%s7 + $0x244] sm:$0xff]
        %v5555 = vld [vmem:[%s7 + $0x24c] sm:$0xff]
        %v5556 = vld [vmem:[%s7 + $0x254] sm:$0xf]
        %v5557 = vld [vmem:[%s7 + $0x258] sm:$0xff]
        %v5558 = vld [vmem:[%s7 + $0x260] sm:$0xff]
        %v5559 = vld [vmem:[%s7 + $0x268] sm:$0xff]
        %v5560 = vld [vmem:[%s7 + $0x270] sm:$0xff]
        %v5561 = vld [vmem:[%s7 + $0x278] sm:$0xff]
        %v5562 = vld [vmem:[%s7 + $0x280] sm:$0xff]
        %v5563 = vld [vmem:[%s7 + $0x288] sm:$0xff]
        %v5564 = vld [vmem:[%s7 + $0x290] sm:$0xff]
        %v5565 = vld [vmem:[%s7 + $0x298] sm:$0xff]
        %v5566 = vld [vmem:[%s7 + $0x2a0] sm:$0xff]
        %v5567 = vld [vmem:[%s7 + $0x2a8] sm:$0xff]
        %v5568 = vld [vmem:[%s7 + $0x2b0] sm:$0xff]
        %v5569 = vld [vmem:[%s7 + $0x2b8] sm:$0xf]
        %v5570 = vld [vmem:[%s7 + $0x2bc] sm:$0xff]
        %v5571 = vld [vmem:[%s7 + $0x2c4] sm:$0xff]
        %v5572 = vld [vmem:[%s7 + $0x2cc] sm:$0xff]
        %v5573 = vld [vmem:[%s7 + $0x2d4] sm:$0xff]
        %v5574 = vld [vmem:[%s7 + $0x2dc] sm:$0xff]
        %v5575 = vld [vmem:[%s7 + $0x2e4] sm:$0xff]
        %v5576 = vld [vmem:[%s7 + $0x2ec] sm:$0xff]
        %v5577 = vld [vmem:[%s7 + $0x2f4] sm:$0xff]
        %v5578 = vld [vmem:[%s7 + $0x2fc] sm:$0xff]
        %v5579 = vld [vmem:[%s7 + $0x304] sm:$0xff]
        %v5580 = vld [vmem:[%s7 + $0x30c] sm:$0xff]
        %v5581 = vld [vmem:[%s7 + $0x314] sm:$0xff]
        %v5582 = vld [vmem:[%s7 + $0x31c] sm:$0xf]
        %v5583 = vld [vmem:[%s7 + $0x320] sm:$0xff]
        %v5584 = vld [vmem:[%s7 + $0x328] sm:$0xff]
        %v5585 = vld [vmem:[%s7 + $0x330] sm:$0xff]
        %v5586 = vld [vmem:[%s7 + $0x338] sm:$0xff]
        %v5587 = vld [vmem:[%s7 + $0x340] sm:$0xff]
        %v5588 = vld [vmem:[%s7 + $0x348] sm:$0xff]
        %v5589 = vld [vmem:[%s7 + $0x350] sm:$0xff]
        %v5590 = vld [vmem:[%s7 + $0x358] sm:$0xff]
        %v5591 = vld [vmem:[%s7 + $0x360] sm:$0xff]
        %v5592 = vld [vmem:[%s7 + $0x368] sm:$0xff]
        %v5593 = vld [vmem:[%s7 + $0x370] sm:$0xff]
        %v5594 = vld [vmem:[%s7 + $0x378] sm:$0xff]
        %v5595 = vld [vmem:[%s7 + $0x380] sm:$0xf]
        %v5596 = vld [vmem:[%s7 + $0x384] sm:$0xff]
        %v5597 = vld [vmem:[%s7 + $0x38c] sm:$0xff]
        %v5598 = vld [vmem:[%s7 + $0x394] sm:$0xff]
        %v5599 = vld [vmem:[%s7 + $0x39c] sm:$0xff]
        %v5600 = vld [vmem:[%s7 + $0x3a4] sm:$0xff]
        %v5601 = vld [vmem:[%s7 + $0x3ac] sm:$0xff]
        %v5602 = vld [vmem:[%s7 + $0x3b4] sm:$0xff]
        %v5603 = vld [vmem:[%s7 + $0x3bc] sm:$0xff]
        %v5604 = vld [vmem:[%s7 + $0x3c4] sm:$0xff]
        %v5605 = vld [vmem:[%s7 + $0x3cc] sm:$0xff]
        %v5606 = vld [vmem:[%s7 + $0x3d4] sm:$0xff]
        %v5607 = vld [vmem:[%s7 + $0x3dc] sm:$0xff]
        %v5608 = vld [vmem:[%s7 + $0x3e4] sm:$0xf]
        %v5609 = vld [vmem:[%s7 + $0x3e8] sm:$0xff]
        %v5610 = vld [vmem:[%s7 + $0x3f0] sm:$0xff]
        %v5611 = vld [vmem:[%s7 + $0x3f8] sm:$0xff]
        %v5612 = vld [vmem:[%s7 + $0x400] sm:$0xff]
        %v5613 = vld [vmem:[%s7 + $0x408] sm:$0xff]
        %v5614 = vld [vmem:[%s7 + $0x410] sm:$0xff]
        %v5615 = vld [vmem:[%s7 + $0x418] sm:$0xff]
        %v5616 = vld [vmem:[%s7 + $0x420] sm:$0xff]
        %v5617 = vld [vmem:[%s7 + $0x428] sm:$0xff]
        %v5618 = vld [vmem:[%s7 + $0x430] sm:$0xff]
        %v5619 = vld [vmem:[%s7 + $0x438] sm:$0xff]
        %v5620 = vld [vmem:[%s7 + $0x440] sm:$0xff]
        %v5621 = vld [vmem:[%s7 + $0x448] sm:$0xf]
        %v5622 = vld [vmem:[%s7 + $0x44c] sm:$0xff]
        %v5623 = vld [vmem:[%s7 + $0x454] sm:$0xff]
        %v5624 = vld [vmem:[%s7 + $0x45c] sm:$0xff]
        %v5625 = vld [vmem:[%s7 + $0x464] sm:$0xff]
        %v5626 = vld [vmem:[%s7 + $0x46c] sm:$0xff]
        %v5627 = vld [vmem:[%s7 + $0x474] sm:$0xff]
        %v5628 = vld [vmem:[%s7 + $0x47c] sm:$0xff]
        %v5629 = vld [vmem:[%s7 + $0x484] sm:$0xff]
        %v5630 = vld [vmem:[%s7 + $0x48c] sm:$0xff]
        %v5631 = vld [vmem:[%s7 + $0x494] sm:$0xff]
        %v5632 = vld [vmem:[%s7 + $0x49c] sm:$0xff]
        %v5633 = vld [vmem:[%s7 + $0x4a4] sm:$0xff]
        %v5634 = vld [vmem:[%s7 + $0x4ac] sm:$0xf]
        %v5635 = vld [vmem:[%s7 + $0x4b0] sm:$0xff]
        %v5636 = vld [vmem:[%s7 + $0x4b8] sm:$0xff]
        %v5637 = vld [vmem:[%s7 + $0x4c0] sm:$0xff]
        %v5638 = vld [vmem:[%s7 + $0x4c8] sm:$0xff]
        %v5639 = vld [vmem:[%s7 + $0x4d0] sm:$0xff]
        %v5640 = vld [vmem:[%s7 + $0x4d8] sm:$0xff]
        %v5641 = vld [vmem:[%s7 + $0x4e0] sm:$0xff]
        %v5642 = vld [vmem:[%s7 + $0x4e8] sm:$0xff]
        %v5643 = vld [vmem:[%s7 + $0x4f0] sm:$0xff]
        %v5644 = vld [vmem:[%s7 + $0x4f8] sm:$0xff]
        %v5645 = vld [vmem:[%s7 + $0x500] sm:$0xff]
        %v5646 = vld [vmem:[%s7 + $0x508] sm:$0xff]
        %v5647 = vld [vmem:[%s7 + $0x510] sm:$0xf]
        %v5648 = vld [vmem:[%s7 + $0x514] sm:$0xff]
        %v5649 = vld [vmem:[%s7 + $0x51c] sm:$0xff]
        %v5650 = vld [vmem:[%s7 + $0x524] sm:$0xff]
        %v5651 = vld [vmem:[%s7 + $0x52c] sm:$0xff]
        %v5652 = vld [vmem:[%s7 + $0x534] sm:$0xff]
        %v5653 = vld [vmem:[%s7 + $0x53c] sm:$0xff]
        %v5654 = vld [vmem:[%s7 + $0x544] sm:$0xff]
        %v5655 = vld [vmem:[%s7 + $0x54c] sm:$0xff]
        %v5656 = vld [vmem:[%s7 + $0x554] sm:$0xff]
        %v5657 = vld [vmem:[%s7 + $0x55c] sm:$0xff]
        %v5658 = vld [vmem:[%s7 + $0x564] sm:$0xff]
        %v5659 = vld [vmem:[%s7 + $0x56c] sm:$0xff]
        %v5660 = vld [vmem:[%s7 + $0x574] sm:$0xf]
        %v5661 = vld [vmem:[%s7 + $0x578] sm:$0xff]
        %v5662 = vld [vmem:[%s7 + $0x580] sm:$0xff]
        %v5663 = vld [vmem:[%s7 + $0x588] sm:$0xff]
        %v5664 = vld [vmem:[%s7 + $0x590] sm:$0xff]
        %v5665 = vld [vmem:[%s7 + $0x598] sm:$0xff]
        %v5666 = vld [vmem:[%s7 + $0x5a0] sm:$0xff]
        %v5667 = vld [vmem:[%s7 + $0x5a8] sm:$0xff]
        %v5668 = vld [vmem:[%s7 + $0x5b0] sm:$0xff]
        %v5669 = vld [vmem:[%s7 + $0x5b8] sm:$0xff]
        %v5670 = vld [vmem:[%s7 + $0x5c0] sm:$0xff]
        %v5671 = vld [vmem:[%s7 + $0x5c8] sm:$0xff]
        %v5672 = vld [vmem:[%s7 + $0x5d0] sm:$0xff]
        %v5673 = vld [vmem:[%s7 + $0x5d8] sm:$0xf]
        %v5674 = vld [vmem:[%s7 + $0x5dc] sm:$0xff]
        %v5675 = vld [vmem:[%s7 + $0x5e4] sm:$0xff]
        %v5676 = vld [vmem:[%s7 + $0x5ec] sm:$0xff]
        %v5677 = vld [vmem:[%s7 + $0x5f4] sm:$0xff]
        %v5678 = vld [vmem:[%s7 + $0x5fc] sm:$0xff]
        %v5679 = vld [vmem:[%s7 + $0x604] sm:$0xff]
        %v5680 = vld [vmem:[%s7 + $0x60c] sm:$0xff]
        %v5681 = vld [vmem:[%s7 + $0x614] sm:$0xff]
        %v5682 = vld [vmem:[%s7 + $0x61c] sm:$0xff]
        %v5683 = vld [vmem:[%s7 + $0x624] sm:$0xff]
        %v5684 = vld [vmem:[%s7 + $0x62c] sm:$0xff]
        %v5685 = vld [vmem:[%s7 + $0x634] sm:$0xff]
        %v5686 = vld [vmem:[%s7 + $0x63c] sm:$0xf]
        %v5687 = vld [vmem:[%s7 + $0x640] sm:$0xff]
        %v5688 = vld [vmem:[%s7 + $0x648] sm:$0xff]
        %v5689 = vld [vmem:[%s7 + $0x650] sm:$0xff]
        %v5690 = vld [vmem:[%s7 + $0x658] sm:$0xff]
        %v5691 = vld [vmem:[%s7 + $0x660] sm:$0xff]
        %v5692 = vld [vmem:[%s7 + $0x668] sm:$0xff]
        %v5693 = vld [vmem:[%s7 + $0x670] sm:$0xff]
        %v5694 = vld [vmem:[%s7 + $0x678] sm:$0xff]
        %v5695 = vld [vmem:[%s7 + $0x680] sm:$0xff]
        %v5696 = vld [vmem:[%s7 + $0x688] sm:$0xff]
        %v5697 = vld [vmem:[%s7 + $0x690] sm:$0xff]
        %v5698 = vld [vmem:[%s7 + $0x698] sm:$0xff]
        %v5699 = vld [vmem:[%s7 + $0x6a0] sm:$0xf]
        %v5700 = vld [vmem:[%s7 + $0x6a4] sm:$0xff]
        %v5701 = vld [vmem:[%s7 + $0x6ac] sm:$0xff]
        %v5702 = vld [vmem:[%s7 + $0x6b4] sm:$0xff]
        %v5703 = vld [vmem:[%s7 + $0x6bc] sm:$0xff]
        %v5704 = vld [vmem:[%s7 + $0x6c4] sm:$0xff]
        %v5705 = vld [vmem:[%s7 + $0x6cc] sm:$0xff]
        %v5706 = vld [vmem:[%s7 + $0x6d4] sm:$0xff]
        %v5707 = vld [vmem:[%s7 + $0x6dc] sm:$0xff]
        %v5708 = vld [vmem:[%s7 + $0x6e4] sm:$0xff]
        %v5709 = vld [vmem:[%s7 + $0x6ec] sm:$0xff]
        %v5710 = vld [vmem:[%s7 + $0x6f4] sm:$0xff]
        %v5711 = vld [vmem:[%s7 + $0x6fc] sm:$0xff]
        %v5712 = vld [vmem:[%s7 + $0x704] sm:$0xf]
        %v5713 = vld [vmem:[%s7 + $0x708] sm:$0xff]
        %v5714 = vld [vmem:[%s7 + $0x710] sm:$0xff]
        %v5715 = vld [vmem:[%s7 + $0x718] sm:$0xff]
        %v5716 = vld [vmem:[%s7 + $0x720] sm:$0xff]
        %v5717 = vld [vmem:[%s7 + $0x728] sm:$0xff]
        %v5718 = vld [vmem:[%s7 + $0x730] sm:$0xff]
        %v5719 = vld [vmem:[%s7 + $0x738] sm:$0xff]
        %v5720 = vld [vmem:[%s7 + $0x740] sm:$0xff]
        %v5721 = vld [vmem:[%s7 + $0x748] sm:$0xff]
        %v5722 = vld [vmem:[%s7 + $0x750] sm:$0xff]
        %v5723 = vld [vmem:[%s7 + $0x758] sm:$0xff]
        %v5724 = vld [vmem:[%s7 + $0x760] sm:$0xff]
        %v5725 = vld [vmem:[%s7 + $0x768] sm:$0xf]
        %v5726 = vld [vmem:[%s7 + $0x76c] sm:$0xff]
        %v5727 = vld [vmem:[%s7 + $0x774] sm:$0xff]
        %v5728 = vld [vmem:[%s7 + $0x77c] sm:$0xff]
        %v5729 = vld [vmem:[%s7 + $0x784] sm:$0xff]
        %v5730 = vld [vmem:[%s7 + $0x78c] sm:$0xff]
        %v5731 = vld [vmem:[%s7 + $0x794] sm:$0xff]
        %v5732 = vld [vmem:[%s7 + $0x79c] sm:$0xff]
        %v5733 = vld [vmem:[%s7 + $0x7a4] sm:$0xff]
        %v5734 = vld [vmem:[%s7 + $0x7ac] sm:$0xff]
        %v5735 = vld [vmem:[%s7 + $0x7b4] sm:$0xff]
        %v5736 = vld [vmem:[%s7 + $0x7bc] sm:$0xff]
        %v5737 = vld [vmem:[%s7 + $0x7c4] sm:$0xff]
        %v5738 = vld [vmem:[%s7 + $0x7cc] sm:$0xf]
        %v5739 = vld [vmem:[%s7 + $0x7d0] sm:$0xff]
        %v5740 = vld [vmem:[%s7 + $0x7d8] sm:$0xff]
        %v5741 = vld [vmem:[%s7 + $0x7e0] sm:$0xff]
        %v5742 = vld [vmem:[%s7 + $0x7e8] sm:$0xff]
        %v5743 = vld [vmem:[%s7 + $0x7f0] sm:$0xff]
        %v5744 = vld [vmem:[%s7 + $0x7f8] sm:$0xff]
        %v5745 = vld [vmem:[%s7 + $0x800] sm:$0xff]
        %v5746 = vld [vmem:[%s7 + $0x808] sm:$0xff]
        %v5747 = vld [vmem:[%s7 + $0x810] sm:$0xff]
        %v5748 = vld [vmem:[%s7 + $0x818] sm:$0xff]
        %v5749 = vld [vmem:[%s7 + $0x820] sm:$0xff]
        %v5750 = vld [vmem:[%s7 + $0x828] sm:$0xff]
        %v5751 = vld [vmem:[%s7 + $0x830] sm:$0xf]
        %v5752 = vld [vmem:[%s7 + $0x834] sm:$0xff]
        %v5753 = vld [vmem:[%s7 + $0x83c] sm:$0xff]
        %v5754 = vld [vmem:[%s7 + $0x844] sm:$0xff]
        %v5755 = vld [vmem:[%s7 + $0x84c] sm:$0xff]
        %v5756 = vld [vmem:[%s7 + $0x854] sm:$0xff]
        %v5757 = vld [vmem:[%s7 + $0x85c] sm:$0xff]
        %v5758 = vld [vmem:[%s7 + $0x864] sm:$0xff]
        %v5759 = vld [vmem:[%s7 + $0x86c] sm:$0xff]
        %v5760 = vld [vmem:[%s7 + $0x874] sm:$0xff]
        %v5761 = vld [vmem:[%s7 + $0x87c] sm:$0xff]
        %v5762 = vld [vmem:[%s7 + $0x884] sm:$0xff]
        %v5763 = vld [vmem:[%s7 + $0x88c] sm:$0xff]
        %v5764 = vld [vmem:[%s7 + $0x894] sm:$0xf]
        %v5765 = vld [vmem:[%s7 + $0x898] sm:$0xff]
        %v5766 = vld [vmem:[%s7 + $0x8a0] sm:$0xff]
        %v5767 = vld [vmem:[%s7 + $0x8a8] sm:$0xff]
        %v5768 = vld [vmem:[%s7 + $0x8b0] sm:$0xff]
        %v5769 = vld [vmem:[%s7 + $0x8b8] sm:$0xff]
        %v5770 = vld [vmem:[%s7 + $0x8c0] sm:$0xff]
        %v5771 = vld [vmem:[%s7 + $0x8c8] sm:$0xff]
        %v5772 = vld [vmem:[%s7 + $0x8d0] sm:$0xff]
        %v5773 = vld [vmem:[%s7 + $0x8d8] sm:$0xff]
        %v5774 = vld [vmem:[%s7 + $0x8e0] sm:$0xff]
        %v5775 = vld [vmem:[%s7 + $0x8e8] sm:$0xff]
        %v5776 = vld [vmem:[%s7 + $0x8f0] sm:$0xff]
        %v5777 = vld [vmem:[%s7 + $0x8f8] sm:$0xf]
        %v5778 = vld [vmem:[%s7 + $0x8fc] sm:$0xff]
        %v5779 = vld [vmem:[%s7 + $0x904] sm:$0xff]
        %v5780 = vld [vmem:[%s7 + $0x90c] sm:$0xff]
        %v5781 = vld [vmem:[%s7 + $0x914] sm:$0xff]
        %v5782 = vld [vmem:[%s7 + $0x91c] sm:$0xff]
        %v5783 = vld [vmem:[%s7 + $0x924] sm:$0xff]
        %v5784 = vld [vmem:[%s7 + $0x92c] sm:$0xff]
        %v5785 = vld [vmem:[%s7 + $0x934] sm:$0xff]
        %v5786 = vld [vmem:[%s7 + $0x93c] sm:$0xff]
        %v5787 = vld [vmem:[%s7 + $0x944] sm:$0xff]
        %v5788 = vld [vmem:[%s7 + $0x94c] sm:$0xff]
        %v5789 = vld [vmem:[%s7 + $0x954] sm:$0xff]
        %v5790 = vld [vmem:[%s7 + $0x95c] sm:$0xf]
        %v5791 = vld [vmem:[%s7 + $0x960] sm:$0xff]
        %v5792 = vld [vmem:[%s7 + $0x968] sm:$0xff]
        %v5793 = vld [vmem:[%s7 + $0x970] sm:$0xff]
        %v5794 = vld [vmem:[%s7 + $0x978] sm:$0xff]
        %v5795 = vld [vmem:[%s7 + $0x980] sm:$0xff]
        %v5796 = vld [vmem:[%s7 + $0x988] sm:$0xff]
        %v5797 = vld [vmem:[%s7 + $0x990] sm:$0xff]
        %v5798 = vld [vmem:[%s7 + $0x998] sm:$0xff]
        %v5799 = vld [vmem:[%s7 + $0x9a0] sm:$0xff]
        %v5800 = vld [vmem:[%s7 + $0x9a8] sm:$0xff]
        %v5801 = vld [vmem:[%s7 + $0x9b0] sm:$0xff]
        %v5802 = vld [vmem:[%s7 + $0x9b8] sm:$0xff]
        %v5803 = vld [vmem:[%s7 + $0x9c0] sm:$0xf]
        %v5804 = vld [vmem:[%s7 + $0x9c4] sm:$0xff]
        %v5805 = vld [vmem:[%s7 + $0x9cc] sm:$0xff]
        %v5806 = vld [vmem:[%s7 + $0x9d4] sm:$0xff]
        %v5807 = vld [vmem:[%s7 + $0x9dc] sm:$0xff]
        %v5808 = vld [vmem:[%s7 + $0x9e4] sm:$0xff]
        %v5809 = vld [vmem:[%s7 + $0x9ec] sm:$0xff]
        %v5810 = vld [vmem:[%s7 + $0x9f4] sm:$0xff]
        %v5811 = vld [vmem:[%s7 + $0x9fc] sm:$0xff]
        %v5812 = vld [vmem:[%s7 + $0xa04] sm:$0xff]
        %v5813 = vld [vmem:[%s7 + $0xa0c] sm:$0xff]
        %v5814 = vld [vmem:[%s7 + $0xa14] sm:$0xff]
        %v5815 = vld [vmem:[%s7 + $0xa1c] sm:$0xff]
        %v5816 = vld [vmem:[%s7 + $0xa24] sm:$0xf]
        %v5817 = vld [vmem:[%s7 + $0xa28] sm:$0xff]
        %v5818 = vld [vmem:[%s7 + $0xa30] sm:$0xff]
        %v5819 = vld [vmem:[%s7 + $0xa38] sm:$0xff]
        %v5820 = vld [vmem:[%s7 + $0xa40] sm:$0xff]
        %v5821 = vld [vmem:[%s7 + $0xa48] sm:$0xff]
        %v5822 = vld [vmem:[%s7 + $0xa50] sm:$0xff]
        %v5823 = vld [vmem:[%s7 + $0xa58] sm:$0xff]
        %v5824 = vld [vmem:[%s7 + $0xa60] sm:$0xff]
        %v5825 = vld [vmem:[%s7 + $0xa68] sm:$0xff]
        %v5826 = vld [vmem:[%s7 + $0xa70] sm:$0xff]
        %v5827 = vld [vmem:[%s7 + $0xa78] sm:$0xff]
        %v5828 = vld [vmem:[%s7 + $0xa80] sm:$0xff]
        %v5829 = vld [vmem:[%s7 + $0xa88] sm:$0xf]
        %v5830 = vld [vmem:[%s7 + $0xa8c] sm:$0xff]
        %v5831 = vld [vmem:[%s7 + $0xa94] sm:$0xff]
        %v5832 = vld [vmem:[%s7 + $0xa9c] sm:$0xff]
        %v5833 = vld [vmem:[%s7 + $0xaa4] sm:$0xff]
        %v5834 = vld [vmem:[%s7 + $0xaac] sm:$0xff]
        %v5835 = vld [vmem:[%s7 + $0xab4] sm:$0xff]
        %v5836 = vld [vmem:[%s7 + $0xabc] sm:$0xff]
        %v5837 = vld [vmem:[%s7 + $0xac4] sm:$0xff]
        %v5838 = vld [vmem:[%s7 + $0xacc] sm:$0xff]
        %v5839 = vld [vmem:[%s7 + $0xad4] sm:$0xff]
        %v5840 = vld [vmem:[%s7 + $0xadc] sm:$0xff]
        %v5841 = vld [vmem:[%s7 + $0xae4] sm:$0xff]
        %v5842 = vld [vmem:[%s7 + $0xaec] sm:$0xf]
        %v5843 = vld [vmem:[%s7 + $0xaf0] sm:$0xff]
        %v5844 = vld [vmem:[%s7 + $0xaf8] sm:$0xff]
        %v5845 = vld [vmem:[%s7 + $0xb00] sm:$0xff]
        %v5846 = vld [vmem:[%s7 + $0xb08] sm:$0xff]
        %v5847 = vld [vmem:[%s7 + $0xb10] sm:$0xff]
        %v5848 = vld [vmem:[%s7 + $0xb18] sm:$0xff]
        %v5849 = vld [vmem:[%s7 + $0xb20] sm:$0xff]
        %v5850 = vld [vmem:[%s7 + $0xb28] sm:$0xff]
        %v5851 = vld [vmem:[%s7 + $0xb30] sm:$0xff]
        %v5852 = vld [vmem:[%s7 + $0xb38] sm:$0xff]
        %v5853 = vld [vmem:[%s7 + $0xb40] sm:$0xff]
        %v5854 = vld [vmem:[%s7 + $0xb48] sm:$0xff]
        %v5855 = vld [vmem:[%s7 + $0xb50] sm:$0xf]
        %v5856 = vld [vmem:[%s7 + $0xb54] sm:$0xff]
        %v5857 = vld [vmem:[%s7 + $0xb5c] sm:$0xff]
        %v5858 = vld [vmem:[%s7 + $0xb64] sm:$0xff]
        %v5859 = vld [vmem:[%s7 + $0xb6c] sm:$0xff]
        %v5860 = vld [vmem:[%s7 + $0xb74] sm:$0xff]
        %v5861 = vld [vmem:[%s7 + $0xb7c] sm:$0xff]
        %v5862 = vld [vmem:[%s7 + $0xb84] sm:$0xff]
        %v5863 = vld [vmem:[%s7 + $0xb8c] sm:$0xff]
        %v5864 = vld [vmem:[%s7 + $0xb94] sm:$0xff]
        %v5865 = vld [vmem:[%s7 + $0xb9c] sm:$0xff]
        %v5866 = vld [vmem:[%s7 + $0xba4] sm:$0xff]
        %v5867 = vld [vmem:[%s7 + $0xbac] sm:$0xff]
        %v5868 = vld [vmem:[%s7 + $0xbb4] sm:$0xf]
        %v5869 = vld [vmem:[%s7 + $0xbb8] sm:$0xff]
        %v5870 = vld [vmem:[%s7 + $0xbc0] sm:$0xff]
        %v5871 = vld [vmem:[%s7 + $0xbc8] sm:$0xff]
        %v5872 = vld [vmem:[%s7 + $0xbd0] sm:$0xff]
        %v5873 = vld [vmem:[%s7 + $0xbd8] sm:$0xff]
        %v5874 = vld [vmem:[%s7 + $0xbe0] sm:$0xff]
        %v5875 = vld [vmem:[%s7 + $0xbe8] sm:$0xff]
        %v5876 = vld [vmem:[%s7 + $0xbf0] sm:$0xff]
        %v5877 = vld [vmem:[%s7 + $0xbf8] sm:$0xff]
        %v5878 = vld [vmem:[%s7 + $0xc00] sm:$0xff]
        %v5879 = vld [vmem:[%s7 + $0xc08] sm:$0xff]
        %v5880 = vld [vmem:[%s7 + $0xc10] sm:$0xff]
        %v5881 = vld [vmem:[%s7 + $0xc18] sm:$0xf]
        %v5882 = vld [vmem:[%s7 + $0xc1c] sm:$0xff]
        %v5883 = vld [vmem:[%s7 + $0xc24] sm:$0xff]
        %v5884 = vld [vmem:[%s7 + $0xc2c] sm:$0xff]
        %v5885 = vld [vmem:[%s7 + $0xc34] sm:$0xff]
        %v5886 = vld [vmem:[%s7 + $0xc3c] sm:$0xff]
        %v5887 = vld [vmem:[%s7 + $0xc44] sm:$0xff]
        %v5888 = vld [vmem:[%s7 + $0xc4c] sm:$0xff]
        %v5889 = vld [vmem:[%s7 + $0xc54] sm:$0xff]
        %v5890 = vld [vmem:[%s7 + $0xc5c] sm:$0xff]
        %v5891 = vld [vmem:[%s7 + $0xc64] sm:$0xff]
        %v5892 = vld [vmem:[%s7 + $0xc6c] sm:$0xff]
        %v5893 = vld [vmem:[%s7 + $0xc74] sm:$0xff]
        %v5894 = vld [vmem:[%s7 + $0xc7c] sm:$0xf]
        %v5895 = vld [vmem:[%s8] sm:$0xff]
        %v5896 = vld [vmem:[%s8 + $0x8] sm:$0xff]
        %v5897 = vld [vmem:[%s8 + $0x10] sm:$0xff]
        %v5898 = vld [vmem:[%s8 + $0x18] sm:$0x1]
        %v5903 = vlaneseq
        %v5904 = vshrl.u32 %v5903, 7
        %v5905 = vsub.s32 0, %v5904
        %v5906 = vrot.slane %v5895, %v5905
        %v5907 = vlaneseq
        %v5908 = vshrl.u32 %v5907, 7
        %v5909 = vsub.s32 1, %v5908
        %v5910 = vrot.slane %v5895, %v5909
        %v5911 = vlaneseq
        %v5912 = vshrl.u32 %v5911, 7
        %v5913 = vsub.s32 2, %v5912
        %v5914 = vrot.slane %v5895, %v5913
        %v5915 = vlaneseq
        %v5916 = vshrl.u32 %v5915, 7
        %v5917 = vsub.s32 3, %v5916
        %v5918 = vrot.slane %v5895, %v5917
        %v5919 = vlaneseq
        %v5920 = vshrl.u32 %v5919, 7
        %v5921 = vsub.s32 4, %v5920
        %v5922 = vrot.slane %v5895, %v5921
        %v5923 = vlaneseq
        %v5924 = vshrl.u32 %v5923, 7
        %v5925 = vsub.s32 5, %v5924
        %v5926 = vrot.slane %v5895, %v5925
        %v5927 = vlaneseq
        %v5928 = vshrl.u32 %v5927, 7
        %v5929 = vsub.s32 6, %v5928
        %v5930 = vrot.slane %v5895, %v5929
        %v5931 = vlaneseq
        %v5932 = vshrl.u32 %v5931, 7
        %v5933 = vsub.s32 7, %v5932
        %v5934 = vrot.slane %v5895, %v5933
        %v5935 = vlaneseq
        %v5936 = vshrl.u32 %v5935, 7
        %v5937 = vsub.s32 0, %v5936
        %v5938 = vrot.slane %v5896, %v5937
        %v5939 = vlaneseq
        %v5940 = vshrl.u32 %v5939, 7
        %v5941 = vsub.s32 1, %v5940
        %v5942 = vrot.slane %v5896, %v5941
        %v5943 = vlaneseq
        %v5944 = vshrl.u32 %v5943, 7
        %v5945 = vsub.s32 2, %v5944
        %v5946 = vrot.slane %v5896, %v5945
        %v5947 = vlaneseq
        %v5948 = vshrl.u32 %v5947, 7
        %v5949 = vsub.s32 3, %v5948
        %v5950 = vrot.slane %v5896, %v5949
        %v5951 = vlaneseq
        %v5952 = vshrl.u32 %v5951, 7
        %v5953 = vsub.s32 4, %v5952
        %v5954 = vrot.slane %v5896, %v5953
        %v5955 = vlaneseq
        %v5956 = vshrl.u32 %v5955, 7
        %v5957 = vsub.s32 5, %v5956
        %v5958 = vrot.slane %v5896, %v5957
        %v5959 = vlaneseq
        %v5960 = vshrl.u32 %v5959, 7
        %v5961 = vsub.s32 6, %v5960
        %v5962 = vrot.slane %v5896, %v5961
        %v5963 = vlaneseq
        %v5964 = vshrl.u32 %v5963, 7
        %v5965 = vsub.s32 7, %v5964
        %v5966 = vrot.slane %v5896, %v5965
        %v5967 = vlaneseq
        %v5968 = vshrl.u32 %v5967, 7
        %v5969 = vsub.s32 0, %v5968
        %v5970 = vrot.slane %v5897, %v5969
        %v5971 = vlaneseq
        %v5972 = vshrl.u32 %v5971, 7
        %v5973 = vsub.s32 1, %v5972
        %v5974 = vrot.slane %v5897, %v5973
        %v5975 = vlaneseq
        %v5976 = vshrl.u32 %v5975, 7
        %v5977 = vsub.s32 2, %v5976
        %v5978 = vrot.slane %v5897, %v5977
        %v5979 = vlaneseq
        %v5980 = vshrl.u32 %v5979, 7
        %v5981 = vsub.s32 3, %v5980
        %v5982 = vrot.slane %v5897, %v5981
        %v5983 = vlaneseq
        %v5984 = vshrl.u32 %v5983, 7
        %v5985 = vsub.s32 4, %v5984
        %v5986 = vrot.slane %v5897, %v5985
        %v5987 = vlaneseq
        %v5988 = vshrl.u32 %v5987, 7
        %v5989 = vsub.s32 5, %v5988
        %v5990 = vrot.slane %v5897, %v5989
        %v5991 = vlaneseq
        %v5992 = vshrl.u32 %v5991, 7
        %v5993 = vsub.s32 6, %v5992
        %v5994 = vrot.slane %v5897, %v5993
        %v5995 = vlaneseq
        %v5996 = vshrl.u32 %v5995, 7
        %v5997 = vsub.s32 7, %v5996
        %v5998 = vrot.slane %v5897, %v5997
        %v5999 = vlaneseq
        %v6000 = vshrl.u32 %v5999, 7
        %v6001 = vsub.s32 0, %v6000
        %v6002 = vrot.slane %v5898, %v6001
        %v6444 = vunpack.c.l.b16 %v5479
        %v6445 = vunpack.c.h.b16 %v5479
        %v6446 = vunpack.c.l.b16 %v5480
        %v6447 = vunpack.c.h.b16 %v5480
        %v6448 = vunpack.c.l.b16 %v5481
        %v6449 = vunpack.c.h.b16 %v5481
        %v6450 = vunpack.c.l.b16 %v5482
        %v6451 = vunpack.c.h.b16 %v5482
        %v6452 = vunpack.c.l.b16 %v5483
        %v6453 = vunpack.c.h.b16 %v5483
        %v6454 = vunpack.c.l.b16 %v5484
        %v6455 = vunpack.c.h.b16 %v5484
        %v6456 = vunpack.c.l.b16 %v5485
        %v6457 = vunpack.c.h.b16 %v5485
        %v6458 = vunpack.c.l.b16 %v5486
        %v6459 = vunpack.c.h.b16 %v5486
        %v6460 = vunpack.c.l.b16 %v5487
        %v6461 = vunpack.c.h.b16 %v5487
        %v6462 = vunpack.c.l.b16 %v5488
        %v6463 = vunpack.c.h.b16 %v5488
        %v6464 = vunpack.c.l.b16 %v5489
        %v6465 = vunpack.c.h.b16 %v5489
        %v6466 = vunpack.c.l.b16 %v5490
        %v6467 = vunpack.c.h.b16 %v5490
        %v6468 = vunpack.c.l.b16 %v5491
        %v6469 = vunpack.c.l.b16 %v5492
        %v6470 = vunpack.c.h.b16 %v5492
        %v6471 = vunpack.c.l.b16 %v5493
        %v6472 = vunpack.c.h.b16 %v5493
        %v6473 = vunpack.c.l.b16 %v5494
        %v6474 = vunpack.c.h.b16 %v5494
        %v6475 = vunpack.c.l.b16 %v5495
        %v6476 = vunpack.c.h.b16 %v5495
        %v6477 = vunpack.c.l.b16 %v5496
        %v6478 = vunpack.c.h.b16 %v5496
        %v6479 = vunpack.c.l.b16 %v5497
        %v6480 = vunpack.c.h.b16 %v5497
        %v6481 = vunpack.c.l.b16 %v5498
        %v6482 = vunpack.c.h.b16 %v5498
        %v6483 = vunpack.c.l.b16 %v5499
        %v6484 = vunpack.c.h.b16 %v5499
        %v6485 = vunpack.c.l.b16 %v5500
        %v6486 = vunpack.c.h.b16 %v5500
        %v6487 = vunpack.c.l.b16 %v5501
        %v6488 = vunpack.c.h.b16 %v5501
        %v6489 = vunpack.c.l.b16 %v5502
        %v6490 = vunpack.c.h.b16 %v5502
        %v6491 = vunpack.c.l.b16 %v5503
        %v6492 = vunpack.c.h.b16 %v5503
        %v6493 = vunpack.c.l.b16 %v5504
        %v6494 = vunpack.c.l.b16 %v5505
        %v6495 = vunpack.c.h.b16 %v5505
        %v6496 = vunpack.c.l.b16 %v5506
        %v6497 = vunpack.c.h.b16 %v5506
        %v6498 = vunpack.c.l.b16 %v5507
        %v6499 = vunpack.c.h.b16 %v5507
        %v6500 = vunpack.c.l.b16 %v5508
        %v6501 = vunpack.c.h.b16 %v5508
        %v6502 = vunpack.c.l.b16 %v5509
        %v6503 = vunpack.c.h.b16 %v5509
        %v6504 = vunpack.c.l.b16 %v5510
        %v6505 = vunpack.c.h.b16 %v5510
        %v6506 = vunpack.c.l.b16 %v5511
        %v6507 = vunpack.c.h.b16 %v5511
        %v6508 = vunpack.c.l.b16 %v5512
        %v6509 = vunpack.c.h.b16 %v5512
        %v6510 = vunpack.c.l.b16 %v5513
        %v6511 = vunpack.c.h.b16 %v5513
        %v6512 = vunpack.c.l.b16 %v5514
        %v6513 = vunpack.c.h.b16 %v5514
        %v6514 = vunpack.c.l.b16 %v5515
        %v6515 = vunpack.c.h.b16 %v5515
        %v6516 = vunpack.c.l.b16 %v5516
        %v6517 = vunpack.c.h.b16 %v5516
        %v6518 = vunpack.c.l.b16 %v5517
        %v6519 = vunpack.c.l.b16 %v5518
        %v6520 = vunpack.c.h.b16 %v5518
        %v6521 = vunpack.c.l.b16 %v5519
        %v6522 = vunpack.c.h.b16 %v5519
        %v6523 = vunpack.c.l.b16 %v5520
        %v6524 = vunpack.c.h.b16 %v5520
        %v6525 = vunpack.c.l.b16 %v5521
        %v6526 = vunpack.c.h.b16 %v5521
        %v6527 = vunpack.c.l.b16 %v5522
        %v6528 = vunpack.c.h.b16 %v5522
        %v6529 = vunpack.c.l.b16 %v5523
        %v6530 = vunpack.c.h.b16 %v5523
        %v6531 = vunpack.c.l.b16 %v5524
        %v6532 = vunpack.c.h.b16 %v5524
        %v6533 = vunpack.c.l.b16 %v5525
        %v6534 = vunpack.c.h.b16 %v5525
        %v6535 = vunpack.c.l.b16 %v5526
        %v6536 = vunpack.c.h.b16 %v5526
        %v6537 = vunpack.c.l.b16 %v5527
        %v6538 = vunpack.c.h.b16 %v5527
        %v6539 = vunpack.c.l.b16 %v5528
        %v6540 = vunpack.c.h.b16 %v5528
        %v6541 = vunpack.c.l.b16 %v5529
        %v6542 = vunpack.c.h.b16 %v5529
        %v6543 = vunpack.c.l.b16 %v5530
        %v6544 = vunpack.c.l.b16 %v5531
        %v6545 = vunpack.c.h.b16 %v5531
        %v6546 = vunpack.c.l.b16 %v5532
        %v6547 = vunpack.c.h.b16 %v5532
        %v6548 = vunpack.c.l.b16 %v5533
        %v6549 = vunpack.c.h.b16 %v5533
        %v6550 = vunpack.c.l.b16 %v5534
        %v6551 = vunpack.c.h.b16 %v5534
        %v6552 = vunpack.c.l.b16 %v5535
        %v6553 = vunpack.c.h.b16 %v5535
        %v6554 = vunpack.c.l.b16 %v5536
        %v6555 = vunpack.c.h.b16 %v5536
        %v6556 = vunpack.c.l.b16 %v5537
        %v6557 = vunpack.c.h.b16 %v5537
        %v6558 = vunpack.c.l.b16 %v5538
        %v6559 = vunpack.c.h.b16 %v5538
        %v6560 = vunpack.c.l.b16 %v5539
        %v6561 = vunpack.c.h.b16 %v5539
        %v6562 = vunpack.c.l.b16 %v5540
        %v6563 = vunpack.c.h.b16 %v5540
        %v6564 = vunpack.c.l.b16 %v5541
        %v6565 = vunpack.c.h.b16 %v5541
        %v6566 = vunpack.c.l.b16 %v5542
        %v6567 = vunpack.c.h.b16 %v5542
        %v6568 = vunpack.c.l.b16 %v5543
        %v6569 = vunpack.c.l.b16 %v5544
        %v6570 = vunpack.c.h.b16 %v5544
        %v6571 = vunpack.c.l.b16 %v5545
        %v6572 = vunpack.c.h.b16 %v5545
        %v6573 = vunpack.c.l.b16 %v5546
        %v6574 = vunpack.c.h.b16 %v5546
        %v6575 = vunpack.c.l.b16 %v5547
        %v6576 = vunpack.c.h.b16 %v5547
        %v6577 = vunpack.c.l.b16 %v5548
        %v6578 = vunpack.c.h.b16 %v5548
        %v6579 = vunpack.c.l.b16 %v5549
        %v6580 = vunpack.c.h.b16 %v5549
        %v6581 = vunpack.c.l.b16 %v5550
        %v6582 = vunpack.c.h.b16 %v5550
        %v6583 = vunpack.c.l.b16 %v5551
        %v6584 = vunpack.c.h.b16 %v5551
        %v6585 = vunpack.c.l.b16 %v5552
        %v6586 = vunpack.c.h.b16 %v5552
        %v6587 = vunpack.c.l.b16 %v5553
        %v6588 = vunpack.c.h.b16 %v5553
        %v6589 = vunpack.c.l.b16 %v5554
        %v6590 = vunpack.c.h.b16 %v5554
        %v6591 = vunpack.c.l.b16 %v5555
        %v6592 = vunpack.c.h.b16 %v5555
        %v6593 = vunpack.c.l.b16 %v5556
        %v6594 = vunpack.c.l.b16 %v5557
        %v6595 = vunpack.c.h.b16 %v5557
        %v6596 = vunpack.c.l.b16 %v5558
        %v6597 = vunpack.c.h.b16 %v5558
        %v6598 = vunpack.c.l.b16 %v5559
        %v6599 = vunpack.c.h.b16 %v5559
        %v6600 = vunpack.c.l.b16 %v5560
        %v6601 = vunpack.c.h.b16 %v5560
        %v6602 = vunpack.c.l.b16 %v5561
        %v6603 = vunpack.c.h.b16 %v5561
        %v6604 = vunpack.c.l.b16 %v5562
        %v6605 = vunpack.c.h.b16 %v5562
        %v6606 = vunpack.c.l.b16 %v5563
        %v6607 = vunpack.c.h.b16 %v5563
        %v6608 = vunpack.c.l.b16 %v5564
        %v6609 = vunpack.c.h.b16 %v5564
        %v6610 = vunpack.c.l.b16 %v5565
        %v6611 = vunpack.c.h.b16 %v5565
        %v6612 = vunpack.c.l.b16 %v5566
        %v6613 = vunpack.c.h.b16 %v5566
        %v6614 = vunpack.c.l.b16 %v5567
        %v6615 = vunpack.c.h.b16 %v5567
        %v6616 = vunpack.c.l.b16 %v5568
        %v6617 = vunpack.c.h.b16 %v5568
        %v6618 = vunpack.c.l.b16 %v5569
        %v6619 = vunpack.c.l.b16 %v5570
        %v6620 = vunpack.c.h.b16 %v5570
        %v6621 = vunpack.c.l.b16 %v5571
        %v6622 = vunpack.c.h.b16 %v5571
        %v6623 = vunpack.c.l.b16 %v5572
        %v6624 = vunpack.c.h.b16 %v5572
        %v6625 = vunpack.c.l.b16 %v5573
        %v6626 = vunpack.c.h.b16 %v5573
        %v6627 = vunpack.c.l.b16 %v5574
        %v6628 = vunpack.c.h.b16 %v5574
        %v6629 = vunpack.c.l.b16 %v5575
        %v6630 = vunpack.c.h.b16 %v5575
        %v6631 = vunpack.c.l.b16 %v5576
        %v6632 = vunpack.c.h.b16 %v5576
        %v6633 = vunpack.c.l.b16 %v5577
        %v6634 = vunpack.c.h.b16 %v5577
        %v6635 = vunpack.c.l.b16 %v5578
        %v6636 = vunpack.c.h.b16 %v5578
        %v6637 = vunpack.c.l.b16 %v5579
        %v6638 = vunpack.c.h.b16 %v5579
        %v6639 = vunpack.c.l.b16 %v5580
        %v6640 = vunpack.c.h.b16 %v5580
        %v6641 = vunpack.c.l.b16 %v5581
        %v6642 = vunpack.c.h.b16 %v5581
        %v6643 = vunpack.c.l.b16 %v5582
        %v6644 = vunpack.c.l.b16 %v5583
        %v6645 = vunpack.c.h.b16 %v5583
        %v6646 = vunpack.c.l.b16 %v5584
        %v6647 = vunpack.c.h.b16 %v5584
        %v6648 = vunpack.c.l.b16 %v5585
        %v6649 = vunpack.c.h.b16 %v5585
        %v6650 = vunpack.c.l.b16 %v5586
        %v6651 = vunpack.c.h.b16 %v5586
        %v6652 = vunpack.c.l.b16 %v5587
        %v6653 = vunpack.c.h.b16 %v5587
        %v6654 = vunpack.c.l.b16 %v5588
        %v6655 = vunpack.c.h.b16 %v5588
        %v6656 = vunpack.c.l.b16 %v5589
        %v6657 = vunpack.c.h.b16 %v5589
        %v6658 = vunpack.c.l.b16 %v5590
        %v6659 = vunpack.c.h.b16 %v5590
        %v6660 = vunpack.c.l.b16 %v5591
        %v6661 = vunpack.c.h.b16 %v5591
        %v6662 = vunpack.c.l.b16 %v5592
        %v6663 = vunpack.c.h.b16 %v5592
        %v6664 = vunpack.c.l.b16 %v5593
        %v6665 = vunpack.c.h.b16 %v5593
        %v6666 = vunpack.c.l.b16 %v5594
        %v6667 = vunpack.c.h.b16 %v5594
        %v6668 = vunpack.c.l.b16 %v5595
        %v6669 = vunpack.c.l.b16 %v5596
        %v6670 = vunpack.c.h.b16 %v5596
        %v6671 = vunpack.c.l.b16 %v5597
        %v6672 = vunpack.c.h.b16 %v5597
        %v6673 = vunpack.c.l.b16 %v5598
        %v6674 = vunpack.c.h.b16 %v5598
        %v6675 = vunpack.c.l.b16 %v5599
        %v6676 = vunpack.c.h.b16 %v5599
        %v6677 = vunpack.c.l.b16 %v5600
        %v6678 = vunpack.c.h.b16 %v5600
        %v6679 = vunpack.c.l.b16 %v5601
        %v6680 = vunpack.c.h.b16 %v5601
        %v6681 = vunpack.c.l.b16 %v5602
        %v6682 = vunpack.c.h.b16 %v5602
        %v6683 = vunpack.c.l.b16 %v5603
        %v6684 = vunpack.c.h.b16 %v5603
        %v6685 = vunpack.c.l.b16 %v5604
        %v6686 = vunpack.c.h.b16 %v5604
        %v6687 = vunpack.c.l.b16 %v5605
        %v6688 = vunpack.c.h.b16 %v5605
        %v6689 = vunpack.c.l.b16 %v5606
        %v6690 = vunpack.c.h.b16 %v5606
        %v6691 = vunpack.c.l.b16 %v5607
        %v6692 = vunpack.c.h.b16 %v5607
        %v6693 = vunpack.c.l.b16 %v5608
        %v6694 = vunpack.c.l.b16 %v5609
        %v6695 = vunpack.c.h.b16 %v5609
        %v6696 = vunpack.c.l.b16 %v5610
        %v6697 = vunpack.c.h.b16 %v5610
        %v6698 = vunpack.c.l.b16 %v5611
        %v6699 = vunpack.c.h.b16 %v5611
        %v6700 = vunpack.c.l.b16 %v5612
        %v6701 = vunpack.c.h.b16 %v5612
        %v6702 = vunpack.c.l.b16 %v5613
        %v6703 = vunpack.c.h.b16 %v5613
        %v6704 = vunpack.c.l.b16 %v5614
        %v6705 = vunpack.c.h.b16 %v5614
        %v6706 = vunpack.c.l.b16 %v5615
        %v6707 = vunpack.c.h.b16 %v5615
        %v6708 = vunpack.c.l.b16 %v5616
        %v6709 = vunpack.c.h.b16 %v5616
        %v6710 = vunpack.c.l.b16 %v5617
        %v6711 = vunpack.c.h.b16 %v5617
        %v6712 = vunpack.c.l.b16 %v5618
        %v6713 = vunpack.c.h.b16 %v5618
        %v6714 = vunpack.c.l.b16 %v5619
        %v6715 = vunpack.c.h.b16 %v5619
        %v6716 = vunpack.c.l.b16 %v5620
        %v6717 = vunpack.c.h.b16 %v5620
        %v6718 = vunpack.c.l.b16 %v5621
        %v6719 = vunpack.c.l.b16 %v5622
        %v6720 = vunpack.c.h.b16 %v5622
        %v6721 = vunpack.c.l.b16 %v5623
        %v6722 = vunpack.c.h.b16 %v5623
        %v6723 = vunpack.c.l.b16 %v5624
        %v6724 = vunpack.c.h.b16 %v5624
        %v6725 = vunpack.c.l.b16 %v5625
        %v6726 = vunpack.c.h.b16 %v5625
        %v6727 = vunpack.c.l.b16 %v5626
        %v6728 = vunpack.c.h.b16 %v5626
        %v6729 = vunpack.c.l.b16 %v5627
        %v6730 = vunpack.c.h.b16 %v5627
        %v6731 = vunpack.c.l.b16 %v5628
        %v6732 = vunpack.c.h.b16 %v5628
        %v6733 = vunpack.c.l.b16 %v5629
        %v6734 = vunpack.c.h.b16 %v5629
        %v6735 = vunpack.c.l.b16 %v5630
        %v6736 = vunpack.c.h.b16 %v5630
        %v6737 = vunpack.c.l.b16 %v5631
        %v6738 = vunpack.c.h.b16 %v5631
        %v6739 = vunpack.c.l.b16 %v5632
        %v6740 = vunpack.c.h.b16 %v5632
        %v6741 = vunpack.c.l.b16 %v5633
        %v6742 = vunpack.c.h.b16 %v5633
        %v6743 = vunpack.c.l.b16 %v5634
        %v6744 = vunpack.c.l.b16 %v5635
        %v6745 = vunpack.c.h.b16 %v5635
        %v6746 = vunpack.c.l.b16 %v5636
        %v6747 = vunpack.c.h.b16 %v5636
        %v6748 = vunpack.c.l.b16 %v5637
        %v6749 = vunpack.c.h.b16 %v5637
        %v6750 = vunpack.c.l.b16 %v5638
        %v6751 = vunpack.c.h.b16 %v5638
        %v6752 = vunpack.c.l.b16 %v5639
        %v6753 = vunpack.c.h.b16 %v5639
        %v6754 = vunpack.c.l.b16 %v5640
        %v6755 = vunpack.c.h.b16 %v5640
        %v6756 = vunpack.c.l.b16 %v5641
        %v6757 = vunpack.c.h.b16 %v5641
        %v6758 = vunpack.c.l.b16 %v5642
        %v6759 = vunpack.c.h.b16 %v5642
        %v6760 = vunpack.c.l.b16 %v5643
        %v6761 = vunpack.c.h.b16 %v5643
        %v6762 = vunpack.c.l.b16 %v5644
        %v6763 = vunpack.c.h.b16 %v5644
        %v6764 = vunpack.c.l.b16 %v5645
        %v6765 = vunpack.c.h.b16 %v5645
        %v6766 = vunpack.c.l.b16 %v5646
        %v6767 = vunpack.c.h.b16 %v5646
        %v6768 = vunpack.c.l.b16 %v5647
        %v6769 = vunpack.c.l.b16 %v5648
        %v6770 = vunpack.c.h.b16 %v5648
        %v6771 = vunpack.c.l.b16 %v5649
        %v6772 = vunpack.c.h.b16 %v5649
        %v6773 = vunpack.c.l.b16 %v5650
        %v6774 = vunpack.c.h.b16 %v5650
        %v6775 = vunpack.c.l.b16 %v5651
        %v6776 = vunpack.c.h.b16 %v5651
        %v6777 = vunpack.c.l.b16 %v5652
        %v6778 = vunpack.c.h.b16 %v5652
        %v6779 = vunpack.c.l.b16 %v5653
        %v6780 = vunpack.c.h.b16 %v5653
        %v6781 = vunpack.c.l.b16 %v5654
        %v6782 = vunpack.c.h.b16 %v5654
        %v6783 = vunpack.c.l.b16 %v5655
        %v6784 = vunpack.c.h.b16 %v5655
        %v6785 = vunpack.c.l.b16 %v5656
        %v6786 = vunpack.c.h.b16 %v5656
        %v6787 = vunpack.c.l.b16 %v5657
        %v6788 = vunpack.c.h.b16 %v5657
        %v6789 = vunpack.c.l.b16 %v5658
        %v6790 = vunpack.c.h.b16 %v5658
        %v6791 = vunpack.c.l.b16 %v5659
        %v6792 = vunpack.c.h.b16 %v5659
        %v6793 = vunpack.c.l.b16 %v5660
        %v6794 = vunpack.c.l.b16 %v5661
        %v6795 = vunpack.c.h.b16 %v5661
        %v6796 = vunpack.c.l.b16 %v5662
        %v6797 = vunpack.c.h.b16 %v5662
        %v6798 = vunpack.c.l.b16 %v5663
        %v6799 = vunpack.c.h.b16 %v5663
        %v6800 = vunpack.c.l.b16 %v5664
        %v6801 = vunpack.c.h.b16 %v5664
        %v6802 = vunpack.c.l.b16 %v5665
        %v6803 = vunpack.c.h.b16 %v5665
        %v6804 = vunpack.c.l.b16 %v5666
        %v6805 = vunpack.c.h.b16 %v5666
        %v6806 = vunpack.c.l.b16 %v5667
        %v6807 = vunpack.c.h.b16 %v5667
        %v6808 = vunpack.c.l.b16 %v5668
        %v6809 = vunpack.c.h.b16 %v5668
        %v6810 = vunpack.c.l.b16 %v5669
        %v6811 = vunpack.c.h.b16 %v5669
        %v6812 = vunpack.c.l.b16 %v5670
        %v6813 = vunpack.c.h.b16 %v5670
        %v6814 = vunpack.c.l.b16 %v5671
        %v6815 = vunpack.c.h.b16 %v5671
        %v6816 = vunpack.c.l.b16 %v5672
        %v6817 = vunpack.c.h.b16 %v5672
        %v6818 = vunpack.c.l.b16 %v5673
        %v6819 = vunpack.c.l.b16 %v5674
        %v6820 = vunpack.c.h.b16 %v5674
        %v6821 = vunpack.c.l.b16 %v5675
        %v6822 = vunpack.c.h.b16 %v5675
        %v6823 = vunpack.c.l.b16 %v5676
        %v6824 = vunpack.c.h.b16 %v5676
        %v6825 = vunpack.c.l.b16 %v5677
        %v6826 = vunpack.c.h.b16 %v5677
        %v6827 = vunpack.c.l.b16 %v5678
        %v6828 = vunpack.c.h.b16 %v5678
        %v6829 = vunpack.c.l.b16 %v5679
        %v6830 = vunpack.c.h.b16 %v5679
        %v6831 = vunpack.c.l.b16 %v5680
        %v6832 = vunpack.c.h.b16 %v5680
        %v6833 = vunpack.c.l.b16 %v5681
        %v6834 = vunpack.c.h.b16 %v5681
        %v6835 = vunpack.c.l.b16 %v5682
        %v6836 = vunpack.c.h.b16 %v5682
        %v6837 = vunpack.c.l.b16 %v5683
        %v6838 = vunpack.c.h.b16 %v5683
        %v6839 = vunpack.c.l.b16 %v5684
        %v6840 = vunpack.c.h.b16 %v5684
        %v6841 = vunpack.c.l.b16 %v5685
        %v6842 = vunpack.c.h.b16 %v5685
        %v6843 = vunpack.c.l.b16 %v5686
        %v6844 = vunpack.c.l.b16 %v5687
        %v6845 = vunpack.c.h.b16 %v5687
        %v6846 = vunpack.c.l.b16 %v5688
        %v6847 = vunpack.c.h.b16 %v5688
        %v6848 = vunpack.c.l.b16 %v5689
        %v6849 = vunpack.c.h.b16 %v5689
        %v6850 = vunpack.c.l.b16 %v5690
        %v6851 = vunpack.c.h.b16 %v5690
        %v6852 = vunpack.c.l.b16 %v5691
        %v6853 = vunpack.c.h.b16 %v5691
        %v6854 = vunpack.c.l.b16 %v5692
        %v6855 = vunpack.c.h.b16 %v5692
        %v6856 = vunpack.c.l.b16 %v5693
        %v6857 = vunpack.c.h.b16 %v5693
        %v6858 = vunpack.c.l.b16 %v5694
        %v6859 = vunpack.c.h.b16 %v5694
        %v6860 = vunpack.c.l.b16 %v5695
        %v6861 = vunpack.c.h.b16 %v5695
        %v6862 = vunpack.c.l.b16 %v5696
        %v6863 = vunpack.c.h.b16 %v5696
        %v6864 = vunpack.c.l.b16 %v5697
        %v6865 = vunpack.c.h.b16 %v5697
        %v6866 = vunpack.c.l.b16 %v5698
        %v6867 = vunpack.c.h.b16 %v5698
        %v6868 = vunpack.c.l.b16 %v5699
        %v6869 = vunpack.c.l.b16 %v5700
        %v6870 = vunpack.c.h.b16 %v5700
        %v6871 = vunpack.c.l.b16 %v5701
        %v6872 = vunpack.c.h.b16 %v5701
        %v6873 = vunpack.c.l.b16 %v5702
        %v6874 = vunpack.c.h.b16 %v5702
        %v6875 = vunpack.c.l.b16 %v5703
        %v6876 = vunpack.c.h.b16 %v5703
        %v6877 = vunpack.c.l.b16 %v5704
        %v6878 = vunpack.c.h.b16 %v5704
        %v6879 = vunpack.c.l.b16 %v5705
        %v6880 = vunpack.c.h.b16 %v5705
        %v6881 = vunpack.c.l.b16 %v5706
        %v6882 = vunpack.c.h.b16 %v5706
        %v6883 = vunpack.c.l.b16 %v5707
        %v6884 = vunpack.c.h.b16 %v5707
        %v6885 = vunpack.c.l.b16 %v5708
        %v6886 = vunpack.c.h.b16 %v5708
        %v6887 = vunpack.c.l.b16 %v5709
        %v6888 = vunpack.c.h.b16 %v5709
        %v6889 = vunpack.c.l.b16 %v5710
        %v6890 = vunpack.c.h.b16 %v5710
        %v6891 = vunpack.c.l.b16 %v5711
        %v6892 = vunpack.c.h.b16 %v5711
        %v6893 = vunpack.c.l.b16 %v5712
        %v6894 = vunpack.c.l.b16 %v5713
        %v6895 = vunpack.c.h.b16 %v5713
        %v6896 = vunpack.c.l.b16 %v5714
        %v6897 = vunpack.c.h.b16 %v5714
        %v6898 = vunpack.c.l.b16 %v5715
        %v6899 = vunpack.c.h.b16 %v5715
        %v6900 = vunpack.c.l.b16 %v5716
        %v6901 = vunpack.c.h.b16 %v5716
        %v6902 = vunpack.c.l.b16 %v5717
        %v6903 = vunpack.c.h.b16 %v5717
        %v6904 = vunpack.c.l.b16 %v5718
        %v6905 = vunpack.c.h.b16 %v5718
        %v6906 = vunpack.c.l.b16 %v5719
        %v6907 = vunpack.c.h.b16 %v5719
        %v6908 = vunpack.c.l.b16 %v5720
        %v6909 = vunpack.c.h.b16 %v5720
        %v6910 = vunpack.c.l.b16 %v5721
        %v6911 = vunpack.c.h.b16 %v5721
        %v6912 = vunpack.c.l.b16 %v5722
        %v6913 = vunpack.c.h.b16 %v5722
        %v6914 = vunpack.c.l.b16 %v5723
        %v6915 = vunpack.c.h.b16 %v5723
        %v6916 = vunpack.c.l.b16 %v5724
        %v6917 = vunpack.c.h.b16 %v5724
        %v6918 = vunpack.c.l.b16 %v5725
        %v6919 = vunpack.c.l.b16 %v5726
        %v6920 = vunpack.c.h.b16 %v5726
        %v6921 = vunpack.c.l.b16 %v5727
        %v6922 = vunpack.c.h.b16 %v5727
        %v6923 = vunpack.c.l.b16 %v5728
        %v6924 = vunpack.c.h.b16 %v5728
        %v6925 = vunpack.c.l.b16 %v5729
        %v6926 = vunpack.c.h.b16 %v5729
        %v6927 = vunpack.c.l.b16 %v5730
        %v6928 = vunpack.c.h.b16 %v5730
        %v6929 = vunpack.c.l.b16 %v5731
        %v6930 = vunpack.c.h.b16 %v5731
        %v6931 = vunpack.c.l.b16 %v5732
        %v6932 = vunpack.c.h.b16 %v5732
        %v6933 = vunpack.c.l.b16 %v5733
        %v6934 = vunpack.c.h.b16 %v5733
        %v6935 = vunpack.c.l.b16 %v5734
        %v6936 = vunpack.c.h.b16 %v5734
        %v6937 = vunpack.c.l.b16 %v5735
        %v6938 = vunpack.c.h.b16 %v5735
        %v6939 = vunpack.c.l.b16 %v5736
        %v6940 = vunpack.c.h.b16 %v5736
        %v6941 = vunpack.c.l.b16 %v5737
        %v6942 = vunpack.c.h.b16 %v5737
        %v6943 = vunpack.c.l.b16 %v5738
        %v6944 = vunpack.c.l.b16 %v5739
        %v6945 = vunpack.c.h.b16 %v5739
        %v6946 = vunpack.c.l.b16 %v5740
        %v6947 = vunpack.c.h.b16 %v5740
        %v6948 = vunpack.c.l.b16 %v5741
        %v6949 = vunpack.c.h.b16 %v5741
        %v6950 = vunpack.c.l.b16 %v5742
        %v6951 = vunpack.c.h.b16 %v5742
        %v6952 = vunpack.c.l.b16 %v5743
        %v6953 = vunpack.c.h.b16 %v5743
        %v6954 = vunpack.c.l.b16 %v5744
        %v6955 = vunpack.c.h.b16 %v5744
        %v6956 = vunpack.c.l.b16 %v5745
        %v6957 = vunpack.c.h.b16 %v5745
        %v6958 = vunpack.c.l.b16 %v5746
        %v6959 = vunpack.c.h.b16 %v5746
        %v6960 = vunpack.c.l.b16 %v5747
        %v6961 = vunpack.c.h.b16 %v5747
        %v6962 = vunpack.c.l.b16 %v5748
        %v6963 = vunpack.c.h.b16 %v5748
        %v6964 = vunpack.c.l.b16 %v5749
        %v6965 = vunpack.c.h.b16 %v5749
        %v6966 = vunpack.c.l.b16 %v5750
        %v6967 = vunpack.c.h.b16 %v5750
        %v6968 = vunpack.c.l.b16 %v5751
        %v6969 = vunpack.c.l.b16 %v5752
        %v6970 = vunpack.c.h.b16 %v5752
        %v6971 = vunpack.c.l.b16 %v5753
        %v6972 = vunpack.c.h.b16 %v5753
        %v6973 = vunpack.c.l.b16 %v5754
        %v6974 = vunpack.c.h.b16 %v5754
        %v6975 = vunpack.c.l.b16 %v5755
        %v6976 = vunpack.c.h.b16 %v5755
        %v6977 = vunpack.c.l.b16 %v5756
        %v6978 = vunpack.c.h.b16 %v5756
        %v6979 = vunpack.c.l.b16 %v5757
        %v6980 = vunpack.c.h.b16 %v5757
        %v6981 = vunpack.c.l.b16 %v5758
        %v6982 = vunpack.c.h.b16 %v5758
        %v6983 = vunpack.c.l.b16 %v5759
        %v6984 = vunpack.c.h.b16 %v5759
        %v6985 = vunpack.c.l.b16 %v5760
        %v6986 = vunpack.c.h.b16 %v5760
        %v6987 = vunpack.c.l.b16 %v5761
        %v6988 = vunpack.c.h.b16 %v5761
        %v6989 = vunpack.c.l.b16 %v5762
        %v6990 = vunpack.c.h.b16 %v5762
        %v6991 = vunpack.c.l.b16 %v5763
        %v6992 = vunpack.c.h.b16 %v5763
        %v6993 = vunpack.c.l.b16 %v5764
        %v6994 = vunpack.c.l.b16 %v5765
        %v6995 = vunpack.c.h.b16 %v5765
        %v6996 = vunpack.c.l.b16 %v5766
        %v6997 = vunpack.c.h.b16 %v5766
        %v6998 = vunpack.c.l.b16 %v5767
        %v6999 = vunpack.c.h.b16 %v5767
        %v7000 = vunpack.c.l.b16 %v5768
        %v7001 = vunpack.c.h.b16 %v5768
        %v7002 = vunpack.c.l.b16 %v5769
        %v7003 = vunpack.c.h.b16 %v5769
        %v7004 = vunpack.c.l.b16 %v5770
        %v7005 = vunpack.c.h.b16 %v5770
        %v7006 = vunpack.c.l.b16 %v5771
        %v7007 = vunpack.c.h.b16 %v5771
        %v7008 = vunpack.c.l.b16 %v5772
        %v7009 = vunpack.c.h.b16 %v5772
        %v7010 = vunpack.c.l.b16 %v5773
        %v7011 = vunpack.c.h.b16 %v5773
        %v7012 = vunpack.c.l.b16 %v5774
        %v7013 = vunpack.c.h.b16 %v5774
        %v7014 = vunpack.c.l.b16 %v5775
        %v7015 = vunpack.c.h.b16 %v5775
        %v7016 = vunpack.c.l.b16 %v5776
        %v7017 = vunpack.c.h.b16 %v5776
        %v7018 = vunpack.c.l.b16 %v5777
        %v7019 = vunpack.c.l.b16 %v5778
        %v7020 = vunpack.c.h.b16 %v5778
        %v7021 = vunpack.c.l.b16 %v5779
        %v7022 = vunpack.c.h.b16 %v5779
        %v7023 = vunpack.c.l.b16 %v5780
        %v7024 = vunpack.c.h.b16 %v5780
        %v7025 = vunpack.c.l.b16 %v5781
        %v7026 = vunpack.c.h.b16 %v5781
        %v7027 = vunpack.c.l.b16 %v5782
        %v7028 = vunpack.c.h.b16 %v5782
        %v7029 = vunpack.c.l.b16 %v5783
        %v7030 = vunpack.c.h.b16 %v5783
        %v7031 = vunpack.c.l.b16 %v5784
        %v7032 = vunpack.c.h.b16 %v5784
        %v7033 = vunpack.c.l.b16 %v5785
        %v7034 = vunpack.c.h.b16 %v5785
        %v7035 = vunpack.c.l.b16 %v5786
        %v7036 = vunpack.c.h.b16 %v5786
        %v7037 = vunpack.c.l.b16 %v5787
        %v7038 = vunpack.c.h.b16 %v5787
        %v7039 = vunpack.c.l.b16 %v5788
        %v7040 = vunpack.c.h.b16 %v5788
        %v7041 = vunpack.c.l.b16 %v5789
        %v7042 = vunpack.c.h.b16 %v5789
        %v7043 = vunpack.c.l.b16 %v5790
        %v7044 = vunpack.c.l.b16 %v5791
        %v7045 = vunpack.c.h.b16 %v5791
        %v7046 = vunpack.c.l.b16 %v5792
        %v7047 = vunpack.c.h.b16 %v5792
        %v7048 = vunpack.c.l.b16 %v5793
        %v7049 = vunpack.c.h.b16 %v5793
        %v7050 = vunpack.c.l.b16 %v5794
        %v7051 = vunpack.c.h.b16 %v5794
        %v7052 = vunpack.c.l.b16 %v5795
        %v7053 = vunpack.c.h.b16 %v5795
        %v7054 = vunpack.c.l.b16 %v5796
        %v7055 = vunpack.c.h.b16 %v5796
        %v7056 = vunpack.c.l.b16 %v5797
        %v7057 = vunpack.c.h.b16 %v5797
        %v7058 = vunpack.c.l.b16 %v5798
        %v7059 = vunpack.c.h.b16 %v5798
        %v7060 = vunpack.c.l.b16 %v5799
        %v7061 = vunpack.c.h.b16 %v5799
        %v7062 = vunpack.c.l.b16 %v5800
        %v7063 = vunpack.c.h.b16 %v5800
        %v7064 = vunpack.c.l.b16 %v5801
        %v7065 = vunpack.c.h.b16 %v5801
        %v7066 = vunpack.c.l.b16 %v5802
        %v7067 = vunpack.c.h.b16 %v5802
        %v7068 = vunpack.c.l.b16 %v5803
        %v7069 = vunpack.c.l.b16 %v5804
        %v7070 = vunpack.c.h.b16 %v5804
        %v7071 = vunpack.c.l.b16 %v5805
        %v7072 = vunpack.c.h.b16 %v5805
        %v7073 = vunpack.c.l.b16 %v5806
        %v7074 = vunpack.c.h.b16 %v5806
        %v7075 = vunpack.c.l.b16 %v5807
        %v7076 = vunpack.c.h.b16 %v5807
        %v7077 = vunpack.c.l.b16 %v5808
        %v7078 = vunpack.c.h.b16 %v5808
        %v7079 = vunpack.c.l.b16 %v5809
        %v7080 = vunpack.c.h.b16 %v5809
        %v7081 = vunpack.c.l.b16 %v5810
        %v7082 = vunpack.c.h.b16 %v5810
        %v7083 = vunpack.c.l.b16 %v5811
        %v7084 = vunpack.c.h.b16 %v5811
        %v7085 = vunpack.c.l.b16 %v5812
        %v7086 = vunpack.c.h.b16 %v5812
        %v7087 = vunpack.c.l.b16 %v5813
        %v7088 = vunpack.c.h.b16 %v5813
        %v7089 = vunpack.c.l.b16 %v5814
        %v7090 = vunpack.c.h.b16 %v5814
        %v7091 = vunpack.c.l.b16 %v5815
        %v7092 = vunpack.c.h.b16 %v5815
        %v7093 = vunpack.c.l.b16 %v5816
        %v7094 = vunpack.c.l.b16 %v5817
        %v7095 = vunpack.c.h.b16 %v5817
        %v7096 = vunpack.c.l.b16 %v5818
        %v7097 = vunpack.c.h.b16 %v5818
        %v7098 = vunpack.c.l.b16 %v5819
        %v7099 = vunpack.c.h.b16 %v5819
        %v7100 = vunpack.c.l.b16 %v5820
        %v7101 = vunpack.c.h.b16 %v5820
        %v7102 = vunpack.c.l.b16 %v5821
        %v7103 = vunpack.c.h.b16 %v5821
        %v7104 = vunpack.c.l.b16 %v5822
        %v7105 = vunpack.c.h.b16 %v5822
        %v7106 = vunpack.c.l.b16 %v5823
        %v7107 = vunpack.c.h.b16 %v5823
        %v7108 = vunpack.c.l.b16 %v5824
        %v7109 = vunpack.c.h.b16 %v5824
        %v7110 = vunpack.c.l.b16 %v5825
        %v7111 = vunpack.c.h.b16 %v5825
        %v7112 = vunpack.c.l.b16 %v5826
        %v7113 = vunpack.c.h.b16 %v5826
        %v7114 = vunpack.c.l.b16 %v5827
        %v7115 = vunpack.c.h.b16 %v5827
        %v7116 = vunpack.c.l.b16 %v5828
        %v7117 = vunpack.c.h.b16 %v5828
        %v7118 = vunpack.c.l.b16 %v5829
        %v7119 = vunpack.c.l.b16 %v5830
        %v7120 = vunpack.c.h.b16 %v5830
        %v7121 = vunpack.c.l.b16 %v5831
        %v7122 = vunpack.c.h.b16 %v5831
        %v7123 = vunpack.c.l.b16 %v5832
        %v7124 = vunpack.c.h.b16 %v5832
        %v7125 = vunpack.c.l.b16 %v5833
        %v7126 = vunpack.c.h.b16 %v5833
        %v7127 = vunpack.c.l.b16 %v5834
        %v7128 = vunpack.c.h.b16 %v5834
        %v7129 = vunpack.c.l.b16 %v5835
        %v7130 = vunpack.c.h.b16 %v5835
        %v7131 = vunpack.c.l.b16 %v5836
        %v7132 = vunpack.c.h.b16 %v5836
        %v7133 = vunpack.c.l.b16 %v5837
        %v7134 = vunpack.c.h.b16 %v5837
        %v7135 = vunpack.c.l.b16 %v5838
        %v7136 = vunpack.c.h.b16 %v5838
        %v7137 = vunpack.c.l.b16 %v5839
        %v7138 = vunpack.c.h.b16 %v5839
        %v7139 = vunpack.c.l.b16 %v5840
        %v7140 = vunpack.c.h.b16 %v5840
        %v7141 = vunpack.c.l.b16 %v5841
        %v7142 = vunpack.c.h.b16 %v5841
        %v7143 = vunpack.c.l.b16 %v5842
        %v7144 = vunpack.c.l.b16 %v5843
        %v7145 = vunpack.c.h.b16 %v5843
        %v7146 = vunpack.c.l.b16 %v5844
        %v7147 = vunpack.c.h.b16 %v5844
        %v7148 = vunpack.c.l.b16 %v5845
        %v7149 = vunpack.c.h.b16 %v5845
        %v7150 = vunpack.c.l.b16 %v5846
        %v7151 = vunpack.c.h.b16 %v5846
        %v7152 = vunpack.c.l.b16 %v5847
        %v7153 = vunpack.c.h.b16 %v5847
        %v7154 = vunpack.c.l.b16 %v5848
        %v7155 = vunpack.c.h.b16 %v5848
        %v7156 = vunpack.c.l.b16 %v5849
        %v7157 = vunpack.c.h.b16 %v5849
        %v7158 = vunpack.c.l.b16 %v5850
        %v7159 = vunpack.c.h.b16 %v5850
        %v7160 = vunpack.c.l.b16 %v5851
        %v7161 = vunpack.c.h.b16 %v5851
        %v7162 = vunpack.c.l.b16 %v5852
        %v7163 = vunpack.c.h.b16 %v5852
        %v7164 = vunpack.c.l.b16 %v5853
        %v7165 = vunpack.c.h.b16 %v5853
        %v7166 = vunpack.c.l.b16 %v5854
        %v7167 = vunpack.c.h.b16 %v5854
        %v7168 = vunpack.c.l.b16 %v5855
        %v7169 = vunpack.c.l.b16 %v5856
        %v7170 = vunpack.c.h.b16 %v5856
        %v7171 = vunpack.c.l.b16 %v5857
        %v7172 = vunpack.c.h.b16 %v5857
        %v7173 = vunpack.c.l.b16 %v5858
        %v7174 = vunpack.c.h.b16 %v5858
        %v7175 = vunpack.c.l.b16 %v5859
        %v7176 = vunpack.c.h.b16 %v5859
        %v7177 = vunpack.c.l.b16 %v5860
        %v7178 = vunpack.c.h.b16 %v5860
        %v7179 = vunpack.c.l.b16 %v5861
        %v7180 = vunpack.c.h.b16 %v5861
        %v7181 = vunpack.c.l.b16 %v5862
        %v7182 = vunpack.c.h.b16 %v5862
        %v7183 = vunpack.c.l.b16 %v5863
        %v7184 = vunpack.c.h.b16 %v5863
        %v7185 = vunpack.c.l.b16 %v5864
        %v7186 = vunpack.c.h.b16 %v5864
        %v7187 = vunpack.c.l.b16 %v5865
        %v7188 = vunpack.c.h.b16 %v5865
        %v7189 = vunpack.c.l.b16 %v5866
        %v7190 = vunpack.c.h.b16 %v5866
        %v7191 = vunpack.c.l.b16 %v5867
        %v7192 = vunpack.c.h.b16 %v5867
        %v7193 = vunpack.c.l.b16 %v5868
        %v7194 = vunpack.c.l.b16 %v5869
        %v7195 = vunpack.c.h.b16 %v5869
        %v7196 = vunpack.c.l.b16 %v5870
        %v7197 = vunpack.c.h.b16 %v5870
        %v7198 = vunpack.c.l.b16 %v5871
        %v7199 = vunpack.c.h.b16 %v5871
        %v7200 = vunpack.c.l.b16 %v5872
        %v7201 = vunpack.c.h.b16 %v5872
        %v7202 = vunpack.c.l.b16 %v5873
        %v7203 = vunpack.c.h.b16 %v5873
        %v7204 = vunpack.c.l.b16 %v5874
        %v7205 = vunpack.c.h.b16 %v5874
        %v7206 = vunpack.c.l.b16 %v5875
        %v7207 = vunpack.c.h.b16 %v5875
        %v7208 = vunpack.c.l.b16 %v5876
        %v7209 = vunpack.c.h.b16 %v5876
        %v7210 = vunpack.c.l.b16 %v5877
        %v7211 = vunpack.c.h.b16 %v5877
        %v7212 = vunpack.c.l.b16 %v5878
        %v7213 = vunpack.c.h.b16 %v5878
        %v7214 = vunpack.c.l.b16 %v5879
        %v7215 = vunpack.c.h.b16 %v5879
        %v7216 = vunpack.c.l.b16 %v5880
        %v7217 = vunpack.c.h.b16 %v5880
        %v7218 = vunpack.c.l.b16 %v5881
        %v7219 = vunpack.c.l.b16 %v5882
        %v7220 = vunpack.c.h.b16 %v5882
        %v7221 = vunpack.c.l.b16 %v5883
        %v7222 = vunpack.c.h.b16 %v5883
        %v7223 = vunpack.c.l.b16 %v5884
        %v7224 = vunpack.c.h.b16 %v5884
        %v7225 = vunpack.c.l.b16 %v5885
        %v7226 = vunpack.c.h.b16 %v5885
        %v7227 = vunpack.c.l.b16 %v5886
        %v7228 = vunpack.c.h.b16 %v5886
        %v7229 = vunpack.c.l.b16 %v5887
        %v7230 = vunpack.c.h.b16 %v5887
        %v7231 = vunpack.c.l.b16 %v5888
        %v7232 = vunpack.c.h.b16 %v5888
        %v7233 = vunpack.c.l.b16 %v5889
        %v7234 = vunpack.c.h.b16 %v5889
        %v7235 = vunpack.c.l.b16 %v5890
        %v7236 = vunpack.c.h.b16 %v5890
        %v7237 = vunpack.c.l.b16 %v5891
        %v7238 = vunpack.c.h.b16 %v5891
        %v7239 = vunpack.c.l.b16 %v5892
        %v7240 = vunpack.c.h.b16 %v5892
        %v7241 = vunpack.c.l.b16 %v5893
        %v7242 = vunpack.c.h.b16 %v5893
        %v7243 = vunpack.c.l.b16 %v5894
        %v7244 = vpack.c.b16 %v6469, %v6444
        %v7245 = vpack.c.b16 %v6470, %v6445
        %v7246 = vpack.c.b16 %v6471, %v6446
        %v7247 = vpack.c.b16 %v6472, %v6447
        %v7248 = vpack.c.b16 %v6473, %v6448
        %v7249 = vpack.c.b16 %v6474, %v6449
        %v7250 = vpack.c.b16 %v6475, %v6450
        %v7251 = vpack.c.b16 %v6476, %v6451
        %v7252 = vpack.c.b16 %v6477, %v6452
        %v7253 = vpack.c.b16 %v6478, %v6453
        %v7254 = vpack.c.b16 %v6479, %v6454
        %v7255 = vpack.c.b16 %v6480, %v6455
        %v7256 = vpack.c.b16 %v6481, %v6456
        %v7257 = vpack.c.b16 %v6482, %v6457
        %v7258 = vpack.c.b16 %v6483, %v6458
        %v7259 = vpack.c.b16 %v6484, %v6459
        %v7260 = vpack.c.b16 %v6485, %v6460
        %v7261 = vpack.c.b16 %v6486, %v6461
        %v7262 = vpack.c.b16 %v6487, %v6462
        %v7263 = vpack.c.b16 %v6488, %v6463
        %v7264 = vpack.c.b16 %v6489, %v6464
        %v7265 = vpack.c.b16 %v6490, %v6465
        %v7266 = vpack.c.b16 %v6491, %v6466
        %v7267 = vpack.c.b16 %v6492, %v6467
        %v7268 = vpack.c.b16 %v6493, %v6468
        %v7269 = vpack.c.b16 %v6519, %v6494
        %v7270 = vpack.c.b16 %v6520, %v6495
        %v7271 = vpack.c.b16 %v6521, %v6496
        %v7272 = vpack.c.b16 %v6522, %v6497
        %v7273 = vpack.c.b16 %v6523, %v6498
        %v7274 = vpack.c.b16 %v6524, %v6499
        %v7275 = vpack.c.b16 %v6525, %v6500
        %v7276 = vpack.c.b16 %v6526, %v6501
        %v7277 = vpack.c.b16 %v6527, %v6502
        %v7278 = vpack.c.b16 %v6528, %v6503
        %v7279 = vpack.c.b16 %v6529, %v6504
        %v7280 = vpack.c.b16 %v6530, %v6505
        %v7281 = vpack.c.b16 %v6531, %v6506
        %v7282 = vpack.c.b16 %v6532, %v6507
        %v7283 = vpack.c.b16 %v6533, %v6508
        %v7284 = vpack.c.b16 %v6534, %v6509
        %v7285 = vpack.c.b16 %v6535, %v6510
        %v7286 = vpack.c.b16 %v6536, %v6511
        %v7287 = vpack.c.b16 %v6537, %v6512
        %v7288 = vpack.c.b16 %v6538, %v6513
        %v7289 = vpack.c.b16 %v6539, %v6514
        %v7290 = vpack.c.b16 %v6540, %v6515
        %v7291 = vpack.c.b16 %v6541, %v6516
        %v7292 = vpack.c.b16 %v6542, %v6517
        %v7293 = vpack.c.b16 %v6543, %v6518
        %v7294 = vpack.c.b16 %v6569, %v6544
        %v7295 = vpack.c.b16 %v6570, %v6545
        %v7296 = vpack.c.b16 %v6571, %v6546
        %v7297 = vpack.c.b16 %v6572, %v6547
        %v7298 = vpack.c.b16 %v6573, %v6548
        %v7299 = vpack.c.b16 %v6574, %v6549
        %v7300 = vpack.c.b16 %v6575, %v6550
        %v7301 = vpack.c.b16 %v6576, %v6551
        %v7302 = vpack.c.b16 %v6577, %v6552
        %v7303 = vpack.c.b16 %v6578, %v6553
        %v7304 = vpack.c.b16 %v6579, %v6554
        %v7305 = vpack.c.b16 %v6580, %v6555
        %v7306 = vpack.c.b16 %v6581, %v6556
        %v7307 = vpack.c.b16 %v6582, %v6557
        %v7308 = vpack.c.b16 %v6583, %v6558
        %v7309 = vpack.c.b16 %v6584, %v6559
        %v7310 = vpack.c.b16 %v6585, %v6560
        %v7311 = vpack.c.b16 %v6586, %v6561
        %v7312 = vpack.c.b16 %v6587, %v6562
        %v7313 = vpack.c.b16 %v6588, %v6563
        %v7314 = vpack.c.b16 %v6589, %v6564
        %v7315 = vpack.c.b16 %v6590, %v6565
        %v7316 = vpack.c.b16 %v6591, %v6566
        %v7317 = vpack.c.b16 %v6592, %v6567
        %v7318 = vpack.c.b16 %v6593, %v6568
        %v7319 = vpack.c.b16 %v6619, %v6594
        %v7320 = vpack.c.b16 %v6620, %v6595
        %v7321 = vpack.c.b16 %v6621, %v6596
        %v7322 = vpack.c.b16 %v6622, %v6597
        %v7323 = vpack.c.b16 %v6623, %v6598
        %v7324 = vpack.c.b16 %v6624, %v6599
        %v7325 = vpack.c.b16 %v6625, %v6600
        %v7326 = vpack.c.b16 %v6626, %v6601
        %v7327 = vpack.c.b16 %v6627, %v6602
        %v7328 = vpack.c.b16 %v6628, %v6603
        %v7329 = vpack.c.b16 %v6629, %v6604
        %v7330 = vpack.c.b16 %v6630, %v6605
        %v7331 = vpack.c.b16 %v6631, %v6606
        %v7332 = vpack.c.b16 %v6632, %v6607
        %v7333 = vpack.c.b16 %v6633, %v6608
        %v7334 = vpack.c.b16 %v6634, %v6609
        %v7335 = vpack.c.b16 %v6635, %v6610
        %v7336 = vpack.c.b16 %v6636, %v6611
        %v7337 = vpack.c.b16 %v6637, %v6612
        %v7338 = vpack.c.b16 %v6638, %v6613
        %v7339 = vpack.c.b16 %v6639, %v6614
        %v7340 = vpack.c.b16 %v6640, %v6615
        %v7341 = vpack.c.b16 %v6641, %v6616
        %v7342 = vpack.c.b16 %v6642, %v6617
        %v7343 = vpack.c.b16 %v6643, %v6618
        %v7344 = vpack.c.b16 %v6669, %v6644
        %v7345 = vpack.c.b16 %v6670, %v6645
        %v7346 = vpack.c.b16 %v6671, %v6646
        %v7347 = vpack.c.b16 %v6672, %v6647
        %v7348 = vpack.c.b16 %v6673, %v6648
        %v7349 = vpack.c.b16 %v6674, %v6649
        %v7350 = vpack.c.b16 %v6675, %v6650
        %v7351 = vpack.c.b16 %v6676, %v6651
        %v7352 = vpack.c.b16 %v6677, %v6652
        %v7353 = vpack.c.b16 %v6678, %v6653
        %v7354 = vpack.c.b16 %v6679, %v6654
        %v7355 = vpack.c.b16 %v6680, %v6655
        %v7356 = vpack.c.b16 %v6681, %v6656
        %v7357 = vpack.c.b16 %v6682, %v6657
        %v7358 = vpack.c.b16 %v6683, %v6658
        %v7359 = vpack.c.b16 %v6684, %v6659
        %v7360 = vpack.c.b16 %v6685, %v6660
        %v7361 = vpack.c.b16 %v6686, %v6661
        %v7362 = vpack.c.b16 %v6687, %v6662
        %v7363 = vpack.c.b16 %v6688, %v6663
        %v7364 = vpack.c.b16 %v6689, %v6664
        %v7365 = vpack.c.b16 %v6690, %v6665
        %v7366 = vpack.c.b16 %v6691, %v6666
        %v7367 = vpack.c.b16 %v6692, %v6667
        %v7368 = vpack.c.b16 %v6693, %v6668
        %v7369 = vpack.c.b16 %v6719, %v6694
        %v7370 = vpack.c.b16 %v6720, %v6695
        %v7371 = vpack.c.b16 %v6721, %v6696
        %v7372 = vpack.c.b16 %v6722, %v6697
        %v7373 = vpack.c.b16 %v6723, %v6698
        %v7374 = vpack.c.b16 %v6724, %v6699
        %v7375 = vpack.c.b16 %v6725, %v6700
        %v7376 = vpack.c.b16 %v6726, %v6701
        %v7377 = vpack.c.b16 %v6727, %v6702
        %v7378 = vpack.c.b16 %v6728, %v6703
        %v7379 = vpack.c.b16 %v6729, %v6704
        %v7380 = vpack.c.b16 %v6730, %v6705
        %v7381 = vpack.c.b16 %v6731, %v6706
        %v7382 = vpack.c.b16 %v6732, %v6707
        %v7383 = vpack.c.b16 %v6733, %v6708
        %v7384 = vpack.c.b16 %v6734, %v6709
        %v7385 = vpack.c.b16 %v6735, %v6710
        %v7386 = vpack.c.b16 %v6736, %v6711
        %v7387 = vpack.c.b16 %v6737, %v6712
        %v7388 = vpack.c.b16 %v6738, %v6713
        %v7389 = vpack.c.b16 %v6739, %v6714
        %v7390 = vpack.c.b16 %v6740, %v6715
        %v7391 = vpack.c.b16 %v6741, %v6716
        %v7392 = vpack.c.b16 %v6742, %v6717
        %v7393 = vpack.c.b16 %v6743, %v6718
        %v7394 = vpack.c.b16 %v6769, %v6744
        %v7395 = vpack.c.b16 %v6770, %v6745
        %v7396 = vpack.c.b16 %v6771, %v6746
        %v7397 = vpack.c.b16 %v6772, %v6747
        %v7398 = vpack.c.b16 %v6773, %v6748
        %v7399 = vpack.c.b16 %v6774, %v6749
        %v7400 = vpack.c.b16 %v6775, %v6750
        %v7401 = vpack.c.b16 %v6776, %v6751
        %v7402 = vpack.c.b16 %v6777, %v6752
        %v7403 = vpack.c.b16 %v6778, %v6753
        %v7404 = vpack.c.b16 %v6779, %v6754
        %v7405 = vpack.c.b16 %v6780, %v6755
        %v7406 = vpack.c.b16 %v6781, %v6756
        %v7407 = vpack.c.b16 %v6782, %v6757
        %v7408 = vpack.c.b16 %v6783, %v6758
        %v7409 = vpack.c.b16 %v6784, %v6759
        %v7410 = vpack.c.b16 %v6785, %v6760
        %v7411 = vpack.c.b16 %v6786, %v6761
        %v7412 = vpack.c.b16 %v6787, %v6762
        %v7413 = vpack.c.b16 %v6788, %v6763
        %v7414 = vpack.c.b16 %v6789, %v6764
        %v7415 = vpack.c.b16 %v6790, %v6765
        %v7416 = vpack.c.b16 %v6791, %v6766
        %v7417 = vpack.c.b16 %v6792, %v6767
        %v7418 = vpack.c.b16 %v6793, %v6768
        %v7419 = vpack.c.b16 %v6819, %v6794
        %v7420 = vpack.c.b16 %v6820, %v6795
        %v7421 = vpack.c.b16 %v6821, %v6796
        %v7422 = vpack.c.b16 %v6822, %v6797
        %v7423 = vpack.c.b16 %v6823, %v6798
        %v7424 = vpack.c.b16 %v6824, %v6799
        %v7425 = vpack.c.b16 %v6825, %v6800
        %v7426 = vpack.c.b16 %v6826, %v6801
        %v7427 = vpack.c.b16 %v6827, %v6802
        %v7428 = vpack.c.b16 %v6828, %v6803
        %v7429 = vpack.c.b16 %v6829, %v6804
        %v7430 = vpack.c.b16 %v6830, %v6805
        %v7431 = vpack.c.b16 %v6831, %v6806
        %v7432 = vpack.c.b16 %v6832, %v6807
        %v7433 = vpack.c.b16 %v6833, %v6808
        %v7434 = vpack.c.b16 %v6834, %v6809
        %v7435 = vpack.c.b16 %v6835, %v6810
        %v7436 = vpack.c.b16 %v6836, %v6811
        %v7437 = vpack.c.b16 %v6837, %v6812
        %v7438 = vpack.c.b16 %v6838, %v6813
        %v7439 = vpack.c.b16 %v6839, %v6814
        %v7440 = vpack.c.b16 %v6840, %v6815
        %v7441 = vpack.c.b16 %v6841, %v6816
        %v7442 = vpack.c.b16 %v6842, %v6817
        %v7443 = vpack.c.b16 %v6843, %v6818
        %v7444 = vpack.c.b16 %v6869, %v6844
        %v7445 = vpack.c.b16 %v6870, %v6845
        %v7446 = vpack.c.b16 %v6871, %v6846
        %v7447 = vpack.c.b16 %v6872, %v6847
        %v7448 = vpack.c.b16 %v6873, %v6848
        %v7449 = vpack.c.b16 %v6874, %v6849
        %v7450 = vpack.c.b16 %v6875, %v6850
        %v7451 = vpack.c.b16 %v6876, %v6851
        %v7452 = vpack.c.b16 %v6877, %v6852
        %v7453 = vpack.c.b16 %v6878, %v6853
        %v7454 = vpack.c.b16 %v6879, %v6854
        %v7455 = vpack.c.b16 %v6880, %v6855
        %v7456 = vpack.c.b16 %v6881, %v6856
        %v7457 = vpack.c.b16 %v6882, %v6857
        %v7458 = vpack.c.b16 %v6883, %v6858
        %v7459 = vpack.c.b16 %v6884, %v6859
        %v7460 = vpack.c.b16 %v6885, %v6860
        %v7461 = vpack.c.b16 %v6886, %v6861
        %v7462 = vpack.c.b16 %v6887, %v6862
        %v7463 = vpack.c.b16 %v6888, %v6863
        %v7464 = vpack.c.b16 %v6889, %v6864
        %v7465 = vpack.c.b16 %v6890, %v6865
        %v7466 = vpack.c.b16 %v6891, %v6866
        %v7467 = vpack.c.b16 %v6892, %v6867
        %v7468 = vpack.c.b16 %v6893, %v6868
        %v7469 = vpack.c.b16 %v6919, %v6894
        %v7470 = vpack.c.b16 %v6920, %v6895
        %v7471 = vpack.c.b16 %v6921, %v6896
        %v7472 = vpack.c.b16 %v6922, %v6897
        %v7473 = vpack.c.b16 %v6923, %v6898
        %v7474 = vpack.c.b16 %v6924, %v6899
        %v7475 = vpack.c.b16 %v6925, %v6900
        %v7476 = vpack.c.b16 %v6926, %v6901
        %v7477 = vpack.c.b16 %v6927, %v6902
        %v7478 = vpack.c.b16 %v6928, %v6903
        %v7479 = vpack.c.b16 %v6929, %v6904
        %v7480 = vpack.c.b16 %v6930, %v6905
        %v7481 = vpack.c.b16 %v6931, %v6906
        %v7482 = vpack.c.b16 %v6932, %v6907
        %v7483 = vpack.c.b16 %v6933, %v6908
        %v7484 = vpack.c.b16 %v6934, %v6909
        %v7485 = vpack.c.b16 %v6935, %v6910
        %v7486 = vpack.c.b16 %v6936, %v6911
        %v7487 = vpack.c.b16 %v6937, %v6912
        %v7488 = vpack.c.b16 %v6938, %v6913
        %v7489 = vpack.c.b16 %v6939, %v6914
        %v7490 = vpack.c.b16 %v6940, %v6915
        %v7491 = vpack.c.b16 %v6941, %v6916
        %v7492 = vpack.c.b16 %v6942, %v6917
        %v7493 = vpack.c.b16 %v6943, %v6918
        %v7494 = vpack.c.b16 %v6969, %v6944
        %v7495 = vpack.c.b16 %v6970, %v6945
        %v7496 = vpack.c.b16 %v6971, %v6946
        %v7497 = vpack.c.b16 %v6972, %v6947
        %v7498 = vpack.c.b16 %v6973, %v6948
        %v7499 = vpack.c.b16 %v6974, %v6949
        %v7500 = vpack.c.b16 %v6975, %v6950
        %v7501 = vpack.c.b16 %v6976, %v6951
        %v7502 = vpack.c.b16 %v6977, %v6952
        %v7503 = vpack.c.b16 %v6978, %v6953
        %v7504 = vpack.c.b16 %v6979, %v6954
        %v7505 = vpack.c.b16 %v6980, %v6955
        %v7506 = vpack.c.b16 %v6981, %v6956
        %v7507 = vpack.c.b16 %v6982, %v6957
        %v7508 = vpack.c.b16 %v6983, %v6958
        %v7509 = vpack.c.b16 %v6984, %v6959
        %v7510 = vpack.c.b16 %v6985, %v6960
        %v7511 = vpack.c.b16 %v6986, %v6961
        %v7512 = vpack.c.b16 %v6987, %v6962
        %v7513 = vpack.c.b16 %v6988, %v6963
        %v7514 = vpack.c.b16 %v6989, %v6964
        %v7515 = vpack.c.b16 %v6990, %v6965
        %v7516 = vpack.c.b16 %v6991, %v6966
        %v7517 = vpack.c.b16 %v6992, %v6967
        %v7518 = vpack.c.b16 %v6993, %v6968
        %v7519 = vpack.c.b16 %v7019, %v6994
        %v7520 = vpack.c.b16 %v7020, %v6995
        %v7521 = vpack.c.b16 %v7021, %v6996
        %v7522 = vpack.c.b16 %v7022, %v6997
        %v7523 = vpack.c.b16 %v7023, %v6998
        %v7524 = vpack.c.b16 %v7024, %v6999
        %v7525 = vpack.c.b16 %v7025, %v7000
        %v7526 = vpack.c.b16 %v7026, %v7001
        %v7527 = vpack.c.b16 %v7027, %v7002
        %v7528 = vpack.c.b16 %v7028, %v7003
        %v7529 = vpack.c.b16 %v7029, %v7004
        %v7530 = vpack.c.b16 %v7030, %v7005
        %v7531 = vpack.c.b16 %v7031, %v7006
        %v7532 = vpack.c.b16 %v7032, %v7007
        %v7533 = vpack.c.b16 %v7033, %v7008
        %v7534 = vpack.c.b16 %v7034, %v7009
        %v7535 = vpack.c.b16 %v7035, %v7010
        %v7536 = vpack.c.b16 %v7036, %v7011
        %v7537 = vpack.c.b16 %v7037, %v7012
        %v7538 = vpack.c.b16 %v7038, %v7013
        %v7539 = vpack.c.b16 %v7039, %v7014
        %v7540 = vpack.c.b16 %v7040, %v7015
        %v7541 = vpack.c.b16 %v7041, %v7016
        %v7542 = vpack.c.b16 %v7042, %v7017
        %v7543 = vpack.c.b16 %v7043, %v7018
        %v7544 = vpack.c.b16 %v7069, %v7044
        %v7545 = vpack.c.b16 %v7070, %v7045
        %v7546 = vpack.c.b16 %v7071, %v7046
        %v7547 = vpack.c.b16 %v7072, %v7047
        %v7548 = vpack.c.b16 %v7073, %v7048
        %v7549 = vpack.c.b16 %v7074, %v7049
        %v7550 = vpack.c.b16 %v7075, %v7050
        %v7551 = vpack.c.b16 %v7076, %v7051
        %v7552 = vpack.c.b16 %v7077, %v7052
        %v7553 = vpack.c.b16 %v7078, %v7053
        %v7554 = vpack.c.b16 %v7079, %v7054
        %v7555 = vpack.c.b16 %v7080, %v7055
        %v7556 = vpack.c.b16 %v7081, %v7056
        %v7557 = vpack.c.b16 %v7082, %v7057
        %v7558 = vpack.c.b16 %v7083, %v7058
        %v7559 = vpack.c.b16 %v7084, %v7059
        %v7560 = vpack.c.b16 %v7085, %v7060
        %v7561 = vpack.c.b16 %v7086, %v7061
        %v7562 = vpack.c.b16 %v7087, %v7062
        %v7563 = vpack.c.b16 %v7088, %v7063
        %v7564 = vpack.c.b16 %v7089, %v7064
        %v7565 = vpack.c.b16 %v7090, %v7065
        %v7566 = vpack.c.b16 %v7091, %v7066
        %v7567 = vpack.c.b16 %v7092, %v7067
        %v7568 = vpack.c.b16 %v7093, %v7068
        %v7569 = vpack.c.b16 %v7119, %v7094
        %v7570 = vpack.c.b16 %v7120, %v7095
        %v7571 = vpack.c.b16 %v7121, %v7096
        %v7572 = vpack.c.b16 %v7122, %v7097
        %v7573 = vpack.c.b16 %v7123, %v7098
        %v7574 = vpack.c.b16 %v7124, %v7099
        %v7575 = vpack.c.b16 %v7125, %v7100
        %v7576 = vpack.c.b16 %v7126, %v7101
        %v7577 = vpack.c.b16 %v7127, %v7102
        %v7578 = vpack.c.b16 %v7128, %v7103
        %v7579 = vpack.c.b16 %v7129, %v7104
        %v7580 = vpack.c.b16 %v7130, %v7105
        %v7581 = vpack.c.b16 %v7131, %v7106
        %v7582 = vpack.c.b16 %v7132, %v7107
        %v7583 = vpack.c.b16 %v7133, %v7108
        %v7584 = vpack.c.b16 %v7134, %v7109
        %v7585 = vpack.c.b16 %v7135, %v7110
        %v7586 = vpack.c.b16 %v7136, %v7111
        %v7587 = vpack.c.b16 %v7137, %v7112
        %v7588 = vpack.c.b16 %v7138, %v7113
        %v7589 = vpack.c.b16 %v7139, %v7114
        %v7590 = vpack.c.b16 %v7140, %v7115
        %v7591 = vpack.c.b16 %v7141, %v7116
        %v7592 = vpack.c.b16 %v7142, %v7117
        %v7593 = vpack.c.b16 %v7143, %v7118
        %v7594 = vpack.c.b16 %v7169, %v7144
        %v7595 = vpack.c.b16 %v7170, %v7145
        %v7596 = vpack.c.b16 %v7171, %v7146
        %v7597 = vpack.c.b16 %v7172, %v7147
        %v7598 = vpack.c.b16 %v7173, %v7148
        %v7599 = vpack.c.b16 %v7174, %v7149
        %v7600 = vpack.c.b16 %v7175, %v7150
        %v7601 = vpack.c.b16 %v7176, %v7151
        %v7602 = vpack.c.b16 %v7177, %v7152
        %v7603 = vpack.c.b16 %v7178, %v7153
        %v7604 = vpack.c.b16 %v7179, %v7154
        %v7605 = vpack.c.b16 %v7180, %v7155
        %v7606 = vpack.c.b16 %v7181, %v7156
        %v7607 = vpack.c.b16 %v7182, %v7157
        %v7608 = vpack.c.b16 %v7183, %v7158
        %v7609 = vpack.c.b16 %v7184, %v7159
        %v7610 = vpack.c.b16 %v7185, %v7160
        %v7611 = vpack.c.b16 %v7186, %v7161
        %v7612 = vpack.c.b16 %v7187, %v7162
        %v7613 = vpack.c.b16 %v7188, %v7163
        %v7614 = vpack.c.b16 %v7189, %v7164
        %v7615 = vpack.c.b16 %v7190, %v7165
        %v7616 = vpack.c.b16 %v7191, %v7166
        %v7617 = vpack.c.b16 %v7192, %v7167
        %v7618 = vpack.c.b16 %v7193, %v7168
        %v7619 = vpack.c.b16 %v7219, %v7194
        %v7620 = vpack.c.b16 %v7220, %v7195
        %v7621 = vpack.c.b16 %v7221, %v7196
        %v7622 = vpack.c.b16 %v7222, %v7197
        %v7623 = vpack.c.b16 %v7223, %v7198
        %v7624 = vpack.c.b16 %v7224, %v7199
        %v7625 = vpack.c.b16 %v7225, %v7200
        %v7626 = vpack.c.b16 %v7226, %v7201
        %v7627 = vpack.c.b16 %v7227, %v7202
        %v7628 = vpack.c.b16 %v7228, %v7203
        %v7629 = vpack.c.b16 %v7229, %v7204
        %v7630 = vpack.c.b16 %v7230, %v7205
        %v7631 = vpack.c.b16 %v7231, %v7206
        %v7632 = vpack.c.b16 %v7232, %v7207
        %v7633 = vpack.c.b16 %v7233, %v7208
        %v7634 = vpack.c.b16 %v7234, %v7209
        %v7635 = vpack.c.b16 %v7235, %v7210
        %v7636 = vpack.c.b16 %v7236, %v7211
        %v7637 = vpack.c.b16 %v7237, %v7212
        %v7638 = vpack.c.b16 %v7238, %v7213
        %v7639 = vpack.c.b16 %v7239, %v7214
        %v7640 = vpack.c.b16 %v7240, %v7215
        %v7641 = vpack.c.b16 %v7241, %v7216
        %v7642 = vpack.c.b16 %v7242, %v7217
        %v7643 = vpack.c.b16 %v7243, %v7218
        %8044 = vmatprep.subr.bf16.mxu0 %v7245
        %8045 = vmatpush1.bf16.msra.mxu0 %v7244
        %8046 = vmatprep.subr.bf16.mxu0 %v7270
        %8047 = vmatpush1.bf16.msra.mxu0 %v7269
        %8048 = vmatprep.subr.bf16.mxu0 %v7295
        %8049 = vmatpush1.bf16.msra.mxu0 %v7294
        %8050 = vmatprep.subr.bf16.mxu0 %v7320
        %8051 = vmatpush1.bf16.msra.mxu0 %v7319
        %8052 = vmatprep.subr.bf16.mxu0 %v7345
        %8053 = vmatpush1.bf16.msra.mxu0 %v7344
        %8054 = vmatprep.subr.bf16.mxu0 %v7370
        %8055 = vmatpush1.bf16.msra.mxu0 %v7369
        %8056 = vmatprep.subr.bf16.mxu0 %v7395
        %8057 = vmatpush1.bf16.msra.mxu0 %v7394
        %8058 = vmatprep.subr.bf16.mxu0 %v7420
        %8059 = vmatpush1.bf16.msra.mxu0 %v7419
        %8060 = vmatprep.subr.bf16.mxu0 %v7445
        %8061 = vmatpush1.bf16.msra.mxu0 %v7444
        %8062 = vmatprep.subr.bf16.mxu0 %v7470
        %8063 = vmatpush1.bf16.msra.mxu0 %v7469
        %8064 = vmatprep.subr.bf16.mxu0 %v7495
        %8065 = vmatpush1.bf16.msra.mxu0 %v7494
        %8066 = vmatprep.subr.bf16.mxu0 %v7520
        %8067 = vmatpush1.bf16.msra.mxu0 %v7519
        %8068 = vmatprep.subr.bf16.mxu0 %v7545
        %8069 = vmatpush1.bf16.msra.mxu0 %v7544
        %8070 = vmatprep.subr.bf16.mxu0 %v7570
        %8071 = vmatpush1.bf16.msra.mxu0 %v7569
        %8072 = vmatprep.subr.bf16.mxu0 %v7595
        %8073 = vmatpush1.bf16.msra.mxu0 %v7594
        %8074 = vmatprep.subr.bf16.mxu0 %v7620
        %8075 = vmatpush1.bf16.msra.mxu0 %v7619
        %8076 = vmatprep.mubr.bf16.mxu0 %v5464
        %8077 = vmatmul.mubr.bf16.gmra.mrb[0].mxu0 %v5463
        %v8078 = vpop.f32.mrb[0].mxu0
        %v8079 = vadd.f32 %v5906, %v8078
        %v8080 = vpop.f32.mrb[0].mxu0
        %v8081 = vadd.f32 %v5910, %v8080
        %v8082 = vpop.f32.mrb[0].mxu0
        %v8083 = vadd.f32 %v5906, %v8082
        %v8084 = vpop.f32.mrb[0].mxu0
        %v8085 = vadd.f32 %v5910, %v8084
        %8086 = vmatprep.mubr.bf16.mxu0 %v5466
        %8087 = vmatmul.mubr.bf16.gmra.mrb[0].mxu0 %v5465
        %v8088 = vpop.f32.mrb[0].mxu0
        %v8089 = vadd.f32 %v5906, %v8088
        %v8090 = vpop.f32.mrb[0].mxu0
        %v8091 = vadd.f32 %v5910, %v8090
        %v8092 = vpop.f32.mrb[0].mxu0
        %v8093 = vadd.f32 %v5906, %v8092
        %v8094 = vpop.f32.mrb[0].mxu0
        %v8095 = vadd.f32 %v5910, %v8094
        %8096 = vmatprep.mubr.bf16.mxu0 %v5468
        %8097 = vmatmul.mubr.bf16.gmra.mrb[0].mxu0 %v5467
        %v8098 = vpop.f32.mrb[0].mxu0
        %v8099 = vadd.f32 %v5906, %v8098
        %v8100 = vpop.f32.mrb[0].mxu0
        %v8101 = vadd.f32 %v5910, %v8100
        %v8102 = vpop.f32.mrb[0].mxu0
        %v8103 = vadd.f32 %v5906, %v8102
        %v8104 = vpop.f32.mrb[0].mxu0
        %v8105 = vadd.f32 %v5910, %v8104
        %8106 = vmatprep.mubr.bf16.mxu0 %v5470
        %8107 = vmatmul.mubr.bf16.gmra.mrb[0].mxu0 %v5469
        %v8108 = vpop.f32.mrb[0].mxu0
        %v8109 = vadd.f32 %v5906, %v8108
        %v8110 = vpop.f32.mrb[0].mxu0
        %v8111 = vadd.f32 %v5910, %v8110
        %v8112 = vpop.f32.mrb[0].mxu0
        %v8113 = vadd.f32 %v5906, %v8112
        %v8114 = vpop.f32.mrb[0].mxu0
        %v8115 = vadd.f32 %v5910, %v8114
        %8116 = vmatprep.mubr.bf16.mxu0 %v5472
        %8117 = vmatmul.mubr.bf16.gmra.mrb[0].mxu0 %v5471
        %v8118 = vpop.f32.mrb[0].mxu0
        %v8119 = vadd.f32 %v5906, %v8118
        %v8120 = vpop.f32.mrb[0].mxu0
        %v8121 = vadd.f32 %v5910, %v8120
        %v8122 = vpop.f32.mrb[0].mxu0
        %v8123 = vadd.f32 %v5906, %v8122
        %v8124 = vpop.f32.mrb[0].mxu0
        %v8125 = vadd.f32 %v5910, %v8124
        %8126 = vmatprep.mubr.bf16.mxu0 %v5474
        %8127 = vmatmul.mubr.bf16.gmra.mrb[0].mxu0 %v5473
        %v8128 = vpop.f32.mrb[0].mxu0
        %v8129 = vadd.f32 %v5906, %v8128
        %v8130 = vpop.f32.mrb[0].mxu0
        %v8131 = vadd.f32 %v5910, %v8130
        %v8132 = vpop.f32.mrb[0].mxu0
        %v8133 = vadd.f32 %v5906, %v8132
        %v8134 = vpop.f32.mrb[0].mxu0
        %v8135 = vadd.f32 %v5910, %v8134
        %8136 = vmatprep.mubr.bf16.mxu0 %v5476
        %8137 = vmatmul.mubr.bf16.gmra.mrb[0].mxu0 %v5475
        %v8138 = vpop.f32.mrb[0].mxu0
        %v8139 = vadd.f32 %v5906, %v8138
        %v8140 = vpop.f32.mrb[0].mxu0
        %v8141 = vadd.f32 %v5910, %v8140
        %v8142 = vpop.f32.mrb[0].mxu0
        %v8143 = vadd.f32 %v5906, %v8142
        %v8144 = vpop.f32.mrb[0].mxu0
        %v8145 = vadd.f32 %v5910, %v8144
        %8146 = vmatprep.mubr.bf16.mxu0 %v5478
        %8147 = vmatmul.mubr.bf16.gmra.mrb[0].mxu0 %v5477
        %v8148 = vpop.f32.mrb[0].mxu0
        %v8149 = vadd.f32 %v5906, %v8148
        %v8150 = vpop.f32.mrb[0].mxu0
        %v8151 = vadd.f32 %v5910, %v8150
        %v8152 = vpop.f32.mrb[0].mxu0
        %v8153 = vadd.f32 %v5906, %v8152
        %v8154 = vpop.f32.mrb[0].mxu0
        %v8155 = vadd.f32 %v5910, %v8154
        %8156 = vdwg.mxu0
        %8157 = vmatprep.subr.bf16.mxu0 %v7247
        %8158 = vmatpush1.bf16.msra.mxu0 %v7246
        %8159 = vmatprep.subr.bf16.mxu0 %v7272
        %8160 = vmatpush1.bf16.msra.mxu0 %v7271
        %8161 = vmatprep.subr.bf16.mxu0 %v7297
        %8162 = vmatpush1.bf16.msra.mxu0 %v7296
        %8163 = vmatprep.subr.bf16.mxu0 %v7322
        %8164 = vmatpush1.bf16.msra.mxu0 %v7321
        %8165 = vmatprep.subr.bf16.mxu0 %v7347
        %8166 = vmatpush1.bf16.msra.mxu0 %v7346
        %8167 = vmatprep.subr.bf16.mxu0 %v7372
        %8168 = vmatpush1.bf16.msra.mxu0 %v7371
        %8169 = vmatprep.subr.bf16.mxu0 %v7397
        %8170 = vmatpush1.bf16.msra.mxu0 %v7396
        %8171 = vmatprep.subr.bf16.mxu0 %v7422
        %8172 = vmatpush1.bf16.msra.mxu0 %v7421
        %8173 = vmatprep.subr.bf16.mxu0 %v7447
        %8174 = vmatpush1.bf16.msra.mxu0 %v7446
        %8175 = vmatprep.subr.bf16.mxu0 %v7472
        %8176 = vmatpush1.bf16.msra.mxu0 %v7471
        %8177 = vmatprep.subr.bf16.mxu0 %v7497
        %8178 = vmatpush1.bf16.msra.mxu0 %v7496
        %8179 = vmatprep.subr.bf16.mxu0 %v7522
        %8180 = vmatpush1.bf16.msra.mxu0 %v7521
        %8181 = vmatprep.subr.bf16.mxu0 %v7547
        %8182 = vmatpush1.bf16.msra.mxu0 %v7546
        %8183 = vmatprep.subr.bf16.mxu0 %v7572
        %8184 = vmatpush1.bf16.msra.mxu0 %v7571
        %8185 = vmatprep.subr.bf16.mxu0 %v7597
        %8186 = vmatpush1.bf16.msra.mxu0 %v7596
        %8187 = vmatprep.subr.bf16.mxu0 %v7622
        %8188 = vmatpush1.bf16.msra.mxu0 %v7621
        %8189 = vmatprep.mubr.bf16.mxu0 %v5464
        %8190 = vmatmul.mubr.bf16.gmra.mrb[0].mxu0 %v5463
        %v8191 = vpop.f32.mrb[0].mxu0
        %v8192 = vadd.f32 %v5914, %v8191
        %v8193 = vpop.f32.mrb[0].mxu0
        %v8194 = vadd.f32 %v5918, %v8193
        %v8195 = vpop.f32.mrb[0].mxu0
        %v8196 = vadd.f32 %v5914, %v8195
        %v8197 = vpop.f32.mrb[0].mxu0
        %v8198 = vadd.f32 %v5918, %v8197
        %8199 = vmatprep.mubr.bf16.mxu0 %v5466
        %8200 = vmatmul.mubr.bf16.gmra.mrb[0].mxu0 %v5465
        %v8201 = vpop.f32.mrb[0].mxu0
        %v8202 = vadd.f32 %v5914, %v8201
        %v8203 = vpop.f32.mrb[0].mxu0
        %v8204 = vadd.f32 %v5918, %v8203
        %v8205 = vpop.f32.mrb[0].mxu0
        %v8206 = vadd.f32 %v5914, %v8205
        %v8207 = vpop.f32.mrb[0].mxu0
        %v8208 = vadd.f32 %v5918, %v8207
        %8209 = vmatprep.mubr.bf16.mxu0 %v5468
        %8210 = vmatmul.mubr.bf16.gmra.mrb[0].mxu0 %v5467
        %v8211 = vpop.f32.mrb[0].mxu0
        %v8212 = vadd.f32 %v5914, %v8211
        %v8213 = vpop.f32.mrb[0].mxu0
        %v8214 = vadd.f32 %v5918, %v8213
        %v8215 = vpop.f32.mrb[0].mxu0
        %v8216 = vadd.f32 %v5914, %v8215
        %v8217 = vpop.f32.mrb[0].mxu0
        %v8218 = vadd.f32 %v5918, %v8217
        %8219 = vmatprep.mubr.bf16.mxu0 %v5470
        %8220 = vmatmul.mubr.bf16.gmra.mrb[0].mxu0 %v5469
        %v8221 = vpop.f32.mrb[0].mxu0
        %v8222 = vadd.f32 %v5914, %v8221
        %v8223 = vpop.f32.mrb[0].mxu0
        %v8224 = vadd.f32 %v5918, %v8223
        %v8225 = vpop.f32.mrb[0].mxu0
        %v8226 = vadd.f32 %v5914, %v8225
        %v8227 = vpop.f32.mrb[0].mxu0
        %v8228 = vadd.f32 %v5918, %v8227
        %8229 = vmatprep.mubr.bf16.mxu0 %v5472
        %8230 = vmatmul.mubr.bf16.gmra.mrb[0].mxu0 %v5471
        %v8231 = vpop.f32.mrb[0].mxu0
        %v8232 = vadd.f32 %v5914, %v8231
        %v8233 = vpop.f32.mrb[0].mxu0
        %v8234 = vadd.f32 %v5918, %v8233
        %v8235 = vpop.f32.mrb[0].mxu0
        %v8236 = vadd.f32 %v5914, %v8235
        %v8237 = vpop.f32.mrb[0].mxu0
        %v8238 = vadd.f32 %v5918, %v8237
        %8239 = vmatprep.mubr.bf16.mxu0 %v5474
        %8240 = vmatmul.mubr.bf16.gmra.mrb[0].mxu0 %v5473
        %v8241 = vpop.f32.mrb[0].mxu0
        %v8242 = vadd.f32 %v5914, %v8241
        %v8243 = vpop.f32.mrb[0].mxu0
        %v8244 = vadd.f32 %v5918, %v8243
        %v8245 = vpop.f32.mrb[0].mxu0
        %v8246 = vadd.f32 %v5914, %v8245
        %v8247 = vpop.f32.mrb[0].mxu0
        %v8248 = vadd.f32 %v5918, %v8247
        %8249 = vmatprep.mubr.bf16.mxu0 %v5476
        %8250 = vmatmul.mubr.bf16.gmra.mrb[0].mxu0 %v5475
        %v8251 = vpop.f32.mrb[0].mxu0
        %v8252 = vadd.f32 %v5914, %v8251
        %v8253 = vpop.f32.mrb[0].mxu0
        %v8254 = vadd.f32 %v5918, %v8253
        %v8255 = vpop.f32.mrb[0].mxu0
        %v8256 = vadd.f32 %v5914, %v8255
        %v8257 = vpop.f32.mrb[0].mxu0
        %v8258 = vadd.f32 %v5918, %v8257
        %8259 = vmatprep.mubr.bf16.mxu0 %v5478
        %8260 = vmatmul.mubr.bf16.gmra.mrb[0].mxu0 %v5477
        %v8261 = vpop.f32.mrb[0].mxu0
        %v8262 = vadd.f32 %v5914, %v8261
        %v8263 = vpop.f32.mrb[0].mxu0
        %v8264 = vadd.f32 %v5918, %v8263
        %v8265 = vpop.f32.mrb[0].mxu0
        %v8266 = vadd.f32 %v5914, %v8265
        %v8267 = vpop.f32.mrb[0].mxu0
        %v8268 = vadd.f32 %v5918, %v8267
        %8269 = vdwg.mxu0
        %8270 = vmatprep.subr.bf16.mxu0 %v7249
        %8271 = vmatpush1.bf16.msra.mxu0 %v7248
        %8272 = vmatprep.subr.bf16.mxu0 %v7274
        %8273 = vmatpush1.bf16.msra.mxu0 %v7273
        %8274 = vmatprep.subr.bf16.mxu0 %v7299
        %8275 = vmatpush1.bf16.msra.mxu0 %v7298
        %8276 = vmatprep.subr.bf16.mxu0 %v7324
        %8277 = vmatpush1.bf16.msra.mxu0 %v7323
        %8278 = vmatprep.subr.bf16.mxu0 %v7349
        %8279 = vmatpush1.bf16.msra.mxu0 %v7348
        %8280 = vmatprep.subr.bf16.mxu0 %v7374
        %8281 = vmatpush1.bf16.msra.mxu0 %v7373
        %8282 = vmatprep.subr.bf16.mxu0 %v7399
        %8283 = vmatpush1.bf16.msra.mxu0 %v7398
        %8284 = vmatprep.subr.bf16.mxu0 %v7424
        %8285 = vmatpush1.bf16.msra.mxu0 %v7423
        %8286 = vmatprep.subr.bf16.mxu0 %v7449
        %8287 = vmatpush1.bf16.msra.mxu0 %v7448
        %8288 = vmatprep.subr.bf16.mxu0 %v7474
        %8289 = vmatpush1.bf16.msra.mxu0 %v7473
        %8290 = vmatprep.subr.bf16.mxu0 %v7499
        %8291 = vmatpush1.bf16.msra.mxu0 %v7498
        %8292 = vmatprep.subr.bf16.mxu0 %v7524
        %8293 = vmatpush1.bf16.msra.mxu0 %v7523
        %8294 = vmatprep.subr.bf16.mxu0 %v7549
        %8295 = vmatpush1.bf16.msra.mxu0 %v7548
        %8296 = vmatprep.subr.bf16.mxu0 %v7574
        %8297 = vmatpush1.bf16.msra.mxu0 %v7573
        %8298 = vmatprep.subr.bf16.mxu0 %v7599
        %8299 = vmatpush1.bf16.msra.mxu0 %v7598
        %8300 = vmatprep.subr.bf16.mxu0 %v7624
        %8301 = vmatpush1.bf16.msra.mxu0 %v7623
        %8302 = vmatprep.mubr.bf16.mxu0 %v5464
        %8303 = vmatmul.mubr.bf16.gmra.mrb[0].mxu0 %v5463
        %v8304 = vpop.f32.mrb[0].mxu0
        %v8305 = vadd.f32 %v5922, %v8304
        %v8306 = vpop.f32.mrb[0].mxu0
        %v8307 = vadd.f32 %v5926, %v8306
        %v8308 = vpop.f32.mrb[0].mxu0
        %v8309 = vadd.f32 %v5922, %v8308
        %v8310 = vpop.f32.mrb[0].mxu0
        %v8311 = vadd.f32 %v5926, %v8310
        %8312 = vmatprep.mubr.bf16.mxu0 %v5466
        %8313 = vmatmul.mubr.bf16.gmra.mrb[0].mxu0 %v5465
        %v8314 = vpop.f32.mrb[0].mxu0
        %v8315 = vadd.f32 %v5922, %v8314
        %v8316 = vpop.f32.mrb[0].mxu0
        %v8317 = vadd.f32 %v5926, %v8316
        %v8318 = vpop.f32.mrb[0].mxu0
        %v8319 = vadd.f32 %v5922, %v8318
        %v8320 = vpop.f32.mrb[0].mxu0
        %v8321 = vadd.f32 %v5926, %v8320
        %8322 = vmatprep.mubr.bf16.mxu0 %v5468
        %8323 = vmatmul.mubr.bf16.gmra.mrb[0].mxu0 %v5467
        %v8324 = vpop.f32.mrb[0].mxu0
        %v8325 = vadd.f32 %v5922, %v8324
        %v8326 = vpop.f32.mrb[0].mxu0
        %v8327 = vadd.f32 %v5926, %v8326
        %v8328 = vpop.f32.mrb[0].mxu0
        %v8329 = vadd.f32 %v5922, %v8328
        %v8330 = vpop.f32.mrb[0].mxu0
        %v8331 = vadd.f32 %v5926, %v8330
        %8332 = vmatprep.mubr.bf16.mxu0 %v5470
        %8333 = vmatmul.mubr.bf16.gmra.mrb[0].mxu0 %v5469
        %v8334 = vpop.f32.mrb[0].mxu0
        %v8335 = vadd.f32 %v5922, %v8334
        %v8336 = vpop.f32.mrb[0].mxu0
        %v8337 = vadd.f32 %v5926, %v8336
        %v8338 = vpop.f32.mrb[0].mxu0
        %v8339 = vadd.f32 %v5922, %v8338
        %v8340 = vpop.f32.mrb[0].mxu0
        %v8341 = vadd.f32 %v5926, %v8340
        %8342 = vmatprep.mubr.bf16.mxu0 %v5472
        %8343 = vmatmul.mubr.bf16.gmra.mrb[0].mxu0 %v5471
        %v8344 = vpop.f32.mrb[0].mxu0
        %v8345 = vadd.f32 %v5922, %v8344
        %v8346 = vpop.f32.mrb[0].mxu0
        %v8347 = vadd.f32 %v5926, %v8346
        %v8348 = vpop.f32.mrb[0].mxu0
        %v8349 = vadd.f32 %v5922, %v8348
        %v8350 = vpop.f32.mrb[0].mxu0
        %v8351 = vadd.f32 %v5926, %v8350
        %8352 = vmatprep.mubr.bf16.mxu0 %v5474
        %8353 = vmatmul.mubr.bf16.gmra.mrb[0].mxu0 %v5473
        %v8354 = vpop.f32.mrb[0].mxu0
        %v8355 = vadd.f32 %v5922, %v8354
        %v8356 = vpop.f32.mrb[0].mxu0
        %v8357 = vadd.f32 %v5926, %v8356
        %v8358 = vpop.f32.mrb[0].mxu0
        %v8359 = vadd.f32 %v5922, %v8358
        %v8360 = vpop.f32.mrb[0].mxu0
        %v8361 = vadd.f32 %v5926, %v8360
        %8362 = vmatprep.mubr.bf16.mxu0 %v5476
        %8363 = vmatmul.mubr.bf16.gmra.mrb[0].mxu0 %v5475
        %v8364 = vpop.f32.mrb[0].mxu0
        %v8365 = vadd.f32 %v5922, %v8364
        %v8366 = vpop.f32.mrb[0].mxu0
        %v8367 = vadd.f32 %v5926, %v8366
        %v8368 = vpop.f32.mrb[0].mxu0
        %v8369 = vadd.f32 %v5922, %v8368
        %v8370 = vpop.f32.mrb[0].mxu0
        %v8371 = vadd.f32 %v5926, %v8370
        %8372 = vmatprep.mubr.bf16.mxu0 %v5478
        %8373 = vmatmul.mubr.bf16.gmra.mrb[0].mxu0 %v5477
        %v8374 = vpop.f32.mrb[0].mxu0
        %v8375 = vadd.f32 %v5922, %v8374
        %v8376 = vpop.f32.mrb[0].mxu0
        %v8377 = vadd.f32 %v5926, %v8376
        %v8378 = vpop.f32.mrb[0].mxu0
        %v8379 = vadd.f32 %v5922, %v8378
        %v8380 = vpop.f32.mrb[0].mxu0
        %v8381 = vadd.f32 %v5926, %v8380
        %8382 = vdwg.mxu0
        %8383 = vmatprep.subr.bf16.mxu0 %v7251
        %8384 = vmatpush1.bf16.msra.mxu0 %v7250
        %8385 = vmatprep.subr.bf16.mxu0 %v7276
        %8386 = vmatpush1.bf16.msra.mxu0 %v7275
        %8387 = vmatprep.subr.bf16.mxu0 %v7301
        %8388 = vmatpush1.bf16.msra.mxu0 %v7300
        %8389 = vmatprep.subr.bf16.mxu0 %v7326
        %8390 = vmatpush1.bf16.msra.mxu0 %v7325
        %8391 = vmatprep.subr.bf16.mxu0 %v7351
        %8392 = vmatpush1.bf16.msra.mxu0 %v7350
        %8393 = vmatprep.subr.bf16.mxu0 %v7376
        %8394 = vmatpush1.bf16.msra.mxu0 %v7375
        %8395 = vmatprep.subr.bf16.mxu0 %v7401
        %8396 = vmatpush1.bf16.msra.mxu0 %v7400
        %8397 = vmatprep.subr.bf16.mxu0 %v7426
        %8398 = vmatpush1.bf16.msra.mxu0 %v7425
        %8399 = vmatprep.subr.bf16.mxu0 %v7451
        %8400 = vmatpush1.bf16.msra.mxu0 %v7450
        %8401 = vmatprep.subr.bf16.mxu0 %v7476
        %8402 = vmatpush1.bf16.msra.mxu0 %v7475
        %8403 = vmatprep.subr.bf16.mxu0 %v7501
        %8404 = vmatpush1.bf16.msra.mxu0 %v7500
        %8405 = vmatprep.subr.bf16.mxu0 %v7526
        %8406 = vmatpush1.bf16.msra.mxu0 %v7525
        %8407 = vmatprep.subr.bf16.mxu0 %v7551
        %8408 = vmatpush1.bf16.msra.mxu0 %v7550
        %8409 = vmatprep.subr.bf16.mxu0 %v7576
        %8410 = vmatpush1.bf16.msra.mxu0 %v7575
        %8411 = vmatprep.subr.bf16.mxu0 %v7601
        %8412 = vmatpush1.bf16.msra.mxu0 %v7600
        %8413 = vmatprep.subr.bf16.mxu0 %v7626
        %8414 = vmatpush1.bf16.msra.mxu0 %v7625
        %8415 = vmatprep.mubr.bf16.mxu0 %v5464
        %8416 = vmatmul.mubr.bf16.gmra.mrb[0].mxu0 %v5463
        %v8417 = vpop.f32.mrb[0].mxu0
        %v8418 = vadd.f32 %v5930, %v8417
        %v8419 = vpop.f32.mrb[0].mxu0
        %v8420 = vadd.f32 %v5934, %v8419
        %v8421 = vpop.f32.mrb[0].mxu0
        %v8422 = vadd.f32 %v5930, %v8421
        %v8423 = vpop.f32.mrb[0].mxu0
        %v8424 = vadd.f32 %v5934, %v8423
        %8425 = vmatprep.mubr.bf16.mxu0 %v5466
        %8426 = vmatmul.mubr.bf16.gmra.mrb[0].mxu0 %v5465
        %v8427 = vpop.f32.mrb[0].mxu0
        %v8428 = vadd.f32 %v5930, %v8427
        %v8429 = vpop.f32.mrb[0].mxu0
        %v8430 = vadd.f32 %v5934, %v8429
        %v8431 = vpop.f32.mrb[0].mxu0
        %v8432 = vadd.f32 %v5930, %v8431
        %v8433 = vpop.f32.mrb[0].mxu0
        %v8434 = vadd.f32 %v5934, %v8433
        %8435 = vmatprep.mubr.bf16.mxu0 %v5468
        %8436 = vmatmul.mubr.bf16.gmra.mrb[0].mxu0 %v5467
        %v8437 = vpop.f32.mrb[0].mxu0
        %v8438 = vadd.f32 %v5930, %v8437
        %v8439 = vpop.f32.mrb[0].mxu0
        %v8440 = vadd.f32 %v5934, %v8439
        %v8441 = vpop.f32.mrb[0].mxu0
        %v8442 = vadd.f32 %v5930, %v8441
        %v8443 = vpop.f32.mrb[0].mxu0
        %v8444 = vadd.f32 %v5934, %v8443
        %8445 = vmatprep.mubr.bf16.mxu0 %v5470
        %8446 = vmatmul.mubr.bf16.gmra.mrb[0].mxu0 %v5469
        %v8447 = vpop.f32.mrb[0].mxu0
        %v8448 = vadd.f32 %v5930, %v8447
        %v8449 = vpop.f32.mrb[0].mxu0
        %v8450 = vadd.f32 %v5934, %v8449
        %v8451 = vpop.f32.mrb[0].mxu0
        %v8452 = vadd.f32 %v5930, %v8451
        %v8453 = vpop.f32.mrb[0].mxu0
        %v8454 = vadd.f32 %v5934, %v8453
        %8455 = vmatprep.mubr.bf16.mxu0 %v5472
        %8456 = vmatmul.mubr.bf16.gmra.mrb[0].mxu0 %v5471
        %v8457 = vpop.f32.mrb[0].mxu0
        %v8458 = vadd.f32 %v5930, %v8457
        %v8459 = vpop.f32.mrb[0].mxu0
        %v8460 = vadd.f32 %v5934, %v8459
        %v8461 = vpop.f32.mrb[0].mxu0
        %v8462 = vadd.f32 %v5930, %v8461
        %v8463 = vpop.f32.mrb[0].mxu0
        %v8464 = vadd.f32 %v5934, %v8463
        %8465 = vmatprep.mubr.bf16.mxu0 %v5474
        %8466 = vmatmul.mubr.bf16.gmra.mrb[0].mxu0 %v5473
        %v8467 = vpop.f32.mrb[0].mxu0
        %v8468 = vadd.f32 %v5930, %v8467
        %v8469 = vpop.f32.mrb[0].mxu0
        %v8470 = vadd.f32 %v5934, %v8469
        %v8471 = vpop.f32.mrb[0].mxu0
        %v8472 = vadd.f32 %v5930, %v8471
        %v8473 = vpop.f32.mrb[0].mxu0
        %v8474 = vadd.f32 %v5934, %v8473
        %8475 = vmatprep.mubr.bf16.mxu0 %v5476
        %8476 = vmatmul.mubr.bf16.gmra.mrb[0].mxu0 %v5475
        %v8477 = vpop.f32.mrb[0].mxu0
        %v8478 = vadd.f32 %v5930, %v8477
        %v8479 = vpop.f32.mrb[0].mxu0
        %v8480 = vadd.f32 %v5934, %v8479
        %v8481 = vpop.f32.mrb[0].mxu0
        %v8482 = vadd.f32 %v5930, %v8481
        %v8483 = vpop.f32.mrb[0].mxu0
        %v8484 = vadd.f32 %v5934, %v8483
        %8485 = vmatprep.mubr.bf16.mxu0 %v5478
        %8486 = vmatmul.mubr.bf16.gmra.mrb[0].mxu0 %v5477
        %v8487 = vpop.f32.mrb[0].mxu0
        %v8488 = vadd.f32 %v5930, %v8487
        %v8489 = vpop.f32.mrb[0].mxu0
        %v8490 = vadd.f32 %v5934, %v8489
        %v8491 = vpop.f32.mrb[0].mxu0
        %v8492 = vadd.f32 %v5930, %v8491
        %v8493 = vpop.f32.mrb[0].mxu0
        %v8494 = vadd.f32 %v5934, %v8493
        %8495 = vdwg.mxu0
        %8496 = vmatprep.subr.bf16.mxu0 %v7253
        %8497 = vmatpush1.bf16.msra.mxu0 %v7252
        %8498 = vmatprep.subr.bf16.mxu0 %v7278
        %8499 = vmatpush1.bf16.msra.mxu0 %v7277
        %8500 = vmatprep.subr.bf16.mxu0 %v7303
        %8501 = vmatpush1.bf16.msra.mxu0 %v7302
        %8502 = vmatprep.subr.bf16.mxu0 %v7328
        %8503 = vmatpush1.bf16.msra.mxu0 %v7327
        %8504 = vmatprep.subr.bf16.mxu0 %v7353
        %8505 = vmatpush1.bf16.msra.mxu0 %v7352
        %8506 = vmatprep.subr.bf16.mxu0 %v7378
        %8507 = vmatpush1.bf16.msra.mxu0 %v7377
        %8508 = vmatprep.subr.bf16.mxu0 %v7403
        %8509 = vmatpush1.bf16.msra.mxu0 %v7402
        %8510 = vmatprep.subr.bf16.mxu0 %v7428
        %8511 = vmatpush1.bf16.msra.mxu0 %v7427
        %8512 = vmatprep.subr.bf16.mxu0 %v7453
        %8513 = vmatpush1.bf16.msra.mxu0 %v7452
        %8514 = vmatprep.subr.bf16.mxu0 %v7478
        %8515 = vmatpush1.bf16.msra.mxu0 %v7477
        %8516 = vmatprep.subr.bf16.mxu0 %v7503
        %8517 = vmatpush1.bf16.msra.mxu0 %v7502
        %8518 = vmatprep.subr.bf16.mxu0 %v7528
        %8519 = vmatpush1.bf16.msra.mxu0 %v7527
        %8520 = vmatprep.subr.bf16.mxu0 %v7553
        %8521 = vmatpush1.bf16.msra.mxu0 %v7552
        %8522 = vmatprep.subr.bf16.mxu0 %v7578
        %8523 = vmatpush1.bf16.msra.mxu0 %v7577
        %8524 = vmatprep.subr.bf16.mxu0 %v7603
        %8525 = vmatpush1.bf16.msra.mxu0 %v7602
        %8526 = vmatprep.subr.bf16.mxu0 %v7628
        %8527 = vmatpush1.bf16.msra.mxu0 %v7627
        %8528 = vmatprep.mubr.bf16.mxu0 %v5464
        %8529 = vmatmul.mubr.bf16.gmra.mrb[0].mxu0 %v5463
        %v8530 = vpop.f32.mrb[0].mxu0
        %v8531 = vadd.f32 %v5938, %v8530
        %v8532 = vpop.f32.mrb[0].mxu0
        %v8533 = vadd.f32 %v5942, %v8532
        %v8534 = vpop.f32.mrb[0].mxu0
        %v8535 = vadd.f32 %v5938, %v8534
        %v8536 = vpop.f32.mrb[0].mxu0
        %v8537 = vadd.f32 %v5942, %v8536
        %8538 = vmatprep.mubr.bf16.mxu0 %v5466
        %8539 = vmatmul.mubr.bf16.gmra.mrb[0].mxu0 %v5465
        %v8540 = vpop.f32.mrb[0].mxu0
        %v8541 = vadd.f32 %v5938, %v8540
        %v8542 = vpop.f32.mrb[0].mxu0
        %v8543 = vadd.f32 %v5942, %v8542
        %v8544 = vpop.f32.mrb[0].mxu0
        %v8545 = vadd.f32 %v5938, %v8544
        %v8546 = vpop.f32.mrb[0].mxu0
        %v8547 = vadd.f32 %v5942, %v8546
        %8548 = vmatprep.mubr.bf16.mxu0 %v5468
        %8549 = vmatmul.mubr.bf16.gmra.mrb[0].mxu0 %v5467
        %v8550 = vpop.f32.mrb[0].mxu0
        %v8551 = vadd.f32 %v5938, %v8550
        %v8552 = vpop.f32.mrb[0].mxu0
        %v8553 = vadd.f32 %v5942, %v8552
        %v8554 = vpop.f32.mrb[0].mxu0
        %v8555 = vadd.f32 %v5938, %v8554
        %v8556 = vpop.f32.mrb[0].mxu0
        %v8557 = vadd.f32 %v5942, %v8556
        %8558 = vmatprep.mubr.bf16.mxu0 %v5470
        %8559 = vmatmul.mubr.bf16.gmra.mrb[0].mxu0 %v5469
        %v8560 = vpop.f32.mrb[0].mxu0
        %v8561 = vadd.f32 %v5938, %v8560
        %v8562 = vpop.f32.mrb[0].mxu0
        %v8563 = vadd.f32 %v5942, %v8562
        %v8564 = vpop.f32.mrb[0].mxu0
        %v8565 = vadd.f32 %v5938, %v8564
        %v8566 = vpop.f32.mrb[0].mxu0
        %v8567 = vadd.f32 %v5942, %v8566
        %8568 = vmatprep.mubr.bf16.mxu0 %v5472
        %8569 = vmatmul.mubr.bf16.gmra.mrb[0].mxu0 %v5471
        %v8570 = vpop.f32.mrb[0].mxu0
        %v8571 = vadd.f32 %v5938, %v8570
        %v8572 = vpop.f32.mrb[0].mxu0
        %v8573 = vadd.f32 %v5942, %v8572
        %v8574 = vpop.f32.mrb[0].mxu0
        %v8575 = vadd.f32 %v5938, %v8574
        %v8576 = vpop.f32.mrb[0].mxu0
        %v8577 = vadd.f32 %v5942, %v8576
        %8578 = vmatprep.mubr.bf16.mxu0 %v5474
        %8579 = vmatmul.mubr.bf16.gmra.mrb[0].mxu0 %v5473
        %v8580 = vpop.f32.mrb[0].mxu0
        %v8581 = vadd.f32 %v5938, %v8580
        %v8582 = vpop.f32.mrb[0].mxu0
        %v8583 = vadd.f32 %v5942, %v8582
        %v8584 = vpop.f32.mrb[0].mxu0
        %v8585 = vadd.f32 %v5938, %v8584
        %v8586 = vpop.f32.mrb[0].mxu0
        %v8587 = vadd.f32 %v5942, %v8586
        %8588 = vmatprep.mubr.bf16.mxu0 %v5476
        %8589 = vmatmul.mubr.bf16.gmra.mrb[0].mxu0 %v5475
        %v8590 = vpop.f32.mrb[0].mxu0
        %v8591 = vadd.f32 %v5938, %v8590
        %v8592 = vpop.f32.mrb[0].mxu0
        %v8593 = vadd.f32 %v5942, %v8592
        %v8594 = vpop.f32.mrb[0].mxu0
        %v8595 = vadd.f32 %v5938, %v8594
        %v8596 = vpop.f32.mrb[0].mxu0
        %v8597 = vadd.f32 %v5942, %v8596
        %8598 = vmatprep.mubr.bf16.mxu0 %v5478
        %8599 = vmatmul.mubr.bf16.gmra.mrb[0].mxu0 %v5477
        %v8600 = vpop.f32.mrb[0].mxu0
        %v8601 = vadd.f32 %v5938, %v8600
        %v8602 = vpop.f32.mrb[0].mxu0
        %v8603 = vadd.f32 %v5942, %v8602
        %v8604 = vpop.f32.mrb[0].mxu0
        %v8605 = vadd.f32 %v5938, %v8604
        %v8606 = vpop.f32.mrb[0].mxu0
        %v8607 = vadd.f32 %v5942, %v8606
        %8608 = vdwg.mxu0
        %8609 = vmatprep.subr.bf16.mxu0 %v7255
        %8610 = vmatpush1.bf16.msra.mxu0 %v7254
        %8611 = vmatprep.subr.bf16.mxu0 %v7280
        %8612 = vmatpush1.bf16.msra.mxu0 %v7279
        %8613 = vmatprep.subr.bf16.mxu0 %v7305
        %8614 = vmatpush1.bf16.msra.mxu0 %v7304
        %8615 = vmatprep.subr.bf16.mxu0 %v7330
        %8616 = vmatpush1.bf16.msra.mxu0 %v7329
        %8617 = vmatprep.subr.bf16.mxu0 %v7355
        %8618 = vmatpush1.bf16.msra.mxu0 %v7354
        %8619 = vmatprep.subr.bf16.mxu0 %v7380
        %8620 = vmatpush1.bf16.msra.mxu0 %v7379
        %8621 = vmatprep.subr.bf16.mxu0 %v7405
        %8622 = vmatpush1.bf16.msra.mxu0 %v7404
        %8623 = vmatprep.subr.bf16.mxu0 %v7430
        %8624 = vmatpush1.bf16.msra.mxu0 %v7429
        %8625 = vmatprep.subr.bf16.mxu0 %v7455
        %8626 = vmatpush1.bf16.msra.mxu0 %v7454
        %8627 = vmatprep.subr.bf16.mxu0 %v7480
        %8628 = vmatpush1.bf16.msra.mxu0 %v7479
        %8629 = vmatprep.subr.bf16.mxu0 %v7505
        %8630 = vmatpush1.bf16.msra.mxu0 %v7504
        %8631 = vmatprep.subr.bf16.mxu0 %v7530
        %8632 = vmatpush1.bf16.msra.mxu0 %v7529
        %8633 = vmatprep.subr.bf16.mxu0 %v7555
        %8634 = vmatpush1.bf16.msra.mxu0 %v7554
        %8635 = vmatprep.subr.bf16.mxu0 %v7580
        %8636 = vmatpush1.bf16.msra.mxu0 %v7579
        %8637 = vmatprep.subr.bf16.mxu0 %v7605
        %8638 = vmatpush1.bf16.msra.mxu0 %v7604
        %8639 = vmatprep.subr.bf16.mxu0 %v7630
        %8640 = vmatpush1.bf16.msra.mxu0 %v7629
        %8641 = vmatprep.mubr.bf16.mxu0 %v5464
        %8642 = vmatmul.mubr.bf16.gmra.mrb[0].mxu0 %v5463
        %v8643 = vpop.f32.mrb[0].mxu0
        %v8644 = vadd.f32 %v5946, %v8643
        %v8645 = vpop.f32.mrb[0].mxu0
        %v8646 = vadd.f32 %v5950, %v8645
        %v8647 = vpop.f32.mrb[0].mxu0
        %v8648 = vadd.f32 %v5946, %v8647
        %v8649 = vpop.f32.mrb[0].mxu0
        %v8650 = vadd.f32 %v5950, %v8649
        %8651 = vmatprep.mubr.bf16.mxu0 %v5466
        %8652 = vmatmul.mubr.bf16.gmra.mrb[0].mxu0 %v5465
        %v8653 = vpop.f32.mrb[0].mxu0
        %v8654 = vadd.f32 %v5946, %v8653
        %v8655 = vpop.f32.mrb[0].mxu0
        %v8656 = vadd.f32 %v5950, %v8655
        %v8657 = vpop.f32.mrb[0].mxu0
        %v8658 = vadd.f32 %v5946, %v8657
        %v8659 = vpop.f32.mrb[0].mxu0
        %v8660 = vadd.f32 %v5950, %v8659
        %8661 = vmatprep.mubr.bf16.mxu0 %v5468
        %8662 = vmatmul.mubr.bf16.gmra.mrb[0].mxu0 %v5467
        %v8663 = vpop.f32.mrb[0].mxu0
        %v8664 = vadd.f32 %v5946, %v8663
        %v8665 = vpop.f32.mrb[0].mxu0
        %v8666 = vadd.f32 %v5950, %v8665
        %v8667 = vpop.f32.mrb[0].mxu0
        %v8668 = vadd.f32 %v5946, %v8667
        %v8669 = vpop.f32.mrb[0].mxu0
        %v8670 = vadd.f32 %v5950, %v8669
        %8671 = vmatprep.mubr.bf16.mxu0 %v5470
        %8672 = vmatmul.mubr.bf16.gmra.mrb[0].mxu0 %v5469
        %v8673 = vpop.f32.mrb[0].mxu0
        %v8674 = vadd.f32 %v5946, %v8673
        %v8675 = vpop.f32.mrb[0].mxu0
        %v8676 = vadd.f32 %v5950, %v8675
        %v8677 = vpop.f32.mrb[0].mxu0
        %v8678 = vadd.f32 %v5946, %v8677
        %v8679 = vpop.f32.mrb[0].mxu0
        %v8680 = vadd.f32 %v5950, %v8679
        %8681 = vmatprep.mubr.bf16.mxu0 %v5472
        %8682 = vmatmul.mubr.bf16.gmra.mrb[0].mxu0 %v5471
        %v8683 = vpop.f32.mrb[0].mxu0
        %v8684 = vadd.f32 %v5946, %v8683
        %v8685 = vpop.f32.mrb[0].mxu0
        %v8686 = vadd.f32 %v5950, %v8685
        %v8687 = vpop.f32.mrb[0].mxu0
        %v8688 = vadd.f32 %v5946, %v8687
        %v8689 = vpop.f32.mrb[0].mxu0
        %v8690 = vadd.f32 %v5950, %v8689
        %8691 = vmatprep.mubr.bf16.mxu0 %v5474
        %8692 = vmatmul.mubr.bf16.gmra.mrb[0].mxu0 %v5473
        %v8693 = vpop.f32.mrb[0].mxu0
        %v8694 = vadd.f32 %v5946, %v8693
        %v8695 = vpop.f32.mrb[0].mxu0
        %v8696 = vadd.f32 %v5950, %v8695
        %v8697 = vpop.f32.mrb[0].mxu0
        %v8698 = vadd.f32 %v5946, %v8697
        %v8699 = vpop.f32.mrb[0].mxu0
        %v8700 = vadd.f32 %v5950, %v8699
        %8701 = vmatprep.mubr.bf16.mxu0 %v5476
        %8702 = vmatmul.mubr.bf16.gmra.mrb[0].mxu0 %v5475
        %v8703 = vpop.f32.mrb[0].mxu0
        %v8704 = vadd.f32 %v5946, %v8703
        %v8705 = vpop.f32.mrb[0].mxu0
        %v8706 = vadd.f32 %v5950, %v8705
        %v8707 = vpop.f32.mrb[0].mxu0
        %v8708 = vadd.f32 %v5946, %v8707
        %v8709 = vpop.f32.mrb[0].mxu0
        %v8710 = vadd.f32 %v5950, %v8709
        %8711 = vmatprep.mubr.bf16.mxu0 %v5478
        %8712 = vmatmul.mubr.bf16.gmra.mrb[0].mxu0 %v5477
        %v8713 = vpop.f32.mrb[0].mxu0
        %v8714 = vadd.f32 %v5946, %v8713
        %v8715 = vpop.f32.mrb[0].mxu0
        %v8716 = vadd.f32 %v5950, %v8715
        %v8717 = vpop.f32.mrb[0].mxu0
        %v8718 = vadd.f32 %v5946, %v8717
        %v8719 = vpop.f32.mrb[0].mxu0
        %v8720 = vadd.f32 %v5950, %v8719
        %8721 = vdwg.mxu0
        %8722 = vmatprep.subr.bf16.mxu0 %v7257
        %8723 = vmatpush1.bf16.msra.mxu0 %v7256
        %8724 = vmatprep.subr.bf16.mxu0 %v7282
        %8725 = vmatpush1.bf16.msra.mxu0 %v7281
        %8726 = vmatprep.subr.bf16.mxu0 %v7307
        %8727 = vmatpush1.bf16.msra.mxu0 %v7306
        %8728 = vmatprep.subr.bf16.mxu0 %v7332
        %8729 = vmatpush1.bf16.msra.mxu0 %v7331
        %8730 = vmatprep.subr.bf16.mxu0 %v7357
        %8731 = vmatpush1.bf16.msra.mxu0 %v7356
        %8732 = vmatprep.subr.bf16.mxu0 %v7382
        %8733 = vmatpush1.bf16.msra.mxu0 %v7381
        %8734 = vmatprep.subr.bf16.mxu0 %v7407
        %8735 = vmatpush1.bf16.msra.mxu0 %v7406
        %8736 = vmatprep.subr.bf16.mxu0 %v7432
        %8737 = vmatpush1.bf16.msra.mxu0 %v7431
        %8738 = vmatprep.subr.bf16.mxu0 %v7457
        %8739 = vmatpush1.bf16.msra.mxu0 %v7456
        %8740 = vmatprep.subr.bf16.mxu0 %v7482
        %8741 = vmatpush1.bf16.msra.mxu0 %v7481
        %8742 = vmatprep.subr.bf16.mxu0 %v7507
        %8743 = vmatpush1.bf16.msra.mxu0 %v7506
        %8744 = vmatprep.subr.bf16.mxu0 %v7532
        %8745 = vmatpush1.bf16.msra.mxu0 %v7531
        %8746 = vmatprep.subr.bf16.mxu0 %v7557
        %8747 = vmatpush1.bf16.msra.mxu0 %v7556
        %8748 = vmatprep.subr.bf16.mxu0 %v7582
        %8749 = vmatpush1.bf16.msra.mxu0 %v7581
        %8750 = vmatprep.subr.bf16.mxu0 %v7607
        %8751 = vmatpush1.bf16.msra.mxu0 %v7606
        %8752 = vmatprep.subr.bf16.mxu0 %v7632
        %8753 = vmatpush1.bf16.msra.mxu0 %v7631
        %8754 = vmatprep.mubr.bf16.mxu0 %v5464
        %8755 = vmatmul.mubr.bf16.gmra.mrb[0].mxu0 %v5463
        %v8756 = vpop.f32.mrb[0].mxu0
        %v8757 = vadd.f32 %v5954, %v8756
        %v8758 = vpop.f32.mrb[0].mxu0
        %v8759 = vadd.f32 %v5958, %v8758
        %v8760 = vpop.f32.mrb[0].mxu0
        %v8761 = vadd.f32 %v5954, %v8760
        %v8762 = vpop.f32.mrb[0].mxu0
        %v8763 = vadd.f32 %v5958, %v8762
        %8764 = vmatprep.mubr.bf16.mxu0 %v5466
        %8765 = vmatmul.mubr.bf16.gmra.mrb[0].mxu0 %v5465
        %v8766 = vpop.f32.mrb[0].mxu0
        %v8767 = vadd.f32 %v5954, %v8766
        %v8768 = vpop.f32.mrb[0].mxu0
        %v8769 = vadd.f32 %v5958, %v8768
        %v8770 = vpop.f32.mrb[0].mxu0
        %v8771 = vadd.f32 %v5954, %v8770
        %v8772 = vpop.f32.mrb[0].mxu0
        %v8773 = vadd.f32 %v5958, %v8772
        %8774 = vmatprep.mubr.bf16.mxu0 %v5468
        %8775 = vmatmul.mubr.bf16.gmra.mrb[0].mxu0 %v5467
        %v8776 = vpop.f32.mrb[0].mxu0
        %v8777 = vadd.f32 %v5954, %v8776
        %v8778 = vpop.f32.mrb[0].mxu0
        %v8779 = vadd.f32 %v5958, %v8778
        %v8780 = vpop.f32.mrb[0].mxu0
        %v8781 = vadd.f32 %v5954, %v8780
        %v8782 = vpop.f32.mrb[0].mxu0
        %v8783 = vadd.f32 %v5958, %v8782
        %8784 = vmatprep.mubr.bf16.mxu0 %v5470
        %8785 = vmatmul.mubr.bf16.gmra.mrb[0].mxu0 %v5469
        %v8786 = vpop.f32.mrb[0].mxu0
        %v8787 = vadd.f32 %v5954, %v8786
        %v8788 = vpop.f32.mrb[0].mxu0
        %v8789 = vadd.f32 %v5958, %v8788
        %v8790 = vpop.f32.mrb[0].mxu0
        %v8791 = vadd.f32 %v5954, %v8790
        %v8792 = vpop.f32.mrb[0].mxu0
        %v8793 = vadd.f32 %v5958, %v8792
        %8794 = vmatprep.mubr.bf16.mxu0 %v5472
        %8795 = vmatmul.mubr.bf16.gmra.mrb[0].mxu0 %v5471
        %v8796 = vpop.f32.mrb[0].mxu0
        %v8797 = vadd.f32 %v5954, %v8796
        %v8798 = vpop.f32.mrb[0].mxu0
        %v8799 = vadd.f32 %v5958, %v8798
        %v8800 = vpop.f32.mrb[0].mxu0
        %v8801 = vadd.f32 %v5954, %v8800
        %v8802 = vpop.f32.mrb[0].mxu0
        %v8803 = vadd.f32 %v5958, %v8802
        %8804 = vmatprep.mubr.bf16.mxu0 %v5474
        %8805 = vmatmul.mubr.bf16.gmra.mrb[0].mxu0 %v5473
        %v8806 = vpop.f32.mrb[0].mxu0
        %v8807 = vadd.f32 %v5954, %v8806
        %v8808 = vpop.f32.mrb[0].mxu0
        %v8809 = vadd.f32 %v5958, %v8808
        %v8810 = vpop.f32.mrb[0].mxu0
        %v8811 = vadd.f32 %v5954, %v8810
        %v8812 = vpop.f32.mrb[0].mxu0
        %v8813 = vadd.f32 %v5958, %v8812
        %8814 = vmatprep.mubr.bf16.mxu0 %v5476
        %8815 = vmatmul.mubr.bf16.gmra.mrb[0].mxu0 %v5475
        %v8816 = vpop.f32.mrb[0].mxu0
        %v8817 = vadd.f32 %v5954, %v8816
        %v8818 = vpop.f32.mrb[0].mxu0
        %v8819 = vadd.f32 %v5958, %v8818
        %v8820 = vpop.f32.mrb[0].mxu0
        %v8821 = vadd.f32 %v5954, %v8820
        %v8822 = vpop.f32.mrb[0].mxu0
        %v8823 = vadd.f32 %v5958, %v8822
        %8824 = vmatprep.mubr.bf16.mxu0 %v5478
        %8825 = vmatmul.mubr.bf16.gmra.mrb[0].mxu0 %v5477
        %v8826 = vpop.f32.mrb[0].mxu0
        %v8827 = vadd.f32 %v5954, %v8826
        %v8828 = vpop.f32.mrb[0].mxu0
        %v8829 = vadd.f32 %v5958, %v8828
        %v8830 = vpop.f32.mrb[0].mxu0
        %v8831 = vadd.f32 %v5954, %v8830
        %v8832 = vpop.f32.mrb[0].mxu0
        %v8833 = vadd.f32 %v5958, %v8832
        %8834 = vdwg.mxu0
        %8835 = vmatprep.subr.bf16.mxu0 %v7259
        %8836 = vmatpush1.bf16.msra.mxu0 %v7258
        %8837 = vmatprep.subr.bf16.mxu0 %v7284
        %8838 = vmatpush1.bf16.msra.mxu0 %v7283
        %8839 = vmatprep.subr.bf16.mxu0 %v7309
        %8840 = vmatpush1.bf16.msra.mxu0 %v7308
        %8841 = vmatprep.subr.bf16.mxu0 %v7334
        %8842 = vmatpush1.bf16.msra.mxu0 %v7333
        %8843 = vmatprep.subr.bf16.mxu0 %v7359
        %8844 = vmatpush1.bf16.msra.mxu0 %v7358
        %8845 = vmatprep.subr.bf16.mxu0 %v7384
        %8846 = vmatpush1.bf16.msra.mxu0 %v7383
        %8847 = vmatprep.subr.bf16.mxu0 %v7409
        %8848 = vmatpush1.bf16.msra.mxu0 %v7408
        %8849 = vmatprep.subr.bf16.mxu0 %v7434
        %8850 = vmatpush1.bf16.msra.mxu0 %v7433
        %8851 = vmatprep.subr.bf16.mxu0 %v7459
        %8852 = vmatpush1.bf16.msra.mxu0 %v7458
        %8853 = vmatprep.subr.bf16.mxu0 %v7484
        %8854 = vmatpush1.bf16.msra.mxu0 %v7483
        %8855 = vmatprep.subr.bf16.mxu0 %v7509
        %8856 = vmatpush1.bf16.msra.mxu0 %v7508
        %8857 = vmatprep.subr.bf16.mxu0 %v7534
        %8858 = vmatpush1.bf16.msra.mxu0 %v7533
        %8859 = vmatprep.subr.bf16.mxu0 %v7559
        %8860 = vmatpush1.bf16.msra.mxu0 %v7558
        %8861 = vmatprep.subr.bf16.mxu0 %v7584
        %8862 = vmatpush1.bf16.msra.mxu0 %v7583
        %8863 = vmatprep.subr.bf16.mxu0 %v7609
        %8864 = vmatpush1.bf16.msra.mxu0 %v7608
        %8865 = vmatprep.subr.bf16.mxu0 %v7634
        %8866 = vmatpush1.bf16.msra.mxu0 %v7633
        %8867 = vmatprep.mubr.bf16.mxu0 %v5464
        %8868 = vmatmul.mubr.bf16.gmra.mrb[0].mxu0 %v5463
        %v8869 = vpop.f32.mrb[0].mxu0
        %v8870 = vadd.f32 %v5962, %v8869
        %v8871 = vpop.f32.mrb[0].mxu0
        %v8872 = vadd.f32 %v5966, %v8871
        %v8873 = vpop.f32.mrb[0].mxu0
        %v8874 = vadd.f32 %v5962, %v8873
        %v8875 = vpop.f32.mrb[0].mxu0
        %v8876 = vadd.f32 %v5966, %v8875
        %8877 = vmatprep.mubr.bf16.mxu0 %v5466
        %8878 = vmatmul.mubr.bf16.gmra.mrb[0].mxu0 %v5465
        %v8879 = vpop.f32.mrb[0].mxu0
        %v8880 = vadd.f32 %v5962, %v8879
        %v8881 = vpop.f32.mrb[0].mxu0
        %v8882 = vadd.f32 %v5966, %v8881
        %v8883 = vpop.f32.mrb[0].mxu0
        %v8884 = vadd.f32 %v5962, %v8883
        %v8885 = vpop.f32.mrb[0].mxu0
        %v8886 = vadd.f32 %v5966, %v8885
        %8887 = vmatprep.mubr.bf16.mxu0 %v5468
        %8888 = vmatmul.mubr.bf16.gmra.mrb[0].mxu0 %v5467
        %v8889 = vpop.f32.mrb[0].mxu0
        %v8890 = vadd.f32 %v5962, %v8889
        %v8891 = vpop.f32.mrb[0].mxu0
        %v8892 = vadd.f32 %v5966, %v8891
        %v8893 = vpop.f32.mrb[0].mxu0
        %v8894 = vadd.f32 %v5962, %v8893
        %v8895 = vpop.f32.mrb[0].mxu0
        %v8896 = vadd.f32 %v5966, %v8895
        %8897 = vmatprep.mubr.bf16.mxu0 %v5470
        %8898 = vmatmul.mubr.bf16.gmra.mrb[0].mxu0 %v5469
        %v8899 = vpop.f32.mrb[0].mxu0
        %v8900 = vadd.f32 %v5962, %v8899
        %v8901 = vpop.f32.mrb[0].mxu0
        %v8902 = vadd.f32 %v5966, %v8901
        %v8903 = vpop.f32.mrb[0].mxu0
        %v8904 = vadd.f32 %v5962, %v8903
        %v8905 = vpop.f32.mrb[0].mxu0
        %v8906 = vadd.f32 %v5966, %v8905
        %8907 = vmatprep.mubr.bf16.mxu0 %v5472
        %8908 = vmatmul.mubr.bf16.gmra.mrb[0].mxu0 %v5471
        %v8909 = vpop.f32.mrb[0].mxu0
        %v8910 = vadd.f32 %v5962, %v8909
        %v8911 = vpop.f32.mrb[0].mxu0
        %v8912 = vadd.f32 %v5966, %v8911
        %v8913 = vpop.f32.mrb[0].mxu0
        %v8914 = vadd.f32 %v5962, %v8913
        %v8915 = vpop.f32.mrb[0].mxu0
        %v8916 = vadd.f32 %v5966, %v8915
        %8917 = vmatprep.mubr.bf16.mxu0 %v5474
        %8918 = vmatmul.mubr.bf16.gmra.mrb[0].mxu0 %v5473
        %v8919 = vpop.f32.mrb[0].mxu0
        %v8920 = vadd.f32 %v5962, %v8919
        %v8921 = vpop.f32.mrb[0].mxu0
        %v8922 = vadd.f32 %v5966, %v8921
        %v8923 = vpop.f32.mrb[0].mxu0
        %v8924 = vadd.f32 %v5962, %v8923
        %v8925 = vpop.f32.mrb[0].mxu0
        %v8926 = vadd.f32 %v5966, %v8925
        %8927 = vmatprep.mubr.bf16.mxu0 %v5476
        %8928 = vmatmul.mubr.bf16.gmra.mrb[0].mxu0 %v5475
        %v8929 = vpop.f32.mrb[0].mxu0
        %v8930 = vadd.f32 %v5962, %v8929
        %v8931 = vpop.f32.mrb[0].mxu0
        %v8932 = vadd.f32 %v5966, %v8931
        %v8933 = vpop.f32.mrb[0].mxu0
        %v8934 = vadd.f32 %v5962, %v8933
        %v8935 = vpop.f32.mrb[0].mxu0
        %v8936 = vadd.f32 %v5966, %v8935
        %8937 = vmatprep.mubr.bf16.mxu0 %v5478
        %8938 = vmatmul.mubr.bf16.gmra.mrb[0].mxu0 %v5477
        %v8939 = vpop.f32.mrb[0].mxu0
        %v8940 = vadd.f32 %v5962, %v8939
        %v8941 = vpop.f32.mrb[0].mxu0
        %v8942 = vadd.f32 %v5966, %v8941
        %v8943 = vpop.f32.mrb[0].mxu0
        %v8944 = vadd.f32 %v5962, %v8943
        %v8945 = vpop.f32.mrb[0].mxu0
        %v8946 = vadd.f32 %v5966, %v8945
        %8947 = vdwg.mxu0
        %8948 = vmatprep.subr.bf16.mxu0 %v7261
        %8949 = vmatpush1.bf16.msra.mxu0 %v7260
        %8950 = vmatprep.subr.bf16.mxu0 %v7286
        %8951 = vmatpush1.bf16.msra.mxu0 %v7285
        %8952 = vmatprep.subr.bf16.mxu0 %v7311
        %8953 = vmatpush1.bf16.msra.mxu0 %v7310
        %8954 = vmatprep.subr.bf16.mxu0 %v7336
        %8955 = vmatpush1.bf16.msra.mxu0 %v7335
        %8956 = vmatprep.subr.bf16.mxu0 %v7361
        %8957 = vmatpush1.bf16.msra.mxu0 %v7360
        %8958 = vmatprep.subr.bf16.mxu0 %v7386
        %8959 = vmatpush1.bf16.msra.mxu0 %v7385
        %8960 = vmatprep.subr.bf16.mxu0 %v7411
        %8961 = vmatpush1.bf16.msra.mxu0 %v7410
        %8962 = vmatprep.subr.bf16.mxu0 %v7436
        %8963 = vmatpush1.bf16.msra.mxu0 %v7435
        %8964 = vmatprep.subr.bf16.mxu0 %v7461
        %8965 = vmatpush1.bf16.msra.mxu0 %v7460
        %8966 = vmatprep.subr.bf16.mxu0 %v7486
        %8967 = vmatpush1.bf16.msra.mxu0 %v7485
        %8968 = vmatprep.subr.bf16.mxu0 %v7511
        %8969 = vmatpush1.bf16.msra.mxu0 %v7510
        %8970 = vmatprep.subr.bf16.mxu0 %v7536
        %8971 = vmatpush1.bf16.msra.mxu0 %v7535
        %8972 = vmatprep.subr.bf16.mxu0 %v7561
        %8973 = vmatpush1.bf16.msra.mxu0 %v7560
        %8974 = vmatprep.subr.bf16.mxu0 %v7586
        %8975 = vmatpush1.bf16.msra.mxu0 %v7585
        %8976 = vmatprep.subr.bf16.mxu0 %v7611
        %8977 = vmatpush1.bf16.msra.mxu0 %v7610
        %8978 = vmatprep.subr.bf16.mxu0 %v7636
        %8979 = vmatpush1.bf16.msra.mxu0 %v7635
        %8980 = vmatprep.mubr.bf16.mxu0 %v5464
        %8981 = vmatmul.mubr.bf16.gmra.mrb[0].mxu0 %v5463
        %v8982 = vpop.f32.mrb[0].mxu0
        %v8983 = vadd.f32 %v5970, %v8982
        %v8984 = vpop.f32.mrb[0].mxu0
        %v8985 = vadd.f32 %v5974, %v8984
        %v8986 = vpop.f32.mrb[0].mxu0
        %v8987 = vadd.f32 %v5970, %v8986
        %v8988 = vpop.f32.mrb[0].mxu0
        %v8989 = vadd.f32 %v5974, %v8988
        %8990 = vmatprep.mubr.bf16.mxu0 %v5466
        %8991 = vmatmul.mubr.bf16.gmra.mrb[0].mxu0 %v5465
        %v8992 = vpop.f32.mrb[0].mxu0
        %v8993 = vadd.f32 %v5970, %v8992
        %v8994 = vpop.f32.mrb[0].mxu0
        %v8995 = vadd.f32 %v5974, %v8994
        %v8996 = vpop.f32.mrb[0].mxu0
        %v8997 = vadd.f32 %v5970, %v8996
        %v8998 = vpop.f32.mrb[0].mxu0
        %v8999 = vadd.f32 %v5974, %v8998
        %9000 = vmatprep.mubr.bf16.mxu0 %v5468
        %9001 = vmatmul.mubr.bf16.gmra.mrb[0].mxu0 %v5467
        %v9002 = vpop.f32.mrb[0].mxu0
        %v9003 = vadd.f32 %v5970, %v9002
        %v9004 = vpop.f32.mrb[0].mxu0
        %v9005 = vadd.f32 %v5974, %v9004
        %v9006 = vpop.f32.mrb[0].mxu0
        %v9007 = vadd.f32 %v5970, %v9006
        %v9008 = vpop.f32.mrb[0].mxu0
        %v9009 = vadd.f32 %v5974, %v9008
        %9010 = vmatprep.mubr.bf16.mxu0 %v5470
        %9011 = vmatmul.mubr.bf16.gmra.mrb[0].mxu0 %v5469
        %v9012 = vpop.f32.mrb[0].mxu0
        %v9013 = vadd.f32 %v5970, %v9012
        %v9014 = vpop.f32.mrb[0].mxu0
        %v9015 = vadd.f32 %v5974, %v9014
        %v9016 = vpop.f32.mrb[0].mxu0
        %v9017 = vadd.f32 %v5970, %v9016
        %v9018 = vpop.f32.mrb[0].mxu0
        %v9019 = vadd.f32 %v5974, %v9018
        %9020 = vmatprep.mubr.bf16.mxu0 %v5472
        %9021 = vmatmul.mubr.bf16.gmra.mrb[0].mxu0 %v5471
        %v9022 = vpop.f32.mrb[0].mxu0
        %v9023 = vadd.f32 %v5970, %v9022
        %v9024 = vpop.f32.mrb[0].mxu0
        %v9025 = vadd.f32 %v5974, %v9024
        %v9026 = vpop.f32.mrb[0].mxu0
        %v9027 = vadd.f32 %v5970, %v9026
        %v9028 = vpop.f32.mrb[0].mxu0
        %v9029 = vadd.f32 %v5974, %v9028
        %9030 = vmatprep.mubr.bf16.mxu0 %v5474
        %9031 = vmatmul.mubr.bf16.gmra.mrb[0].mxu0 %v5473
        %v9032 = vpop.f32.mrb[0].mxu0
        %v9033 = vadd.f32 %v5970, %v9032
        %v9034 = vpop.f32.mrb[0].mxu0
        %v9035 = vadd.f32 %v5974, %v9034
        %v9036 = vpop.f32.mrb[0].mxu0
        %v9037 = vadd.f32 %v5970, %v9036
        %v9038 = vpop.f32.mrb[0].mxu0
        %v9039 = vadd.f32 %v5974, %v9038
        %9040 = vmatprep.mubr.bf16.mxu0 %v5476
        %9041 = vmatmul.mubr.bf16.gmra.mrb[0].mxu0 %v5475
        %v9042 = vpop.f32.mrb[0].mxu0
        %v9043 = vadd.f32 %v5970, %v9042
        %v9044 = vpop.f32.mrb[0].mxu0
        %v9045 = vadd.f32 %v5974, %v9044
        %v9046 = vpop.f32.mrb[0].mxu0
        %v9047 = vadd.f32 %v5970, %v9046
        %v9048 = vpop.f32.mrb[0].mxu0
        %v9049 = vadd.f32 %v5974, %v9048
        %9050 = vmatprep.mubr.bf16.mxu0 %v5478
        %9051 = vmatmul.mubr.bf16.gmra.mrb[0].mxu0 %v5477
        %v9052 = vpop.f32.mrb[0].mxu0
        %v9053 = vadd.f32 %v5970, %v9052
        %v9054 = vpop.f32.mrb[0].mxu0
        %v9055 = vadd.f32 %v5974, %v9054
        %v9056 = vpop.f32.mrb[0].mxu0
        %v9057 = vadd.f32 %v5970, %v9056
        %v9058 = vpop.f32.mrb[0].mxu0
        %v9059 = vadd.f32 %v5974, %v9058
        %9060 = vdwg.mxu0
        %9061 = vmatprep.subr.bf16.mxu0 %v7263
        %9062 = vmatpush1.bf16.msra.mxu0 %v7262
        %9063 = vmatprep.subr.bf16.mxu0 %v7288
        %9064 = vmatpush1.bf16.msra.mxu0 %v7287
        %9065 = vmatprep.subr.bf16.mxu0 %v7313
        %9066 = vmatpush1.bf16.msra.mxu0 %v7312
        %9067 = vmatprep.subr.bf16.mxu0 %v7338
        %9068 = vmatpush1.bf16.msra.mxu0 %v7337
        %9069 = vmatprep.subr.bf16.mxu0 %v7363
        %9070 = vmatpush1.bf16.msra.mxu0 %v7362
        %9071 = vmatprep.subr.bf16.mxu0 %v7388
        %9072 = vmatpush1.bf16.msra.mxu0 %v7387
        %9073 = vmatprep.subr.bf16.mxu0 %v7413
        %9074 = vmatpush1.bf16.msra.mxu0 %v7412
        %9075 = vmatprep.subr.bf16.mxu0 %v7438
        %9076 = vmatpush1.bf16.msra.mxu0 %v7437
        %9077 = vmatprep.subr.bf16.mxu0 %v7463
        %9078 = vmatpush1.bf16.msra.mxu0 %v7462
        %9079 = vmatprep.subr.bf16.mxu0 %v7488
        %9080 = vmatpush1.bf16.msra.mxu0 %v7487
        %9081 = vmatprep.subr.bf16.mxu0 %v7513
        %9082 = vmatpush1.bf16.msra.mxu0 %v7512
        %9083 = vmatprep.subr.bf16.mxu0 %v7538
        %9084 = vmatpush1.bf16.msra.mxu0 %v7537
        %9085 = vmatprep.subr.bf16.mxu0 %v7563
        %9086 = vmatpush1.bf16.msra.mxu0 %v7562
        %9087 = vmatprep.subr.bf16.mxu0 %v7588
        %9088 = vmatpush1.bf16.msra.mxu0 %v7587
        %9089 = vmatprep.subr.bf16.mxu0 %v7613
        %9090 = vmatpush1.bf16.msra.mxu0 %v7612
        %9091 = vmatprep.subr.bf16.mxu0 %v7638
        %9092 = vmatpush1.bf16.msra.mxu0 %v7637
        %9093 = vmatprep.mubr.bf16.mxu0 %v5464
        %9094 = vmatmul.mubr.bf16.gmra.mrb[0].mxu0 %v5463
        %v9095 = vpop.f32.mrb[0].mxu0
        %v9096 = vadd.f32 %v5978, %v9095
        %v9097 = vpop.f32.mrb[0].mxu0
        %v9098 = vadd.f32 %v5982, %v9097
        %v9099 = vpop.f32.mrb[0].mxu0
        %v9100 = vadd.f32 %v5978, %v9099
        %v9101 = vpop.f32.mrb[0].mxu0
        %v9102 = vadd.f32 %v5982, %v9101
        %9103 = vmatprep.mubr.bf16.mxu0 %v5466
        %9104 = vmatmul.mubr.bf16.gmra.mrb[0].mxu0 %v5465
        %v9105 = vpop.f32.mrb[0].mxu0
        %v9106 = vadd.f32 %v5978, %v9105
        %v9107 = vpop.f32.mrb[0].mxu0
        %v9108 = vadd.f32 %v5982, %v9107
        %v9109 = vpop.f32.mrb[0].mxu0
        %v9110 = vadd.f32 %v5978, %v9109
        %v9111 = vpop.f32.mrb[0].mxu0
        %v9112 = vadd.f32 %v5982, %v9111
        %9113 = vmatprep.mubr.bf16.mxu0 %v5468
        %9114 = vmatmul.mubr.bf16.gmra.mrb[0].mxu0 %v5467
        %v9115 = vpop.f32.mrb[0].mxu0
        %v9116 = vadd.f32 %v5978, %v9115
        %v9117 = vpop.f32.mrb[0].mxu0
        %v9118 = vadd.f32 %v5982, %v9117
        %v9119 = vpop.f32.mrb[0].mxu0
        %v9120 = vadd.f32 %v5978, %v9119
        %v9121 = vpop.f32.mrb[0].mxu0
        %v9122 = vadd.f32 %v5982, %v9121
        %9123 = vmatprep.mubr.bf16.mxu0 %v5470
        %9124 = vmatmul.mubr.bf16.gmra.mrb[0].mxu0 %v5469
        %v9125 = vpop.f32.mrb[0].mxu0
        %v9126 = vadd.f32 %v5978, %v9125
        %v9127 = vpop.f32.mrb[0].mxu0
        %v9128 = vadd.f32 %v5982, %v9127
        %v9129 = vpop.f32.mrb[0].mxu0
        %v9130 = vadd.f32 %v5978, %v9129
        %v9131 = vpop.f32.mrb[0].mxu0
        %v9132 = vadd.f32 %v5982, %v9131
        %9133 = vmatprep.mubr.bf16.mxu0 %v5472
        %9134 = vmatmul.mubr.bf16.gmra.mrb[0].mxu0 %v5471
        %v9135 = vpop.f32.mrb[0].mxu0
        %v9136 = vadd.f32 %v5978, %v9135
        %v9137 = vpop.f32.mrb[0].mxu0
        %v9138 = vadd.f32 %v5982, %v9137
        %v9139 = vpop.f32.mrb[0].mxu0
        %v9140 = vadd.f32 %v5978, %v9139
        %v9141 = vpop.f32.mrb[0].mxu0
        %v9142 = vadd.f32 %v5982, %v9141
        %9143 = vmatprep.mubr.bf16.mxu0 %v5474
        %9144 = vmatmul.mubr.bf16.gmra.mrb[0].mxu0 %v5473
        %v9145 = vpop.f32.mrb[0].mxu0
        %v9146 = vadd.f32 %v5978, %v9145
        %v9147 = vpop.f32.mrb[0].mxu0
        %v9148 = vadd.f32 %v5982, %v9147
        %v9149 = vpop.f32.mrb[0].mxu0
        %v9150 = vadd.f32 %v5978, %v9149
        %v9151 = vpop.f32.mrb[0].mxu0
        %v9152 = vadd.f32 %v5982, %v9151
        %9153 = vmatprep.mubr.bf16.mxu0 %v5476
        %9154 = vmatmul.mubr.bf16.gmra.mrb[0].mxu0 %v5475
        %v9155 = vpop.f32.mrb[0].mxu0
        %v9156 = vadd.f32 %v5978, %v9155
        %v9157 = vpop.f32.mrb[0].mxu0
        %v9158 = vadd.f32 %v5982, %v9157
        %v9159 = vpop.f32.mrb[0].mxu0
        %v9160 = vadd.f32 %v5978, %v9159
        %v9161 = vpop.f32.mrb[0].mxu0
        %v9162 = vadd.f32 %v5982, %v9161
        %9163 = vmatprep.mubr.bf16.mxu0 %v5478
        %9164 = vmatmul.mubr.bf16.gmra.mrb[0].mxu0 %v5477
        %v9165 = vpop.f32.mrb[0].mxu0
        %v9166 = vadd.f32 %v5978, %v9165
        %v9167 = vpop.f32.mrb[0].mxu0
        %v9168 = vadd.f32 %v5982, %v9167
        %v9169 = vpop.f32.mrb[0].mxu0
        %v9170 = vadd.f32 %v5978, %v9169
        %v9171 = vpop.f32.mrb[0].mxu0
        %v9172 = vadd.f32 %v5982, %v9171
        %9173 = vdwg.mxu0
        %9174 = vmatprep.subr.bf16.mxu0 %v7265
        %9175 = vmatpush1.bf16.msra.mxu0 %v7264
        %9176 = vmatprep.subr.bf16.mxu0 %v7290
        %9177 = vmatpush1.bf16.msra.mxu0 %v7289
        %9178 = vmatprep.subr.bf16.mxu0 %v7315
        %9179 = vmatpush1.bf16.msra.mxu0 %v7314
        %9180 = vmatprep.subr.bf16.mxu0 %v7340
        %9181 = vmatpush1.bf16.msra.mxu0 %v7339
        %9182 = vmatprep.subr.bf16.mxu0 %v7365
        %9183 = vmatpush1.bf16.msra.mxu0 %v7364
        %9184 = vmatprep.subr.bf16.mxu0 %v7390
        %9185 = vmatpush1.bf16.msra.mxu0 %v7389
        %9186 = vmatprep.subr.bf16.mxu0 %v7415
        %9187 = vmatpush1.bf16.msra.mxu0 %v7414
        %9188 = vmatprep.subr.bf16.mxu0 %v7440
        %9189 = vmatpush1.bf16.msra.mxu0 %v7439
        %9190 = vmatprep.subr.bf16.mxu0 %v7465
        %9191 = vmatpush1.bf16.msra.mxu0 %v7464
        %9192 = vmatprep.subr.bf16.mxu0 %v7490
        %9193 = vmatpush1.bf16.msra.mxu0 %v7489
        %9194 = vmatprep.subr.bf16.mxu0 %v7515
        %9195 = vmatpush1.bf16.msra.mxu0 %v7514
        %9196 = vmatprep.subr.bf16.mxu0 %v7540
        %9197 = vmatpush1.bf16.msra.mxu0 %v7539
        %9198 = vmatprep.subr.bf16.mxu0 %v7565
        %9199 = vmatpush1.bf16.msra.mxu0 %v7564
        %9200 = vmatprep.subr.bf16.mxu0 %v7590
        %9201 = vmatpush1.bf16.msra.mxu0 %v7589
        %9202 = vmatprep.subr.bf16.mxu0 %v7615
        %9203 = vmatpush1.bf16.msra.mxu0 %v7614
        %9204 = vmatprep.subr.bf16.mxu0 %v7640
        %9205 = vmatpush1.bf16.msra.mxu0 %v7639
        %9206 = vmatprep.mubr.bf16.mxu0 %v5464
        %9207 = vmatmul.mubr.bf16.gmra.mrb[0].mxu0 %v5463
        %v9208 = vpop.f32.mrb[0].mxu0
        %v9209 = vadd.f32 %v5986, %v9208
        %v9210 = vpop.f32.mrb[0].mxu0
        %v9211 = vadd.f32 %v5990, %v9210
        %v9212 = vpop.f32.mrb[0].mxu0
        %v9213 = vadd.f32 %v5986, %v9212
        %v9214 = vpop.f32.mrb[0].mxu0
        %v9215 = vadd.f32 %v5990, %v9214
        %9216 = vmatprep.mubr.bf16.mxu0 %v5466
        %9217 = vmatmul.mubr.bf16.gmra.mrb[0].mxu0 %v5465
        %v9218 = vpop.f32.mrb[0].mxu0
        %v9219 = vadd.f32 %v5986, %v9218
        %v9220 = vpop.f32.mrb[0].mxu0
        %v9221 = vadd.f32 %v5990, %v9220
        %v9222 = vpop.f32.mrb[0].mxu0
        %v9223 = vadd.f32 %v5986, %v9222
        %v9224 = vpop.f32.mrb[0].mxu0
        %v9225 = vadd.f32 %v5990, %v9224
        %9226 = vmatprep.mubr.bf16.mxu0 %v5468
        %9227 = vmatmul.mubr.bf16.gmra.mrb[0].mxu0 %v5467
        %v9228 = vpop.f32.mrb[0].mxu0
        %v9229 = vadd.f32 %v5986, %v9228
        %v9230 = vpop.f32.mrb[0].mxu0
        %v9231 = vadd.f32 %v5990, %v9230
        %v9232 = vpop.f32.mrb[0].mxu0
        %v9233 = vadd.f32 %v5986, %v9232
        %v9234 = vpop.f32.mrb[0].mxu0
        %v9235 = vadd.f32 %v5990, %v9234
        %9236 = vmatprep.mubr.bf16.mxu0 %v5470
        %9237 = vmatmul.mubr.bf16.gmra.mrb[0].mxu0 %v5469
        %v9238 = vpop.f32.mrb[0].mxu0
        %v9239 = vadd.f32 %v5986, %v9238
        %v9240 = vpop.f32.mrb[0].mxu0
        %v9241 = vadd.f32 %v5990, %v9240
        %v9242 = vpop.f32.mrb[0].mxu0
        %v9243 = vadd.f32 %v5986, %v9242
        %v9244 = vpop.f32.mrb[0].mxu0
        %v9245 = vadd.f32 %v5990, %v9244
        %9246 = vmatprep.mubr.bf16.mxu0 %v5472
        %9247 = vmatmul.mubr.bf16.gmra.mrb[0].mxu0 %v5471
        %v9248 = vpop.f32.mrb[0].mxu0
        %v9249 = vadd.f32 %v5986, %v9248
        %v9250 = vpop.f32.mrb[0].mxu0
        %v9251 = vadd.f32 %v5990, %v9250
        %v9252 = vpop.f32.mrb[0].mxu0
        %v9253 = vadd.f32 %v5986, %v9252
        %v9254 = vpop.f32.mrb[0].mxu0
        %v9255 = vadd.f32 %v5990, %v9254
        %9256 = vmatprep.mubr.bf16.mxu0 %v5474
        %9257 = vmatmul.mubr.bf16.gmra.mrb[0].mxu0 %v5473
        %v9258 = vpop.f32.mrb[0].mxu0
        %v9259 = vadd.f32 %v5986, %v9258
        %v9260 = vpop.f32.mrb[0].mxu0
        %v9261 = vadd.f32 %v5990, %v9260
        %v9262 = vpop.f32.mrb[0].mxu0
        %v9263 = vadd.f32 %v5986, %v9262
        %v9264 = vpop.f32.mrb[0].mxu0
        %v9265 = vadd.f32 %v5990, %v9264
        %9266 = vmatprep.mubr.bf16.mxu0 %v5476
        %9267 = vmatmul.mubr.bf16.gmra.mrb[0].mxu0 %v5475
        %v9268 = vpop.f32.mrb[0].mxu0
        %v9269 = vadd.f32 %v5986, %v9268
        %v9270 = vpop.f32.mrb[0].mxu0
        %v9271 = vadd.f32 %v5990, %v9270
        %v9272 = vpop.f32.mrb[0].mxu0
        %v9273 = vadd.f32 %v5986, %v9272
        %v9274 = vpop.f32.mrb[0].mxu0
        %v9275 = vadd.f32 %v5990, %v9274
        %9276 = vmatprep.mubr.bf16.mxu0 %v5478
        %9277 = vmatmul.mubr.bf16.gmra.mrb[0].mxu0 %v5477
        %v9278 = vpop.f32.mrb[0].mxu0
        %v9279 = vadd.f32 %v5986, %v9278
        %v9280 = vpop.f32.mrb[0].mxu0
        %v9281 = vadd.f32 %v5990, %v9280
        %v9282 = vpop.f32.mrb[0].mxu0
        %v9283 = vadd.f32 %v5986, %v9282
        %v9284 = vpop.f32.mrb[0].mxu0
        %v9285 = vadd.f32 %v5990, %v9284
        %9286 = vdwg.mxu0
        %9287 = vmatprep.subr.bf16.mxu0 %v7267
        %9288 = vmatpush1.bf16.msra.mxu0 %v7266
        %9289 = vmatprep.subr.bf16.mxu0 %v7292
        %9290 = vmatpush1.bf16.msra.mxu0 %v7291
        %9291 = vmatprep.subr.bf16.mxu0 %v7317
        %9292 = vmatpush1.bf16.msra.mxu0 %v7316
        %9293 = vmatprep.subr.bf16.mxu0 %v7342
        %9294 = vmatpush1.bf16.msra.mxu0 %v7341
        %9295 = vmatprep.subr.bf16.mxu0 %v7367
        %9296 = vmatpush1.bf16.msra.mxu0 %v7366
        %9297 = vmatprep.subr.bf16.mxu0 %v7392
        %9298 = vmatpush1.bf16.msra.mxu0 %v7391
        %9299 = vmatprep.subr.bf16.mxu0 %v7417
        %9300 = vmatpush1.bf16.msra.mxu0 %v7416
        %9301 = vmatprep.subr.bf16.mxu0 %v7442
        %9302 = vmatpush1.bf16.msra.mxu0 %v7441
        %9303 = vmatprep.subr.bf16.mxu0 %v7467
        %9304 = vmatpush1.bf16.msra.mxu0 %v7466
        %9305 = vmatprep.subr.bf16.mxu0 %v7492
        %9306 = vmatpush1.bf16.msra.mxu0 %v7491
        %9307 = vmatprep.subr.bf16.mxu0 %v7517
        %9308 = vmatpush1.bf16.msra.mxu0 %v7516
        %9309 = vmatprep.subr.bf16.mxu0 %v7542
        %9310 = vmatpush1.bf16.msra.mxu0 %v7541
        %9311 = vmatprep.subr.bf16.mxu0 %v7567
        %9312 = vmatpush1.bf16.msra.mxu0 %v7566
        %9313 = vmatprep.subr.bf16.mxu0 %v7592
        %9314 = vmatpush1.bf16.msra.mxu0 %v7591
        %9315 = vmatprep.subr.bf16.mxu0 %v7617
        %9316 = vmatpush1.bf16.msra.mxu0 %v7616
        %9317 = vmatprep.subr.bf16.mxu0 %v7642
        %9318 = vmatpush1.bf16.msra.mxu0 %v7641
        %9319 = vmatprep.mubr.bf16.mxu0 %v5464
        %9320 = vmatmul.mubr.bf16.gmra.mrb[0].mxu0 %v5463
        %v9321 = vpop.f32.mrb[0].mxu0
        %v9322 = vadd.f32 %v5994, %v9321
        %v9323 = vpop.f32.mrb[0].mxu0
        %v9324 = vadd.f32 %v5998, %v9323
        %v9325 = vpop.f32.mrb[0].mxu0
        %v9326 = vadd.f32 %v5994, %v9325
        %v9327 = vpop.f32.mrb[0].mxu0
        %v9328 = vadd.f32 %v5998, %v9327
        %9329 = vmatprep.mubr.bf16.mxu0 %v5466
        %9330 = vmatmul.mubr.bf16.gmra.mrb[0].mxu0 %v5465
        %v9331 = vpop.f32.mrb[0].mxu0
        %v9332 = vadd.f32 %v5994, %v9331
        %v9333 = vpop.f32.mrb[0].mxu0
        %v9334 = vadd.f32 %v5998, %v9333
        %v9335 = vpop.f32.mrb[0].mxu0
        %v9336 = vadd.f32 %v5994, %v9335
        %v9337 = vpop.f32.mrb[0].mxu0
        %v9338 = vadd.f32 %v5998, %v9337
        %9339 = vmatprep.mubr.bf16.mxu0 %v5468
        %9340 = vmatmul.mubr.bf16.gmra.mrb[0].mxu0 %v5467
        %v9341 = vpop.f32.mrb[0].mxu0
        %v9342 = vadd.f32 %v5994, %v9341
        %v9343 = vpop.f32.mrb[0].mxu0
        %v9344 = vadd.f32 %v5998, %v9343
        %v9345 = vpop.f32.mrb[0].mxu0
        %v9346 = vadd.f32 %v5994, %v9345
        %v9347 = vpop.f32.mrb[0].mxu0
        %v9348 = vadd.f32 %v5998, %v9347
        %9349 = vmatprep.mubr.bf16.mxu0 %v5470
        %9350 = vmatmul.mubr.bf16.gmra.mrb[0].mxu0 %v5469
        %v9351 = vpop.f32.mrb[0].mxu0
        %v9352 = vadd.f32 %v5994, %v9351
        %v9353 = vpop.f32.mrb[0].mxu0
        %v9354 = vadd.f32 %v5998, %v9353
        %v9355 = vpop.f32.mrb[0].mxu0
        %v9356 = vadd.f32 %v5994, %v9355
        %v9357 = vpop.f32.mrb[0].mxu0
        %v9358 = vadd.f32 %v5998, %v9357
        %9359 = vmatprep.mubr.bf16.mxu0 %v5472
        %9360 = vmatmul.mubr.bf16.gmra.mrb[0].mxu0 %v5471
        %v9361 = vpop.f32.mrb[0].mxu0
        %v9362 = vadd.f32 %v5994, %v9361
        %v9363 = vpop.f32.mrb[0].mxu0
        %v9364 = vadd.f32 %v5998, %v9363
        %v9365 = vpop.f32.mrb[0].mxu0
        %v9366 = vadd.f32 %v5994, %v9365
        %v9367 = vpop.f32.mrb[0].mxu0
        %v9368 = vadd.f32 %v5998, %v9367
        %9369 = vmatprep.mubr.bf16.mxu0 %v5474
        %9370 = vmatmul.mubr.bf16.gmra.mrb[0].mxu0 %v5473
        %v9371 = vpop.f32.mrb[0].mxu0
        %v9372 = vadd.f32 %v5994, %v9371
        %v9373 = vpop.f32.mrb[0].mxu0
        %v9374 = vadd.f32 %v5998, %v9373
        %v9375 = vpop.f32.mrb[0].mxu0
        %v9376 = vadd.f32 %v5994, %v9375
        %v9377 = vpop.f32.mrb[0].mxu0
        %v9378 = vadd.f32 %v5998, %v9377
        %9379 = vmatprep.mubr.bf16.mxu0 %v5476
        %9380 = vmatmul.mubr.bf16.gmra.mrb[0].mxu0 %v5475
        %v9381 = vpop.f32.mrb[0].mxu0
        %v9382 = vadd.f32 %v5994, %v9381
        %v9383 = vpop.f32.mrb[0].mxu0
        %v9384 = vadd.f32 %v5998, %v9383
        %v9385 = vpop.f32.mrb[0].mxu0
        %v9386 = vadd.f32 %v5994, %v9385
        %v9387 = vpop.f32.mrb[0].mxu0
        %v9388 = vadd.f32 %v5998, %v9387
        %9389 = vmatprep.mubr.bf16.mxu0 %v5478
        %9390 = vmatmul.mubr.bf16.gmra.mrb[0].mxu0 %v5477
        %v9391 = vpop.f32.mrb[0].mxu0
        %v9392 = vadd.f32 %v5994, %v9391
        %v9393 = vpop.f32.mrb[0].mxu0
        %v9394 = vadd.f32 %v5998, %v9393
        %v9395 = vpop.f32.mrb[0].mxu0
        %v9396 = vadd.f32 %v5994, %v9395
        %v9397 = vpop.f32.mrb[0].mxu0
        %v9398 = vadd.f32 %v5998, %v9397
        %9399 = vdwg.mxu0
        %9400 = vmatprep.subr.bf16.mxu0 0
        %9401 = vmatpush1.bf16.msra.mxu0 %v7268
        %9402 = vmatprep.subr.bf16.mxu0 0
        %9403 = vmatpush1.bf16.msra.mxu0 %v7293
        %9404 = vmatprep.subr.bf16.mxu0 0
        %9405 = vmatpush1.bf16.msra.mxu0 %v7318
        %9406 = vmatprep.subr.bf16.mxu0 0
        %9407 = vmatpush1.bf16.msra.mxu0 %v7343
        %9408 = vmatprep.subr.bf16.mxu0 0
        %9409 = vmatpush1.bf16.msra.mxu0 %v7368
        %9410 = vmatprep.subr.bf16.mxu0 0
        %9411 = vmatpush1.bf16.msra.mxu0 %v7393
        %9412 = vmatprep.subr.bf16.mxu0 0
        %9413 = vmatpush1.bf16.msra.mxu0 %v7418
        %9414 = vmatprep.subr.bf16.mxu0 0
        %9415 = vmatpush1.bf16.msra.mxu0 %v7443
        %9416 = vmatprep.subr.bf16.mxu0 0
        %9417 = vmatpush1.bf16.msra.mxu0 %v7468
        %9418 = vmatprep.subr.bf16.mxu0 0
        %9419 = vmatpush1.bf16.msra.mxu0 %v7493
        %9420 = vmatprep.subr.bf16.mxu0 0
        %9421 = vmatpush1.bf16.msra.mxu0 %v7518
        %9422 = vmatprep.subr.bf16.mxu0 0
        %9423 = vmatpush1.bf16.msra.mxu0 %v7543
        %9424 = vmatprep.subr.bf16.mxu0 0
        %9425 = vmatpush1.bf16.msra.mxu0 %v7568
        %9426 = vmatprep.subr.bf16.mxu0 0
        %9427 = vmatpush1.bf16.msra.mxu0 %v7593
        %9428 = vmatprep.subr.bf16.mxu0 0
        %9429 = vmatpush1.bf16.msra.mxu0 %v7618
        %9430 = vmatprep.subr.bf16.mxu0 0
        %9431 = vmatpush1.bf16.msra.mxu0 %v7643
        %9432 = vmatprep.mubr.bf16.mxu0 %v5464
        %9433 = vmatmul.mubr.bf16.gmra.mrb[0].mxu0 %v5463
        %v9434 = vpop.f32.mrb[0].mxu0
        %v9435 = vadd.f32 %v6002, %v9434
        %v9436 = vpop.f32.mrb[0].mxu0
        %v9437 = vpop.f32.mrb[0].mxu0
        %v9438 = vadd.f32 %v6002, %v9437
        %v9439 = vpop.f32.mrb[0].mxu0
        %9440 = vmatprep.mubr.bf16.mxu0 %v5466
        %9441 = vmatmul.mubr.bf16.gmra.mrb[0].mxu0 %v5465
        %v9442 = vpop.f32.mrb[0].mxu0
        %v9443 = vadd.f32 %v6002, %v9442
        %v9444 = vpop.f32.mrb[0].mxu0
        %v9445 = vpop.f32.mrb[0].mxu0
        %v9446 = vadd.f32 %v6002, %v9445
        %v9447 = vpop.f32.mrb[0].mxu0
        %9448 = vmatprep.mubr.bf16.mxu0 %v5468
        %9449 = vmatmul.mubr.bf16.gmra.mrb[0].mxu0 %v5467
        %v9450 = vpop.f32.mrb[0].mxu0
        %v9451 = vadd.f32 %v6002, %v9450
        %v9452 = vpop.f32.mrb[0].mxu0
        %v9453 = vpop.f32.mrb[0].mxu0
        %v9454 = vadd.f32 %v6002, %v9453
        %v9455 = vpop.f32.mrb[0].mxu0
        %9456 = vmatprep.mubr.bf16.mxu0 %v5470
        %9457 = vmatmul.mubr.bf16.gmra.mrb[0].mxu0 %v5469
        %v9458 = vpop.f32.mrb[0].mxu0
        %v9459 = vadd.f32 %v6002, %v9458
        %v9460 = vpop.f32.mrb[0].mxu0
        %v9461 = vpop.f32.mrb[0].mxu0
        %v9462 = vadd.f32 %v6002, %v9461
        %v9463 = vpop.f32.mrb[0].mxu0
        %9464 = vmatprep.mubr.bf16.mxu0 %v5472
        %9465 = vmatmul.mubr.bf16.gmra.mrb[0].mxu0 %v5471
        %v9466 = vpop.f32.mrb[0].mxu0
        %v9467 = vadd.f32 %v6002, %v9466
        %v9468 = vpop.f32.mrb[0].mxu0
        %v9469 = vpop.f32.mrb[0].mxu0
        %v9470 = vadd.f32 %v6002, %v9469
        %v9471 = vpop.f32.mrb[0].mxu0
        %9472 = vmatprep.mubr.bf16.mxu0 %v5474
        %9473 = vmatmul.mubr.bf16.gmra.mrb[0].mxu0 %v5473
        %v9474 = vpop.f32.mrb[0].mxu0
        %v9475 = vadd.f32 %v6002, %v9474
        %v9476 = vpop.f32.mrb[0].mxu0
        %v9477 = vpop.f32.mrb[0].mxu0
        %v9478 = vadd.f32 %v6002, %v9477
        %v9479 = vpop.f32.mrb[0].mxu0
        %9480 = vmatprep.mubr.bf16.mxu0 %v5476
        %9481 = vmatmul.mubr.bf16.gmra.mrb[0].mxu0 %v5475
        %v9482 = vpop.f32.mrb[0].mxu0
        %v9483 = vadd.f32 %v6002, %v9482
        %v9484 = vpop.f32.mrb[0].mxu0
        %v9485 = vpop.f32.mrb[0].mxu0
        %v9486 = vadd.f32 %v6002, %v9485
        %v9487 = vpop.f32.mrb[0].mxu0
        %9488 = vmatprep.mubr.bf16.mxu0 %v5478
        %9489 = vmatmul.mubr.bf16.gmra.mrb[0].mxu0 %v5477
        %v9490 = vpop.f32.mrb[0].mxu0
        %v9491 = vadd.f32 %v6002, %v9490
        %v9492 = vpop.f32.mrb[0].mxu0
        %v9493 = vpop.f32.mrb[0].mxu0
        %v9494 = vadd.f32 %v6002, %v9493
        %v9495 = vpop.f32.mrb[0].mxu0
        %9496 = vdwg.mxu0
        %9497 = vst [vmem:[%s373] sm:$0xff] %v8079
        %9498 = vst [vmem:[%s373 + $0x8] sm:$0xff] %v8081
        %9499 = vst [vmem:[%s373 + $0x10] sm:$0xff] %v8192
        %9500 = vst [vmem:[%s373 + $0x18] sm:$0xff] %v8194
        %9501 = vst [vmem:[%s373 + $0x20] sm:$0xff] %v8305
        %9502 = vst [vmem:[%s373 + $0x28] sm:$0xff] %v8307
        %9503 = vst [vmem:[%s373 + $0x30] sm:$0xff] %v8418
        %9504 = vst [vmem:[%s373 + $0x38] sm:$0xff] %v8420
        %9505 = vst [vmem:[%s373 + $0x40] sm:$0xff] %v8531
        %9506 = vst [vmem:[%s373 + $0x48] sm:$0xff] %v8533
        %9507 = vst [vmem:[%s373 + $0x50] sm:$0xff] %v8644
        %9508 = vst [vmem:[%s373 + $0x58] sm:$0xff] %v8646
        %9509 = vst [vmem:[%s373 + $0x60] sm:$0xff] %v8757
        %9510 = vst [vmem:[%s373 + $0x68] sm:$0xff] %v8759
        %9511 = vst [vmem:[%s373 + $0x70] sm:$0xff] %v8870
        %9512 = vst [vmem:[%s373 + $0x78] sm:$0xff] %v8872
        %9513 = vst [vmem:[%s373 + $0x80] sm:$0xff] %v8983
        %9514 = vst [vmem:[%s373 + $0x88] sm:$0xff] %v8985
        %9515 = vst [vmem:[%s373 + $0x90] sm:$0xff] %v9096
        %9516 = vst [vmem:[%s373 + $0x98] sm:$0xff] %v9098
        %9517 = vst [vmem:[%s373 + $0xa0] sm:$0xff] %v9209
        %9518 = vst [vmem:[%s373 + $0xa8] sm:$0xff] %v9211
        %9519 = vst [vmem:[%s373 + $0xb0] sm:$0xff] %v9322
        %9520 = vst [vmem:[%s373 + $0xb8] sm:$0xff] %v9324
        %vm9521 = vcmask 523264
        %9522 = vst.msk [vmem:[%s373 + $0xc0] sm:$0xff] %vm9521, %v9435
        %9523 = vst [vmem:[%s373 + $0xc8] sm:$0xff] %v8083
        %9524 = vst [vmem:[%s373 + $0xd0] sm:$0xff] %v8085
        %9525 = vst [vmem:[%s373 + $0xd8] sm:$0xff] %v8196
        %9526 = vst [vmem:[%s373 + $0xe0] sm:$0xff] %v8198
        %9527 = vst [vmem:[%s373 + $0xe8] sm:$0xff] %v8309
        %9528 = vst [vmem:[%s373 + $0xf0] sm:$0xff] %v8311
        %9529 = vst [vmem:[%s373 + $0xf8] sm:$0xff] %v8422
        %9530 = vst [vmem:[%s373 + $0x100] sm:$0xff] %v8424
        %9531 = vst [vmem:[%s373 + $0x108] sm:$0xff] %v8535
        %9532 = vst [vmem:[%s373 + $0x110] sm:$0xff] %v8537
        %9533 = vst [vmem:[%s373 + $0x118] sm:$0xff] %v8648
        %9534 = vst [vmem:[%s373 + $0x120] sm:$0xff] %v8650
        %9535 = vst [vmem:[%s373 + $0x128] sm:$0xff] %v8761
        %9536 = vst [vmem:[%s373 + $0x130] sm:$0xff] %v8763
        %9537 = vst [vmem:[%s373 + $0x138] sm:$0xff] %v8874
        %9538 = vst [vmem:[%s373 + $0x140] sm:$0xff] %v8876
        %9539 = vst [vmem:[%s373 + $0x148] sm:$0xff] %v8987
        %9540 = vst [vmem:[%s373 + $0x150] sm:$0xff] %v8989
        %9541 = vst [vmem:[%s373 + $0x158] sm:$0xff] %v9100
        %9542 = vst [vmem:[%s373 + $0x160] sm:$0xff] %v9102
        %9543 = vst [vmem:[%s373 + $0x168] sm:$0xff] %v9213
        %9544 = vst [vmem:[%s373 + $0x170] sm:$0xff] %v9215
        %9545 = vst [vmem:[%s373 + $0x178] sm:$0xff] %v9326
        %9546 = vst [vmem:[%s373 + $0x180] sm:$0xff] %v9328
        %9547 = vst.msk [vmem:[%s373 + $0x188] sm:$0xff] %vm9521, %v9438
        %9548 = vst [vmem:[%s373 + $0x190] sm:$0xff] %v8089
        %9549 = vst [vmem:[%s373 + $0x198] sm:$0xff] %v8091
        %9550 = vst [vmem:[%s373 + $0x1a0] sm:$0xff] %v8202
        %9551 = vst [vmem:[%s373 + $0x1a8] sm:$0xff] %v8204
        %9552 = vst [vmem:[%s373 + $0x1b0] sm:$0xff] %v8315
        %9553 = vst [vmem:[%s373 + $0x1b8] sm:$0xff] %v8317
        %9554 = vst [vmem:[%s373 + $0x1c0] sm:$0xff] %v8428
        %9555 = vst [vmem:[%s373 + $0x1c8] sm:$0xff] %v8430
        %9556 = vst [vmem:[%s373 + $0x1d0] sm:$0xff] %v8541
        %9557 = vst [vmem:[%s373 + $0x1d8] sm:$0xff] %v8543
        %9558 = vst [vmem:[%s373 + $0x1e0] sm:$0xff] %v8654
        %9559 = vst [vmem:[%s373 + $0x1e8] sm:$0xff] %v8656
        %9560 = vst [vmem:[%s373 + $0x1f0] sm:$0xff] %v8767
        %9561 = vst [vmem:[%s373 + $0x1f8] sm:$0xff] %v8769
        %9562 = vst [vmem:[%s373 + $0x200] sm:$0xff] %v8880
        %9563 = vst [vmem:[%s373 + $0x208] sm:$0xff] %v8882
        %9564 = vst [vmem:[%s373 + $0x210] sm:$0xff] %v8993
        %9565 = vst [vmem:[%s373 + $0x218] sm:$0xff] %v8995
        %9566 = vst [vmem:[%s373 + $0x220] sm:$0xff] %v9106
        %9567 = vst [vmem:[%s373 + $0x228] sm:$0xff] %v9108
        %9568 = vst [vmem:[%s373 + $0x230] sm:$0xff] %v9219
        %9569 = vst [vmem:[%s373 + $0x238] sm:$0xff] %v9221
        %9570 = vst [vmem:[%s373 + $0x240] sm:$0xff] %v9332
        %9571 = vst [vmem:[%s373 + $0x248] sm:$0xff] %v9334
        %9572 = vst.msk [vmem:[%s373 + $0x250] sm:$0xff] %vm9521, %v9443
        %9573 = vst [vmem:[%s373 + $0x258] sm:$0xff] %v8093
        %9574 = vst [vmem:[%s373 + $0x260] sm:$0xff] %v8095
        %9575 = vst [vmem:[%s373 + $0x268] sm:$0xff] %v8206
        %9576 = vst [vmem:[%s373 + $0x270] sm:$0xff] %v8208
        %9577 = vst [vmem:[%s373 + $0x278] sm:$0xff] %v8319
        %9578 = vst [vmem:[%s373 + $0x280] sm:$0xff] %v8321
        %9579 = vst [vmem:[%s373 + $0x288] sm:$0xff] %v8432
        %9580 = vst [vmem:[%s373 + $0x290] sm:$0xff] %v8434
        %9581 = vst [vmem:[%s373 + $0x298] sm:$0xff] %v8545
        %9582 = vst [vmem:[%s373 + $0x2a0] sm:$0xff] %v8547
        %9583 = vst [vmem:[%s373 + $0x2a8] sm:$0xff] %v8658
        %9584 = vst [vmem:[%s373 + $0x2b0] sm:$0xff] %v8660
        %9585 = vst [vmem:[%s373 + $0x2b8] sm:$0xff] %v8771
        %9586 = vst [vmem:[%s373 + $0x2c0] sm:$0xff] %v8773
        %9587 = vst [vmem:[%s373 + $0x2c8] sm:$0xff] %v8884
        %9588 = vst [vmem:[%s373 + $0x2d0] sm:$0xff] %v8886
        %9589 = vst [vmem:[%s373 + $0x2d8] sm:$0xff] %v8997
        %9590 = vst [vmem:[%s373 + $0x2e0] sm:$0xff] %v8999
        %9591 = vst [vmem:[%s373 + $0x2e8] sm:$0xff] %v9110
        %9592 = vst [vmem:[%s373 + $0x2f0] sm:$0xff] %v9112
        %9593 = vst [vmem:[%s373 + $0x2f8] sm:$0xff] %v9223
        %9594 = vst [vmem:[%s373 + $0x300] sm:$0xff] %v9225
        %9595 = vst [vmem:[%s373 + $0x308] sm:$0xff] %v9336
        %9596 = vst [vmem:[%s373 + $0x310] sm:$0xff] %v9338
        %9597 = vst.msk [vmem:[%s373 + $0x318] sm:$0xff] %vm9521, %v9446
        %9598 = vst [vmem:[%s373 + $0x320] sm:$0xff] %v8099
        %9599 = vst [vmem:[%s373 + $0x328] sm:$0xff] %v8101
        %9600 = vst [vmem:[%s373 + $0x330] sm:$0xff] %v8212
        %9601 = vst [vmem:[%s373 + $0x338] sm:$0xff] %v8214
        %9602 = vst [vmem:[%s373 + $0x340] sm:$0xff] %v8325
        %9603 = vst [vmem:[%s373 + $0x348] sm:$0xff] %v8327
        %9604 = vst [vmem:[%s373 + $0x350] sm:$0xff] %v8438
        %9605 = vst [vmem:[%s373 + $0x358] sm:$0xff] %v8440
        %9606 = vst [vmem:[%s373 + $0x360] sm:$0xff] %v8551
        %9607 = vst [vmem:[%s373 + $0x368] sm:$0xff] %v8553
        %9608 = vst [vmem:[%s373 + $0x370] sm:$0xff] %v8664
        %9609 = vst [vmem:[%s373 + $0x378] sm:$0xff] %v8666
        %9610 = vst [vmem:[%s373 + $0x380] sm:$0xff] %v8777
        %9611 = vst [vmem:[%s373 + $0x388] sm:$0xff] %v8779
        %9612 = vst [vmem:[%s373 + $0x390] sm:$0xff] %v8890
        %9613 = vst [vmem:[%s373 + $0x398] sm:$0xff] %v8892
        %9614 = vst [vmem:[%s373 + $0x3a0] sm:$0xff] %v9003
        %9615 = vst [vmem:[%s373 + $0x3a8] sm:$0xff] %v9005
        %9616 = vst [vmem:[%s373 + $0x3b0] sm:$0xff] %v9116
        %9617 = vst [vmem:[%s373 + $0x3b8] sm:$0xff] %v9118
        %9618 = vst [vmem:[%s373 + $0x3c0] sm:$0xff] %v9229
        %9619 = vst [vmem:[%s373 + $0x3c8] sm:$0xff] %v9231
        %9620 = vst [vmem:[%s373 + $0x3d0] sm:$0xff] %v9342
        %9621 = vst [vmem:[%s373 + $0x3d8] sm:$0xff] %v9344
        %9622 = vst.msk [vmem:[%s373 + $0x3e0] sm:$0xff] %vm9521, %v9451
        %9623 = vst [vmem:[%s373 + $0x3e8] sm:$0xff] %v8103
        %9624 = vst [vmem:[%s373 + $0x3f0] sm:$0xff] %v8105
        %9625 = vst [vmem:[%s373 + $0x3f8] sm:$0xff] %v8216
        %9626 = vst [vmem:[%s373 + $0x400] sm:$0xff] %v8218
        %9627 = vst [vmem:[%s373 + $0x408] sm:$0xff] %v8329
        %9628 = vst [vmem:[%s373 + $0x410] sm:$0xff] %v8331
        %9629 = vst [vmem:[%s373 + $0x418] sm:$0xff] %v8442
        %9630 = vst [vmem:[%s373 + $0x420] sm:$0xff] %v8444
        %9631 = vst [vmem:[%s373 + $0x428] sm:$0xff] %v8555
        %9632 = vst [vmem:[%s373 + $0x430] sm:$0xff] %v8557
        %9633 = vst [vmem:[%s373 + $0x438] sm:$0xff] %v8668
        %9634 = vst [vmem:[%s373 + $0x440] sm:$0xff] %v8670
        %9635 = vst [vmem:[%s373 + $0x448] sm:$0xff] %v8781
        %9636 = vst [vmem:[%s373 + $0x450] sm:$0xff] %v8783
        %9637 = vst [vmem:[%s373 + $0x458] sm:$0xff] %v8894
        %9638 = vst [vmem:[%s373 + $0x460] sm:$0xff] %v8896
        %9639 = vst [vmem:[%s373 + $0x468] sm:$0xff] %v9007
        %9640 = vst [vmem:[%s373 + $0x470] sm:$0xff] %v9009
        %9641 = vst [vmem:[%s373 + $0x478] sm:$0xff] %v9120
        %9642 = vst [vmem:[%s373 + $0x480] sm:$0xff] %v9122
        %9643 = vst [vmem:[%s373 + $0x488] sm:$0xff] %v9233
        %9644 = vst [vmem:[%s373 + $0x490] sm:$0xff] %v9235
        %9645 = vst [vmem:[%s373 + $0x498] sm:$0xff] %v9346
        %9646 = vst [vmem:[%s373 + $0x4a0] sm:$0xff] %v9348
        %9647 = vst.msk [vmem:[%s373 + $0x4a8] sm:$0xff] %vm9521, %v9454
        %9648 = vst [vmem:[%s373 + $0x4b0] sm:$0xff] %v8109
        %9649 = vst [vmem:[%s373 + $0x4b8] sm:$0xff] %v8111
        %9650 = vst [vmem:[%s373 + $0x4c0] sm:$0xff] %v8222
        %9651 = vst [vmem:[%s373 + $0x4c8] sm:$0xff] %v8224
        %9652 = vst [vmem:[%s373 + $0x4d0] sm:$0xff] %v8335
        %9653 = vst [vmem:[%s373 + $0x4d8] sm:$0xff] %v8337
        %9654 = vst [vmem:[%s373 + $0x4e0] sm:$0xff] %v8448
        %9655 = vst [vmem:[%s373 + $0x4e8] sm:$0xff] %v8450
        %9656 = vst [vmem:[%s373 + $0x4f0] sm:$0xff] %v8561
        %9657 = vst [vmem:[%s373 + $0x4f8] sm:$0xff] %v8563
        %9658 = vst [vmem:[%s373 + $0x500] sm:$0xff] %v8674
        %9659 = vst [vmem:[%s373 + $0x508] sm:$0xff] %v8676
        %9660 = vst [vmem:[%s373 + $0x510] sm:$0xff] %v8787
        %9661 = vst [vmem:[%s373 + $0x518] sm:$0xff] %v8789
        %9662 = vst [vmem:[%s373 + $0x520] sm:$0xff] %v8900
        %9663 = vst [vmem:[%s373 + $0x528] sm:$0xff] %v8902
        %9664 = vst [vmem:[%s373 + $0x530] sm:$0xff] %v9013
        %9665 = vst [vmem:[%s373 + $0x538] sm:$0xff] %v9015
        %9666 = vst [vmem:[%s373 + $0x540] sm:$0xff] %v9126
        %9667 = vst [vmem:[%s373 + $0x548] sm:$0xff] %v9128
        %9668 = vst [vmem:[%s373 + $0x550] sm:$0xff] %v9239
        %9669 = vst [vmem:[%s373 + $0x558] sm:$0xff] %v9241
        %9670 = vst [vmem:[%s373 + $0x560] sm:$0xff] %v9352
        %9671 = vst [vmem:[%s373 + $0x568] sm:$0xff] %v9354
        %9672 = vst.msk [vmem:[%s373 + $0x570] sm:$0xff] %vm9521, %v9459
        %9673 = vst [vmem:[%s373 + $0x578] sm:$0xff] %v8113
        %9674 = vst [vmem:[%s373 + $0x580] sm:$0xff] %v8115
        %9675 = vst [vmem:[%s373 + $0x588] sm:$0xff] %v8226
        %9676 = vst [vmem:[%s373 + $0x590] sm:$0xff] %v8228
        %9677 = vst [vmem:[%s373 + $0x598] sm:$0xff] %v8339
        %9678 = vst [vmem:[%s373 + $0x5a0] sm:$0xff] %v8341
        %9679 = vst [vmem:[%s373 + $0x5a8] sm:$0xff] %v8452
        %9680 = vst [vmem:[%s373 + $0x5b0] sm:$0xff] %v8454
        %9681 = vst [vmem:[%s373 + $0x5b8] sm:$0xff] %v8565
        %9682 = vst [vmem:[%s373 + $0x5c0] sm:$0xff] %v8567
        %9683 = vst [vmem:[%s373 + $0x5c8] sm:$0xff] %v8678
        %9684 = vst [vmem:[%s373 + $0x5d0] sm:$0xff] %v8680
        %9685 = vst [vmem:[%s373 + $0x5d8] sm:$0xff] %v8791
        %9686 = vst [vmem:[%s373 + $0x5e0] sm:$0xff] %v8793
        %9687 = vst [vmem:[%s373 + $0x5e8] sm:$0xff] %v8904
        %9688 = vst [vmem:[%s373 + $0x5f0] sm:$0xff] %v8906
        %9689 = vst [vmem:[%s373 + $0x5f8] sm:$0xff] %v9017
        %9690 = vst [vmem:[%s373 + $0x600] sm:$0xff] %v9019
        %9691 = vst [vmem:[%s373 + $0x608] sm:$0xff] %v9130
        %9692 = vst [vmem:[%s373 + $0x610] sm:$0xff] %v9132
        %9693 = vst [vmem:[%s373 + $0x618] sm:$0xff] %v9243
        %9694 = vst [vmem:[%s373 + $0x620] sm:$0xff] %v9245
        %9695 = vst [vmem:[%s373 + $0x628] sm:$0xff] %v9356
        %9696 = vst [vmem:[%s373 + $0x630] sm:$0xff] %v9358
        %9697 = vst.msk [vmem:[%s373 + $0x638] sm:$0xff] %vm9521, %v9462
        %9698 = vst [vmem:[%s373 + $0x640] sm:$0xff] %v8119
        %9699 = vst [vmem:[%s373 + $0x648] sm:$0xff] %v8121
        %9700 = vst [vmem:[%s373 + $0x650] sm:$0xff] %v8232
        %9701 = vst [vmem:[%s373 + $0x658] sm:$0xff] %v8234
        %9702 = vst [vmem:[%s373 + $0x660] sm:$0xff] %v8345
        %9703 = vst [vmem:[%s373 + $0x668] sm:$0xff] %v8347
        %9704 = vst [vmem:[%s373 + $0x670] sm:$0xff] %v8458
        %9705 = vst [vmem:[%s373 + $0x678] sm:$0xff] %v8460
        %9706 = vst [vmem:[%s373 + $0x680] sm:$0xff] %v8571
        %9707 = vst [vmem:[%s373 + $0x688] sm:$0xff] %v8573
        %9708 = vst [vmem:[%s373 + $0x690] sm:$0xff] %v8684
        %9709 = vst [vmem:[%s373 + $0x698] sm:$0xff] %v8686
        %9710 = vst [vmem:[%s373 + $0x6a0] sm:$0xff] %v8797
        %9711 = vst [vmem:[%s373 + $0x6a8] sm:$0xff] %v8799
        %9712 = vst [vmem:[%s373 + $0x6b0] sm:$0xff] %v8910
        %9713 = vst [vmem:[%s373 + $0x6b8] sm:$0xff] %v8912
        %9714 = vst [vmem:[%s373 + $0x6c0] sm:$0xff] %v9023
        %9715 = vst [vmem:[%s373 + $0x6c8] sm:$0xff] %v9025
        %9716 = vst [vmem:[%s373 + $0x6d0] sm:$0xff] %v9136
        %9717 = vst [vmem:[%s373 + $0x6d8] sm:$0xff] %v9138
        %9718 = vst [vmem:[%s373 + $0x6e0] sm:$0xff] %v9249
        %9719 = vst [vmem:[%s373 + $0x6e8] sm:$0xff] %v9251
        %9720 = vst [vmem:[%s373 + $0x6f0] sm:$0xff] %v9362
        %9721 = vst [vmem:[%s373 + $0x6f8] sm:$0xff] %v9364
        %9722 = vst.msk [vmem:[%s373 + $0x700] sm:$0xff] %vm9521, %v9467
        %9723 = vst [vmem:[%s373 + $0x708] sm:$0xff] %v8123
        %9724 = vst [vmem:[%s373 + $0x710] sm:$0xff] %v8125
        %9725 = vst [vmem:[%s373 + $0x718] sm:$0xff] %v8236
        %9726 = vst [vmem:[%s373 + $0x720] sm:$0xff] %v8238
        %9727 = vst [vmem:[%s373 + $0x728] sm:$0xff] %v8349
        %9728 = vst [vmem:[%s373 + $0x730] sm:$0xff] %v8351
        %9729 = vst [vmem:[%s373 + $0x738] sm:$0xff] %v8462
        %9730 = vst [vmem:[%s373 + $0x740] sm:$0xff] %v8464
        %9731 = vst [vmem:[%s373 + $0x748] sm:$0xff] %v8575
        %9732 = vst [vmem:[%s373 + $0x750] sm:$0xff] %v8577
        %9733 = vst [vmem:[%s373 + $0x758] sm:$0xff] %v8688
        %9734 = vst [vmem:[%s373 + $0x760] sm:$0xff] %v8690
        %9735 = vst [vmem:[%s373 + $0x768] sm:$0xff] %v8801
        %9736 = vst [vmem:[%s373 + $0x770] sm:$0xff] %v8803
        %9737 = vst [vmem:[%s373 + $0x778] sm:$0xff] %v8914
        %9738 = vst [vmem:[%s373 + $0x780] sm:$0xff] %v8916
        %9739 = vst [vmem:[%s373 + $0x788] sm:$0xff] %v9027
        %9740 = vst [vmem:[%s373 + $0x790] sm:$0xff] %v9029
        %9741 = vst [vmem:[%s373 + $0x798] sm:$0xff] %v9140
        %9742 = vst [vmem:[%s373 + $0x7a0] sm:$0xff] %v9142
        %9743 = vst [vmem:[%s373 + $0x7a8] sm:$0xff] %v9253
        %9744 = vst [vmem:[%s373 + $0x7b0] sm:$0xff] %v9255
        %9745 = vst [vmem:[%s373 + $0x7b8] sm:$0xff] %v9366
        %9746 = vst [vmem:[%s373 + $0x7c0] sm:$0xff] %v9368
        %9747 = vst.msk [vmem:[%s373 + $0x7c8] sm:$0xff] %vm9521, %v9470
        %9748 = vst [vmem:[%s373 + $0x7d0] sm:$0xff] %v8129
        %9749 = vst [vmem:[%s373 + $0x7d8] sm:$0xff] %v8131
        %9750 = vst [vmem:[%s373 + $0x7e0] sm:$0xff] %v8242
        %9751 = vst [vmem:[%s373 + $0x7e8] sm:$0xff] %v8244
        %9752 = vst [vmem:[%s373 + $0x7f0] sm:$0xff] %v8355
        %9753 = vst [vmem:[%s373 + $0x7f8] sm:$0xff] %v8357
        %9754 = vst [vmem:[%s373 + $0x800] sm:$0xff] %v8468
        %9755 = vst [vmem:[%s373 + $0x808] sm:$0xff] %v8470
        %9756 = vst [vmem:[%s373 + $0x810] sm:$0xff] %v8581
        %9757 = vst [vmem:[%s373 + $0x818] sm:$0xff] %v8583
        %9758 = vst [vmem:[%s373 + $0x820] sm:$0xff] %v8694
        %9759 = vst [vmem:[%s373 + $0x828] sm:$0xff] %v8696
        %9760 = vst [vmem:[%s373 + $0x830] sm:$0xff] %v8807
        %9761 = vst [vmem:[%s373 + $0x838] sm:$0xff] %v8809
        %9762 = vst [vmem:[%s373 + $0x840] sm:$0xff] %v8920
        %9763 = vst [vmem:[%s373 + $0x848] sm:$0xff] %v8922
        %9764 = vst [vmem:[%s373 + $0x850] sm:$0xff] %v9033
        %9765 = vst [vmem:[%s373 + $0x858] sm:$0xff] %v9035
        %9766 = vst [vmem:[%s373 + $0x860] sm:$0xff] %v9146
        %9767 = vst [vmem:[%s373 + $0x868] sm:$0xff] %v9148
        %9768 = vst [vmem:[%s373 + $0x870] sm:$0xff] %v9259
        %9769 = vst [vmem:[%s373 + $0x878] sm:$0xff] %v9261
        %9770 = vst [vmem:[%s373 + $0x880] sm:$0xff] %v9372
        %9771 = vst [vmem:[%s373 + $0x888] sm:$0xff] %v9374
        %9772 = vst.msk [vmem:[%s373 + $0x890] sm:$0xff] %vm9521, %v9475
        %9773 = vst [vmem:[%s373 + $0x898] sm:$0xff] %v8133
        %9774 = vst [vmem:[%s373 + $0x8a0] sm:$0xff] %v8135
        %9775 = vst [vmem:[%s373 + $0x8a8] sm:$0xff] %v8246
        %9776 = vst [vmem:[%s373 + $0x8b0] sm:$0xff] %v8248
        %9777 = vst [vmem:[%s373 + $0x8b8] sm:$0xff] %v8359
        %9778 = vst [vmem:[%s373 + $0x8c0] sm:$0xff] %v8361
        %9779 = vst [vmem:[%s373 + $0x8c8] sm:$0xff] %v8472
        %9780 = vst [vmem:[%s373 + $0x8d0] sm:$0xff] %v8474
        %9781 = vst [vmem:[%s373 + $0x8d8] sm:$0xff] %v8585
        %9782 = vst [vmem:[%s373 + $0x8e0] sm:$0xff] %v8587
        %9783 = vst [vmem:[%s373 + $0x8e8] sm:$0xff] %v8698
        %9784 = vst [vmem:[%s373 + $0x8f0] sm:$0xff] %v8700
        %9785 = vst [vmem:[%s373 + $0x8f8] sm:$0xff] %v8811
        %9786 = vst [vmem:[%s373 + $0x900] sm:$0xff] %v8813
        %9787 = vst [vmem:[%s373 + $0x908] sm:$0xff] %v8924
        %9788 = vst [vmem:[%s373 + $0x910] sm:$0xff] %v8926
        %9789 = vst [vmem:[%s373 + $0x918] sm:$0xff] %v9037
        %9790 = vst [vmem:[%s373 + $0x920] sm:$0xff] %v9039
        %9791 = vst [vmem:[%s373 + $0x928] sm:$0xff] %v9150
        %9792 = vst [vmem:[%s373 + $0x930] sm:$0xff] %v9152
        %9793 = vst [vmem:[%s373 + $0x938] sm:$0xff] %v9263
        %9794 = vst [vmem:[%s373 + $0x940] sm:$0xff] %v9265
        %9795 = vst [vmem:[%s373 + $0x948] sm:$0xff] %v9376
        %9796 = vst [vmem:[%s373 + $0x950] sm:$0xff] %v9378
        %9797 = vst.msk [vmem:[%s373 + $0x958] sm:$0xff] %vm9521, %v9478
        %9798 = vst [vmem:[%s373 + $0x960] sm:$0xff] %v8139
        %9799 = vst [vmem:[%s373 + $0x968] sm:$0xff] %v8141
        %9800 = vst [vmem:[%s373 + $0x970] sm:$0xff] %v8252
        %9801 = vst [vmem:[%s373 + $0x978] sm:$0xff] %v8254
        %9802 = vst [vmem:[%s373 + $0x980] sm:$0xff] %v8365
        %9803 = vst [vmem:[%s373 + $0x988] sm:$0xff] %v8367
        %9804 = vst [vmem:[%s373 + $0x990] sm:$0xff] %v8478
        %9805 = vst [vmem:[%s373 + $0x998] sm:$0xff] %v8480
        %9806 = vst [vmem:[%s373 + $0x9a0] sm:$0xff] %v8591
        %9807 = vst [vmem:[%s373 + $0x9a8] sm:$0xff] %v8593
        %9808 = vst [vmem:[%s373 + $0x9b0] sm:$0xff] %v8704
        %9809 = vst [vmem:[%s373 + $0x9b8] sm:$0xff] %v8706
        %9810 = vst [vmem:[%s373 + $0x9c0] sm:$0xff] %v8817
        %9811 = vst [vmem:[%s373 + $0x9c8] sm:$0xff] %v8819
        %9812 = vst [vmem:[%s373 + $0x9d0] sm:$0xff] %v8930
        %9813 = vst [vmem:[%s373 + $0x9d8] sm:$0xff] %v8932
        %9814 = vst [vmem:[%s373 + $0x9e0] sm:$0xff] %v9043
        %9815 = vst [vmem:[%s373 + $0x9e8] sm:$0xff] %v9045
        %9816 = vst [vmem:[%s373 + $0x9f0] sm:$0xff] %v9156
        %9817 = vst [vmem:[%s373 + $0x9f8] sm:$0xff] %v9158
        %9818 = vst [vmem:[%s373 + $0xa00] sm:$0xff] %v9269
        %9819 = vst [vmem:[%s373 + $0xa08] sm:$0xff] %v9271
        %9820 = vst [vmem:[%s373 + $0xa10] sm:$0xff] %v9382
        %9821 = vst [vmem:[%s373 + $0xa18] sm:$0xff] %v9384
        %9822 = vst.msk [vmem:[%s373 + $0xa20] sm:$0xff] %vm9521, %v9483
        %9823 = vst [vmem:[%s373 + $0xa28] sm:$0xff] %v8143
        %9824 = vst [vmem:[%s373 + $0xa30] sm:$0xff] %v8145
        %9825 = vst [vmem:[%s373 + $0xa38] sm:$0xff] %v8256
        %9826 = vst [vmem:[%s373 + $0xa40] sm:$0xff] %v8258
        %9827 = vst [vmem:[%s373 + $0xa48] sm:$0xff] %v8369
        %9828 = vst [vmem:[%s373 + $0xa50] sm:$0xff] %v8371
        %9829 = vst [vmem:[%s373 + $0xa58] sm:$0xff] %v8482
        %9830 = vst [vmem:[%s373 + $0xa60] sm:$0xff] %v8484
        %9831 = vst [vmem:[%s373 + $0xa68] sm:$0xff] %v8595
        %9832 = vst [vmem:[%s373 + $0xa70] sm:$0xff] %v8597
        %9833 = vst [vmem:[%s373 + $0xa78] sm:$0xff] %v8708
        %9834 = vst [vmem:[%s373 + $0xa80] sm:$0xff] %v8710
        %9835 = vst [vmem:[%s373 + $0xa88] sm:$0xff] %v8821
        %9836 = vst [vmem:[%s373 + $0xa90] sm:$0xff] %v8823
        %9837 = vst [vmem:[%s373 + $0xa98] sm:$0xff] %v8934
        %9838 = vst [vmem:[%s373 + $0xaa0] sm:$0xff] %v8936
        %9839 = vst [vmem:[%s373 + $0xaa8] sm:$0xff] %v9047
        %9840 = vst [vmem:[%s373 + $0xab0] sm:$0xff] %v9049
        %9841 = vst [vmem:[%s373 + $0xab8] sm:$0xff] %v9160
        %9842 = vst [vmem:[%s373 + $0xac0] sm:$0xff] %v9162
        %9843 = vst [vmem:[%s373 + $0xac8] sm:$0xff] %v9273
        %9844 = vst [vmem:[%s373 + $0xad0] sm:$0xff] %v9275
        %9845 = vst [vmem:[%s373 + $0xad8] sm:$0xff] %v9386
        %9846 = vst [vmem:[%s373 + $0xae0] sm:$0xff] %v9388
        %9847 = vst.msk [vmem:[%s373 + $0xae8] sm:$0xff] %vm9521, %v9486
        %9848 = vst [vmem:[%s373 + $0xaf0] sm:$0xff] %v8149
        %9849 = vst [vmem:[%s373 + $0xaf8] sm:$0xff] %v8151
        %9850 = vst [vmem:[%s373 + $0xb00] sm:$0xff] %v8262
        %9851 = vst [vmem:[%s373 + $0xb08] sm:$0xff] %v8264
        %9852 = vst [vmem:[%s373 + $0xb10] sm:$0xff] %v8375
        %9853 = vst [vmem:[%s373 + $0xb18] sm:$0xff] %v8377
        %9854 = vst [vmem:[%s373 + $0xb20] sm:$0xff] %v8488
        %9855 = vst [vmem:[%s373 + $0xb28] sm:$0xff] %v8490
        %9856 = vst [vmem:[%s373 + $0xb30] sm:$0xff] %v8601
        %9857 = vst [vmem:[%s373 + $0xb38] sm:$0xff] %v8603
        %9858 = vst [vmem:[%s373 + $0xb40] sm:$0xff] %v8714
        %9859 = vst [vmem:[%s373 + $0xb48] sm:$0xff] %v8716
        %9860 = vst [vmem:[%s373 + $0xb50] sm:$0xff] %v8827
        %9861 = vst [vmem:[%s373 + $0xb58] sm:$0xff] %v8829
        %9862 = vst [vmem:[%s373 + $0xb60] sm:$0xff] %v8940
        %9863 = vst [vmem:[%s373 + $0xb68] sm:$0xff] %v8942
        %9864 = vst [vmem:[%s373 + $0xb70] sm:$0xff] %v9053
        %9865 = vst [vmem:[%s373 + $0xb78] sm:$0xff] %v9055
        %9866 = vst [vmem:[%s373 + $0xb80] sm:$0xff] %v9166
        %9867 = vst [vmem:[%s373 + $0xb88] sm:$0xff] %v9168
        %9868 = vst [vmem:[%s373 + $0xb90] sm:$0xff] %v9279
        %9869 = vst [vmem:[%s373 + $0xb98] sm:$0xff] %v9281
        %9870 = vst [vmem:[%s373 + $0xba0] sm:$0xff] %v9392
        %9871 = vst [vmem:[%s373 + $0xba8] sm:$0xff] %v9394
        %9872 = vst.msk [vmem:[%s373 + $0xbb0] sm:$0xff] %vm9521, %v9491
        %9873 = vst [vmem:[%s373 + $0xbb8] sm:$0xff] %v8153
        %9874 = vst [vmem:[%s373 + $0xbc0] sm:$0xff] %v8155
        %9875 = vst [vmem:[%s373 + $0xbc8] sm:$0xff] %v8266
        %9876 = vst [vmem:[%s373 + $0xbd0] sm:$0xff] %v8268
        %9877 = vst [vmem:[%s373 + $0xbd8] sm:$0xff] %v8379
        %9878 = vst [vmem:[%s373 + $0xbe0] sm:$0xff] %v8381
        %9879 = vst [vmem:[%s373 + $0xbe8] sm:$0xff] %v8492
        %9880 = vst [vmem:[%s373 + $0xbf0] sm:$0xff] %v8494
        %9881 = vst [vmem:[%s373 + $0xbf8] sm:$0xff] %v8605
        %9882 = vst [vmem:[%s373 + $0xc00] sm:$0xff] %v8607
        %9883 = vst [vmem:[%s373 + $0xc08] sm:$0xff] %v8718
        %9884 = vst [vmem:[%s373 + $0xc10] sm:$0xff] %v8720
        %9885 = vst [vmem:[%s373 + $0xc18] sm:$0xff] %v8831
        %9886 = vst [vmem:[%s373 + $0xc20] sm:$0xff] %v8833
        %9887 = vst [vmem:[%s373 + $0xc28] sm:$0xff] %v8944
        %9888 = vst [vmem:[%s373 + $0xc30] sm:$0xff] %v8946
        %9889 = vst [vmem:[%s373 + $0xc38] sm:$0xff] %v9057
        %9890 = vst [vmem:[%s373 + $0xc40] sm:$0xff] %v9059
        %9891 = vst [vmem:[%s373 + $0xc48] sm:$0xff] %v9170
        %9892 = vst [vmem:[%s373 + $0xc50] sm:$0xff] %v9172
        %9893 = vst [vmem:[%s373 + $0xc58] sm:$0xff] %v9283
        %9894 = vst [vmem:[%s373 + $0xc60] sm:$0xff] %v9285
        %9895 = vst [vmem:[%s373 + $0xc68] sm:$0xff] %v9396
        %9896 = vst [vmem:[%s373 + $0xc70] sm:$0xff] %v9398
        %9897 = vst.msk [vmem:[%s373 + $0xc78] sm:$0xff] %vm9521, %v9494
      $region76: #{tpu_custom_call.1} parent=55 // pred_fallthru
        _
      %p9898 = scmp.eq.s32.totalorder %s24, 2
      %s9899 = scalar_select %p9898, %s25, 0
      %s9900 = smul.u32 16, %s9899
      %p9901 = scmp.lt.s32.totalorder %s9900, 47
      %s9902 = scalar_select %p9901, %s9900, 47
      %s9903 = smul.addr %s9902, 25
      %s9904 = smul.addr %s9903, 8
      %s9905 = scalar_lea.vmem %s9, %s9904
      // Predicated region
      $region81: #{tpu_custom_call.1} parent=55 // pred_check
        %p9906 = pneg %p252
      $region82: #{tpu_custom_call.1} parent=55 // pred_check_branch
        %9908 = sbr.rel (%p9906) target = $region84
      $region83: #{tpu_custom_call.1} parent=55 // pred_region
        %p9909 = scmp.eq.s32.totalorder %s24, 2
        %s9910 = scalar_select %p9909, %s25, 0
        %s9911 = smul.u32 16, %s9910
      $region84: #{tpu_custom_call.1} parent=55 // pred_fallthru
        _
    $region56: #{tpu_custom_call.1} parent=5 // pred_fallthru
      _
    %p9912 = scmp.le.s32.totalorder 2, %s15
    // Predicated region
    $region85: #{tpu_custom_call.1} parent=5 // pred_check
      %p9913 = pneg %p9912
    $region86: #{tpu_custom_call.1} parent=5 // pred_check_branch
      %9915 = sbr.rel (%p9913) target = $region88
    $region87: #{tpu_custom_call.1} parent=5 // pred_region
      %s9916 = ssub.s32 %s15, 2
      // Predicated region
      $region89: #{tpu_custom_call.1} parent=87 // pred_check
        %p9917 = pneg %p258
      $region90: #{tpu_custom_call.1} parent=87 // pred_check_branch
        %9919 = sbr.rel (%p9917) target = $region92
      $region91: #{tpu_custom_call.1} parent=87 // pred_region
        %p9920 = scmp.eq.s32.totalorder %s26, 2
        %s9921 = scalar_select %p9920, %s27, 0
        %s9922 = smul.u32 16, %s9921
        %p9923 = scmp.lt.s32.totalorder %s9922, 47
        %s9924 = scalar_select %p9923, %s9922, 47
        %s9925 = smul.addr %s9924, 25
        %s9926 = smul.addr %s9925, 8
        %s9927 = scalar_lea.vmem %s9, %s9926
      $region92: #{tpu_custom_call.1} parent=87 // pred_fallthru
        _
    $region88: #{tpu_custom_call.1} parent=5 // pred_fallthru
      _
  $region6: #{tpu_custom_call.1} parent=0 // loop_footer
    %s19 = sadd.s32 1, %s15
  $region7: #{tpu_custom_call.1} parent=0 // loop_footer_branch
    %14 = sbr.rel target = $region3
  $region8: #{tpu_custom_call.1} parent=0 // loop_exit
    _

</llo_original>
